<compile_context>
chip_gen: v5e
topology: v5e:2x2
jax: 0.10.0
libtpu: 0.0.40
codegen_flags: <defaults>
</compile_context>

<pallas_src>
import functools

import jax
import jax.numpy as jnp
from jax.experimental import pallas as pl
from jax.experimental.pallas import tpu as pltpu

D_IN, D_H, D_OUT = 28 * 28, 1200, 10
D_OUT_PAD = 128                      # lane-dense padded fc3 output width
P_IN, P_HID = 0.2, 0.5


def _round_up(n, m):
    return ((n + m - 1) // m) * m


def _hash_bits(shape, salt):
    """Counter-based uint32 hash (murmur-style finalizer). Portable: plain jnp ops only."""
    rows = jax.lax.broadcasted_iota(jnp.uint32, shape, 0)
    cols = jax.lax.broadcasted_iota(jnp.uint32, shape, 1)
    x = (rows * jnp.uint32(0x9E3779B1)) ^ (cols * jnp.uint32(0x85EBCA77)) ^ salt
    x = x * jnp.uint32(0xC2B2AE3D)
    x = x ^ (x >> 15)
    x = x * jnp.uint32(0x27D4EB2F)
    x = x ^ (x >> 13)
    x = x * jnp.uint32(0x165667B1)
    x = x ^ (x >> 16)
    return x


def _dropout(x, p, salt):
    """Inverted dropout: keep iff bits >= p*2^32, scale kept values by 1/(1-p)."""
    thresh = jnp.uint32(min(int(p * (2 ** 32)), 2 ** 32 - 1))
    bits = _hash_bits(x.shape, salt)
    scale = jnp.float32(1.0 / (1.0 - p))
    return jnp.where(bits >= thresh, x * scale, jnp.float32(0.0))


def teacher_kernel(seed_ref, x_ref, w1_ref, b1_ref, w2_ref, b2_ref,
                   w3_ref, b3_ref, out_ref, *, training: bool):
    pid = pl.program_id(0)
    # Per-tile salt so different batch tiles draw independent dropout masks.
    base_salt = (seed_ref[0].astype(jnp.uint32)
                 + pid.astype(jnp.uint32) * jnp.uint32(0x632BE59B))

    def maybe_dropout(v, p, tag):
        if not training:
            return v
        return _dropout(v, p, base_salt ^ jnp.uint32(tag))

    x = x_ref[...].astype(jnp.float32)
    x = maybe_dropout(x, P_IN, 0x11111111)

    h = jnp.dot(x.astype(jnp.bfloat16), w1_ref[...],
                preferred_element_type=jnp.float32) + b1_ref[...]
    h = maybe_dropout(jnp.maximum(h, 0.0), P_HID, 0x22222222)

    h = jnp.dot(h.astype(jnp.bfloat16), w2_ref[...],
                preferred_element_type=jnp.float32) + b2_ref[...]
    h = maybe_dropout(jnp.maximum(h, 0.0), P_HID, 0x33333333)

    out = jnp.dot(h.astype(jnp.bfloat16), w3_ref[...],
                  preferred_element_type=jnp.float32) + b3_ref[...]
    out_ref[...] = out.astype(out_ref.dtype)


def init_params(key):
    """Deterministic init mimicking nn.Linear (U(-1/sqrt(fan_in), 1/sqrt(fan_in)))."""
    ks = jax.random.split(key, 6)

    def linear(kw, kb, fan_in, fan_out):
        bound = 1.0 / jnp.sqrt(jnp.float32(fan_in))
        w = jax.random.uniform(kw, (fan_in, fan_out), jnp.float32, -bound, bound)
        b = jax.random.uniform(kb, (fan_out,), jnp.float32, -bound, bound)
        return w, b

    w1, b1 = linear(ks[0], ks[1], D_IN, D_H)
    w2, b2 = linear(ks[2], ks[3], D_H, D_H)
    w3, b3 = linear(ks[4], ks[5], D_H, D_OUT)
    return (w1, b1, w2, b2, w3, b3)


def teacher_forward(x, params, seed: int, *, training: bool = True, tile_m: int = 256):
    w1, b1, w2, b2, w3, b3 = params
    B = x.shape[0]
    x2 = x.reshape(B, D_IN).astype(jnp.float32)       # x.view(-1, 28*28)

    # Batch tiling: tile rows (multiple of 8), pad batch to a whole number of tiles.
    tm = min(tile_m, _round_up(B, 8))
    Bp = _round_up(B, tm)
    if Bp != B:
        x2 = jnp.pad(x2, ((0, Bp - B), (0, 0)))

    # bf16 weights (f32 accumulation happens in the kernel); fc3 padded to 128 lanes.
    w1b = w1.astype(jnp.bfloat16)
    w2b = w2.astype(jnp.bfloat16)
    w3b = jnp.pad(w3, ((0, 0), (0, D_OUT_PAD - D_OUT))).astype(jnp.bfloat16)
    b3p = jnp.pad(b3, (0, D_OUT_PAD - D_OUT)).astype(jnp.float32)

    seed_arr = jnp.asarray([seed], dtype=jnp.int32)
    grid = (Bp // tm,)

    out = pl.pallas_call(
        functools.partial(teacher_kernel, training=training),
        out_shape=jax.ShapeDtypeStruct((Bp, D_OUT_PAD), jnp.float32),
        grid=grid,
        in_specs=[
            pl.BlockSpec(memory_space=pltpu.MemorySpace.SMEM),          # seed
            pl.BlockSpec((tm, D_IN), lambda i: (i, 0)),                 # x tile
            pl.BlockSpec((D_IN, D_H), lambda i: (0, 0)),                # w1 (resident)
            pl.BlockSpec((1, D_H), lambda i: (0, 0)),                   # b1
            pl.BlockSpec((D_H, D_H), lambda i: (0, 0)),                 # w2 (resident)
            pl.BlockSpec((1, D_H), lambda i: (0, 0)),                   # b2
            pl.BlockSpec((D_H, D_OUT_PAD), lambda i: (0, 0)),           # w3 (resident)
            pl.BlockSpec((1, D_OUT_PAD), lambda i: (0, 0)),             # b3
        ],
        out_specs=pl.BlockSpec((tm, D_OUT_PAD), lambda i: (i, 0)),
        compiler_params=pltpu.CompilerParams(
            dimension_semantics=("parallel",),
            vmem_limit_bytes=32 * 1024 * 1024,
        ),
    )(seed_arr, x2, w1b, b1.reshape(1, D_H), w2b, b2.reshape(1, D_H),
      w3b, b3p.reshape(1, D_OUT_PAD))

    return out[:B, :D_OUT]


if __name__ == "__main__":
    key = jax.random.PRNGKey(0)
    k_param, k_x = jax.random.split(key)

    params = init_params(k_param)
    # MNIST-like NCHW input, batch=2
    x = jax.random.normal(k_x, (2, 1, 28, 28), dtype=jnp.float32)

    out = teacher_forward(x, params, seed=1234, training=True)
    out = jax.block_until_ready(out)

    assert out.shape == (2, D_OUT), out.shape
    assert bool(jnp.all(jnp.isfinite(out)))
    print("KERNEL_OK")
</pallas_src>

<mosaic_0001>
module attributes {stable_mosaic.version = 11 : i64} {
  func.func @teacher_kernel(%arg0: i32, %arg1: memref<1xi32, #tpu.memory_space<smem>>, %arg2: memref<8x784xf32, #tpu.memory_space<vmem>>, %arg3: memref<784x1200xbf16, #tpu.memory_space<vmem>>, %arg4: memref<1x1200xf32, #tpu.memory_space<vmem>>, %arg5: memref<1200x1200xbf16, #tpu.memory_space<vmem>>, %arg6: memref<1x1200xf32, #tpu.memory_space<vmem>>, %arg7: memref<1200x128xbf16, #tpu.memory_space<vmem>>, %arg8: memref<1x128xf32, #tpu.memory_space<vmem>>, %arg9: memref<8x128xf32, #tpu.memory_space<vmem>>) attributes {dimension_semantics = [#tpu.dimension_semantics<parallel>], iteration_bounds = array<i64: 1>, scalar_prefetch = 0 : i64, scratch_operands = 0 : i64, tpu.core_type = #tpu.core_type<tc>, window_params = [{transform_indices = @transform_0, window_bounds = array<i64: 1>}, {transform_indices = @transform_1, window_bounds = array<i64: 8, 784>}, {pipeline_mode = #tpu.pipeline_mode<synchronous>, transform_indices = @transform_2, window_bounds = array<i64: 784, 1200>}, {pipeline_mode = #tpu.pipeline_mode<synchronous>, transform_indices = @transform_3, window_bounds = array<i64: 1, 1200>}, {pipeline_mode = #tpu.pipeline_mode<synchronous>, transform_indices = @transform_4, window_bounds = array<i64: 1200, 1200>}, {pipeline_mode = #tpu.pipeline_mode<synchronous>, transform_indices = @transform_5, window_bounds = array<i64: 1, 1200>}, {pipeline_mode = #tpu.pipeline_mode<synchronous>, transform_indices = @transform_6, window_bounds = array<i64: 1200, 128>}, {pipeline_mode = #tpu.pipeline_mode<synchronous>, transform_indices = @transform_7, window_bounds = array<i64: 1, 128>}, {transform_indices = @transform_8, window_bounds = array<i64: 8, 128>}]} {
    %c0 = arith.constant 0 : index
    %0 = memref.load %arg1[%c0] : memref<1xi32, #tpu.memory_space<smem>>
    %c1663821211_i32 = arith.constant 1663821211 : i32
    %1 = arith.muli %arg0, %c1663821211_i32 : i32
    %2 = arith.addi %0, %1 : i32
    %c0_0 = arith.constant 0 : index
    %c0_1 = arith.constant 0 : index
    %3 = vector.load %arg2[%c0_0, %c0_1] : memref<8x784xf32, #tpu.memory_space<vmem>>, vector<8x784xf32>
    %c286331153_i32 = arith.constant 286331153 : i32
    %4 = arith.xori %2, %c286331153_i32 : i32
    %5 = tpu.iota {dimensions = array<i32: 0>} : vector<8x784xi32>
    %6 = tpu.iota {dimensions = array<i32: 1>} : vector<8x784xi32>
    %c-1640531535_i32 = arith.constant -1640531535 : i32
    %7 = vector.broadcast %c-1640531535_i32 : i32 to vector<8x784xi32>
    %8 = arith.muli %5, %7 : vector<8x784xi32>
    %c-2048144777_i32 = arith.constant -2048144777 : i32
    %9 = vector.broadcast %c-2048144777_i32 : i32 to vector<8x784xi32>
    %10 = arith.muli %6, %9 : vector<8x784xi32>
    %11 = arith.xori %8, %10 : vector<8x784xi32>
    %12 = vector.broadcast %4 : i32 to vector<8x784xi32>
    %13 = arith.xori %11, %12 : vector<8x784xi32>
    %c-1028477379_i32 = arith.constant -1028477379 : i32
    %14 = vector.broadcast %c-1028477379_i32 : i32 to vector<8x784xi32>
    %15 = arith.muli %13, %14 : vector<8x784xi32>
    %c15_i32 = arith.constant 15 : i32
    %16 = vector.broadcast %c15_i32 : i32 to vector<8x784xi32>
    %17 = arith.shrui %15, %16 : vector<8x784xi32>
    %18 = arith.xori %15, %17 : vector<8x784xi32>
    %c668265263_i32 = arith.constant 668265263 : i32
    %19 = vector.broadcast %c668265263_i32 : i32 to vector<8x784xi32>
    %20 = arith.muli %18, %19 : vector<8x784xi32>
    %c13_i32 = arith.constant 13 : i32
    %21 = vector.broadcast %c13_i32 : i32 to vector<8x784xi32>
    %22 = arith.shrui %20, %21 : vector<8x784xi32>
    %23 = arith.xori %20, %22 : vector<8x784xi32>
    %c374761393_i32 = arith.constant 374761393 : i32
    %24 = vector.broadcast %c374761393_i32 : i32 to vector<8x784xi32>
    %25 = arith.muli %23, %24 : vector<8x784xi32>
    %c16_i32 = arith.constant 16 : i32
    %26 = vector.broadcast %c16_i32 : i32 to vector<8x784xi32>
    %27 = arith.shrui %25, %26 : vector<8x784xi32>
    %28 = arith.xori %25, %27 : vector<8x784xi32>
    %c858993459_i32 = arith.constant 858993459 : i32
    %29 = vector.broadcast %c858993459_i32 : i32 to vector<8x784xi32>
    %30 = arith.cmpi uge, %28, %29 : vector<8x784xi32>
    %cst = arith.constant 1.250000e+00 : f32
    %31 = vector.broadcast %cst : f32 to vector<8x784xf32>
    %32 = arith.mulf %3, %31 : vector<8x784xf32>
    %cst_2 = arith.constant 0.000000e+00 : f32
    %33 = vector.broadcast %cst_2 : f32 to vector<8x784xf32>
    %34 = arith.select %30, %32, %33 : vector<8x784xi1>, vector<8x784xf32>
    %35 = arith.truncf %34 : vector<8x784xf32> to vector<8x784xbf16>
    %c0_3 = arith.constant 0 : index
    %c0_4 = arith.constant 0 : index
    %36 = vector.load %arg3[%c0_3, %c0_4] : memref<784x1200xbf16, #tpu.memory_space<vmem>>, vector<784x1200xbf16>
    %cst_5 = arith.constant dense<0.000000e+00> : vector<8x1200xf32>
    %37 = tpu.matmul %35, %36, %cst_5 {dimension_numbers = #tpu.dot_dimension_numbers<[1], [0], [0], [1], [0, 0, 1, 1], [], []>} : vector<8x784xbf16>, vector<784x1200xbf16>, vector<8x1200xf32> -> vector<8x1200xf32>
    %c0_6 = arith.constant 0 : index
    %c0_7 = arith.constant 0 : index
    %38 = vector.load %arg4[%c0_6, %c0_7] : memref<1x1200xf32, #tpu.memory_space<vmem>>, vector<1x1200xf32>
    %39 = vector.broadcast %38 : vector<1x1200xf32> to vector<8x1200xf32>
    %40 = arith.addf %37, %39 : vector<8x1200xf32>
    %cst_8 = arith.constant 0.000000e+00 : f32
    %41 = vector.broadcast %cst_8 : f32 to vector<8x1200xf32>
    %42 = arith.maximumf %40, %41 : vector<8x1200xf32>
    %c572662306_i32 = arith.constant 572662306 : i32
    %43 = arith.xori %2, %c572662306_i32 : i32
    %44 = tpu.iota {dimensions = array<i32: 0>} : vector<8x1200xi32>
    %45 = tpu.iota {dimensions = array<i32: 1>} : vector<8x1200xi32>
    %c-1640531535_i32_9 = arith.constant -1640531535 : i32
    %46 = vector.broadcast %c-1640531535_i32_9 : i32 to vector<8x1200xi32>
    %47 = arith.muli %44, %46 : vector<8x1200xi32>
    %c-2048144777_i32_10 = arith.constant -2048144777 : i32
    %48 = vector.broadcast %c-2048144777_i32_10 : i32 to vector<8x1200xi32>
    %49 = arith.muli %45, %48 : vector<8x1200xi32>
    %50 = arith.xori %47, %49 : vector<8x1200xi32>
    %51 = vector.broadcast %43 : i32 to vector<8x1200xi32>
    %52 = arith.xori %50, %51 : vector<8x1200xi32>
    %c-1028477379_i32_11 = arith.constant -1028477379 : i32
    %53 = vector.broadcast %c-1028477379_i32_11 : i32 to vector<8x1200xi32>
    %54 = arith.muli %52, %53 : vector<8x1200xi32>
    %c15_i32_12 = arith.constant 15 : i32
    %55 = vector.broadcast %c15_i32_12 : i32 to vector<8x1200xi32>
    %56 = arith.shrui %54, %55 : vector<8x1200xi32>
    %57 = arith.xori %54, %56 : vector<8x1200xi32>
    %c668265263_i32_13 = arith.constant 668265263 : i32
    %58 = vector.broadcast %c668265263_i32_13 : i32 to vector<8x1200xi32>
    %59 = arith.muli %57, %58 : vector<8x1200xi32>
    %c13_i32_14 = arith.constant 13 : i32
    %60 = vector.broadcast %c13_i32_14 : i32 to vector<8x1200xi32>
    %61 = arith.shrui %59, %60 : vector<8x1200xi32>
    %62 = arith.xori %59, %61 : vector<8x1200xi32>
    %c374761393_i32_15 = arith.constant 374761393 : i32
    %63 = vector.broadcast %c374761393_i32_15 : i32 to vector<8x1200xi32>
    %64 = arith.muli %62, %63 : vector<8x1200xi32>
    %c16_i32_16 = arith.constant 16 : i32
    %65 = vector.broadcast %c16_i32_16 : i32 to vector<8x1200xi32>
    %66 = arith.shrui %64, %65 : vector<8x1200xi32>
    %67 = arith.xori %64, %66 : vector<8x1200xi32>
    %c-2147483648_i32 = arith.constant -2147483648 : i32
    %68 = vector.broadcast %c-2147483648_i32 : i32 to vector<8x1200xi32>
    %69 = arith.cmpi uge, %67, %68 : vector<8x1200xi32>
    %cst_17 = arith.constant 2.000000e+00 : f32
    %70 = vector.broadcast %cst_17 : f32 to vector<8x1200xf32>
    %71 = arith.mulf %42, %70 : vector<8x1200xf32>
    %cst_18 = arith.constant 0.000000e+00 : f32
    %72 = vector.broadcast %cst_18 : f32 to vector<8x1200xf32>
    %73 = arith.select %69, %71, %72 : vector<8x1200xi1>, vector<8x1200xf32>
    %74 = arith.truncf %73 : vector<8x1200xf32> to vector<8x1200xbf16>
    %c0_19 = arith.constant 0 : index
    %c0_20 = arith.constant 0 : index
    %75 = vector.load %arg5[%c0_19, %c0_20] : memref<1200x1200xbf16, #tpu.memory_space<vmem>>, vector<1200x1200xbf16>
    %cst_21 = arith.constant dense<0.000000e+00> : vector<8x1200xf32>
    %76 = tpu.matmul %74, %75, %cst_21 {dimension_numbers = #tpu.dot_dimension_numbers<[1], [0], [0], [1], [0, 0, 1, 1], [], []>} : vector<8x1200xbf16>, vector<1200x1200xbf16>, vector<8x1200xf32> -> vector<8x1200xf32>
    %c0_22 = arith.constant 0 : index
    %c0_23 = arith.constant 0 : index
    %77 = vector.load %arg6[%c0_22, %c0_23] : memref<1x1200xf32, #tpu.memory_space<vmem>>, vector<1x1200xf32>
    %78 = vector.broadcast %77 : vector<1x1200xf32> to vector<8x1200xf32>
    %79 = arith.addf %76, %78 : vector<8x1200xf32>
    %cst_24 = arith.constant 0.000000e+00 : f32
    %80 = vector.broadcast %cst_24 : f32 to vector<8x1200xf32>
    %81 = arith.maximumf %79, %80 : vector<8x1200xf32>
    %c858993459_i32_25 = arith.constant 858993459 : i32
    %82 = arith.xori %2, %c858993459_i32_25 : i32
    %83 = tpu.iota {dimensions = array<i32: 0>} : vector<8x1200xi32>
    %84 = tpu.iota {dimensions = array<i32: 1>} : vector<8x1200xi32>
    %c-1640531535_i32_26 = arith.constant -1640531535 : i32
    %85 = vector.broadcast %c-1640531535_i32_26 : i32 to vector<8x1200xi32>
    %86 = arith.muli %83, %85 : vector<8x1200xi32>
    %c-2048144777_i32_27 = arith.constant -2048144777 : i32
    %87 = vector.broadcast %c-2048144777_i32_27 : i32 to vector<8x1200xi32>
    %88 = arith.muli %84, %87 : vector<8x1200xi32>
    %89 = arith.xori %86, %88 : vector<8x1200xi32>
    %90 = vector.broadcast %82 : i32 to vector<8x1200xi32>
    %91 = arith.xori %89, %90 : vector<8x1200xi32>
    %c-1028477379_i32_28 = arith.constant -1028477379 : i32
    %92 = vector.broadcast %c-1028477379_i32_28 : i32 to vector<8x1200xi32>
    %93 = arith.muli %91, %92 : vector<8x1200xi32>
    %c15_i32_29 = arith.constant 15 : i32
    %94 = vector.broadcast %c15_i32_29 : i32 to vector<8x1200xi32>
    %95 = arith.shrui %93, %94 : vector<8x1200xi32>
    %96 = arith.xori %93, %95 : vector<8x1200xi32>
    %c668265263_i32_30 = arith.constant 668265263 : i32
    %97 = vector.broadcast %c668265263_i32_30 : i32 to vector<8x1200xi32>
    %98 = arith.muli %96, %97 : vector<8x1200xi32>
    %c13_i32_31 = arith.constant 13 : i32
    %99 = vector.broadcast %c13_i32_31 : i32 to vector<8x1200xi32>
    %100 = arith.shrui %98, %99 : vector<8x1200xi32>
    %101 = arith.xori %98, %100 : vector<8x1200xi32>
    %c374761393_i32_32 = arith.constant 374761393 : i32
    %102 = vector.broadcast %c374761393_i32_32 : i32 to vector<8x1200xi32>
    %103 = arith.muli %101, %102 : vector<8x1200xi32>
    %c16_i32_33 = arith.constant 16 : i32
    %104 = vector.broadcast %c16_i32_33 : i32 to vector<8x1200xi32>
    %105 = arith.shrui %103, %104 : vector<8x1200xi32>
    %106 = arith.xori %103, %105 : vector<8x1200xi32>
    %c-2147483648_i32_34 = arith.constant -2147483648 : i32
    %107 = vector.broadcast %c-2147483648_i32_34 : i32 to vector<8x1200xi32>
    %108 = arith.cmpi uge, %106, %107 : vector<8x1200xi32>
    %cst_35 = arith.constant 2.000000e+00 : f32
    %109 = vector.broadcast %cst_35 : f32 to vector<8x1200xf32>
    %110 = arith.mulf %81, %109 : vector<8x1200xf32>
    %cst_36 = arith.constant 0.000000e+00 : f32
    %111 = vector.broadcast %cst_36 : f32 to vector<8x1200xf32>
    %112 = arith.select %108, %110, %111 : vector<8x1200xi1>, vector<8x1200xf32>
    %113 = arith.truncf %112 : vector<8x1200xf32> to vector<8x1200xbf16>
    %c0_37 = arith.constant 0 : index
    %c0_38 = arith.constant 0 : index
    %114 = vector.load %arg7[%c0_37, %c0_38] : memref<1200x128xbf16, #tpu.memory_space<vmem>>, vector<1200x128xbf16>
    %cst_39 = arith.constant dense<0.000000e+00> : vector<8x128xf32>
    %115 = tpu.matmul %113, %114, %cst_39 {dimension_numbers = #tpu.dot_dimension_numbers<[1], [0], [0], [1], [0, 0, 1, 1], [], []>} : vector<8x1200xbf16>, vector<1200x128xbf16>, vector<8x128xf32> -> vector<8x128xf32>
    %c0_40 = arith.constant 0 : index
    %c0_41 = arith.constant 0 : index
    %116 = vector.load %arg8[%c0_40, %c0_41] : memref<1x128xf32, #tpu.memory_space<vmem>>, vector<1x128xf32>
    %117 = vector.broadcast %116 : vector<1x128xf32> to vector<8x128xf32>
    %118 = arith.addf %115, %117 : vector<8x128xf32>
    %c0_42 = arith.constant 0 : index
    %c0_43 = arith.constant 0 : index
    %119 = vector.load %arg9[%c0_42, %c0_43] : memref<8x128xf32, #tpu.memory_space<vmem>>, vector<8x128xf32>
    tpu.vector_store %arg9[%c0_42, %c0_43], %118 {strides = array<i32>} : memref<8x128xf32, #tpu.memory_space<vmem>>, vector<8x128xf32>,
    return
  }
  func.func @transform_0(%arg0: i32) -> i32 {
    %c0_i32 = arith.constant 0 : i32
    %c0_i32_0 = arith.constant 0 : i32
    return %c0_i32 : i32
  }
  func.func @transform_1(%arg0: i32) -> (i32, i32) {
    %c0_i32 = arith.constant 0 : i32
    %c0_i32_0 = arith.constant 0 : i32
    return %arg0, %c0_i32 : i32, i32
  }
  func.func @transform_2(%arg0: i32) -> (i32, i32) {
    %c0_i32 = arith.constant 0 : i32
    %c0_i32_0 = arith.constant 0 : i32
    %c0_i32_1 = arith.constant 0 : i32
    return %c0_i32, %c0_i32_0 : i32, i32
  }
  func.func @transform_3(%arg0: i32) -> (i32, i32) {
    %c0_i32 = arith.constant 0 : i32
    %c0_i32_0 = arith.constant 0 : i32
    %c0_i32_1 = arith.constant 0 : i32
    return %c0_i32, %c0_i32_0 : i32, i32
  }
  func.func @transform_4(%arg0: i32) -> (i32, i32) {
    %c0_i32 = arith.constant 0 : i32
    %c0_i32_0 = arith.constant 0 : i32
    %c0_i32_1 = arith.constant 0 : i32
    return %c0_i32, %c0_i32_0 : i32, i32
  }
  func.func @transform_5(%arg0: i32) -> (i32, i32) {
    %c0_i32 = arith.constant 0 : i32
    %c0_i32_0 = arith.constant 0 : i32
    %c0_i32_1 = arith.constant 0 : i32
    return %c0_i32, %c0_i32_0 : i32, i32
  }
  func.func @transform_6(%arg0: i32) -> (i32, i32) {
    %c0_i32 = arith.constant 0 : i32
    %c0_i32_0 = arith.constant 0 : i32
    %c0_i32_1 = arith.constant 0 : i32
    return %c0_i32, %c0_i32_0 : i32, i32
  }
  func.func @transform_7(%arg0: i32) -> (i32, i32) {
    %c0_i32 = arith.constant 0 : i32
    %c0_i32_0 = arith.constant 0 : i32
    %c0_i32_1 = arith.constant 0 : i32
    return %c0_i32, %c0_i32_0 : i32, i32
  }
  func.func @transform_8(%arg0: i32) -> (i32, i32) {
    %c0_i32 = arith.constant 0 : i32
    %c0_i32_0 = arith.constant 0 : i32
    return %arg0, %c0_i32 : i32, i32
  }
}

</mosaic_0001>

<llo_original>
// kernel: tpu_custom_call.1
$region0: #{tpu_custom_call.1}
  #allocation0 [shape = 'u32[]', space=smem, size = 0x4, offset = 0x4, fixed_abs, tag = 'smem constant byte address 0x4 - core index']
  #allocation1 [shape = 'u32[72,128]{1,0:T(1,128)}', space=vmem, size = 0x9000, scoped, tag = 'internal scratch']
  #allocation2 [shape = 's32[1]{0:T(128)S(6)}', space=smem, size = 0x200, scoped, tag = 'scoped memory for tpu_custom_call.1']
  %s0 = inlined_call_operand.<no memory space> [shape: s32[1], index: 0, kind: input, shape index: {}]
  %s1 = inlined_call_operand.hbm [shape: f32[8,784], index: 1, kind: input, shape index: {}]
  %s2 = inlined_call_operand.hbm [shape: bf16[784,1200], index: 2, kind: input, shape index: {}]
  %s3 = inlined_call_operand.hbm [shape: f32[1,1200], index: 3, kind: input, shape index: {}]
  %s4 = inlined_call_operand.hbm [shape: bf16[1200,1200], index: 4, kind: input, shape index: {}]
  %s5 = inlined_call_operand.hbm [shape: f32[1,1200], index: 5, kind: input, shape index: {}]
  %s6 = inlined_call_operand.hbm [shape: bf16[1200,128], index: 6, kind: input, shape index: {}]
  %s7 = inlined_call_operand.hbm [shape: f32[1,128], index: 7, kind: input, shape index: {}]
  %s8 = inlined_call_operand.hbm [shape: f32[8,128], index: 8, kind: output, shape index: {}]
  %s9 = sld [smem:[#allocation0]]
  $region70: #{tpu_custom_call.1} parent=0
    _
  %s11 = ssub.s32 1, %s9
  %s12 = scalar_select 0, %s11, %s9
  %13 = sst [smem:[#allocation2]] %s0
  $region1: #{tpu_custom_call.1} parent=0
    #allocation3 [shape = 'u8[28672]{0}', space=vmem, size = 0x7000, scoped, tag = 'input window, operand 1, single buffered']
    #allocation4 [shape = 's32[1]{0}', space=sflag, size = 0x4, scoped, tag = 'scoped memory for tpu_custom_call.1']
    #allocation5 [shape = 's32[1]{0}', space=sflag, size = 0x4, scoped, tag = 'scoped memory for tpu_custom_call.1']
    #allocation6 [shape = 'u8[2007040]{0}', space=vmem, size = 0x1ea000, scoped, tag = 'input window, operand 2, single buffered']
    #allocation7 [shape = 's32[1]{0}', space=sflag, size = 0x4, scoped, tag = 'scoped memory for tpu_custom_call.1']
    #allocation8 [shape = 'u8[5120]{0}', space=vmem, size = 0x1400, scoped, tag = 'input window, operand 3, single buffered']
    #allocation9 [shape = 'u8[3072000]{0}', space=vmem, size = 0x2ee000, scoped, tag = 'input window, operand 4, single buffered']
    #allocation10 [shape = 's32[1]{0}', space=sflag, size = 0x4, scoped, tag = 'scoped memory for tpu_custom_call.1']
    #allocation11 [shape = 'u8[5120]{0}', space=vmem, size = 0x1400, scoped, tag = 'input window, operand 5, single buffered']
    #allocation12 [shape = 'u8[307200]{0}', space=vmem, size = 0x4b000, scoped, tag = 'input window, operand 6, single buffered']
    #allocation13 [shape = 's32[1]{0}', space=sflag, size = 0x4, scoped, tag = 'scoped memory for tpu_custom_call.1']
    #allocation14 [shape = 'u8[512]{0}', space=vmem, size = 0x400, scoped, tag = 'input window, operand 7, single buffered']
    #allocation15 [shape = 'u8[4096]{0}', space=vmem, size = 0x1000, scoped, tag = 'output window, operand 0, single buffered']
    %14 = vsyncpa [#allocation4], 0
    %15 = vsyncpa [#allocation7], 0
    %16 = vsyncpa [#allocation10], 0
    %17 = vsyncpa [#allocation13], 0
    %18 = vsyncpa [#allocation5], 0
    // Predicated region
    $region2: #{tpu_custom_call.1} parent=1 // pred_check
      _
    $region3: #{tpu_custom_call.1} parent=1 // pred_check_branch
      %20 = sbr.rel (0) target = $region5
    $region4: #{tpu_custom_call.1} parent=1 // pred_region
      _
    $region5: #{tpu_custom_call.1} parent=1 // pred_fallthru
      _
    // Predicated region
    $region6: #{tpu_custom_call.1} parent=1 // pred_check
      _
    $region7: #{tpu_custom_call.1} parent=1 // pred_check_branch
      %22 = sbr.rel (0) target = $region9
    $region8: #{tpu_custom_call.1} parent=1 // pred_region
      %24 = vsyncadd [#allocation4], 0
      %s26 = sshll.u32 %s1, 4
      %s27 = int_to_ptr.hbm [resolvable:$true] %s26
      %s28 = sshll.u32 [#allocation3], 4
      %s29 = int_to_ptr.vmem [resolvable:$true] %s28
      %31 = dma.hbm_to_vmem [thread:$0]  %s27, 896, %s29, [#allocation4]
    $region9: #{tpu_custom_call.1} parent=1 // pred_fallthru
      _
    // Predicated region
    $region10: #{tpu_custom_call.1} parent=1 // pred_check
      _
    $region11: #{tpu_custom_call.1} parent=1 // pred_check_branch
      %33 = sbr.rel (0) target = $region13
    $region12: #{tpu_custom_call.1} parent=1 // pred_region
      %35 = vsyncadd [#allocation7], 0
      %s36 = sshll.u32 %s2, 4
      %s37 = int_to_ptr.hbm [resolvable:$true] %s36
      %s38 = sshll.u32 [#allocation6], 4
      %s39 = int_to_ptr.vmem [resolvable:$true] %s38
      %44 = dma.hbm_to_vmem [thread:$0]  %s37, 62720, %s39, [#allocation7], 640, 640, 40
    $region13: #{tpu_custom_call.1} parent=1 // pred_fallthru
      _
    // Predicated region
    $region14: #{tpu_custom_call.1} parent=1 // pred_check
      _
    $region15: #{tpu_custom_call.1} parent=1 // pred_check_branch
      %46 = sbr.rel (0) target = $region17
    $region16: #{tpu_custom_call.1} parent=1 // pred_region
      %48 = vsyncadd [#allocation7], 0
      %s50 = sshll.u32 %s3, 4
      %s51 = int_to_ptr.hbm [resolvable:$true] %s50
      %s52 = sshll.u32 [#allocation8], 4
      %s53 = int_to_ptr.vmem [resolvable:$true] %s52
      %55 = dma.hbm_to_vmem [thread:$0]  %s51, 160, %s53, [#allocation7]
    $region17: #{tpu_custom_call.1} parent=1 // pred_fallthru
      _
    // Predicated region
    $region18: #{tpu_custom_call.1} parent=1 // pred_check
      _
    $region19: #{tpu_custom_call.1} parent=1 // pred_check_branch
      %57 = sbr.rel (0) target = $region21
    $region20: #{tpu_custom_call.1} parent=1 // pred_region
      %59 = vsyncadd [#allocation10], 0
      %s60 = sshll.u32 %s4, 4
      %s61 = int_to_ptr.hbm [resolvable:$true] %s60
      %s62 = sshll.u32 [#allocation9], 4
      %s63 = int_to_ptr.vmem [resolvable:$true] %s62
      %68 = dma.hbm_to_vmem [thread:$0]  %s61, 96000, %s63, [#allocation10], 640, 640, 40
    $region21: #{tpu_custom_call.1} parent=1 // pred_fallthru
      _
    // Predicated region
    $region22: #{tpu_custom_call.1} parent=1 // pred_check
      _
    $region23: #{tpu_custom_call.1} parent=1 // pred_check_branch
      %70 = sbr.rel (0) target = $region25
    $region24: #{tpu_custom_call.1} parent=1 // pred_region
      %72 = vsyncadd [#allocation10], 0
      %s74 = sshll.u32 %s5, 4
      %s75 = int_to_ptr.hbm [resolvable:$true] %s74
      %s76 = sshll.u32 [#allocation11], 4
      %s77 = int_to_ptr.vmem [resolvable:$true] %s76
      %79 = dma.hbm_to_vmem [thread:$0]  %s75, 160, %s77, [#allocation10]
    $region25: #{tpu_custom_call.1} parent=1 // pred_fallthru
      _
    // Predicated region
    $region26: #{tpu_custom_call.1} parent=1 // pred_check
      _
    $region27: #{tpu_custom_call.1} parent=1 // pred_check_branch
      %81 = sbr.rel (0) target = $region29
    $region28: #{tpu_custom_call.1} parent=1 // pred_region
      %83 = vsyncadd [#allocation13], 0
      %s84 = sshll.u32 %s6, 4
      %s85 = int_to_ptr.hbm [resolvable:$true] %s84
      %s86 = sshll.u32 [#allocation12], 4
      %s87 = int_to_ptr.vmem [resolvable:$true] %s86
      %92 = dma.hbm_to_vmem [thread:$0]  %s85, 9600, %s87, [#allocation13], 64, 64, 4
    $region29: #{tpu_custom_call.1} parent=1 // pred_fallthru
      _
    // Predicated region
    $region30: #{tpu_custom_call.1} parent=1 // pred_check
      _
    $region31: #{tpu_custom_call.1} parent=1 // pred_check_branch
      %94 = sbr.rel (0) target = $region33
    $region32: #{tpu_custom_call.1} parent=1 // pred_region
      %96 = vsyncadd [#allocation13], 0
      %s98 = sshll.u32 %s7, 4
      %s99 = int_to_ptr.hbm [resolvable:$true] %s98
      %s100 = sshll.u32 [#allocation14], 4
      %s101 = int_to_ptr.vmem [resolvable:$true] %s100
      %103 = dma.hbm_to_vmem [thread:$0]  %s99, 16, %s101, [#allocation13]
    $region33: #{tpu_custom_call.1} parent=1 // pred_fallthru
      _
    // Predicated region
    $region34: #{tpu_custom_call.1} parent=1 // pred_check
      _
    $region35: #{tpu_custom_call.1} parent=1 // pred_check_branch
      %105 = sbr.rel (0) target = $region37
    $region36: #{tpu_custom_call.1} parent=1 // pred_region
      %107 = dma.done [#allocation4], 896
    $region37: #{tpu_custom_call.1} parent=1 // pred_fallthru
      _
    // Predicated region
    $region38: #{tpu_custom_call.1} parent=1 // pred_check
      _
    $region39: #{tpu_custom_call.1} parent=1 // pred_check_branch
      %109 = sbr.rel (0) target = $region41
    $region40: #{tpu_custom_call.1} parent=1 // pred_region
      %111 = dma.done [#allocation7], 62720
    $region41: #{tpu_custom_call.1} parent=1 // pred_fallthru
      _
    // Predicated region
    $region42: #{tpu_custom_call.1} parent=1 // pred_check
      _
    $region43: #{tpu_custom_call.1} parent=1 // pred_check_branch
      %113 = sbr.rel (0) target = $region45
    $region44: #{tpu_custom_call.1} parent=1 // pred_region
      %115 = dma.done [#allocation7], 160
    $region45: #{tpu_custom_call.1} parent=1 // pred_fallthru
      _
    // Predicated region
    $region46: #{tpu_custom_call.1} parent=1 // pred_check
      _
    $region47: #{tpu_custom_call.1} parent=1 // pred_check_branch
      %117 = sbr.rel (0) target = $region49
    $region48: #{tpu_custom_call.1} parent=1 // pred_region
      %119 = dma.done [#allocation10], 96000
    $region49: #{tpu_custom_call.1} parent=1 // pred_fallthru
      _
    // Predicated region
    $region50: #{tpu_custom_call.1} parent=1 // pred_check
      _
    $region51: #{tpu_custom_call.1} parent=1 // pred_check_branch
      %121 = sbr.rel (0) target = $region53
    $region52: #{tpu_custom_call.1} parent=1 // pred_region
      %123 = dma.done [#allocation10], 160
    $region53: #{tpu_custom_call.1} parent=1 // pred_fallthru
      _
    // Predicated region
    $region54: #{tpu_custom_call.1} parent=1 // pred_check
      _
    $region55: #{tpu_custom_call.1} parent=1 // pred_check_branch
      %125 = sbr.rel (0) target = $region57
    $region56: #{tpu_custom_call.1} parent=1 // pred_region
      %127 = dma.done [#allocation13], 9600
    $region57: #{tpu_custom_call.1} parent=1 // pred_fallthru
      _
    // Predicated region
    $region58: #{tpu_custom_call.1} parent=1 // pred_check
      _
    $region59: #{tpu_custom_call.1} parent=1 // pred_check_branch
      %129 = sbr.rel (0) target = $region61
    $region60: #{tpu_custom_call.1} parent=1 // pred_region
      %131 = dma.done [#allocation13], 16
    $region61: #{tpu_custom_call.1} parent=1 // pred_fallthru
      _
    %s133 = sld [smem:[#allocation2]]
    %s134 = smul.u32 0, 1663821211
    %s135 = sadd.s32 %s133, %s134
    %v136 = vld [vmem:[#allocation3] sm:$0xff]
    %v137 = vld [vmem:[#allocation3 + $0x8] sm:$0xff]
    %v138 = vld [vmem:[#allocation3 + $0x10] sm:$0xff]
    %v139 = vld [vmem:[#allocation3 + $0x18] sm:$0xff]
    %v140 = vld [vmem:[#allocation3 + $0x20] sm:$0xff]
    %v141 = vld [vmem:[#allocation3 + $0x28] sm:$0xff]
    %v142 = vld [vmem:[#allocation3 + $0x30] sm:$0xff]
    %s143 = sxor.u32 %s135, 286331153
    %v144 = vlaneseq
    %v145 = vshrl.u32 %v144, 7
    %v146 = vlaneseq
    %v147 = vand.u32 %v146, 127
    %v148 = vadd.s32 %v147, 128
    %v149 = vadd.s32 %v147, 256
    %v150 = vadd.s32 %v147, 384
    %v151 = vadd.s32 %v147, 512
    %v152 = vadd.s32 %v147, 640
    %v153 = vadd.s32 %v147, 768
    %v154 = vmul.u32 %v145, 2654435761
    %v155 = vmul.u32 %v147, 2246822519
    %v156 = vmul.u32 %v148, 2246822519
    %v157 = vmul.u32 %v149, 2246822519
    %v158 = vmul.u32 %v150, 2246822519
    %v159 = vmul.u32 %v151, 2246822519
    %v160 = vmul.u32 %v152, 2246822519
    %v161 = vmul.u32 %v153, 2246822519
    %v162 = vxor.u32 %v154, %v155
    %v163 = vxor.u32 %v154, %v156
    %v164 = vxor.u32 %v154, %v157
    %v165 = vxor.u32 %v154, %v158
    %v166 = vxor.u32 %v154, %v159
    %v167 = vxor.u32 %v154, %v160
    %v168 = vxor.u32 %v154, %v161
    %v169 = vstv %s143
    %v170 = vxor.u32 %v162, %v169
    %v171 = vxor.u32 %v163, %v169
    %v172 = vxor.u32 %v164, %v169
    %v173 = vxor.u32 %v165, %v169
    %v174 = vxor.u32 %v166, %v169
    %v175 = vxor.u32 %v167, %v169
    %v176 = vxor.u32 %v168, %v169
    %v177 = vmul.u32 %v170, 3266489917
    %v178 = vmul.u32 %v171, 3266489917
    %v179 = vmul.u32 %v172, 3266489917
    %v180 = vmul.u32 %v173, 3266489917
    %v181 = vmul.u32 %v174, 3266489917
    %v182 = vmul.u32 %v175, 3266489917
    %v183 = vmul.u32 %v176, 3266489917
    %v184 = vshrl.u32 %v177, 15
    %v185 = vshrl.u32 %v178, 15
    %v186 = vshrl.u32 %v179, 15
    %v187 = vshrl.u32 %v180, 15
    %v188 = vshrl.u32 %v181, 15
    %v189 = vshrl.u32 %v182, 15
    %v190 = vshrl.u32 %v183, 15
    %v191 = vxor.u32 %v177, %v184
    %v192 = vxor.u32 %v178, %v185
    %v193 = vxor.u32 %v179, %v186
    %v194 = vxor.u32 %v180, %v187
    %v195 = vxor.u32 %v181, %v188
    %v196 = vxor.u32 %v182, %v189
    %v197 = vxor.u32 %v183, %v190
    %v198 = vmul.u32 %v191, 668265263
    %v199 = vmul.u32 %v192, 668265263
    %v200 = vmul.u32 %v193, 668265263
    %v201 = vmul.u32 %v194, 668265263
    %v202 = vmul.u32 %v195, 668265263
    %v203 = vmul.u32 %v196, 668265263
    %v204 = vmul.u32 %v197, 668265263
    %v205 = vshrl.u32 %v198, 13
    %v206 = vshrl.u32 %v199, 13
    %v207 = vshrl.u32 %v200, 13
    %v208 = vshrl.u32 %v201, 13
    %v209 = vshrl.u32 %v202, 13
    %v210 = vshrl.u32 %v203, 13
    %v211 = vshrl.u32 %v204, 13
    %v212 = vxor.u32 %v198, %v205
    %v213 = vxor.u32 %v199, %v206
    %v214 = vxor.u32 %v200, %v207
    %v215 = vxor.u32 %v201, %v208
    %v216 = vxor.u32 %v202, %v209
    %v217 = vxor.u32 %v203, %v210
    %v218 = vxor.u32 %v204, %v211
    %v219 = vmul.u32 %v212, 374761393
    %v220 = vmul.u32 %v213, 374761393
    %v221 = vmul.u32 %v214, 374761393
    %v222 = vmul.u32 %v215, 374761393
    %v223 = vmul.u32 %v216, 374761393
    %v224 = vmul.u32 %v217, 374761393
    %v225 = vmul.u32 %v218, 374761393
    %v226 = vshrl.u32 %v219, 16
    %v227 = vshrl.u32 %v220, 16
    %v228 = vshrl.u32 %v221, 16
    %v229 = vshrl.u32 %v222, 16
    %v230 = vshrl.u32 %v223, 16
    %v231 = vshrl.u32 %v224, 16
    %v232 = vshrl.u32 %v225, 16
    %v233 = vxor.u32 %v219, %v226
    %v234 = vxor.u32 %v220, %v227
    %v235 = vxor.u32 %v221, %v228
    %v236 = vxor.u32 %v222, %v229
    %v237 = vxor.u32 %v223, %v230
    %v238 = vxor.u32 %v224, %v231
    %v239 = vxor.u32 %v225, %v232
    %v240 = vadd.s32 %v233, 2147483648
    %vm242 = vcmp.ge.s32.totalorder %v240, 3006477107
    %v243 = vadd.s32 %v234, 2147483648
    %vm245 = vcmp.ge.s32.totalorder %v243, 3006477107
    %v246 = vadd.s32 %v235, 2147483648
    %vm248 = vcmp.ge.s32.totalorder %v246, 3006477107
    %v249 = vadd.s32 %v236, 2147483648
    %vm251 = vcmp.ge.s32.totalorder %v249, 3006477107
    %v252 = vadd.s32 %v237, 2147483648
    %vm254 = vcmp.ge.s32.totalorder %v252, 3006477107
    %v255 = vadd.s32 %v238, 2147483648
    %vm257 = vcmp.ge.s32.totalorder %v255, 3006477107
    %v258 = vadd.s32 %v239, 2147483648
    %vm260 = vcmp.ge.s32.totalorder %v258, 3006477107
    %v261 = vmul.f32 %v136, 1.25
    %v262 = vmul.f32 %v137, 1.25
    %v263 = vmul.f32 %v138, 1.25
    %v264 = vmul.f32 %v139, 1.25
    %v265 = vmul.f32 %v140, 1.25
    %v266 = vmul.f32 %v141, 1.25
    %v267 = vmul.f32 %v142, 1.25
    %v268 = vsel %vm242, %v261, 0.0
    %v269 = vsel %vm245, %v262, 0.0
    %v270 = vsel %vm248, %v263, 0.0
    %v271 = vsel %vm251, %v264, 0.0
    %v272 = vsel %vm254, %v265, 0.0
    %v273 = vsel %vm257, %v266, 0.0
    %v274 = vsel %vm260, %v267, 0.0
    %v275 = vpack.c.bf16 %v268, %v268
    %v276 = vpack.c.bf16 %v269, %v269
    %v277 = vpack.c.bf16 %v270, %v270
    %v278 = vpack.c.bf16 %v271, %v271
    %v279 = vpack.c.bf16 %v272, %v272
    %v280 = vpack.c.bf16 %v273, %v273
    %v281 = vpack.c.bf16 %v274, %v274
    %v282 = vld [vmem:[#allocation6] sm:$0xff]
    %v283 = vld [vmem:[#allocation6 + $0x8] sm:$0xff]
    %v284 = vld [vmem:[#allocation6 + $0x10] sm:$0xff]
    %v285 = vld [vmem:[#allocation6 + $0x18] sm:$0xff]
    %v286 = vld [vmem:[#allocation6 + $0x20] sm:$0xff]
    %v287 = vld [vmem:[#allocation6 + $0x28] sm:$0xff]
    %v288 = vld [vmem:[#allocation6 + $0x30] sm:$0xff]
    %v289 = vld [vmem:[#allocation6 + $0x38] sm:$0xff]
    %v290 = vld [vmem:[#allocation6 + $0x40] sm:$0xff]
    %v291 = vld [vmem:[#allocation6 + $0x48] sm:$0xff]
    %v292 = vld [vmem:[#allocation6 + $0x50] sm:$0xff]
    %v293 = vld [vmem:[#allocation6 + $0x58] sm:$0xff]
    %v294 = vld [vmem:[#allocation6 + $0x60] sm:$0xff]
    %v295 = vld [vmem:[#allocation6 + $0x68] sm:$0xff]
    %v296 = vld [vmem:[#allocation6 + $0x70] sm:$0xff]
    %v297 = vld [vmem:[#allocation6 + $0x78] sm:$0xff]
    %v298 = vld [vmem:[#allocation6 + $0x80] sm:$0xff]
    %v299 = vld [vmem:[#allocation6 + $0x88] sm:$0xff]
    %v300 = vld [vmem:[#allocation6 + $0x90] sm:$0xff]
    %v301 = vld [vmem:[#allocation6 + $0x98] sm:$0xff]
    %v302 = vld [vmem:[#allocation6 + $0xa0] sm:$0xff]
    %v303 = vld [vmem:[#allocation6 + $0xa8] sm:$0xff]
    %v304 = vld [vmem:[#allocation6 + $0xb0] sm:$0xff]
    %v305 = vld [vmem:[#allocation6 + $0xb8] sm:$0xff]
    %v306 = vld [vmem:[#allocation6 + $0xc0] sm:$0xff]
    %v307 = vld [vmem:[#allocation6 + $0xc8] sm:$0xff]
    %v308 = vld [vmem:[#allocation6 + $0xd0] sm:$0xff]
    %v309 = vld [vmem:[#allocation6 + $0xd8] sm:$0xff]
    %v310 = vld [vmem:[#allocation6 + $0xe0] sm:$0xff]
    %v311 = vld [vmem:[#allocation6 + $0xe8] sm:$0xff]
    %v312 = vld [vmem:[#allocation6 + $0xf0] sm:$0xff]
    %v313 = vld [vmem:[#allocation6 + $0xf8] sm:$0xff]
    %v314 = vld [vmem:[#allocation6 + $0x100] sm:$0xff]
    %v315 = vld [vmem:[#allocation6 + $0x108] sm:$0xff]
    %v316 = vld [vmem:[#allocation6 + $0x110] sm:$0xff]
    %v317 = vld [vmem:[#allocation6 + $0x118] sm:$0xff]
    %v318 = vld [vmem:[#allocation6 + $0x120] sm:$0xff]
    %v319 = vld [vmem:[#allocation6 + $0x128] sm:$0xff]
    %v320 = vld [vmem:[#allocation6 + $0x130] sm:$0xff]
    %v321 = vld [vmem:[#allocation6 + $0x138] sm:$0xff]
    %v322 = vld [vmem:[#allocation6 + $0x140] sm:$0xff]
    %v323 = vld [vmem:[#allocation6 + $0x148] sm:$0xff]
    %v324 = vld [vmem:[#allocation6 + $0x150] sm:$0xff]
    %v325 = vld [vmem:[#allocation6 + $0x158] sm:$0xff]
    %v326 = vld [vmem:[#allocation6 + $0x160] sm:$0xff]
    %v327 = vld [vmem:[#allocation6 + $0x168] sm:$0xff]
    %v328 = vld [vmem:[#allocation6 + $0x170] sm:$0xff]
    %v329 = vld [vmem:[#allocation6 + $0x178] sm:$0xff]
    %v330 = vld [vmem:[#allocation6 + $0x180] sm:$0xff]
    %v331 = vld [vmem:[#allocation6 + $0x188] sm:$0xff]
    %v332 = vld [vmem:[#allocation6 + $0x190] sm:$0xff]
    %v333 = vld [vmem:[#allocation6 + $0x198] sm:$0xff]
    %v334 = vld [vmem:[#allocation6 + $0x1a0] sm:$0xff]
    %v335 = vld [vmem:[#allocation6 + $0x1a8] sm:$0xff]
    %v336 = vld [vmem:[#allocation6 + $0x1b0] sm:$0xff]
    %v337 = vld [vmem:[#allocation6 + $0x1b8] sm:$0xff]
    %v338 = vld [vmem:[#allocation6 + $0x1c0] sm:$0xff]
    %v339 = vld [vmem:[#allocation6 + $0x1c8] sm:$0xff]
    %v340 = vld [vmem:[#allocation6 + $0x1d0] sm:$0xff]
    %v341 = vld [vmem:[#allocation6 + $0x1d8] sm:$0xff]
    %v342 = vld [vmem:[#allocation6 + $0x1e0] sm:$0xff]
    %v343 = vld [vmem:[#allocation6 + $0x1e8] sm:$0xff]
    %v344 = vld [vmem:[#allocation6 + $0x1f0] sm:$0xff]
    %v345 = vld [vmem:[#allocation6 + $0x1f8] sm:$0xff]
    %v346 = vld [vmem:[#allocation6 + $0x200] sm:$0xff]
    %v347 = vld [vmem:[#allocation6 + $0x208] sm:$0xff]
    %v348 = vld [vmem:[#allocation6 + $0x210] sm:$0xff]
    %v349 = vld [vmem:[#allocation6 + $0x218] sm:$0xff]
    %v350 = vld [vmem:[#allocation6 + $0x220] sm:$0xff]
    %v351 = vld [vmem:[#allocation6 + $0x228] sm:$0xff]
    %v352 = vld [vmem:[#allocation6 + $0x230] sm:$0xff]
    %v353 = vld [vmem:[#allocation6 + $0x238] sm:$0xff]
    %v354 = vld [vmem:[#allocation6 + $0x240] sm:$0xff]
    %v355 = vld [vmem:[#allocation6 + $0x248] sm:$0xff]
    %v356 = vld [vmem:[#allocation6 + $0x250] sm:$0xff]
    %v357 = vld [vmem:[#allocation6 + $0x258] sm:$0xff]
    %v358 = vld [vmem:[#allocation6 + $0x260] sm:$0xff]
    %v359 = vld [vmem:[#allocation6 + $0x268] sm:$0xff]
    %v360 = vld [vmem:[#allocation6 + $0x270] sm:$0xff]
    %v361 = vld [vmem:[#allocation6 + $0x278] sm:$0xff]
    %v362 = vld [vmem:[#allocation6 + $0x280] sm:$0xff]
    %v363 = vld [vmem:[#allocation6 + $0x288] sm:$0xff]
    %v364 = vld [vmem:[#allocation6 + $0x290] sm:$0xff]
    %v365 = vld [vmem:[#allocation6 + $0x298] sm:$0xff]
    %v366 = vld [vmem:[#allocation6 + $0x2a0] sm:$0xff]
    %v367 = vld [vmem:[#allocation6 + $0x2a8] sm:$0xff]
    %v368 = vld [vmem:[#allocation6 + $0x2b0] sm:$0xff]
    %v369 = vld [vmem:[#allocation6 + $0x2b8] sm:$0xff]
    %v370 = vld [vmem:[#allocation6 + $0x2c0] sm:$0xff]
    %v371 = vld [vmem:[#allocation6 + $0x2c8] sm:$0xff]
    %v372 = vld [vmem:[#allocation6 + $0x2d0] sm:$0xff]
    %v373 = vld [vmem:[#allocation6 + $0x2d8] sm:$0xff]
    %v374 = vld [vmem:[#allocation6 + $0x2e0] sm:$0xff]
    %v375 = vld [vmem:[#allocation6 + $0x2e8] sm:$0xff]
    %v376 = vld [vmem:[#allocation6 + $0x2f0] sm:$0xff]
    %v377 = vld [vmem:[#allocation6 + $0x2f8] sm:$0xff]
    %v378 = vld [vmem:[#allocation6 + $0x300] sm:$0xff]
    %v379 = vld [vmem:[#allocation6 + $0x308] sm:$0xff]
    %v380 = vld [vmem:[#allocation6 + $0x310] sm:$0xff]
    %v381 = vld [vmem:[#allocation6 + $0x318] sm:$0xff]
    %v382 = vld [vmem:[#allocation6 + $0x320] sm:$0xff]
    %v383 = vld [vmem:[#allocation6 + $0x328] sm:$0xff]
    %v384 = vld [vmem:[#allocation6 + $0x330] sm:$0xff]
    %v385 = vld [vmem:[#allocation6 + $0x338] sm:$0xff]
    %v386 = vld [vmem:[#allocation6 + $0x340] sm:$0xff]
    %v387 = vld [vmem:[#allocation6 + $0x348] sm:$0xff]
    %v388 = vld [vmem:[#allocation6 + $0x350] sm:$0xff]
    %v389 = vld [vmem:[#allocation6 + $0x358] sm:$0xff]
    %v390 = vld [vmem:[#allocation6 + $0x360] sm:$0xff]
    %v391 = vld [vmem:[#allocation6 + $0x368] sm:$0xff]
    %v392 = vld [vmem:[#allocation6 + $0x370] sm:$0xff]
    %v393 = vld [vmem:[#allocation6 + $0x378] sm:$0xff]
    %v394 = vld [vmem:[#allocation6 + $0x380] sm:$0xff]
    %v395 = vld [vmem:[#allocation6 + $0x388] sm:$0xff]
    %v396 = vld [vmem:[#allocation6 + $0x390] sm:$0xff]
    %v397 = vld [vmem:[#allocation6 + $0x398] sm:$0xff]
    %v398 = vld [vmem:[#allocation6 + $0x3a0] sm:$0xff]
    %v399 = vld [vmem:[#allocation6 + $0x3a8] sm:$0xff]
    %v400 = vld [vmem:[#allocation6 + $0x3b0] sm:$0xff]
    %v401 = vld [vmem:[#allocation6 + $0x3b8] sm:$0xff]
    %v402 = vld [vmem:[#allocation6 + $0x3c0] sm:$0xff]
    %v403 = vld [vmem:[#allocation6 + $0x3c8] sm:$0xff]
    %v404 = vld [vmem:[#allocation6 + $0x3d0] sm:$0xff]
    %v405 = vld [vmem:[#allocation6 + $0x3d8] sm:$0xff]
    %v406 = vld [vmem:[#allocation6 + $0x3e0] sm:$0xff]
    %v407 = vld [vmem:[#allocation6 + $0x3e8] sm:$0xff]
    %v408 = vld [vmem:[#allocation6 + $0x3f0] sm:$0xff]
    %v409 = vld [vmem:[#allocation6 + $0x3f8] sm:$0xff]
    %v410 = vld [vmem:[#allocation6 + $0x400] sm:$0xff]
    %v411 = vld [vmem:[#allocation6 + $0x408] sm:$0xff]
    %v412 = vld [vmem:[#allocation6 + $0x410] sm:$0xff]
    %v413 = vld [vmem:[#allocation6 + $0x418] sm:$0xff]
    %v414 = vld [vmem:[#allocation6 + $0x420] sm:$0xff]
    %v415 = vld [vmem:[#allocation6 + $0x428] sm:$0xff]
    %v416 = vld [vmem:[#allocation6 + $0x430] sm:$0xff]
    %v417 = vld [vmem:[#allocation6 + $0x438] sm:$0xff]
    %v418 = vld [vmem:[#allocation6 + $0x440] sm:$0xff]
    %v419 = vld [vmem:[#allocation6 + $0x448] sm:$0xff]
    %v420 = vld [vmem:[#allocation6 + $0x450] sm:$0xff]
    %v421 = vld [vmem:[#allocation6 + $0x458] sm:$0xff]
    %v422 = vld [vmem:[#allocation6 + $0x460] sm:$0xff]
    %v423 = vld [vmem:[#allocation6 + $0x468] sm:$0xff]
    %v424 = vld [vmem:[#allocation6 + $0x470] sm:$0xff]
    %v425 = vld [vmem:[#allocation6 + $0x478] sm:$0xff]
    %v426 = vld [vmem:[#allocation6 + $0x480] sm:$0xff]
    %v427 = vld [vmem:[#allocation6 + $0x488] sm:$0xff]
    %v428 = vld [vmem:[#allocation6 + $0x490] sm:$0xff]
    %v429 = vld [vmem:[#allocation6 + $0x498] sm:$0xff]
    %v430 = vld [vmem:[#allocation6 + $0x4a0] sm:$0xff]
    %v431 = vld [vmem:[#allocation6 + $0x4a8] sm:$0xff]
    %v432 = vld [vmem:[#allocation6 + $0x4b0] sm:$0xff]
    %v433 = vld [vmem:[#allocation6 + $0x4b8] sm:$0xff]
    %v434 = vld [vmem:[#allocation6 + $0x4c0] sm:$0xff]
    %v435 = vld [vmem:[#allocation6 + $0x4c8] sm:$0xff]
    %v436 = vld [vmem:[#allocation6 + $0x4d0] sm:$0xff]
    %v437 = vld [vmem:[#allocation6 + $0x4d8] sm:$0xff]
    %v438 = vld [vmem:[#allocation6 + $0x4e0] sm:$0xff]
    %v439 = vld [vmem:[#allocation6 + $0x4e8] sm:$0xff]
    %v440 = vld [vmem:[#allocation6 + $0x4f0] sm:$0xff]
    %v441 = vld [vmem:[#allocation6 + $0x4f8] sm:$0xff]
    %v442 = vld [vmem:[#allocation6 + $0x500] sm:$0xff]
    %v443 = vld [vmem:[#allocation6 + $0x508] sm:$0xff]
    %v444 = vld [vmem:[#allocation6 + $0x510] sm:$0xff]
    %v445 = vld [vmem:[#allocation6 + $0x518] sm:$0xff]
    %v446 = vld [vmem:[#allocation6 + $0x520] sm:$0xff]
    %v447 = vld [vmem:[#allocation6 + $0x528] sm:$0xff]
    %v448 = vld [vmem:[#allocation6 + $0x530] sm:$0xff]
    %v449 = vld [vmem:[#allocation6 + $0x538] sm:$0xff]
    %v450 = vld [vmem:[#allocation6 + $0x540] sm:$0xff]
    %v451 = vld [vmem:[#allocation6 + $0x548] sm:$0xff]
    %v452 = vld [vmem:[#allocation6 + $0x550] sm:$0xff]
    %v453 = vld [vmem:[#allocation6 + $0x558] sm:$0xff]
    %v454 = vld [vmem:[#allocation6 + $0x560] sm:$0xff]
    %v455 = vld [vmem:[#allocation6 + $0x568] sm:$0xff]
    %v456 = vld [vmem:[#allocation6 + $0x570] sm:$0xff]
    %v457 = vld [vmem:[#allocation6 + $0x578] sm:$0xff]
    %v458 = vld [vmem:[#allocation6 + $0x580] sm:$0xff]
    %v459 = vld [vmem:[#allocation6 + $0x588] sm:$0xff]
    %v460 = vld [vmem:[#allocation6 + $0x590] sm:$0xff]
    %v461 = vld [vmem:[#allocation6 + $0x598] sm:$0xff]
    %v462 = vld [vmem:[#allocation6 + $0x5a0] sm:$0xff]
    %v463 = vld [vmem:[#allocation6 + $0x5a8] sm:$0xff]
    %v464 = vld [vmem:[#allocation6 + $0x5b0] sm:$0xff]
    %v465 = vld [vmem:[#allocation6 + $0x5b8] sm:$0xff]
    %v466 = vld [vmem:[#allocation6 + $0x5c0] sm:$0xff]
    %v467 = vld [vmem:[#allocation6 + $0x5c8] sm:$0xff]
    %v468 = vld [vmem:[#allocation6 + $0x5d0] sm:$0xff]
    %v469 = vld [vmem:[#allocation6 + $0x5d8] sm:$0xff]
    %v470 = vld [vmem:[#allocation6 + $0x5e0] sm:$0xff]
    %v471 = vld [vmem:[#allocation6 + $0x5e8] sm:$0xff]
    %v472 = vld [vmem:[#allocation6 + $0x5f0] sm:$0xff]
    %v473 = vld [vmem:[#allocation6 + $0x5f8] sm:$0xff]
    %v474 = vld [vmem:[#allocation6 + $0x600] sm:$0xff]
    %v475 = vld [vmem:[#allocation6 + $0x608] sm:$0xff]
    %v476 = vld [vmem:[#allocation6 + $0x610] sm:$0xff]
    %v477 = vld [vmem:[#allocation6 + $0x618] sm:$0xff]
    %v478 = vld [vmem:[#allocation6 + $0x620] sm:$0xff]
    %v479 = vld [vmem:[#allocation6 + $0x628] sm:$0xff]
    %v480 = vld [vmem:[#allocation6 + $0x630] sm:$0xff]
    %v481 = vld [vmem:[#allocation6 + $0x638] sm:$0xff]
    %v482 = vld [vmem:[#allocation6 + $0x640] sm:$0xff]
    %v483 = vld [vmem:[#allocation6 + $0x648] sm:$0xff]
    %v484 = vld [vmem:[#allocation6 + $0x650] sm:$0xff]
    %v485 = vld [vmem:[#allocation6 + $0x658] sm:$0xff]
    %v486 = vld [vmem:[#allocation6 + $0x660] sm:$0xff]
    %v487 = vld [vmem:[#allocation6 + $0x668] sm:$0xff]
    %v488 = vld [vmem:[#allocation6 + $0x670] sm:$0xff]
    %v489 = vld [vmem:[#allocation6 + $0x678] sm:$0xff]
    %v490 = vld [vmem:[#allocation6 + $0x680] sm:$0xff]
    %v491 = vld [vmem:[#allocation6 + $0x688] sm:$0xff]
    %v492 = vld [vmem:[#allocation6 + $0x690] sm:$0xff]
    %v493 = vld [vmem:[#allocation6 + $0x698] sm:$0xff]
    %v494 = vld [vmem:[#allocation6 + $0x6a0] sm:$0xff]
    %v495 = vld [vmem:[#allocation6 + $0x6a8] sm:$0xff]
    %v496 = vld [vmem:[#allocation6 + $0x6b0] sm:$0xff]
    %v497 = vld [vmem:[#allocation6 + $0x6b8] sm:$0xff]
    %v498 = vld [vmem:[#allocation6 + $0x6c0] sm:$0xff]
    %v499 = vld [vmem:[#allocation6 + $0x6c8] sm:$0xff]
    %v500 = vld [vmem:[#allocation6 + $0x6d0] sm:$0xff]
    %v501 = vld [vmem:[#allocation6 + $0x6d8] sm:$0xff]
    %v502 = vld [vmem:[#allocation6 + $0x6e0] sm:$0xff]
    %v503 = vld [vmem:[#allocation6 + $0x6e8] sm:$0xff]
    %v504 = vld [vmem:[#allocation6 + $0x6f0] sm:$0xff]
    %v505 = vld [vmem:[#allocation6 + $0x6f8] sm:$0xff]
    %v506 = vld [vmem:[#allocation6 + $0x700] sm:$0xff]
    %v507 = vld [vmem:[#allocation6 + $0x708] sm:$0xff]
    %v508 = vld [vmem:[#allocation6 + $0x710] sm:$0xff]
    %v509 = vld [vmem:[#allocation6 + $0x718] sm:$0xff]
    %v510 = vld [vmem:[#allocation6 + $0x720] sm:$0xff]
    %v511 = vld [vmem:[#allocation6 + $0x728] sm:$0xff]
    %v512 = vld [vmem:[#allocation6 + $0x730] sm:$0xff]
    %v513 = vld [vmem:[#allocation6 + $0x738] sm:$0xff]
    %v514 = vld [vmem:[#allocation6 + $0x740] sm:$0xff]
    %v515 = vld [vmem:[#allocation6 + $0x748] sm:$0xff]
    %v516 = vld [vmem:[#allocation6 + $0x750] sm:$0xff]
    %v517 = vld [vmem:[#allocation6 + $0x758] sm:$0xff]
    %v518 = vld [vmem:[#allocation6 + $0x760] sm:$0xff]
    %v519 = vld [vmem:[#allocation6 + $0x768] sm:$0xff]
    %v520 = vld [vmem:[#allocation6 + $0x770] sm:$0xff]
    %v521 = vld [vmem:[#allocation6 + $0x778] sm:$0xff]
    %v522 = vld [vmem:[#allocation6 + $0x780] sm:$0xff]
    %v523 = vld [vmem:[#allocation6 + $0x788] sm:$0xff]
    %v524 = vld [vmem:[#allocation6 + $0x790] sm:$0xff]
    %v525 = vld [vmem:[#allocation6 + $0x798] sm:$0xff]
    %v526 = vld [vmem:[#allocation6 + $0x7a0] sm:$0xff]
    %v527 = vld [vmem:[#allocation6 + $0x7a8] sm:$0xff]
    %v528 = vld [vmem:[#allocation6 + $0x7b0] sm:$0xff]
    %v529 = vld [vmem:[#allocation6 + $0x7b8] sm:$0xff]
    %v530 = vld [vmem:[#allocation6 + $0x7c0] sm:$0xff]
    %v531 = vld [vmem:[#allocation6 + $0x7c8] sm:$0xff]
    %v532 = vld [vmem:[#allocation6 + $0x7d0] sm:$0xff]
    %v533 = vld [vmem:[#allocation6 + $0x7d8] sm:$0xff]
    %v534 = vld [vmem:[#allocation6 + $0x7e0] sm:$0xff]
    %v535 = vld [vmem:[#allocation6 + $0x7e8] sm:$0xff]
    %v536 = vld [vmem:[#allocation6 + $0x7f0] sm:$0xff]
    %v537 = vld [vmem:[#allocation6 + $0x7f8] sm:$0xff]
    %v538 = vld [vmem:[#allocation6 + $0x800] sm:$0xff]
    %v539 = vld [vmem:[#allocation6 + $0x808] sm:$0xff]
    %v540 = vld [vmem:[#allocation6 + $0x810] sm:$0xff]
    %v541 = vld [vmem:[#allocation6 + $0x818] sm:$0xff]
    %v542 = vld [vmem:[#allocation6 + $0x820] sm:$0xff]
    %v543 = vld [vmem:[#allocation6 + $0x828] sm:$0xff]
    %v544 = vld [vmem:[#allocation6 + $0x830] sm:$0xff]
    %v545 = vld [vmem:[#allocation6 + $0x838] sm:$0xff]
    %v546 = vld [vmem:[#allocation6 + $0x840] sm:$0xff]
    %v547 = vld [vmem:[#allocation6 + $0x848] sm:$0xff]
    %v548 = vld [vmem:[#allocation6 + $0x850] sm:$0xff]
    %v549 = vld [vmem:[#allocation6 + $0x858] sm:$0xff]
    %v550 = vld [vmem:[#allocation6 + $0x860] sm:$0xff]
    %v551 = vld [vmem:[#allocation6 + $0x868] sm:$0xff]
    %v552 = vld [vmem:[#allocation6 + $0x870] sm:$0xff]
    %v553 = vld [vmem:[#allocation6 + $0x878] sm:$0xff]
    %v554 = vld [vmem:[#allocation6 + $0x880] sm:$0xff]
    %v555 = vld [vmem:[#allocation6 + $0x888] sm:$0xff]
    %v556 = vld [vmem:[#allocation6 + $0x890] sm:$0xff]
    %v557 = vld [vmem:[#allocation6 + $0x898] sm:$0xff]
    %v558 = vld [vmem:[#allocation6 + $0x8a0] sm:$0xff]
    %v559 = vld [vmem:[#allocation6 + $0x8a8] sm:$0xff]
    %v560 = vld [vmem:[#allocation6 + $0x8b0] sm:$0xff]
    %v561 = vld [vmem:[#allocation6 + $0x8b8] sm:$0xff]
    %v562 = vld [vmem:[#allocation6 + $0x8c0] sm:$0xff]
    %v563 = vld [vmem:[#allocation6 + $0x8c8] sm:$0xff]
    %v564 = vld [vmem:[#allocation6 + $0x8d0] sm:$0xff]
    %v565 = vld [vmem:[#allocation6 + $0x8d8] sm:$0xff]
    %v566 = vld [vmem:[#allocation6 + $0x8e0] sm:$0xff]
    %v567 = vld [vmem:[#allocation6 + $0x8e8] sm:$0xff]
    %v568 = vld [vmem:[#allocation6 + $0x8f0] sm:$0xff]
    %v569 = vld [vmem:[#allocation6 + $0x8f8] sm:$0xff]
    %v570 = vld [vmem:[#allocation6 + $0x900] sm:$0xff]
    %v571 = vld [vmem:[#allocation6 + $0x908] sm:$0xff]
    %v572 = vld [vmem:[#allocation6 + $0x910] sm:$0xff]
    %v573 = vld [vmem:[#allocation6 + $0x918] sm:$0xff]
    %v574 = vld [vmem:[#allocation6 + $0x920] sm:$0xff]
    %v575 = vld [vmem:[#allocation6 + $0x928] sm:$0xff]
    %v576 = vld [vmem:[#allocation6 + $0x930] sm:$0xff]
    %v577 = vld [vmem:[#allocation6 + $0x938] sm:$0xff]
    %v578 = vld [vmem:[#allocation6 + $0x940] sm:$0xff]
    %v579 = vld [vmem:[#allocation6 + $0x948] sm:$0xff]
    %v580 = vld [vmem:[#allocation6 + $0x950] sm:$0xff]
    %v581 = vld [vmem:[#allocation6 + $0x958] sm:$0xff]
    %v582 = vld [vmem:[#allocation6 + $0x960] sm:$0xff]
    %v583 = vld [vmem:[#allocation6 + $0x968] sm:$0xff]
    %v584 = vld [vmem:[#allocation6 + $0x970] sm:$0xff]
    %v585 = vld [vmem:[#allocation6 + $0x978] sm:$0xff]
    %v586 = vld [vmem:[#allocation6 + $0x980] sm:$0xff]
    %v587 = vld [vmem:[#allocation6 + $0x988] sm:$0xff]
    %v588 = vld [vmem:[#allocation6 + $0x990] sm:$0xff]
    %v589 = vld [vmem:[#allocation6 + $0x998] sm:$0xff]
    %v590 = vld [vmem:[#allocation6 + $0x9a0] sm:$0xff]
    %v591 = vld [vmem:[#allocation6 + $0x9a8] sm:$0xff]
    %v592 = vld [vmem:[#allocation6 + $0x9b0] sm:$0xff]
    %v593 = vld [vmem:[#allocation6 + $0x9b8] sm:$0xff]
    %v594 = vld [vmem:[#allocation6 + $0x9c0] sm:$0xff]
    %v595 = vld [vmem:[#allocation6 + $0x9c8] sm:$0xff]
    %v596 = vld [vmem:[#allocation6 + $0x9d0] sm:$0xff]
    %v597 = vld [vmem:[#allocation6 + $0x9d8] sm:$0xff]
    %v598 = vld [vmem:[#allocation6 + $0x9e0] sm:$0xff]
    %v599 = vld [vmem:[#allocation6 + $0x9e8] sm:$0xff]
    %v600 = vld [vmem:[#allocation6 + $0x9f0] sm:$0xff]
    %v601 = vld [vmem:[#allocation6 + $0x9f8] sm:$0xff]
    %v602 = vld [vmem:[#allocation6 + $0xa00] sm:$0xff]
    %v603 = vld [vmem:[#allocation6 + $0xa08] sm:$0xff]
    %v604 = vld [vmem:[#allocation6 + $0xa10] sm:$0xff]
    %v605 = vld [vmem:[#allocation6 + $0xa18] sm:$0xff]
    %v606 = vld [vmem:[#allocation6 + $0xa20] sm:$0xff]
    %v607 = vld [vmem:[#allocation6 + $0xa28] sm:$0xff]
    %v608 = vld [vmem:[#allocation6 + $0xa30] sm:$0xff]
    %v609 = vld [vmem:[#allocation6 + $0xa38] sm:$0xff]
    %v610 = vld [vmem:[#allocation6 + $0xa40] sm:$0xff]
    %v611 = vld [vmem:[#allocation6 + $0xa48] sm:$0xff]
    %v612 = vld [vmem:[#allocation6 + $0xa50] sm:$0xff]
    %v613 = vld [vmem:[#allocation6 + $0xa58] sm:$0xff]
    %v614 = vld [vmem:[#allocation6 + $0xa60] sm:$0xff]
    %v615 = vld [vmem:[#allocation6 + $0xa68] sm:$0xff]
    %v616 = vld [vmem:[#allocation6 + $0xa70] sm:$0xff]
    %v617 = vld [vmem:[#allocation6 + $0xa78] sm:$0xff]
    %v618 = vld [vmem:[#allocation6 + $0xa80] sm:$0xff]
    %v619 = vld [vmem:[#allocation6 + $0xa88] sm:$0xff]
    %v620 = vld [vmem:[#allocation6 + $0xa90] sm:$0xff]
    %v621 = vld [vmem:[#allocation6 + $0xa98] sm:$0xff]
    %v622 = vld [vmem:[#allocation6 + $0xaa0] sm:$0xff]
    %v623 = vld [vmem:[#allocation6 + $0xaa8] sm:$0xff]
    %v624 = vld [vmem:[#allocation6 + $0xab0] sm:$0xff]
    %v625 = vld [vmem:[#allocation6 + $0xab8] sm:$0xff]
    %v626 = vld [vmem:[#allocation6 + $0xac0] sm:$0xff]
    %v627 = vld [vmem:[#allocation6 + $0xac8] sm:$0xff]
    %v628 = vld [vmem:[#allocation6 + $0xad0] sm:$0xff]
    %v629 = vld [vmem:[#allocation6 + $0xad8] sm:$0xff]
    %v630 = vld [vmem:[#allocation6 + $0xae0] sm:$0xff]
    %v631 = vld [vmem:[#allocation6 + $0xae8] sm:$0xff]
    %v632 = vld [vmem:[#allocation6 + $0xaf0] sm:$0xff]
    %v633 = vld [vmem:[#allocation6 + $0xaf8] sm:$0xff]
    %v634 = vld [vmem:[#allocation6 + $0xb00] sm:$0xff]
    %v635 = vld [vmem:[#allocation6 + $0xb08] sm:$0xff]
    %v636 = vld [vmem:[#allocation6 + $0xb10] sm:$0xff]
    %v637 = vld [vmem:[#allocation6 + $0xb18] sm:$0xff]
    %v638 = vld [vmem:[#allocation6 + $0xb20] sm:$0xff]
    %v639 = vld [vmem:[#allocation6 + $0xb28] sm:$0xff]
    %v640 = vld [vmem:[#allocation6 + $0xb30] sm:$0xff]
    %v641 = vld [vmem:[#allocation6 + $0xb38] sm:$0xff]
    %v642 = vld [vmem:[#allocation6 + $0xb40] sm:$0xff]
    %v643 = vld [vmem:[#allocation6 + $0xb48] sm:$0xff]
    %v644 = vld [vmem:[#allocation6 + $0xb50] sm:$0xff]
    %v645 = vld [vmem:[#allocation6 + $0xb58] sm:$0xff]
    %v646 = vld [vmem:[#allocation6 + $0xb60] sm:$0xff]
    %v647 = vld [vmem:[#allocation6 + $0xb68] sm:$0xff]
    %v648 = vld [vmem:[#allocation6 + $0xb70] sm:$0xff]
    %v649 = vld [vmem:[#allocation6 + $0xb78] sm:$0xff]
    %v650 = vld [vmem:[#allocation6 + $0xb80] sm:$0xff]
    %v651 = vld [vmem:[#allocation6 + $0xb88] sm:$0xff]
    %v652 = vld [vmem:[#allocation6 + $0xb90] sm:$0xff]
    %v653 = vld [vmem:[#allocation6 + $0xb98] sm:$0xff]
    %v654 = vld [vmem:[#allocation6 + $0xba0] sm:$0xff]
    %v655 = vld [vmem:[#allocation6 + $0xba8] sm:$0xff]
    %v656 = vld [vmem:[#allocation6 + $0xbb0] sm:$0xff]
    %v657 = vld [vmem:[#allocation6 + $0xbb8] sm:$0xff]
    %v658 = vld [vmem:[#allocation6 + $0xbc0] sm:$0xff]
    %v659 = vld [vmem:[#allocation6 + $0xbc8] sm:$0xff]
    %v660 = vld [vmem:[#allocation6 + $0xbd0] sm:$0xff]
    %v661 = vld [vmem:[#allocation6 + $0xbd8] sm:$0xff]
    %v662 = vld [vmem:[#allocation6 + $0xbe0] sm:$0xff]
    %v663 = vld [vmem:[#allocation6 + $0xbe8] sm:$0xff]
    %v664 = vld [vmem:[#allocation6 + $0xbf0] sm:$0xff]
    %v665 = vld [vmem:[#allocation6 + $0xbf8] sm:$0xff]
    %v666 = vld [vmem:[#allocation6 + $0xc00] sm:$0xff]
    %v667 = vld [vmem:[#allocation6 + $0xc08] sm:$0xff]
    %v668 = vld [vmem:[#allocation6 + $0xc10] sm:$0xff]
    %v669 = vld [vmem:[#allocation6 + $0xc18] sm:$0xff]
    %v670 = vld [vmem:[#allocation6 + $0xc20] sm:$0xff]
    %v671 = vld [vmem:[#allocation6 + $0xc28] sm:$0xff]
    %v672 = vld [vmem:[#allocation6 + $0xc30] sm:$0xff]
    %v673 = vld [vmem:[#allocation6 + $0xc38] sm:$0xff]
    %v674 = vld [vmem:[#allocation6 + $0xc40] sm:$0xff]
    %v675 = vld [vmem:[#allocation6 + $0xc48] sm:$0xff]
    %v676 = vld [vmem:[#allocation6 + $0xc50] sm:$0xff]
    %v677 = vld [vmem:[#allocation6 + $0xc58] sm:$0xff]
    %v678 = vld [vmem:[#allocation6 + $0xc60] sm:$0xff]
    %v679 = vld [vmem:[#allocation6 + $0xc68] sm:$0xff]
    %v680 = vld [vmem:[#allocation6 + $0xc70] sm:$0xff]
    %v681 = vld [vmem:[#allocation6 + $0xc78] sm:$0xff]
    %v682 = vld [vmem:[#allocation6 + $0xc80] sm:$0xff]
    %v683 = vld [vmem:[#allocation6 + $0xc88] sm:$0xff]
    %v684 = vld [vmem:[#allocation6 + $0xc90] sm:$0xff]
    %v685 = vld [vmem:[#allocation6 + $0xc98] sm:$0xff]
    %v686 = vld [vmem:[#allocation6 + $0xca0] sm:$0xff]
    %v687 = vld [vmem:[#allocation6 + $0xca8] sm:$0xff]
    %v688 = vld [vmem:[#allocation6 + $0xcb0] sm:$0xff]
    %v689 = vld [vmem:[#allocation6 + $0xcb8] sm:$0xff]
    %v690 = vld [vmem:[#allocation6 + $0xcc0] sm:$0xff]
    %v691 = vld [vmem:[#allocation6 + $0xcc8] sm:$0xff]
    %v692 = vld [vmem:[#allocation6 + $0xcd0] sm:$0xff]
    %v693 = vld [vmem:[#allocation6 + $0xcd8] sm:$0xff]
    %v694 = vld [vmem:[#allocation6 + $0xce0] sm:$0xff]
    %v695 = vld [vmem:[#allocation6 + $0xce8] sm:$0xff]
    %v696 = vld [vmem:[#allocation6 + $0xcf0] sm:$0xff]
    %v697 = vld [vmem:[#allocation6 + $0xcf8] sm:$0xff]
    %v698 = vld [vmem:[#allocation6 + $0xd00] sm:$0xff]
    %v699 = vld [vmem:[#allocation6 + $0xd08] sm:$0xff]
    %v700 = vld [vmem:[#allocation6 + $0xd10] sm:$0xff]
    %v701 = vld [vmem:[#allocation6 + $0xd18] sm:$0xff]
    %v702 = vld [vmem:[#allocation6 + $0xd20] sm:$0xff]
    %v703 = vld [vmem:[#allocation6 + $0xd28] sm:$0xff]
    %v704 = vld [vmem:[#allocation6 + $0xd30] sm:$0xff]
    %v705 = vld [vmem:[#allocation6 + $0xd38] sm:$0xff]
    %v706 = vld [vmem:[#allocation6 + $0xd40] sm:$0xff]
    %v707 = vld [vmem:[#allocation6 + $0xd48] sm:$0xff]
    %v708 = vld [vmem:[#allocation6 + $0xd50] sm:$0xff]
    %v709 = vld [vmem:[#allocation6 + $0xd58] sm:$0xff]
    %v710 = vld [vmem:[#allocation6 + $0xd60] sm:$0xff]
    %v711 = vld [vmem:[#allocation6 + $0xd68] sm:$0xff]
    %v712 = vld [vmem:[#allocation6 + $0xd70] sm:$0xff]
    %v713 = vld [vmem:[#allocation6 + $0xd78] sm:$0xff]
    %v714 = vld [vmem:[#allocation6 + $0xd80] sm:$0xff]
    %v715 = vld [vmem:[#allocation6 + $0xd88] sm:$0xff]
    %v716 = vld [vmem:[#allocation6 + $0xd90] sm:$0xff]
    %v717 = vld [vmem:[#allocation6 + $0xd98] sm:$0xff]
    %v718 = vld [vmem:[#allocation6 + $0xda0] sm:$0xff]
    %v719 = vld [vmem:[#allocation6 + $0xda8] sm:$0xff]
    %v720 = vld [vmem:[#allocation6 + $0xdb0] sm:$0xff]
    %v721 = vld [vmem:[#allocation6 + $0xdb8] sm:$0xff]
    %v722 = vld [vmem:[#allocation6 + $0xdc0] sm:$0xff]
    %v723 = vld [vmem:[#allocation6 + $0xdc8] sm:$0xff]
    %v724 = vld [vmem:[#allocation6 + $0xdd0] sm:$0xff]
    %v725 = vld [vmem:[#allocation6 + $0xdd8] sm:$0xff]
    %v726 = vld [vmem:[#allocation6 + $0xde0] sm:$0xff]
    %v727 = vld [vmem:[#allocation6 + $0xde8] sm:$0xff]
    %v728 = vld [vmem:[#allocation6 + $0xdf0] sm:$0xff]
    %v729 = vld [vmem:[#allocation6 + $0xdf8] sm:$0xff]
    %v730 = vld [vmem:[#allocation6 + $0xe00] sm:$0xff]
    %v731 = vld [vmem:[#allocation6 + $0xe08] sm:$0xff]
    %v732 = vld [vmem:[#allocation6 + $0xe10] sm:$0xff]
    %v733 = vld [vmem:[#allocation6 + $0xe18] sm:$0xff]
    %v734 = vld [vmem:[#allocation6 + $0xe20] sm:$0xff]
    %v735 = vld [vmem:[#allocation6 + $0xe28] sm:$0xff]
    %v736 = vld [vmem:[#allocation6 + $0xe30] sm:$0xff]
    %v737 = vld [vmem:[#allocation6 + $0xe38] sm:$0xff]
    %v738 = vld [vmem:[#allocation6 + $0xe40] sm:$0xff]
    %v739 = vld [vmem:[#allocation6 + $0xe48] sm:$0xff]
    %v740 = vld [vmem:[#allocation6 + $0xe50] sm:$0xff]
    %v741 = vld [vmem:[#allocation6 + $0xe58] sm:$0xff]
    %v742 = vld [vmem:[#allocation6 + $0xe60] sm:$0xff]
    %v743 = vld [vmem:[#allocation6 + $0xe68] sm:$0xff]
    %v744 = vld [vmem:[#allocation6 + $0xe70] sm:$0xff]
    %v745 = vld [vmem:[#allocation6 + $0xe78] sm:$0xff]
    %v746 = vld [vmem:[#allocation6 + $0xe80] sm:$0xff]
    %v747 = vld [vmem:[#allocation6 + $0xe88] sm:$0xff]
    %v748 = vld [vmem:[#allocation6 + $0xe90] sm:$0xff]
    %v749 = vld [vmem:[#allocation6 + $0xe98] sm:$0xff]
    %v750 = vld [vmem:[#allocation6 + $0xea0] sm:$0xff]
    %v751 = vld [vmem:[#allocation6 + $0xea8] sm:$0xff]
    %v752 = vld [vmem:[#allocation6 + $0xeb0] sm:$0xff]
    %v753 = vld [vmem:[#allocation6 + $0xeb8] sm:$0xff]
    %v754 = vld [vmem:[#allocation6 + $0xec0] sm:$0xff]
    %v755 = vld [vmem:[#allocation6 + $0xec8] sm:$0xff]
    %v756 = vld [vmem:[#allocation6 + $0xed0] sm:$0xff]
    %v757 = vld [vmem:[#allocation6 + $0xed8] sm:$0xff]
    %v758 = vld [vmem:[#allocation6 + $0xee0] sm:$0xff]
    %v759 = vld [vmem:[#allocation6 + $0xee8] sm:$0xff]
    %v760 = vld [vmem:[#allocation6 + $0xef0] sm:$0xff]
    %v761 = vld [vmem:[#allocation6 + $0xef8] sm:$0xff]
    %v762 = vld [vmem:[#allocation6 + $0xf00] sm:$0xff]
    %v763 = vld [vmem:[#allocation6 + $0xf08] sm:$0xff]
    %v764 = vld [vmem:[#allocation6 + $0xf10] sm:$0xff]
    %v765 = vld [vmem:[#allocation6 + $0xf18] sm:$0xff]
    %v766 = vld [vmem:[#allocation6 + $0xf20] sm:$0xff]
    %v767 = vld [vmem:[#allocation6 + $0xf28] sm:$0xff]
    %v768 = vld [vmem:[#allocation6 + $0xf30] sm:$0xff]
    %v769 = vld [vmem:[#allocation6 + $0xf38] sm:$0xff]
    %v770 = vld [vmem:[#allocation6 + $0xf40] sm:$0xff]
    %v771 = vld [vmem:[#allocation6 + $0xf48] sm:$0xff]
    %v772 = vld [vmem:[#allocation8] sm:$0xff]
    %v773 = vld [vmem:[#allocation8 + $0x8] sm:$0x3]
    %v776 = vperm.slane %v772, 0
    %v777 = vperm.slane %v772, 1
    %v778 = vperm.slane %v772, 2
    %v779 = vperm.slane %v772, 3
    %v780 = vperm.slane %v772, 4
    %v781 = vperm.slane %v772, 5
    %v782 = vperm.slane %v772, 6
    %v783 = vperm.slane %v772, 7
    %v784 = vperm.slane %v773, 0
    %v785 = vperm.slane %v773, 1
    %v1286 = vunpack.c.l.b16 %v282
    %v1287 = vunpack.c.h.b16 %v282
    %v1288 = vunpack.c.l.b16 %v283
    %v1289 = vunpack.c.h.b16 %v283
    %v1290 = vunpack.c.l.b16 %v284
    %v1291 = vunpack.c.h.b16 %v284
    %v1292 = vunpack.c.l.b16 %v285
    %v1293 = vunpack.c.h.b16 %v285
    %v1294 = vunpack.c.l.b16 %v286
    %v1295 = vunpack.c.h.b16 %v286
    %v1296 = vunpack.c.l.b16 %v287
    %v1297 = vunpack.c.h.b16 %v287
    %v1298 = vunpack.c.l.b16 %v288
    %v1299 = vunpack.c.h.b16 %v288
    %v1300 = vunpack.c.l.b16 %v289
    %v1301 = vunpack.c.h.b16 %v289
    %v1302 = vunpack.c.l.b16 %v290
    %v1303 = vunpack.c.h.b16 %v290
    %v1304 = vunpack.c.l.b16 %v291
    %v1305 = vunpack.c.h.b16 %v291
    %v1306 = vunpack.c.l.b16 %v292
    %v1307 = vunpack.c.h.b16 %v292
    %v1308 = vunpack.c.l.b16 %v293
    %v1309 = vunpack.c.h.b16 %v293
    %v1310 = vunpack.c.l.b16 %v294
    %v1311 = vunpack.c.h.b16 %v294
    %v1312 = vunpack.c.l.b16 %v295
    %v1313 = vunpack.c.h.b16 %v295
    %v1314 = vunpack.c.l.b16 %v296
    %v1315 = vunpack.c.h.b16 %v296
    %v1316 = vunpack.c.l.b16 %v297
    %v1317 = vunpack.c.h.b16 %v297
    %v1318 = vunpack.c.l.b16 %v298
    %v1319 = vunpack.c.h.b16 %v298
    %v1320 = vunpack.c.l.b16 %v299
    %v1321 = vunpack.c.h.b16 %v299
    %v1322 = vunpack.c.l.b16 %v300
    %v1323 = vunpack.c.h.b16 %v300
    %v1324 = vunpack.c.l.b16 %v301
    %v1325 = vunpack.c.h.b16 %v301
    %v1326 = vunpack.c.l.b16 %v302
    %v1327 = vunpack.c.h.b16 %v302
    %v1328 = vunpack.c.l.b16 %v303
    %v1329 = vunpack.c.h.b16 %v303
    %v1330 = vunpack.c.l.b16 %v304
    %v1331 = vunpack.c.h.b16 %v304
    %v1332 = vunpack.c.l.b16 %v305
    %v1333 = vunpack.c.h.b16 %v305
    %v1334 = vunpack.c.l.b16 %v306
    %v1335 = vunpack.c.h.b16 %v306
    %v1336 = vunpack.c.l.b16 %v307
    %v1337 = vunpack.c.h.b16 %v307
    %v1338 = vunpack.c.l.b16 %v308
    %v1339 = vunpack.c.h.b16 %v308
    %v1340 = vunpack.c.l.b16 %v309
    %v1341 = vunpack.c.h.b16 %v309
    %v1342 = vunpack.c.l.b16 %v310
    %v1343 = vunpack.c.h.b16 %v310
    %v1344 = vunpack.c.l.b16 %v311
    %v1345 = vunpack.c.h.b16 %v311
    %v1346 = vunpack.c.l.b16 %v312
    %v1347 = vunpack.c.h.b16 %v312
    %v1348 = vunpack.c.l.b16 %v313
    %v1349 = vunpack.c.h.b16 %v313
    %v1350 = vunpack.c.l.b16 %v314
    %v1351 = vunpack.c.h.b16 %v314
    %v1352 = vunpack.c.l.b16 %v315
    %v1353 = vunpack.c.h.b16 %v315
    %v1354 = vunpack.c.l.b16 %v316
    %v1355 = vunpack.c.h.b16 %v316
    %v1356 = vunpack.c.l.b16 %v317
    %v1357 = vunpack.c.h.b16 %v317
    %v1358 = vunpack.c.l.b16 %v318
    %v1359 = vunpack.c.h.b16 %v318
    %v1360 = vunpack.c.l.b16 %v319
    %v1361 = vunpack.c.h.b16 %v319
    %v1362 = vunpack.c.l.b16 %v320
    %v1363 = vunpack.c.h.b16 %v320
    %v1364 = vunpack.c.l.b16 %v321
    %v1365 = vunpack.c.h.b16 %v321
    %v1366 = vunpack.c.l.b16 %v322
    %v1367 = vunpack.c.h.b16 %v322
    %v1368 = vunpack.c.l.b16 %v323
    %v1369 = vunpack.c.h.b16 %v323
    %v1370 = vunpack.c.l.b16 %v324
    %v1371 = vunpack.c.h.b16 %v324
    %v1372 = vunpack.c.l.b16 %v325
    %v1373 = vunpack.c.h.b16 %v325
    %v1374 = vunpack.c.l.b16 %v326
    %v1375 = vunpack.c.h.b16 %v326
    %v1376 = vunpack.c.l.b16 %v327
    %v1377 = vunpack.c.h.b16 %v327
    %v1378 = vunpack.c.l.b16 %v328
    %v1379 = vunpack.c.h.b16 %v328
    %v1380 = vunpack.c.l.b16 %v329
    %v1381 = vunpack.c.h.b16 %v329
    %v1382 = vunpack.c.l.b16 %v330
    %v1383 = vunpack.c.h.b16 %v330
    %v1384 = vunpack.c.l.b16 %v331
    %v1385 = vunpack.c.h.b16 %v331
    %v1386 = vunpack.c.l.b16 %v332
    %v1387 = vunpack.c.h.b16 %v332
    %v1388 = vunpack.c.l.b16 %v333
    %v1389 = vunpack.c.h.b16 %v333
    %v1390 = vunpack.c.l.b16 %v334
    %v1391 = vunpack.c.h.b16 %v334
    %v1392 = vunpack.c.l.b16 %v335
    %v1393 = vunpack.c.h.b16 %v335
    %v1394 = vunpack.c.l.b16 %v336
    %v1395 = vunpack.c.h.b16 %v336
    %v1396 = vunpack.c.l.b16 %v337
    %v1397 = vunpack.c.h.b16 %v337
    %v1398 = vunpack.c.l.b16 %v338
    %v1399 = vunpack.c.h.b16 %v338
    %v1400 = vunpack.c.l.b16 %v339
    %v1401 = vunpack.c.h.b16 %v339
    %v1402 = vunpack.c.l.b16 %v340
    %v1403 = vunpack.c.h.b16 %v340
    %v1404 = vunpack.c.l.b16 %v341
    %v1405 = vunpack.c.h.b16 %v341
    %v1406 = vunpack.c.l.b16 %v342
    %v1407 = vunpack.c.h.b16 %v342
    %v1408 = vunpack.c.l.b16 %v343
    %v1409 = vunpack.c.h.b16 %v343
    %v1410 = vunpack.c.l.b16 %v344
    %v1411 = vunpack.c.h.b16 %v344
    %v1412 = vunpack.c.l.b16 %v345
    %v1413 = vunpack.c.h.b16 %v345
    %v1414 = vunpack.c.l.b16 %v346
    %v1415 = vunpack.c.h.b16 %v346
    %v1416 = vunpack.c.l.b16 %v347
    %v1417 = vunpack.c.h.b16 %v347
    %v1418 = vunpack.c.l.b16 %v348
    %v1419 = vunpack.c.h.b16 %v348
    %v1420 = vunpack.c.l.b16 %v349
    %v1421 = vunpack.c.h.b16 %v349
    %v1422 = vunpack.c.l.b16 %v350
    %v1423 = vunpack.c.h.b16 %v350
    %v1424 = vunpack.c.l.b16 %v351
    %v1425 = vunpack.c.h.b16 %v351
    %v1426 = vunpack.c.l.b16 %v352
    %v1427 = vunpack.c.h.b16 %v352
    %v1428 = vunpack.c.l.b16 %v353
    %v1429 = vunpack.c.h.b16 %v353
    %v1430 = vunpack.c.l.b16 %v354
    %v1431 = vunpack.c.h.b16 %v354
    %v1432 = vunpack.c.l.b16 %v355
    %v1433 = vunpack.c.h.b16 %v355
    %v1434 = vunpack.c.l.b16 %v356
    %v1435 = vunpack.c.h.b16 %v356
    %v1436 = vunpack.c.l.b16 %v357
    %v1437 = vunpack.c.h.b16 %v357
    %v1438 = vunpack.c.l.b16 %v358
    %v1439 = vunpack.c.h.b16 %v358
    %v1440 = vunpack.c.l.b16 %v359
    %v1441 = vunpack.c.h.b16 %v359
    %v1442 = vunpack.c.l.b16 %v360
    %v1443 = vunpack.c.h.b16 %v360
    %v1444 = vunpack.c.l.b16 %v361
    %v1445 = vunpack.c.h.b16 %v361
    %v1446 = vunpack.c.l.b16 %v362
    %v1447 = vunpack.c.h.b16 %v362
    %v1448 = vunpack.c.l.b16 %v363
    %v1449 = vunpack.c.h.b16 %v363
    %v1450 = vunpack.c.l.b16 %v364
    %v1451 = vunpack.c.h.b16 %v364
    %v1452 = vunpack.c.l.b16 %v365
    %v1453 = vunpack.c.h.b16 %v365
    %v1454 = vunpack.c.l.b16 %v366
    %v1455 = vunpack.c.h.b16 %v366
    %v1456 = vunpack.c.l.b16 %v367
    %v1457 = vunpack.c.h.b16 %v367
    %v1458 = vunpack.c.l.b16 %v368
    %v1459 = vunpack.c.h.b16 %v368
    %v1460 = vunpack.c.l.b16 %v369
    %v1461 = vunpack.c.h.b16 %v369
    %v1462 = vunpack.c.l.b16 %v370
    %v1463 = vunpack.c.h.b16 %v370
    %v1464 = vunpack.c.l.b16 %v371
    %v1465 = vunpack.c.h.b16 %v371
    %v1466 = vunpack.c.l.b16 %v372
    %v1467 = vunpack.c.h.b16 %v372
    %v1468 = vunpack.c.l.b16 %v373
    %v1469 = vunpack.c.h.b16 %v373
    %v1470 = vunpack.c.l.b16 %v374
    %v1471 = vunpack.c.h.b16 %v374
    %v1472 = vunpack.c.l.b16 %v375
    %v1473 = vunpack.c.h.b16 %v375
    %v1474 = vunpack.c.l.b16 %v376
    %v1475 = vunpack.c.h.b16 %v376
    %v1476 = vunpack.c.l.b16 %v377
    %v1477 = vunpack.c.h.b16 %v377
    %v1478 = vunpack.c.l.b16 %v378
    %v1479 = vunpack.c.h.b16 %v378
    %v1480 = vunpack.c.l.b16 %v379
    %v1481 = vunpack.c.h.b16 %v379
    %v1482 = vunpack.c.l.b16 %v380
    %v1483 = vunpack.c.h.b16 %v380
    %v1484 = vunpack.c.l.b16 %v381
    %v1485 = vunpack.c.h.b16 %v381
    %v1486 = vunpack.c.l.b16 %v382
    %v1487 = vunpack.c.h.b16 %v382
    %v1488 = vunpack.c.l.b16 %v383
    %v1489 = vunpack.c.h.b16 %v383
    %v1490 = vunpack.c.l.b16 %v384
    %v1491 = vunpack.c.h.b16 %v384
    %v1492 = vunpack.c.l.b16 %v385
    %v1493 = vunpack.c.h.b16 %v385
    %v1494 = vunpack.c.l.b16 %v386
    %v1495 = vunpack.c.h.b16 %v386
    %v1496 = vunpack.c.l.b16 %v387
    %v1497 = vunpack.c.h.b16 %v387
    %v1498 = vunpack.c.l.b16 %v388
    %v1499 = vunpack.c.h.b16 %v388
    %v1500 = vunpack.c.l.b16 %v389
    %v1501 = vunpack.c.h.b16 %v389
    %v1502 = vunpack.c.l.b16 %v390
    %v1503 = vunpack.c.h.b16 %v390
    %v1504 = vunpack.c.l.b16 %v391
    %v1505 = vunpack.c.h.b16 %v391
    %v1506 = vunpack.c.l.b16 %v392
    %v1507 = vunpack.c.h.b16 %v392
    %v1508 = vunpack.c.l.b16 %v393
    %v1509 = vunpack.c.h.b16 %v393
    %v1510 = vunpack.c.l.b16 %v394
    %v1511 = vunpack.c.h.b16 %v394
    %v1512 = vunpack.c.l.b16 %v395
    %v1513 = vunpack.c.h.b16 %v395
    %v1514 = vunpack.c.l.b16 %v396
    %v1515 = vunpack.c.h.b16 %v396
    %v1516 = vunpack.c.l.b16 %v397
    %v1517 = vunpack.c.h.b16 %v397
    %v1518 = vunpack.c.l.b16 %v398
    %v1519 = vunpack.c.h.b16 %v398
    %v1520 = vunpack.c.l.b16 %v399
    %v1521 = vunpack.c.h.b16 %v399
    %v1522 = vunpack.c.l.b16 %v400
    %v1523 = vunpack.c.h.b16 %v400
    %v1524 = vunpack.c.l.b16 %v401
    %v1525 = vunpack.c.h.b16 %v401
    %v1526 = vunpack.c.l.b16 %v402
    %v1527 = vunpack.c.h.b16 %v402
    %v1528 = vunpack.c.l.b16 %v403
    %v1529 = vunpack.c.h.b16 %v403
    %v1530 = vunpack.c.l.b16 %v404
    %v1531 = vunpack.c.h.b16 %v404
    %v1532 = vunpack.c.l.b16 %v405
    %v1533 = vunpack.c.h.b16 %v405
    %v1534 = vunpack.c.l.b16 %v406
    %v1535 = vunpack.c.h.b16 %v406
    %v1536 = vunpack.c.l.b16 %v407
    %v1537 = vunpack.c.h.b16 %v407
    %v1538 = vunpack.c.l.b16 %v408
    %v1539 = vunpack.c.h.b16 %v408
    %v1540 = vunpack.c.l.b16 %v409
    %v1541 = vunpack.c.h.b16 %v409
    %v1542 = vunpack.c.l.b16 %v410
    %v1543 = vunpack.c.h.b16 %v410
    %v1544 = vunpack.c.l.b16 %v411
    %v1545 = vunpack.c.h.b16 %v411
    %v1546 = vunpack.c.l.b16 %v412
    %v1547 = vunpack.c.h.b16 %v412
    %v1548 = vunpack.c.l.b16 %v413
    %v1549 = vunpack.c.h.b16 %v413
    %v1550 = vunpack.c.l.b16 %v414
    %v1551 = vunpack.c.h.b16 %v414
    %v1552 = vunpack.c.l.b16 %v415
    %v1553 = vunpack.c.h.b16 %v415
    %v1554 = vunpack.c.l.b16 %v416
    %v1555 = vunpack.c.h.b16 %v416
    %v1556 = vunpack.c.l.b16 %v417
    %v1557 = vunpack.c.h.b16 %v417
    %v1558 = vunpack.c.l.b16 %v418
    %v1559 = vunpack.c.h.b16 %v418
    %v1560 = vunpack.c.l.b16 %v419
    %v1561 = vunpack.c.h.b16 %v419
    %v1562 = vunpack.c.l.b16 %v420
    %v1563 = vunpack.c.h.b16 %v420
    %v1564 = vunpack.c.l.b16 %v421
    %v1565 = vunpack.c.h.b16 %v421
    %v1566 = vunpack.c.l.b16 %v422
    %v1567 = vunpack.c.h.b16 %v422
    %v1568 = vunpack.c.l.b16 %v423
    %v1569 = vunpack.c.h.b16 %v423
    %v1570 = vunpack.c.l.b16 %v424
    %v1571 = vunpack.c.h.b16 %v424
    %v1572 = vunpack.c.l.b16 %v425
    %v1573 = vunpack.c.h.b16 %v425
    %v1574 = vunpack.c.l.b16 %v426
    %v1575 = vunpack.c.h.b16 %v426
    %v1576 = vunpack.c.l.b16 %v427
    %v1577 = vunpack.c.h.b16 %v427
    %v1578 = vunpack.c.l.b16 %v428
    %v1579 = vunpack.c.h.b16 %v428
    %v1580 = vunpack.c.l.b16 %v429
    %v1581 = vunpack.c.h.b16 %v429
    %v1582 = vunpack.c.l.b16 %v430
    %v1583 = vunpack.c.h.b16 %v430
    %v1584 = vunpack.c.l.b16 %v431
    %v1585 = vunpack.c.h.b16 %v431
    %v1586 = vunpack.c.l.b16 %v432
    %v1587 = vunpack.c.h.b16 %v432
    %v1588 = vunpack.c.l.b16 %v433
    %v1589 = vunpack.c.h.b16 %v433
    %v1590 = vunpack.c.l.b16 %v434
    %v1591 = vunpack.c.h.b16 %v434
    %v1592 = vunpack.c.l.b16 %v435
    %v1593 = vunpack.c.h.b16 %v435
    %v1594 = vunpack.c.l.b16 %v436
    %v1595 = vunpack.c.h.b16 %v436
    %v1596 = vunpack.c.l.b16 %v437
    %v1597 = vunpack.c.h.b16 %v437
    %v1598 = vunpack.c.l.b16 %v438
    %v1599 = vunpack.c.h.b16 %v438
    %v1600 = vunpack.c.l.b16 %v439
    %v1601 = vunpack.c.h.b16 %v439
    %v1602 = vunpack.c.l.b16 %v440
    %v1603 = vunpack.c.h.b16 %v440
    %v1604 = vunpack.c.l.b16 %v441
    %v1605 = vunpack.c.h.b16 %v441
    %v1606 = vunpack.c.l.b16 %v442
    %v1607 = vunpack.c.h.b16 %v442
    %v1608 = vunpack.c.l.b16 %v443
    %v1609 = vunpack.c.h.b16 %v443
    %v1610 = vunpack.c.l.b16 %v444
    %v1611 = vunpack.c.h.b16 %v444
    %v1612 = vunpack.c.l.b16 %v445
    %v1613 = vunpack.c.h.b16 %v445
    %v1614 = vunpack.c.l.b16 %v446
    %v1615 = vunpack.c.h.b16 %v446
    %v1616 = vunpack.c.l.b16 %v447
    %v1617 = vunpack.c.h.b16 %v447
    %v1618 = vunpack.c.l.b16 %v448
    %v1619 = vunpack.c.h.b16 %v448
    %v1620 = vunpack.c.l.b16 %v449
    %v1621 = vunpack.c.h.b16 %v449
    %v1622 = vunpack.c.l.b16 %v450
    %v1623 = vunpack.c.h.b16 %v450
    %v1624 = vunpack.c.l.b16 %v451
    %v1625 = vunpack.c.h.b16 %v451
    %v1626 = vunpack.c.l.b16 %v452
    %v1627 = vunpack.c.h.b16 %v452
    %v1628 = vunpack.c.l.b16 %v453
    %v1629 = vunpack.c.h.b16 %v453
    %v1630 = vunpack.c.l.b16 %v454
    %v1631 = vunpack.c.h.b16 %v454
    %v1632 = vunpack.c.l.b16 %v455
    %v1633 = vunpack.c.h.b16 %v455
    %v1634 = vunpack.c.l.b16 %v456
    %v1635 = vunpack.c.h.b16 %v456
    %v1636 = vunpack.c.l.b16 %v457
    %v1637 = vunpack.c.h.b16 %v457
    %v1638 = vunpack.c.l.b16 %v458
    %v1639 = vunpack.c.h.b16 %v458
    %v1640 = vunpack.c.l.b16 %v459
    %v1641 = vunpack.c.h.b16 %v459
    %v1642 = vunpack.c.l.b16 %v460
    %v1643 = vunpack.c.h.b16 %v460
    %v1644 = vunpack.c.l.b16 %v461
    %v1645 = vunpack.c.h.b16 %v461
    %v1646 = vunpack.c.l.b16 %v462
    %v1647 = vunpack.c.h.b16 %v462
    %v1648 = vunpack.c.l.b16 %v463
    %v1649 = vunpack.c.h.b16 %v463
    %v1650 = vunpack.c.l.b16 %v464
    %v1651 = vunpack.c.h.b16 %v464
    %v1652 = vunpack.c.l.b16 %v465
    %v1653 = vunpack.c.h.b16 %v465
    %v1654 = vunpack.c.l.b16 %v466
    %v1655 = vunpack.c.h.b16 %v466
    %v1656 = vunpack.c.l.b16 %v467
    %v1657 = vunpack.c.h.b16 %v467
    %v1658 = vunpack.c.l.b16 %v468
    %v1659 = vunpack.c.h.b16 %v468
    %v1660 = vunpack.c.l.b16 %v469
    %v1661 = vunpack.c.h.b16 %v469
    %v1662 = vunpack.c.l.b16 %v470
    %v1663 = vunpack.c.h.b16 %v470
    %v1664 = vunpack.c.l.b16 %v471
    %v1665 = vunpack.c.h.b16 %v471
    %v1666 = vunpack.c.l.b16 %v472
    %v1667 = vunpack.c.h.b16 %v472
    %v1668 = vunpack.c.l.b16 %v473
    %v1669 = vunpack.c.h.b16 %v473
    %v1670 = vunpack.c.l.b16 %v474
    %v1671 = vunpack.c.h.b16 %v474
    %v1672 = vunpack.c.l.b16 %v475
    %v1673 = vunpack.c.h.b16 %v475
    %v1674 = vunpack.c.l.b16 %v476
    %v1675 = vunpack.c.h.b16 %v476
    %v1676 = vunpack.c.l.b16 %v477
    %v1677 = vunpack.c.h.b16 %v477
    %v1678 = vunpack.c.l.b16 %v478
    %v1679 = vunpack.c.h.b16 %v478
    %v1680 = vunpack.c.l.b16 %v479
    %v1681 = vunpack.c.h.b16 %v479
    %v1682 = vunpack.c.l.b16 %v480
    %v1683 = vunpack.c.h.b16 %v480
    %v1684 = vunpack.c.l.b16 %v481
    %v1685 = vunpack.c.h.b16 %v481
    %v1686 = vunpack.c.l.b16 %v482
    %v1687 = vunpack.c.h.b16 %v482
    %v1688 = vunpack.c.l.b16 %v483
    %v1689 = vunpack.c.h.b16 %v483
    %v1690 = vunpack.c.l.b16 %v484
    %v1691 = vunpack.c.h.b16 %v484
    %v1692 = vunpack.c.l.b16 %v485
    %v1693 = vunpack.c.h.b16 %v485
    %v1694 = vunpack.c.l.b16 %v486
    %v1695 = vunpack.c.h.b16 %v486
    %v1696 = vunpack.c.l.b16 %v487
    %v1697 = vunpack.c.h.b16 %v487
    %v1698 = vunpack.c.l.b16 %v488
    %v1699 = vunpack.c.h.b16 %v488
    %v1700 = vunpack.c.l.b16 %v489
    %v1701 = vunpack.c.h.b16 %v489
    %v1702 = vunpack.c.l.b16 %v490
    %v1703 = vunpack.c.h.b16 %v490
    %v1704 = vunpack.c.l.b16 %v491
    %v1705 = vunpack.c.h.b16 %v491
    %v1706 = vunpack.c.l.b16 %v492
    %v1707 = vunpack.c.h.b16 %v492
    %v1708 = vunpack.c.l.b16 %v493
    %v1709 = vunpack.c.h.b16 %v493
    %v1710 = vunpack.c.l.b16 %v494
    %v1711 = vunpack.c.h.b16 %v494
    %v1712 = vunpack.c.l.b16 %v495
    %v1713 = vunpack.c.h.b16 %v495
    %v1714 = vunpack.c.l.b16 %v496
    %v1715 = vunpack.c.h.b16 %v496
    %v1716 = vunpack.c.l.b16 %v497
    %v1717 = vunpack.c.h.b16 %v497
    %v1718 = vunpack.c.l.b16 %v498
    %v1719 = vunpack.c.h.b16 %v498
    %v1720 = vunpack.c.l.b16 %v499
    %v1721 = vunpack.c.h.b16 %v499
    %v1722 = vunpack.c.l.b16 %v500
    %v1723 = vunpack.c.h.b16 %v500
    %v1724 = vunpack.c.l.b16 %v501
    %v1725 = vunpack.c.h.b16 %v501
    %v1726 = vunpack.c.l.b16 %v502
    %v1727 = vunpack.c.h.b16 %v502
    %v1728 = vunpack.c.l.b16 %v503
    %v1729 = vunpack.c.h.b16 %v503
    %v1730 = vunpack.c.l.b16 %v504
    %v1731 = vunpack.c.h.b16 %v504
    %v1732 = vunpack.c.l.b16 %v505
    %v1733 = vunpack.c.h.b16 %v505
    %v1734 = vunpack.c.l.b16 %v506
    %v1735 = vunpack.c.h.b16 %v506
    %v1736 = vunpack.c.l.b16 %v507
    %v1737 = vunpack.c.h.b16 %v507
    %v1738 = vunpack.c.l.b16 %v508
    %v1739 = vunpack.c.h.b16 %v508
    %v1740 = vunpack.c.l.b16 %v509
    %v1741 = vunpack.c.h.b16 %v509
    %v1742 = vunpack.c.l.b16 %v510
    %v1743 = vunpack.c.h.b16 %v510
    %v1744 = vunpack.c.l.b16 %v511
    %v1745 = vunpack.c.h.b16 %v511
    %v1746 = vunpack.c.l.b16 %v512
    %v1747 = vunpack.c.h.b16 %v512
    %v1748 = vunpack.c.l.b16 %v513
    %v1749 = vunpack.c.h.b16 %v513
    %v1750 = vunpack.c.l.b16 %v514
    %v1751 = vunpack.c.h.b16 %v514
    %v1752 = vunpack.c.l.b16 %v515
    %v1753 = vunpack.c.h.b16 %v515
    %v1754 = vunpack.c.l.b16 %v516
    %v1755 = vunpack.c.h.b16 %v516
    %v1756 = vunpack.c.l.b16 %v517
    %v1757 = vunpack.c.h.b16 %v517
    %v1758 = vunpack.c.l.b16 %v518
    %v1759 = vunpack.c.h.b16 %v518
    %v1760 = vunpack.c.l.b16 %v519
    %v1761 = vunpack.c.h.b16 %v519
    %v1762 = vunpack.c.l.b16 %v520
    %v1763 = vunpack.c.h.b16 %v520
    %v1764 = vunpack.c.l.b16 %v521
    %v1765 = vunpack.c.h.b16 %v521
    %v1766 = vunpack.c.l.b16 %v522
    %v1767 = vunpack.c.h.b16 %v522
    %v1768 = vunpack.c.l.b16 %v523
    %v1769 = vunpack.c.h.b16 %v523
    %v1770 = vunpack.c.l.b16 %v524
    %v1771 = vunpack.c.h.b16 %v524
    %v1772 = vunpack.c.l.b16 %v525
    %v1773 = vunpack.c.h.b16 %v525
    %v1774 = vunpack.c.l.b16 %v526
    %v1775 = vunpack.c.h.b16 %v526
    %v1776 = vunpack.c.l.b16 %v527
    %v1777 = vunpack.c.h.b16 %v527
    %v1778 = vunpack.c.l.b16 %v528
    %v1779 = vunpack.c.h.b16 %v528
    %v1780 = vunpack.c.l.b16 %v529
    %v1781 = vunpack.c.h.b16 %v529
    %v1782 = vunpack.c.l.b16 %v530
    %v1783 = vunpack.c.h.b16 %v530
    %v1784 = vunpack.c.l.b16 %v531
    %v1785 = vunpack.c.h.b16 %v531
    %v1786 = vunpack.c.l.b16 %v532
    %v1787 = vunpack.c.h.b16 %v532
    %v1788 = vunpack.c.l.b16 %v533
    %v1789 = vunpack.c.h.b16 %v533
    %v1790 = vunpack.c.l.b16 %v534
    %v1791 = vunpack.c.h.b16 %v534
    %v1792 = vunpack.c.l.b16 %v535
    %v1793 = vunpack.c.h.b16 %v535
    %v1794 = vunpack.c.l.b16 %v536
    %v1795 = vunpack.c.h.b16 %v536
    %v1796 = vunpack.c.l.b16 %v537
    %v1797 = vunpack.c.h.b16 %v537
    %v1798 = vunpack.c.l.b16 %v538
    %v1799 = vunpack.c.h.b16 %v538
    %v1800 = vunpack.c.l.b16 %v539
    %v1801 = vunpack.c.h.b16 %v539
    %v1802 = vunpack.c.l.b16 %v540
    %v1803 = vunpack.c.h.b16 %v540
    %v1804 = vunpack.c.l.b16 %v541
    %v1805 = vunpack.c.h.b16 %v541
    %v1806 = vunpack.c.l.b16 %v542
    %v1807 = vunpack.c.h.b16 %v542
    %v1808 = vunpack.c.l.b16 %v543
    %v1809 = vunpack.c.h.b16 %v543
    %v1810 = vunpack.c.l.b16 %v544
    %v1811 = vunpack.c.h.b16 %v544
    %v1812 = vunpack.c.l.b16 %v545
    %v1813 = vunpack.c.h.b16 %v545
    %v1814 = vunpack.c.l.b16 %v546
    %v1815 = vunpack.c.h.b16 %v546
    %v1816 = vunpack.c.l.b16 %v547
    %v1817 = vunpack.c.h.b16 %v547
    %v1818 = vunpack.c.l.b16 %v548
    %v1819 = vunpack.c.h.b16 %v548
    %v1820 = vunpack.c.l.b16 %v549
    %v1821 = vunpack.c.h.b16 %v549
    %v1822 = vunpack.c.l.b16 %v550
    %v1823 = vunpack.c.h.b16 %v550
    %v1824 = vunpack.c.l.b16 %v551
    %v1825 = vunpack.c.h.b16 %v551
    %v1826 = vunpack.c.l.b16 %v552
    %v1827 = vunpack.c.h.b16 %v552
    %v1828 = vunpack.c.l.b16 %v553
    %v1829 = vunpack.c.h.b16 %v553
    %v1830 = vunpack.c.l.b16 %v554
    %v1831 = vunpack.c.h.b16 %v554
    %v1832 = vunpack.c.l.b16 %v555
    %v1833 = vunpack.c.h.b16 %v555
    %v1834 = vunpack.c.l.b16 %v556
    %v1835 = vunpack.c.h.b16 %v556
    %v1836 = vunpack.c.l.b16 %v557
    %v1837 = vunpack.c.h.b16 %v557
    %v1838 = vunpack.c.l.b16 %v558
    %v1839 = vunpack.c.h.b16 %v558
    %v1840 = vunpack.c.l.b16 %v559
    %v1841 = vunpack.c.h.b16 %v559
    %v1842 = vunpack.c.l.b16 %v560
    %v1843 = vunpack.c.h.b16 %v560
    %v1844 = vunpack.c.l.b16 %v561
    %v1845 = vunpack.c.h.b16 %v561
    %v1846 = vunpack.c.l.b16 %v562
    %v1847 = vunpack.c.h.b16 %v562
    %v1848 = vunpack.c.l.b16 %v563
    %v1849 = vunpack.c.h.b16 %v563
    %v1850 = vunpack.c.l.b16 %v564
    %v1851 = vunpack.c.h.b16 %v564
    %v1852 = vunpack.c.l.b16 %v565
    %v1853 = vunpack.c.h.b16 %v565
    %v1854 = vunpack.c.l.b16 %v566
    %v1855 = vunpack.c.h.b16 %v566
    %v1856 = vunpack.c.l.b16 %v567
    %v1857 = vunpack.c.h.b16 %v567
    %v1858 = vunpack.c.l.b16 %v568
    %v1859 = vunpack.c.h.b16 %v568
    %v1860 = vunpack.c.l.b16 %v569
    %v1861 = vunpack.c.h.b16 %v569
    %v1862 = vunpack.c.l.b16 %v570
    %v1863 = vunpack.c.h.b16 %v570
    %v1864 = vunpack.c.l.b16 %v571
    %v1865 = vunpack.c.h.b16 %v571
    %v1866 = vunpack.c.l.b16 %v572
    %v1867 = vunpack.c.h.b16 %v572
    %v1868 = vunpack.c.l.b16 %v573
    %v1869 = vunpack.c.h.b16 %v573
    %v1870 = vunpack.c.l.b16 %v574
    %v1871 = vunpack.c.h.b16 %v574
    %v1872 = vunpack.c.l.b16 %v575
    %v1873 = vunpack.c.h.b16 %v575
    %v1874 = vunpack.c.l.b16 %v576
    %v1875 = vunpack.c.h.b16 %v576
    %v1876 = vunpack.c.l.b16 %v577
    %v1877 = vunpack.c.h.b16 %v577
    %v1878 = vunpack.c.l.b16 %v578
    %v1879 = vunpack.c.h.b16 %v578
    %v1880 = vunpack.c.l.b16 %v579
    %v1881 = vunpack.c.h.b16 %v579
    %v1882 = vunpack.c.l.b16 %v580
    %v1883 = vunpack.c.h.b16 %v580
    %v1884 = vunpack.c.l.b16 %v581
    %v1885 = vunpack.c.h.b16 %v581
    %v1886 = vunpack.c.l.b16 %v582
    %v1887 = vunpack.c.h.b16 %v582
    %v1888 = vunpack.c.l.b16 %v583
    %v1889 = vunpack.c.h.b16 %v583
    %v1890 = vunpack.c.l.b16 %v584
    %v1891 = vunpack.c.h.b16 %v584
    %v1892 = vunpack.c.l.b16 %v585
    %v1893 = vunpack.c.h.b16 %v585
    %v1894 = vunpack.c.l.b16 %v586
    %v1895 = vunpack.c.h.b16 %v586
    %v1896 = vunpack.c.l.b16 %v587
    %v1897 = vunpack.c.h.b16 %v587
    %v1898 = vunpack.c.l.b16 %v588
    %v1899 = vunpack.c.h.b16 %v588
    %v1900 = vunpack.c.l.b16 %v589
    %v1901 = vunpack.c.h.b16 %v589
    %v1902 = vunpack.c.l.b16 %v590
    %v1903 = vunpack.c.h.b16 %v590
    %v1904 = vunpack.c.l.b16 %v591
    %v1905 = vunpack.c.h.b16 %v591
    %v1906 = vunpack.c.l.b16 %v592
    %v1907 = vunpack.c.h.b16 %v592
    %v1908 = vunpack.c.l.b16 %v593
    %v1909 = vunpack.c.h.b16 %v593
    %v1910 = vunpack.c.l.b16 %v594
    %v1911 = vunpack.c.h.b16 %v594
    %v1912 = vunpack.c.l.b16 %v595
    %v1913 = vunpack.c.h.b16 %v595
    %v1914 = vunpack.c.l.b16 %v596
    %v1915 = vunpack.c.h.b16 %v596
    %v1916 = vunpack.c.l.b16 %v597
    %v1917 = vunpack.c.h.b16 %v597
    %v1918 = vunpack.c.l.b16 %v598
    %v1919 = vunpack.c.h.b16 %v598
    %v1920 = vunpack.c.l.b16 %v599
    %v1921 = vunpack.c.h.b16 %v599
    %v1922 = vunpack.c.l.b16 %v600
    %v1923 = vunpack.c.h.b16 %v600
    %v1924 = vunpack.c.l.b16 %v601
    %v1925 = vunpack.c.h.b16 %v601
    %v1926 = vunpack.c.l.b16 %v602
    %v1927 = vunpack.c.h.b16 %v602
    %v1928 = vunpack.c.l.b16 %v603
    %v1929 = vunpack.c.h.b16 %v603
    %v1930 = vunpack.c.l.b16 %v604
    %v1931 = vunpack.c.h.b16 %v604
    %v1932 = vunpack.c.l.b16 %v605
    %v1933 = vunpack.c.h.b16 %v605
    %v1934 = vunpack.c.l.b16 %v606
    %v1935 = vunpack.c.h.b16 %v606
    %v1936 = vunpack.c.l.b16 %v607
    %v1937 = vunpack.c.h.b16 %v607
    %v1938 = vunpack.c.l.b16 %v608
    %v1939 = vunpack.c.h.b16 %v608
    %v1940 = vunpack.c.l.b16 %v609
    %v1941 = vunpack.c.h.b16 %v609
    %v1942 = vunpack.c.l.b16 %v610
    %v1943 = vunpack.c.h.b16 %v610
    %v1944 = vunpack.c.l.b16 %v611
    %v1945 = vunpack.c.h.b16 %v611
    %v1946 = vunpack.c.l.b16 %v612
    %v1947 = vunpack.c.h.b16 %v612
    %v1948 = vunpack.c.l.b16 %v613
    %v1949 = vunpack.c.h.b16 %v613
    %v1950 = vunpack.c.l.b16 %v614
    %v1951 = vunpack.c.h.b16 %v614
    %v1952 = vunpack.c.l.b16 %v615
    %v1953 = vunpack.c.h.b16 %v615
    %v1954 = vunpack.c.l.b16 %v616
    %v1955 = vunpack.c.h.b16 %v616
    %v1956 = vunpack.c.l.b16 %v617
    %v1957 = vunpack.c.h.b16 %v617
    %v1958 = vunpack.c.l.b16 %v618
    %v1959 = vunpack.c.h.b16 %v618
    %v1960 = vunpack.c.l.b16 %v619
    %v1961 = vunpack.c.h.b16 %v619
    %v1962 = vunpack.c.l.b16 %v620
    %v1963 = vunpack.c.h.b16 %v620
    %v1964 = vunpack.c.l.b16 %v621
    %v1965 = vunpack.c.h.b16 %v621
    %v1966 = vunpack.c.l.b16 %v622
    %v1967 = vunpack.c.h.b16 %v622
    %v1968 = vunpack.c.l.b16 %v623
    %v1969 = vunpack.c.h.b16 %v623
    %v1970 = vunpack.c.l.b16 %v624
    %v1971 = vunpack.c.h.b16 %v624
    %v1972 = vunpack.c.l.b16 %v625
    %v1973 = vunpack.c.h.b16 %v625
    %v1974 = vunpack.c.l.b16 %v626
    %v1975 = vunpack.c.h.b16 %v626
    %v1976 = vunpack.c.l.b16 %v627
    %v1977 = vunpack.c.h.b16 %v627
    %v1978 = vunpack.c.l.b16 %v628
    %v1979 = vunpack.c.h.b16 %v628
    %v1980 = vunpack.c.l.b16 %v629
    %v1981 = vunpack.c.h.b16 %v629
    %v1982 = vunpack.c.l.b16 %v630
    %v1983 = vunpack.c.h.b16 %v630
    %v1984 = vunpack.c.l.b16 %v631
    %v1985 = vunpack.c.h.b16 %v631
    %v1986 = vunpack.c.l.b16 %v632
    %v1987 = vunpack.c.h.b16 %v632
    %v1988 = vunpack.c.l.b16 %v633
    %v1989 = vunpack.c.h.b16 %v633
    %v1990 = vunpack.c.l.b16 %v634
    %v1991 = vunpack.c.h.b16 %v634
    %v1992 = vunpack.c.l.b16 %v635
    %v1993 = vunpack.c.h.b16 %v635
    %v1994 = vunpack.c.l.b16 %v636
    %v1995 = vunpack.c.h.b16 %v636
    %v1996 = vunpack.c.l.b16 %v637
    %v1997 = vunpack.c.h.b16 %v637
    %v1998 = vunpack.c.l.b16 %v638
    %v1999 = vunpack.c.h.b16 %v638
    %v2000 = vunpack.c.l.b16 %v639
    %v2001 = vunpack.c.h.b16 %v639
    %v2002 = vunpack.c.l.b16 %v640
    %v2003 = vunpack.c.h.b16 %v640
    %v2004 = vunpack.c.l.b16 %v641
    %v2005 = vunpack.c.h.b16 %v641
    %v2006 = vunpack.c.l.b16 %v642
    %v2007 = vunpack.c.h.b16 %v642
    %v2008 = vunpack.c.l.b16 %v643
    %v2009 = vunpack.c.h.b16 %v643
    %v2010 = vunpack.c.l.b16 %v644
    %v2011 = vunpack.c.h.b16 %v644
    %v2012 = vunpack.c.l.b16 %v645
    %v2013 = vunpack.c.h.b16 %v645
    %v2014 = vunpack.c.l.b16 %v646
    %v2015 = vunpack.c.h.b16 %v646
    %v2016 = vunpack.c.l.b16 %v647
    %v2017 = vunpack.c.h.b16 %v647
    %v2018 = vunpack.c.l.b16 %v648
    %v2019 = vunpack.c.h.b16 %v648
    %v2020 = vunpack.c.l.b16 %v649
    %v2021 = vunpack.c.h.b16 %v649
    %v2022 = vunpack.c.l.b16 %v650
    %v2023 = vunpack.c.h.b16 %v650
    %v2024 = vunpack.c.l.b16 %v651
    %v2025 = vunpack.c.h.b16 %v651
    %v2026 = vunpack.c.l.b16 %v652
    %v2027 = vunpack.c.h.b16 %v652
    %v2028 = vunpack.c.l.b16 %v653
    %v2029 = vunpack.c.h.b16 %v653
    %v2030 = vunpack.c.l.b16 %v654
    %v2031 = vunpack.c.h.b16 %v654
    %v2032 = vunpack.c.l.b16 %v655
    %v2033 = vunpack.c.h.b16 %v655
    %v2034 = vunpack.c.l.b16 %v656
    %v2035 = vunpack.c.h.b16 %v656
    %v2036 = vunpack.c.l.b16 %v657
    %v2037 = vunpack.c.h.b16 %v657
    %v2038 = vunpack.c.l.b16 %v658
    %v2039 = vunpack.c.h.b16 %v658
    %v2040 = vunpack.c.l.b16 %v659
    %v2041 = vunpack.c.h.b16 %v659
    %v2042 = vunpack.c.l.b16 %v660
    %v2043 = vunpack.c.h.b16 %v660
    %v2044 = vunpack.c.l.b16 %v661
    %v2045 = vunpack.c.h.b16 %v661
    %v2046 = vunpack.c.l.b16 %v662
    %v2047 = vunpack.c.h.b16 %v662
    %v2048 = vunpack.c.l.b16 %v663
    %v2049 = vunpack.c.h.b16 %v663
    %v2050 = vunpack.c.l.b16 %v664
    %v2051 = vunpack.c.h.b16 %v664
    %v2052 = vunpack.c.l.b16 %v665
    %v2053 = vunpack.c.h.b16 %v665
    %v2054 = vunpack.c.l.b16 %v666
    %v2055 = vunpack.c.h.b16 %v666
    %v2056 = vunpack.c.l.b16 %v667
    %v2057 = vunpack.c.h.b16 %v667
    %v2058 = vunpack.c.l.b16 %v668
    %v2059 = vunpack.c.h.b16 %v668
    %v2060 = vunpack.c.l.b16 %v669
    %v2061 = vunpack.c.h.b16 %v669
    %v2062 = vunpack.c.l.b16 %v670
    %v2063 = vunpack.c.h.b16 %v670
    %v2064 = vunpack.c.l.b16 %v671
    %v2065 = vunpack.c.h.b16 %v671
    %v2066 = vunpack.c.l.b16 %v672
    %v2067 = vunpack.c.h.b16 %v672
    %v2068 = vunpack.c.l.b16 %v673
    %v2069 = vunpack.c.h.b16 %v673
    %v2070 = vunpack.c.l.b16 %v674
    %v2071 = vunpack.c.h.b16 %v674
    %v2072 = vunpack.c.l.b16 %v675
    %v2073 = vunpack.c.h.b16 %v675
    %v2074 = vunpack.c.l.b16 %v676
    %v2075 = vunpack.c.h.b16 %v676
    %v2076 = vunpack.c.l.b16 %v677
    %v2077 = vunpack.c.h.b16 %v677
    %v2078 = vunpack.c.l.b16 %v678
    %v2079 = vunpack.c.h.b16 %v678
    %v2080 = vunpack.c.l.b16 %v679
    %v2081 = vunpack.c.h.b16 %v679
    %v2082 = vunpack.c.l.b16 %v680
    %v2083 = vunpack.c.h.b16 %v680
    %v2084 = vunpack.c.l.b16 %v681
    %v2085 = vunpack.c.h.b16 %v681
    %v2086 = vunpack.c.l.b16 %v682
    %v2087 = vunpack.c.h.b16 %v682
    %v2088 = vunpack.c.l.b16 %v683
    %v2089 = vunpack.c.h.b16 %v683
    %v2090 = vunpack.c.l.b16 %v684
    %v2091 = vunpack.c.h.b16 %v684
    %v2092 = vunpack.c.l.b16 %v685
    %v2093 = vunpack.c.h.b16 %v685
    %v2094 = vunpack.c.l.b16 %v686
    %v2095 = vunpack.c.h.b16 %v686
    %v2096 = vunpack.c.l.b16 %v687
    %v2097 = vunpack.c.h.b16 %v687
    %v2098 = vunpack.c.l.b16 %v688
    %v2099 = vunpack.c.h.b16 %v688
    %v2100 = vunpack.c.l.b16 %v689
    %v2101 = vunpack.c.h.b16 %v689
    %v2102 = vunpack.c.l.b16 %v690
    %v2103 = vunpack.c.h.b16 %v690
    %v2104 = vunpack.c.l.b16 %v691
    %v2105 = vunpack.c.h.b16 %v691
    %v2106 = vunpack.c.l.b16 %v692
    %v2107 = vunpack.c.h.b16 %v692
    %v2108 = vunpack.c.l.b16 %v693
    %v2109 = vunpack.c.h.b16 %v693
    %v2110 = vunpack.c.l.b16 %v694
    %v2111 = vunpack.c.h.b16 %v694
    %v2112 = vunpack.c.l.b16 %v695
    %v2113 = vunpack.c.h.b16 %v695
    %v2114 = vunpack.c.l.b16 %v696
    %v2115 = vunpack.c.h.b16 %v696
    %v2116 = vunpack.c.l.b16 %v697
    %v2117 = vunpack.c.h.b16 %v697
    %v2118 = vunpack.c.l.b16 %v698
    %v2119 = vunpack.c.h.b16 %v698
    %v2120 = vunpack.c.l.b16 %v699
    %v2121 = vunpack.c.h.b16 %v699
    %v2122 = vunpack.c.l.b16 %v700
    %v2123 = vunpack.c.h.b16 %v700
    %v2124 = vunpack.c.l.b16 %v701
    %v2125 = vunpack.c.h.b16 %v701
    %v2126 = vunpack.c.l.b16 %v702
    %v2127 = vunpack.c.h.b16 %v702
    %v2128 = vunpack.c.l.b16 %v703
    %v2129 = vunpack.c.h.b16 %v703
    %v2130 = vunpack.c.l.b16 %v704
    %v2131 = vunpack.c.h.b16 %v704
    %v2132 = vunpack.c.l.b16 %v705
    %v2133 = vunpack.c.h.b16 %v705
    %v2134 = vunpack.c.l.b16 %v706
    %v2135 = vunpack.c.h.b16 %v706
    %v2136 = vunpack.c.l.b16 %v707
    %v2137 = vunpack.c.h.b16 %v707
    %v2138 = vunpack.c.l.b16 %v708
    %v2139 = vunpack.c.h.b16 %v708
    %v2140 = vunpack.c.l.b16 %v709
    %v2141 = vunpack.c.h.b16 %v709
    %v2142 = vunpack.c.l.b16 %v710
    %v2143 = vunpack.c.h.b16 %v710
    %v2144 = vunpack.c.l.b16 %v711
    %v2145 = vunpack.c.h.b16 %v711
    %v2146 = vunpack.c.l.b16 %v712
    %v2147 = vunpack.c.h.b16 %v712
    %v2148 = vunpack.c.l.b16 %v713
    %v2149 = vunpack.c.h.b16 %v713
    %v2150 = vunpack.c.l.b16 %v714
    %v2151 = vunpack.c.h.b16 %v714
    %v2152 = vunpack.c.l.b16 %v715
    %v2153 = vunpack.c.h.b16 %v715
    %v2154 = vunpack.c.l.b16 %v716
    %v2155 = vunpack.c.h.b16 %v716
    %v2156 = vunpack.c.l.b16 %v717
    %v2157 = vunpack.c.h.b16 %v717
    %v2158 = vunpack.c.l.b16 %v718
    %v2159 = vunpack.c.h.b16 %v718
    %v2160 = vunpack.c.l.b16 %v719
    %v2161 = vunpack.c.h.b16 %v719
    %v2162 = vunpack.c.l.b16 %v720
    %v2163 = vunpack.c.h.b16 %v720
    %v2164 = vunpack.c.l.b16 %v721
    %v2165 = vunpack.c.h.b16 %v721
    %v2166 = vunpack.c.l.b16 %v722
    %v2167 = vunpack.c.h.b16 %v722
    %v2168 = vunpack.c.l.b16 %v723
    %v2169 = vunpack.c.h.b16 %v723
    %v2170 = vunpack.c.l.b16 %v724
    %v2171 = vunpack.c.h.b16 %v724
    %v2172 = vunpack.c.l.b16 %v725
    %v2173 = vunpack.c.h.b16 %v725
    %v2174 = vunpack.c.l.b16 %v726
    %v2175 = vunpack.c.h.b16 %v726
    %v2176 = vunpack.c.l.b16 %v727
    %v2177 = vunpack.c.h.b16 %v727
    %v2178 = vunpack.c.l.b16 %v728
    %v2179 = vunpack.c.h.b16 %v728
    %v2180 = vunpack.c.l.b16 %v729
    %v2181 = vunpack.c.h.b16 %v729
    %v2182 = vunpack.c.l.b16 %v730
    %v2183 = vunpack.c.h.b16 %v730
    %v2184 = vunpack.c.l.b16 %v731
    %v2185 = vunpack.c.h.b16 %v731
    %v2186 = vunpack.c.l.b16 %v732
    %v2187 = vunpack.c.h.b16 %v732
    %v2188 = vunpack.c.l.b16 %v733
    %v2189 = vunpack.c.h.b16 %v733
    %v2190 = vunpack.c.l.b16 %v734
    %v2191 = vunpack.c.h.b16 %v734
    %v2192 = vunpack.c.l.b16 %v735
    %v2193 = vunpack.c.h.b16 %v735
    %v2194 = vunpack.c.l.b16 %v736
    %v2195 = vunpack.c.h.b16 %v736
    %v2196 = vunpack.c.l.b16 %v737
    %v2197 = vunpack.c.h.b16 %v737
    %v2198 = vunpack.c.l.b16 %v738
    %v2199 = vunpack.c.h.b16 %v738
    %v2200 = vunpack.c.l.b16 %v739
    %v2201 = vunpack.c.h.b16 %v739
    %v2202 = vunpack.c.l.b16 %v740
    %v2203 = vunpack.c.h.b16 %v740
    %v2204 = vunpack.c.l.b16 %v741
    %v2205 = vunpack.c.h.b16 %v741
    %v2206 = vunpack.c.l.b16 %v742
    %v2207 = vunpack.c.h.b16 %v742
    %v2208 = vunpack.c.l.b16 %v743
    %v2209 = vunpack.c.h.b16 %v743
    %v2210 = vunpack.c.l.b16 %v744
    %v2211 = vunpack.c.h.b16 %v744
    %v2212 = vunpack.c.l.b16 %v745
    %v2213 = vunpack.c.h.b16 %v745
    %v2214 = vunpack.c.l.b16 %v746
    %v2215 = vunpack.c.h.b16 %v746
    %v2216 = vunpack.c.l.b16 %v747
    %v2217 = vunpack.c.h.b16 %v747
    %v2218 = vunpack.c.l.b16 %v748
    %v2219 = vunpack.c.h.b16 %v748
    %v2220 = vunpack.c.l.b16 %v749
    %v2221 = vunpack.c.h.b16 %v749
    %v2222 = vunpack.c.l.b16 %v750
    %v2223 = vunpack.c.h.b16 %v750
    %v2224 = vunpack.c.l.b16 %v751
    %v2225 = vunpack.c.h.b16 %v751
    %v2226 = vunpack.c.l.b16 %v752
    %v2227 = vunpack.c.h.b16 %v752
    %v2228 = vunpack.c.l.b16 %v753
    %v2229 = vunpack.c.h.b16 %v753
    %v2230 = vunpack.c.l.b16 %v754
    %v2231 = vunpack.c.h.b16 %v754
    %v2232 = vunpack.c.l.b16 %v755
    %v2233 = vunpack.c.h.b16 %v755
    %v2234 = vunpack.c.l.b16 %v756
    %v2235 = vunpack.c.h.b16 %v756
    %v2236 = vunpack.c.l.b16 %v757
    %v2237 = vunpack.c.h.b16 %v757
    %v2238 = vunpack.c.l.b16 %v758
    %v2239 = vunpack.c.h.b16 %v758
    %v2240 = vunpack.c.l.b16 %v759
    %v2241 = vunpack.c.h.b16 %v759
    %v2242 = vunpack.c.l.b16 %v760
    %v2243 = vunpack.c.h.b16 %v760
    %v2244 = vunpack.c.l.b16 %v761
    %v2245 = vunpack.c.h.b16 %v761
    %v2246 = vunpack.c.l.b16 %v762
    %v2247 = vunpack.c.h.b16 %v762
    %v2248 = vunpack.c.l.b16 %v763
    %v2249 = vunpack.c.h.b16 %v763
    %v2250 = vunpack.c.l.b16 %v764
    %v2251 = vunpack.c.h.b16 %v764
    %v2252 = vunpack.c.l.b16 %v765
    %v2253 = vunpack.c.h.b16 %v765
    %v2254 = vunpack.c.l.b16 %v766
    %v2255 = vunpack.c.h.b16 %v766
    %v2256 = vunpack.c.l.b16 %v767
    %v2257 = vunpack.c.h.b16 %v767
    %v2258 = vunpack.c.l.b16 %v768
    %v2259 = vunpack.c.h.b16 %v768
    %v2260 = vunpack.c.l.b16 %v769
    %v2261 = vunpack.c.h.b16 %v769
    %v2262 = vunpack.c.l.b16 %v770
    %v2263 = vunpack.c.h.b16 %v770
    %v2264 = vunpack.c.l.b16 %v771
    %v2265 = vunpack.c.h.b16 %v771
    %v2266 = vpack.c.b16 %v1296, %v1286
    %v2267 = vpack.c.b16 %v1297, %v1287
    %v2268 = vpack.c.b16 %v1298, %v1288
    %v2269 = vpack.c.b16 %v1299, %v1289
    %v2270 = vpack.c.b16 %v1300, %v1290
    %v2271 = vpack.c.b16 %v1301, %v1291
    %v2272 = vpack.c.b16 %v1302, %v1292
    %v2273 = vpack.c.b16 %v1303, %v1293
    %v2274 = vpack.c.b16 %v1304, %v1294
    %v2275 = vpack.c.b16 %v1305, %v1295
    %v2276 = vpack.c.b16 %v1316, %v1306
    %v2277 = vpack.c.b16 %v1317, %v1307
    %v2278 = vpack.c.b16 %v1318, %v1308
    %v2279 = vpack.c.b16 %v1319, %v1309
    %v2280 = vpack.c.b16 %v1320, %v1310
    %v2281 = vpack.c.b16 %v1321, %v1311
    %v2282 = vpack.c.b16 %v1322, %v1312
    %v2283 = vpack.c.b16 %v1323, %v1313
    %v2284 = vpack.c.b16 %v1324, %v1314
    %v2285 = vpack.c.b16 %v1325, %v1315
    %v2286 = vpack.c.b16 %v1336, %v1326
    %v2287 = vpack.c.b16 %v1337, %v1327
    %v2288 = vpack.c.b16 %v1338, %v1328
    %v2289 = vpack.c.b16 %v1339, %v1329
    %v2290 = vpack.c.b16 %v1340, %v1330
    %v2291 = vpack.c.b16 %v1341, %v1331
    %v2292 = vpack.c.b16 %v1342, %v1332
    %v2293 = vpack.c.b16 %v1343, %v1333
    %v2294 = vpack.c.b16 %v1344, %v1334
    %v2295 = vpack.c.b16 %v1345, %v1335
    %v2296 = vpack.c.b16 %v1356, %v1346
    %v2297 = vpack.c.b16 %v1357, %v1347
    %v2298 = vpack.c.b16 %v1358, %v1348
    %v2299 = vpack.c.b16 %v1359, %v1349
    %v2300 = vpack.c.b16 %v1360, %v1350
    %v2301 = vpack.c.b16 %v1361, %v1351
    %v2302 = vpack.c.b16 %v1362, %v1352
    %v2303 = vpack.c.b16 %v1363, %v1353
    %v2304 = vpack.c.b16 %v1364, %v1354
    %v2305 = vpack.c.b16 %v1365, %v1355
    %v2306 = vpack.c.b16 %v1376, %v1366
    %v2307 = vpack.c.b16 %v1377, %v1367
    %v2308 = vpack.c.b16 %v1378, %v1368
    %v2309 = vpack.c.b16 %v1379, %v1369
    %v2310 = vpack.c.b16 %v1380, %v1370
    %v2311 = vpack.c.b16 %v1381, %v1371
    %v2312 = vpack.c.b16 %v1382, %v1372
    %v2313 = vpack.c.b16 %v1383, %v1373
    %v2314 = vpack.c.b16 %v1384, %v1374
    %v2315 = vpack.c.b16 %v1385, %v1375
    %v2316 = vpack.c.b16 %v1396, %v1386
    %v2317 = vpack.c.b16 %v1397, %v1387
    %v2318 = vpack.c.b16 %v1398, %v1388
    %v2319 = vpack.c.b16 %v1399, %v1389
    %v2320 = vpack.c.b16 %v1400, %v1390
    %v2321 = vpack.c.b16 %v1401, %v1391
    %v2322 = vpack.c.b16 %v1402, %v1392
    %v2323 = vpack.c.b16 %v1403, %v1393
    %v2324 = vpack.c.b16 %v1404, %v1394
    %v2325 = vpack.c.b16 %v1405, %v1395
    %v2326 = vpack.c.b16 %v1416, %v1406
    %v2327 = vpack.c.b16 %v1417, %v1407
    %v2328 = vpack.c.b16 %v1418, %v1408
    %v2329 = vpack.c.b16 %v1419, %v1409
    %v2330 = vpack.c.b16 %v1420, %v1410
    %v2331 = vpack.c.b16 %v1421, %v1411
    %v2332 = vpack.c.b16 %v1422, %v1412
    %v2333 = vpack.c.b16 %v1423, %v1413
    %v2334 = vpack.c.b16 %v1424, %v1414
    %v2335 = vpack.c.b16 %v1425, %v1415
    %v2336 = vpack.c.b16 %v1436, %v1426
    %v2337 = vpack.c.b16 %v1437, %v1427
    %v2338 = vpack.c.b16 %v1438, %v1428
    %v2339 = vpack.c.b16 %v1439, %v1429
    %v2340 = vpack.c.b16 %v1440, %v1430
    %v2341 = vpack.c.b16 %v1441, %v1431
    %v2342 = vpack.c.b16 %v1442, %v1432
    %v2343 = vpack.c.b16 %v1443, %v1433
    %v2344 = vpack.c.b16 %v1444, %v1434
    %v2345 = vpack.c.b16 %v1445, %v1435
    %v2346 = vpack.c.b16 %v1456, %v1446
    %v2347 = vpack.c.b16 %v1457, %v1447
    %v2348 = vpack.c.b16 %v1458, %v1448
    %v2349 = vpack.c.b16 %v1459, %v1449
    %v2350 = vpack.c.b16 %v1460, %v1450
    %v2351 = vpack.c.b16 %v1461, %v1451
    %v2352 = vpack.c.b16 %v1462, %v1452
    %v2353 = vpack.c.b16 %v1463, %v1453
    %v2354 = vpack.c.b16 %v1464, %v1454
    %v2355 = vpack.c.b16 %v1465, %v1455
    %v2356 = vpack.c.b16 %v1476, %v1466
    %v2357 = vpack.c.b16 %v1477, %v1467
    %v2358 = vpack.c.b16 %v1478, %v1468
    %v2359 = vpack.c.b16 %v1479, %v1469
    %v2360 = vpack.c.b16 %v1480, %v1470
    %v2361 = vpack.c.b16 %v1481, %v1471
    %v2362 = vpack.c.b16 %v1482, %v1472
    %v2363 = vpack.c.b16 %v1483, %v1473
    %v2364 = vpack.c.b16 %v1484, %v1474
    %v2365 = vpack.c.b16 %v1485, %v1475
    %v2366 = vpack.c.b16 %v1496, %v1486
    %v2367 = vpack.c.b16 %v1497, %v1487
    %v2368 = vpack.c.b16 %v1498, %v1488
    %v2369 = vpack.c.b16 %v1499, %v1489
    %v2370 = vpack.c.b16 %v1500, %v1490
    %v2371 = vpack.c.b16 %v1501, %v1491
    %v2372 = vpack.c.b16 %v1502, %v1492
    %v2373 = vpack.c.b16 %v1503, %v1493
    %v2374 = vpack.c.b16 %v1504, %v1494
    %v2375 = vpack.c.b16 %v1505, %v1495
    %v2376 = vpack.c.b16 %v1516, %v1506
    %v2377 = vpack.c.b16 %v1517, %v1507
    %v2378 = vpack.c.b16 %v1518, %v1508
    %v2379 = vpack.c.b16 %v1519, %v1509
    %v2380 = vpack.c.b16 %v1520, %v1510
    %v2381 = vpack.c.b16 %v1521, %v1511
    %v2382 = vpack.c.b16 %v1522, %v1512
    %v2383 = vpack.c.b16 %v1523, %v1513
    %v2384 = vpack.c.b16 %v1524, %v1514
    %v2385 = vpack.c.b16 %v1525, %v1515
    %v2386 = vpack.c.b16 %v1536, %v1526
    %v2387 = vpack.c.b16 %v1537, %v1527
    %v2388 = vpack.c.b16 %v1538, %v1528
    %v2389 = vpack.c.b16 %v1539, %v1529
    %v2390 = vpack.c.b16 %v1540, %v1530
    %v2391 = vpack.c.b16 %v1541, %v1531
    %v2392 = vpack.c.b16 %v1542, %v1532
    %v2393 = vpack.c.b16 %v1543, %v1533
    %v2394 = vpack.c.b16 %v1544, %v1534
    %v2395 = vpack.c.b16 %v1545, %v1535
    %v2396 = vpack.c.b16 %v1556, %v1546
    %v2397 = vpack.c.b16 %v1557, %v1547
    %v2398 = vpack.c.b16 %v1558, %v1548
    %v2399 = vpack.c.b16 %v1559, %v1549
    %v2400 = vpack.c.b16 %v1560, %v1550
    %v2401 = vpack.c.b16 %v1561, %v1551
    %v2402 = vpack.c.b16 %v1562, %v1552
    %v2403 = vpack.c.b16 %v1563, %v1553
    %v2404 = vpack.c.b16 %v1564, %v1554
    %v2405 = vpack.c.b16 %v1565, %v1555
    %v2406 = vpack.c.b16 %v1576, %v1566
    %v2407 = vpack.c.b16 %v1577, %v1567
    %v2408 = vpack.c.b16 %v1578, %v1568
    %v2409 = vpack.c.b16 %v1579, %v1569
    %v2410 = vpack.c.b16 %v1580, %v1570
    %v2411 = vpack.c.b16 %v1581, %v1571
    %v2412 = vpack.c.b16 %v1582, %v1572
    %v2413 = vpack.c.b16 %v1583, %v1573
    %v2414 = vpack.c.b16 %v1584, %v1574
    %v2415 = vpack.c.b16 %v1585, %v1575
    %v2416 = vpack.c.b16 %v1596, %v1586
    %v2417 = vpack.c.b16 %v1597, %v1587
    %v2418 = vpack.c.b16 %v1598, %v1588
    %v2419 = vpack.c.b16 %v1599, %v1589
    %v2420 = vpack.c.b16 %v1600, %v1590
    %v2421 = vpack.c.b16 %v1601, %v1591
    %v2422 = vpack.c.b16 %v1602, %v1592
    %v2423 = vpack.c.b16 %v1603, %v1593
    %v2424 = vpack.c.b16 %v1604, %v1594
    %v2425 = vpack.c.b16 %v1605, %v1595
    %v2426 = vpack.c.b16 %v1616, %v1606
    %v2427 = vpack.c.b16 %v1617, %v1607
    %v2428 = vpack.c.b16 %v1618, %v1608
    %v2429 = vpack.c.b16 %v1619, %v1609
    %v2430 = vpack.c.b16 %v1620, %v1610
    %v2431 = vpack.c.b16 %v1621, %v1611
    %v2432 = vpack.c.b16 %v1622, %v1612
    %v2433 = vpack.c.b16 %v1623, %v1613
    %v2434 = vpack.c.b16 %v1624, %v1614
    %v2435 = vpack.c.b16 %v1625, %v1615
    %v2436 = vpack.c.b16 %v1636, %v1626
    %v2437 = vpack.c.b16 %v1637, %v1627
    %v2438 = vpack.c.b16 %v1638, %v1628
    %v2439 = vpack.c.b16 %v1639, %v1629
    %v2440 = vpack.c.b16 %v1640, %v1630
    %v2441 = vpack.c.b16 %v1641, %v1631
    %v2442 = vpack.c.b16 %v1642, %v1632
    %v2443 = vpack.c.b16 %v1643, %v1633
    %v2444 = vpack.c.b16 %v1644, %v1634
    %v2445 = vpack.c.b16 %v1645, %v1635
    %v2446 = vpack.c.b16 %v1656, %v1646
    %v2447 = vpack.c.b16 %v1657, %v1647
    %v2448 = vpack.c.b16 %v1658, %v1648
    %v2449 = vpack.c.b16 %v1659, %v1649
    %v2450 = vpack.c.b16 %v1660, %v1650
    %v2451 = vpack.c.b16 %v1661, %v1651
    %v2452 = vpack.c.b16 %v1662, %v1652
    %v2453 = vpack.c.b16 %v1663, %v1653
    %v2454 = vpack.c.b16 %v1664, %v1654
    %v2455 = vpack.c.b16 %v1665, %v1655
    %v2456 = vpack.c.b16 %v1676, %v1666
    %v2457 = vpack.c.b16 %v1677, %v1667
    %v2458 = vpack.c.b16 %v1678, %v1668
    %v2459 = vpack.c.b16 %v1679, %v1669
    %v2460 = vpack.c.b16 %v1680, %v1670
    %v2461 = vpack.c.b16 %v1681, %v1671
    %v2462 = vpack.c.b16 %v1682, %v1672
    %v2463 = vpack.c.b16 %v1683, %v1673
    %v2464 = vpack.c.b16 %v1684, %v1674
    %v2465 = vpack.c.b16 %v1685, %v1675
    %v2466 = vpack.c.b16 %v1696, %v1686
    %v2467 = vpack.c.b16 %v1697, %v1687
    %v2468 = vpack.c.b16 %v1698, %v1688
    %v2469 = vpack.c.b16 %v1699, %v1689
    %v2470 = vpack.c.b16 %v1700, %v1690
    %v2471 = vpack.c.b16 %v1701, %v1691
    %v2472 = vpack.c.b16 %v1702, %v1692
    %v2473 = vpack.c.b16 %v1703, %v1693
    %v2474 = vpack.c.b16 %v1704, %v1694
    %v2475 = vpack.c.b16 %v1705, %v1695
    %v2476 = vpack.c.b16 %v1716, %v1706
    %v2477 = vpack.c.b16 %v1717, %v1707
    %v2478 = vpack.c.b16 %v1718, %v1708
    %v2479 = vpack.c.b16 %v1719, %v1709
    %v2480 = vpack.c.b16 %v1720, %v1710
    %v2481 = vpack.c.b16 %v1721, %v1711
    %v2482 = vpack.c.b16 %v1722, %v1712
    %v2483 = vpack.c.b16 %v1723, %v1713
    %v2484 = vpack.c.b16 %v1724, %v1714
    %v2485 = vpack.c.b16 %v1725, %v1715
    %v2486 = vpack.c.b16 %v1736, %v1726
    %v2487 = vpack.c.b16 %v1737, %v1727
    %v2488 = vpack.c.b16 %v1738, %v1728
    %v2489 = vpack.c.b16 %v1739, %v1729
    %v2490 = vpack.c.b16 %v1740, %v1730
    %v2491 = vpack.c.b16 %v1741, %v1731
    %v2492 = vpack.c.b16 %v1742, %v1732
    %v2493 = vpack.c.b16 %v1743, %v1733
    %v2494 = vpack.c.b16 %v1744, %v1734
    %v2495 = vpack.c.b16 %v1745, %v1735
    %v2496 = vpack.c.b16 %v1756, %v1746
    %v2497 = vpack.c.b16 %v1757, %v1747
    %v2498 = vpack.c.b16 %v1758, %v1748
    %v2499 = vpack.c.b16 %v1759, %v1749
    %v2500 = vpack.c.b16 %v1760, %v1750
    %v2501 = vpack.c.b16 %v1761, %v1751
    %v2502 = vpack.c.b16 %v1762, %v1752
    %v2503 = vpack.c.b16 %v1763, %v1753
    %v2504 = vpack.c.b16 %v1764, %v1754
    %v2505 = vpack.c.b16 %v1765, %v1755
    %v2506 = vpack.c.b16 %v1776, %v1766
    %v2507 = vpack.c.b16 %v1777, %v1767
    %v2508 = vpack.c.b16 %v1778, %v1768
    %v2509 = vpack.c.b16 %v1779, %v1769
    %v2510 = vpack.c.b16 %v1780, %v1770
    %v2511 = vpack.c.b16 %v1781, %v1771
    %v2512 = vpack.c.b16 %v1782, %v1772
    %v2513 = vpack.c.b16 %v1783, %v1773
    %v2514 = vpack.c.b16 %v1784, %v1774
    %v2515 = vpack.c.b16 %v1785, %v1775
    %v2516 = vpack.c.b16 %v1796, %v1786
    %v2517 = vpack.c.b16 %v1797, %v1787
    %v2518 = vpack.c.b16 %v1798, %v1788
    %v2519 = vpack.c.b16 %v1799, %v1789
    %v2520 = vpack.c.b16 %v1800, %v1790
    %v2521 = vpack.c.b16 %v1801, %v1791
    %v2522 = vpack.c.b16 %v1802, %v1792
    %v2523 = vpack.c.b16 %v1803, %v1793
    %v2524 = vpack.c.b16 %v1804, %v1794
    %v2525 = vpack.c.b16 %v1805, %v1795
    %v2526 = vpack.c.b16 %v1816, %v1806
    %v2527 = vpack.c.b16 %v1817, %v1807
    %v2528 = vpack.c.b16 %v1818, %v1808
    %v2529 = vpack.c.b16 %v1819, %v1809
    %v2530 = vpack.c.b16 %v1820, %v1810
    %v2531 = vpack.c.b16 %v1821, %v1811
    %v2532 = vpack.c.b16 %v1822, %v1812
    %v2533 = vpack.c.b16 %v1823, %v1813
    %v2534 = vpack.c.b16 %v1824, %v1814
    %v2535 = vpack.c.b16 %v1825, %v1815
    %v2536 = vpack.c.b16 %v1836, %v1826
    %v2537 = vpack.c.b16 %v1837, %v1827
    %v2538 = vpack.c.b16 %v1838, %v1828
    %v2539 = vpack.c.b16 %v1839, %v1829
    %v2540 = vpack.c.b16 %v1840, %v1830
    %v2541 = vpack.c.b16 %v1841, %v1831
    %v2542 = vpack.c.b16 %v1842, %v1832
    %v2543 = vpack.c.b16 %v1843, %v1833
    %v2544 = vpack.c.b16 %v1844, %v1834
    %v2545 = vpack.c.b16 %v1845, %v1835
    %v2546 = vpack.c.b16 %v1856, %v1846
    %v2547 = vpack.c.b16 %v1857, %v1847
    %v2548 = vpack.c.b16 %v1858, %v1848
    %v2549 = vpack.c.b16 %v1859, %v1849
    %v2550 = vpack.c.b16 %v1860, %v1850
    %v2551 = vpack.c.b16 %v1861, %v1851
    %v2552 = vpack.c.b16 %v1862, %v1852
    %v2553 = vpack.c.b16 %v1863, %v1853
    %v2554 = vpack.c.b16 %v1864, %v1854
    %v2555 = vpack.c.b16 %v1865, %v1855
    %v2556 = vpack.c.b16 %v1876, %v1866
    %v2557 = vpack.c.b16 %v1877, %v1867
    %v2558 = vpack.c.b16 %v1878, %v1868
    %v2559 = vpack.c.b16 %v1879, %v1869
    %v2560 = vpack.c.b16 %v1880, %v1870
    %v2561 = vpack.c.b16 %v1881, %v1871
    %v2562 = vpack.c.b16 %v1882, %v1872
    %v2563 = vpack.c.b16 %v1883, %v1873
    %v2564 = vpack.c.b16 %v1884, %v1874
    %v2565 = vpack.c.b16 %v1885, %v1875
    %v2566 = vpack.c.b16 %v1896, %v1886
    %v2567 = vpack.c.b16 %v1897, %v1887
    %v2568 = vpack.c.b16 %v1898, %v1888
    %v2569 = vpack.c.b16 %v1899, %v1889
    %v2570 = vpack.c.b16 %v1900, %v1890
    %v2571 = vpack.c.b16 %v1901, %v1891
    %v2572 = vpack.c.b16 %v1902, %v1892
    %v2573 = vpack.c.b16 %v1903, %v1893
    %v2574 = vpack.c.b16 %v1904, %v1894
    %v2575 = vpack.c.b16 %v1905, %v1895
    %v2576 = vpack.c.b16 %v1916, %v1906
    %v2577 = vpack.c.b16 %v1917, %v1907
    %v2578 = vpack.c.b16 %v1918, %v1908
    %v2579 = vpack.c.b16 %v1919, %v1909
    %v2580 = vpack.c.b16 %v1920, %v1910
    %v2581 = vpack.c.b16 %v1921, %v1911
    %v2582 = vpack.c.b16 %v1922, %v1912
    %v2583 = vpack.c.b16 %v1923, %v1913
    %v2584 = vpack.c.b16 %v1924, %v1914
    %v2585 = vpack.c.b16 %v1925, %v1915
    %v2586 = vpack.c.b16 %v1936, %v1926
    %v2587 = vpack.c.b16 %v1937, %v1927
    %v2588 = vpack.c.b16 %v1938, %v1928
    %v2589 = vpack.c.b16 %v1939, %v1929
    %v2590 = vpack.c.b16 %v1940, %v1930
    %v2591 = vpack.c.b16 %v1941, %v1931
    %v2592 = vpack.c.b16 %v1942, %v1932
    %v2593 = vpack.c.b16 %v1943, %v1933
    %v2594 = vpack.c.b16 %v1944, %v1934
    %v2595 = vpack.c.b16 %v1945, %v1935
    %v2596 = vpack.c.b16 %v1956, %v1946
    %v2597 = vpack.c.b16 %v1957, %v1947
    %v2598 = vpack.c.b16 %v1958, %v1948
    %v2599 = vpack.c.b16 %v1959, %v1949
    %v2600 = vpack.c.b16 %v1960, %v1950
    %v2601 = vpack.c.b16 %v1961, %v1951
    %v2602 = vpack.c.b16 %v1962, %v1952
    %v2603 = vpack.c.b16 %v1963, %v1953
    %v2604 = vpack.c.b16 %v1964, %v1954
    %v2605 = vpack.c.b16 %v1965, %v1955
    %v2606 = vpack.c.b16 %v1976, %v1966
    %v2607 = vpack.c.b16 %v1977, %v1967
    %v2608 = vpack.c.b16 %v1978, %v1968
    %v2609 = vpack.c.b16 %v1979, %v1969
    %v2610 = vpack.c.b16 %v1980, %v1970
    %v2611 = vpack.c.b16 %v1981, %v1971
    %v2612 = vpack.c.b16 %v1982, %v1972
    %v2613 = vpack.c.b16 %v1983, %v1973
    %v2614 = vpack.c.b16 %v1984, %v1974
    %v2615 = vpack.c.b16 %v1985, %v1975
    %v2616 = vpack.c.b16 %v1996, %v1986
    %v2617 = vpack.c.b16 %v1997, %v1987
    %v2618 = vpack.c.b16 %v1998, %v1988
    %v2619 = vpack.c.b16 %v1999, %v1989
    %v2620 = vpack.c.b16 %v2000, %v1990
    %v2621 = vpack.c.b16 %v2001, %v1991
    %v2622 = vpack.c.b16 %v2002, %v1992
    %v2623 = vpack.c.b16 %v2003, %v1993
    %v2624 = vpack.c.b16 %v2004, %v1994
    %v2625 = vpack.c.b16 %v2005, %v1995
    %v2626 = vpack.c.b16 %v2016, %v2006
    %v2627 = vpack.c.b16 %v2017, %v2007
    %v2628 = vpack.c.b16 %v2018, %v2008
    %v2629 = vpack.c.b16 %v2019, %v2009
    %v2630 = vpack.c.b16 %v2020, %v2010
    %v2631 = vpack.c.b16 %v2021, %v2011
    %v2632 = vpack.c.b16 %v2022, %v2012
    %v2633 = vpack.c.b16 %v2023, %v2013
    %v2634 = vpack.c.b16 %v2024, %v2014
    %v2635 = vpack.c.b16 %v2025, %v2015
    %v2636 = vpack.c.b16 %v2036, %v2026
    %v2637 = vpack.c.b16 %v2037, %v2027
    %v2638 = vpack.c.b16 %v2038, %v2028
    %v2639 = vpack.c.b16 %v2039, %v2029
    %v2640 = vpack.c.b16 %v2040, %v2030
    %v2641 = vpack.c.b16 %v2041, %v2031
    %v2642 = vpack.c.b16 %v2042, %v2032
    %v2643 = vpack.c.b16 %v2043, %v2033
    %v2644 = vpack.c.b16 %v2044, %v2034
    %v2645 = vpack.c.b16 %v2045, %v2035
    %v2646 = vpack.c.b16 %v2056, %v2046
    %v2647 = vpack.c.b16 %v2057, %v2047
    %v2648 = vpack.c.b16 %v2058, %v2048
    %v2649 = vpack.c.b16 %v2059, %v2049
    %v2650 = vpack.c.b16 %v2060, %v2050
    %v2651 = vpack.c.b16 %v2061, %v2051
    %v2652 = vpack.c.b16 %v2062, %v2052
    %v2653 = vpack.c.b16 %v2063, %v2053
    %v2654 = vpack.c.b16 %v2064, %v2054
    %v2655 = vpack.c.b16 %v2065, %v2055
    %v2656 = vpack.c.b16 %v2076, %v2066
    %v2657 = vpack.c.b16 %v2077, %v2067
    %v2658 = vpack.c.b16 %v2078, %v2068
    %v2659 = vpack.c.b16 %v2079, %v2069
    %v2660 = vpack.c.b16 %v2080, %v2070
    %v2661 = vpack.c.b16 %v2081, %v2071
    %v2662 = vpack.c.b16 %v2082, %v2072
    %v2663 = vpack.c.b16 %v2083, %v2073
    %v2664 = vpack.c.b16 %v2084, %v2074
    %v2665 = vpack.c.b16 %v2085, %v2075
    %v2666 = vpack.c.b16 %v2096, %v2086
    %v2667 = vpack.c.b16 %v2097, %v2087
    %v2668 = vpack.c.b16 %v2098, %v2088
    %v2669 = vpack.c.b16 %v2099, %v2089
    %v2670 = vpack.c.b16 %v2100, %v2090
    %v2671 = vpack.c.b16 %v2101, %v2091
    %v2672 = vpack.c.b16 %v2102, %v2092
    %v2673 = vpack.c.b16 %v2103, %v2093
    %v2674 = vpack.c.b16 %v2104, %v2094
    %v2675 = vpack.c.b16 %v2105, %v2095
    %v2676 = vpack.c.b16 %v2116, %v2106
    %v2677 = vpack.c.b16 %v2117, %v2107
    %v2678 = vpack.c.b16 %v2118, %v2108
    %v2679 = vpack.c.b16 %v2119, %v2109
    %v2680 = vpack.c.b16 %v2120, %v2110
    %v2681 = vpack.c.b16 %v2121, %v2111
    %v2682 = vpack.c.b16 %v2122, %v2112
    %v2683 = vpack.c.b16 %v2123, %v2113
    %v2684 = vpack.c.b16 %v2124, %v2114
    %v2685 = vpack.c.b16 %v2125, %v2115
    %v2686 = vpack.c.b16 %v2136, %v2126
    %v2687 = vpack.c.b16 %v2137, %v2127
    %v2688 = vpack.c.b16 %v2138, %v2128
    %v2689 = vpack.c.b16 %v2139, %v2129
    %v2690 = vpack.c.b16 %v2140, %v2130
    %v2691 = vpack.c.b16 %v2141, %v2131
    %v2692 = vpack.c.b16 %v2142, %v2132
    %v2693 = vpack.c.b16 %v2143, %v2133
    %v2694 = vpack.c.b16 %v2144, %v2134
    %v2695 = vpack.c.b16 %v2145, %v2135
    %v2696 = vpack.c.b16 %v2156, %v2146
    %v2697 = vpack.c.b16 %v2157, %v2147
    %v2698 = vpack.c.b16 %v2158, %v2148
    %v2699 = vpack.c.b16 %v2159, %v2149
    %v2700 = vpack.c.b16 %v2160, %v2150
    %v2701 = vpack.c.b16 %v2161, %v2151
    %v2702 = vpack.c.b16 %v2162, %v2152
    %v2703 = vpack.c.b16 %v2163, %v2153
    %v2704 = vpack.c.b16 %v2164, %v2154
    %v2705 = vpack.c.b16 %v2165, %v2155
    %v2706 = vpack.c.b16 %v2176, %v2166
    %v2707 = vpack.c.b16 %v2177, %v2167
    %v2708 = vpack.c.b16 %v2178, %v2168
    %v2709 = vpack.c.b16 %v2179, %v2169
    %v2710 = vpack.c.b16 %v2180, %v2170
    %v2711 = vpack.c.b16 %v2181, %v2171
    %v2712 = vpack.c.b16 %v2182, %v2172
    %v2713 = vpack.c.b16 %v2183, %v2173
    %v2714 = vpack.c.b16 %v2184, %v2174
    %v2715 = vpack.c.b16 %v2185, %v2175
    %v2716 = vpack.c.b16 %v2196, %v2186
    %v2717 = vpack.c.b16 %v2197, %v2187
    %v2718 = vpack.c.b16 %v2198, %v2188
    %v2719 = vpack.c.b16 %v2199, %v2189
    %v2720 = vpack.c.b16 %v2200, %v2190
    %v2721 = vpack.c.b16 %v2201, %v2191
    %v2722 = vpack.c.b16 %v2202, %v2192
    %v2723 = vpack.c.b16 %v2203, %v2193
    %v2724 = vpack.c.b16 %v2204, %v2194
    %v2725 = vpack.c.b16 %v2205, %v2195
    %v2726 = vpack.c.b16 %v2216, %v2206
    %v2727 = vpack.c.b16 %v2217, %v2207
    %v2728 = vpack.c.b16 %v2218, %v2208
    %v2729 = vpack.c.b16 %v2219, %v2209
    %v2730 = vpack.c.b16 %v2220, %v2210
    %v2731 = vpack.c.b16 %v2221, %v2211
    %v2732 = vpack.c.b16 %v2222, %v2212
    %v2733 = vpack.c.b16 %v2223, %v2213
    %v2734 = vpack.c.b16 %v2224, %v2214
    %v2735 = vpack.c.b16 %v2225, %v2215
    %v2736 = vpack.c.b16 %v2236, %v2226
    %v2737 = vpack.c.b16 %v2237, %v2227
    %v2738 = vpack.c.b16 %v2238, %v2228
    %v2739 = vpack.c.b16 %v2239, %v2229
    %v2740 = vpack.c.b16 %v2240, %v2230
    %v2741 = vpack.c.b16 %v2241, %v2231
    %v2742 = vpack.c.b16 %v2242, %v2232
    %v2743 = vpack.c.b16 %v2243, %v2233
    %v2744 = vpack.c.b16 %v2244, %v2234
    %v2745 = vpack.c.b16 %v2245, %v2235
    %v2746 = vpack.c.b16 %v2256, %v2246
    %v2747 = vpack.c.b16 %v2257, %v2247
    %v2748 = vpack.c.b16 %v2258, %v2248
    %v2749 = vpack.c.b16 %v2259, %v2249
    %v2750 = vpack.c.b16 %v2260, %v2250
    %v2751 = vpack.c.b16 %v2261, %v2251
    %v2752 = vpack.c.b16 %v2262, %v2252
    %v2753 = vpack.c.b16 %v2263, %v2253
    %v2754 = vpack.c.b16 %v2264, %v2254
    %v2755 = vpack.c.b16 %v2265, %v2255
    %vm3246 = vcmask 130048
    %v3248 = vsel %vm3246, %v281, 0
    %3250 = vmatpush.bf16.msra.mxu0 %v2336
    %3251 = vmatpush.bf16.msra.mxu0 %v2326
    %3252 = vmatpush.bf16.msra.mxu0 %v2316
    %3253 = vmatpush.bf16.msra.mxu0 %v2306
    %3254 = vmatpush.bf16.msra.mxu0 %v2296
    %3255 = vmatpush.bf16.msra.mxu0 %v2286
    %3256 = vmatpush.bf16.msra.mxu0 %v2276
    %3257 = vmatpush.bf16.msra.mxu0 %v2266
    %3258 = vmatmul.bf16.gmra.mxu0 %v275
    %v3259 = vpop.f32.mrf.mxu0
    %v3260 = vadd.f32 %v776, %v3259
    %v3261 = vpop.f32.mrf.mxu0
    %3262 = vdwg.mxu0
    %3263 = vmatpush.bf16.msra.mxu0 %v2416
    %3264 = vmatpush.bf16.msra.mxu0 %v2406
    %3265 = vmatpush.bf16.msra.mxu0 %v2396
    %3266 = vmatpush.bf16.msra.mxu0 %v2386
    %3267 = vmatpush.bf16.msra.mxu0 %v2376
    %3268 = vmatpush.bf16.msra.mxu0 %v2366
    %3269 = vmatpush.bf16.msra.mxu0 %v2356
    %3270 = vmatpush.bf16.msra.mxu0 %v2346
    %3271 = vmatmul.bf16.gmra.mxu0 %v276
    %v3272 = vpop.f32.mrf.mxu0
    %v3273 = vadd.f32 %v3260, %v3272
    %v3274 = vpop.f32.mrf.mxu0
    %3275 = vdwg.mxu0
    %3276 = vmatpush.bf16.msra.mxu0 %v2496
    %3277 = vmatpush.bf16.msra.mxu0 %v2486
    %3278 = vmatpush.bf16.msra.mxu0 %v2476
    %3279 = vmatpush.bf16.msra.mxu0 %v2466
    %3280 = vmatpush.bf16.msra.mxu0 %v2456
    %3281 = vmatpush.bf16.msra.mxu0 %v2446
    %3282 = vmatpush.bf16.msra.mxu0 %v2436
    %3283 = vmatpush.bf16.msra.mxu0 %v2426
    %3284 = vmatmul.bf16.gmra.mxu0 %v277
    %v3285 = vpop.f32.mrf.mxu0
    %v3286 = vadd.f32 %v3273, %v3285
    %v3287 = vpop.f32.mrf.mxu0
    %3288 = vdwg.mxu0
    %3289 = vmatpush.bf16.msra.mxu0 %v2576
    %3290 = vmatpush.bf16.msra.mxu0 %v2566
    %3291 = vmatpush.bf16.msra.mxu0 %v2556
    %3292 = vmatpush.bf16.msra.mxu0 %v2546
    %3293 = vmatpush.bf16.msra.mxu0 %v2536
    %3294 = vmatpush.bf16.msra.mxu0 %v2526
    %3295 = vmatpush.bf16.msra.mxu0 %v2516
    %3296 = vmatpush.bf16.msra.mxu0 %v2506
    %3297 = vmatmul.bf16.gmra.mxu0 %v278
    %v3298 = vpop.f32.mrf.mxu0
    %v3299 = vadd.f32 %v3286, %v3298
    %v3300 = vpop.f32.mrf.mxu0
    %3301 = vdwg.mxu0
    %3302 = vmatpush.bf16.msra.mxu0 %v2656
    %3303 = vmatpush.bf16.msra.mxu0 %v2646
    %3304 = vmatpush.bf16.msra.mxu0 %v2636
    %3305 = vmatpush.bf16.msra.mxu0 %v2626
    %3306 = vmatpush.bf16.msra.mxu0 %v2616
    %3307 = vmatpush.bf16.msra.mxu0 %v2606
    %3308 = vmatpush.bf16.msra.mxu0 %v2596
    %3309 = vmatpush.bf16.msra.mxu0 %v2586
    %3310 = vmatmul.bf16.gmra.mxu0 %v279
    %v3311 = vpop.f32.mrf.mxu0
    %v3312 = vadd.f32 %v3299, %v3311
    %v3313 = vpop.f32.mrf.mxu0
    %3314 = vdwg.mxu0
    %3315 = vmatpush.bf16.msra.mxu0 %v2736
    %3316 = vmatpush.bf16.msra.mxu0 %v2726
    %3317 = vmatpush.bf16.msra.mxu0 %v2716
    %3318 = vmatpush.bf16.msra.mxu0 %v2706
    %3319 = vmatpush.bf16.msra.mxu0 %v2696
    %3320 = vmatpush.bf16.msra.mxu0 %v2686
    %3321 = vmatpush.bf16.msra.mxu0 %v2676
    %3322 = vmatpush.bf16.msra.mxu0 %v2666
    %3323 = vmatmul.bf16.gmra.mxu0 %v280
    %v3324 = vpop.f32.mrf.mxu0
    %v3325 = vadd.f32 %v3312, %v3324
    %v3326 = vpop.f32.mrf.mxu0
    %3327 = vdwg.mxu0
    %3328 = vmatpush.bf16.msra.mxu0 0
    %3329 = vmatpush.bf16.msra.mxu0 0
    %3330 = vmatpush.bf16.msra.mxu0 0
    %3331 = vmatpush.bf16.msra.mxu0 0
    %3332 = vmatpush.bf16.msra.mxu0 0
    %3333 = vmatpush.bf16.msra.mxu0 0
    %3334 = vmatpush.bf16.msra.mxu0 0
    %3335 = vmatpush.bf16.msra.mxu0 %v2746
    %3336 = vmatmul.bf16.gmra.mxu0 %v3248
    %v3337 = vpop.f32.mrf.mxu0
    %v3338 = vadd.f32 %v3325, %v3337
    %v3339 = vpop.f32.mrf.mxu0
    %3340 = vdwg.mxu0
    %3341 = vmatpush.bf16.msra.mxu0 %v2337
    %3342 = vmatpush.bf16.msra.mxu0 %v2327
    %3343 = vmatpush.bf16.msra.mxu0 %v2317
    %3344 = vmatpush.bf16.msra.mxu0 %v2307
    %3345 = vmatpush.bf16.msra.mxu0 %v2297
    %3346 = vmatpush.bf16.msra.mxu0 %v2287
    %3347 = vmatpush.bf16.msra.mxu0 %v2277
    %3348 = vmatpush.bf16.msra.mxu0 %v2267
    %3349 = vmatmul.bf16.gmra.mxu0 %v275
    %v3350 = vpop.f32.mrf.mxu0
    %v3351 = vadd.f32 %v777, %v3350
    %v3352 = vpop.f32.mrf.mxu0
    %3353 = vdwg.mxu0
    %3354 = vmatpush.bf16.msra.mxu0 %v2417
    %3355 = vmatpush.bf16.msra.mxu0 %v2407
    %3356 = vmatpush.bf16.msra.mxu0 %v2397
    %3357 = vmatpush.bf16.msra.mxu0 %v2387
    %3358 = vmatpush.bf16.msra.mxu0 %v2377
    %3359 = vmatpush.bf16.msra.mxu0 %v2367
    %3360 = vmatpush.bf16.msra.mxu0 %v2357
    %3361 = vmatpush.bf16.msra.mxu0 %v2347
    %3362 = vmatmul.bf16.gmra.mxu0 %v276
    %v3363 = vpop.f32.mrf.mxu0
    %v3364 = vadd.f32 %v3351, %v3363
    %v3365 = vpop.f32.mrf.mxu0
    %3366 = vdwg.mxu0
    %3367 = vmatpush.bf16.msra.mxu0 %v2497
    %3368 = vmatpush.bf16.msra.mxu0 %v2487
    %3369 = vmatpush.bf16.msra.mxu0 %v2477
    %3370 = vmatpush.bf16.msra.mxu0 %v2467
    %3371 = vmatpush.bf16.msra.mxu0 %v2457
    %3372 = vmatpush.bf16.msra.mxu0 %v2447
    %3373 = vmatpush.bf16.msra.mxu0 %v2437
    %3374 = vmatpush.bf16.msra.mxu0 %v2427
    %3375 = vmatmul.bf16.gmra.mxu0 %v277
    %v3376 = vpop.f32.mrf.mxu0
    %v3377 = vadd.f32 %v3364, %v3376
    %v3378 = vpop.f32.mrf.mxu0
    %3379 = vdwg.mxu0
    %3380 = vmatpush.bf16.msra.mxu0 %v2577
    %3381 = vmatpush.bf16.msra.mxu0 %v2567
    %3382 = vmatpush.bf16.msra.mxu0 %v2557
    %3383 = vmatpush.bf16.msra.mxu0 %v2547
    %3384 = vmatpush.bf16.msra.mxu0 %v2537
    %3385 = vmatpush.bf16.msra.mxu0 %v2527
    %3386 = vmatpush.bf16.msra.mxu0 %v2517
    %3387 = vmatpush.bf16.msra.mxu0 %v2507
    %3388 = vmatmul.bf16.gmra.mxu0 %v278
    %v3389 = vpop.f32.mrf.mxu0
    %v3390 = vadd.f32 %v3377, %v3389
    %v3391 = vpop.f32.mrf.mxu0
    %3392 = vdwg.mxu0
    %3393 = vmatpush.bf16.msra.mxu0 %v2657
    %3394 = vmatpush.bf16.msra.mxu0 %v2647
    %3395 = vmatpush.bf16.msra.mxu0 %v2637
    %3396 = vmatpush.bf16.msra.mxu0 %v2627
    %3397 = vmatpush.bf16.msra.mxu0 %v2617
    %3398 = vmatpush.bf16.msra.mxu0 %v2607
    %3399 = vmatpush.bf16.msra.mxu0 %v2597
    %3400 = vmatpush.bf16.msra.mxu0 %v2587
    %3401 = vmatmul.bf16.gmra.mxu0 %v279
    %v3402 = vpop.f32.mrf.mxu0
    %v3403 = vadd.f32 %v3390, %v3402
    %v3404 = vpop.f32.mrf.mxu0
    %3405 = vdwg.mxu0
    %3406 = vmatpush.bf16.msra.mxu0 %v2737
    %3407 = vmatpush.bf16.msra.mxu0 %v2727
    %3408 = vmatpush.bf16.msra.mxu0 %v2717
    %3409 = vmatpush.bf16.msra.mxu0 %v2707
    %3410 = vmatpush.bf16.msra.mxu0 %v2697
    %3411 = vmatpush.bf16.msra.mxu0 %v2687
    %3412 = vmatpush.bf16.msra.mxu0 %v2677
    %3413 = vmatpush.bf16.msra.mxu0 %v2667
    %3414 = vmatmul.bf16.gmra.mxu0 %v280
    %v3415 = vpop.f32.mrf.mxu0
    %v3416 = vadd.f32 %v3403, %v3415
    %v3417 = vpop.f32.mrf.mxu0
    %3418 = vdwg.mxu0
    %3419 = vmatpush.bf16.msra.mxu0 0
    %3420 = vmatpush.bf16.msra.mxu0 0
    %3421 = vmatpush.bf16.msra.mxu0 0
    %3422 = vmatpush.bf16.msra.mxu0 0
    %3423 = vmatpush.bf16.msra.mxu0 0
    %3424 = vmatpush.bf16.msra.mxu0 0
    %3425 = vmatpush.bf16.msra.mxu0 0
    %3426 = vmatpush.bf16.msra.mxu0 %v2747
    %3427 = vmatmul.bf16.gmra.mxu0 %v3248
    %v3428 = vpop.f32.mrf.mxu0
    %v3429 = vadd.f32 %v3416, %v3428
    %v3430 = vpop.f32.mrf.mxu0
    %3431 = vdwg.mxu0
    %3432 = vmatpush.bf16.msra.mxu0 %v2338
    %3433 = vmatpush.bf16.msra.mxu0 %v2328
    %3434 = vmatpush.bf16.msra.mxu0 %v2318
    %3435 = vmatpush.bf16.msra.mxu0 %v2308
    %3436 = vmatpush.bf16.msra.mxu0 %v2298
    %3437 = vmatpush.bf16.msra.mxu0 %v2288
    %3438 = vmatpush.bf16.msra.mxu0 %v2278
    %3439 = vmatpush.bf16.msra.mxu0 %v2268
    %3440 = vmatmul.bf16.gmra.mxu0 %v275
    %v3441 = vpop.f32.mrf.mxu0
    %v3442 = vadd.f32 %v778, %v3441
    %v3443 = vpop.f32.mrf.mxu0
    %3444 = vdwg.mxu0
    %3445 = vmatpush.bf16.msra.mxu0 %v2418
    %3446 = vmatpush.bf16.msra.mxu0 %v2408
    %3447 = vmatpush.bf16.msra.mxu0 %v2398
    %3448 = vmatpush.bf16.msra.mxu0 %v2388
    %3449 = vmatpush.bf16.msra.mxu0 %v2378
    %3450 = vmatpush.bf16.msra.mxu0 %v2368
    %3451 = vmatpush.bf16.msra.mxu0 %v2358
    %3452 = vmatpush.bf16.msra.mxu0 %v2348
    %3453 = vmatmul.bf16.gmra.mxu0 %v276
    %v3454 = vpop.f32.mrf.mxu0
    %v3455 = vadd.f32 %v3442, %v3454
    %v3456 = vpop.f32.mrf.mxu0
    %3457 = vdwg.mxu0
    %3458 = vmatpush.bf16.msra.mxu0 %v2498
    %3459 = vmatpush.bf16.msra.mxu0 %v2488
    %3460 = vmatpush.bf16.msra.mxu0 %v2478
    %3461 = vmatpush.bf16.msra.mxu0 %v2468
    %3462 = vmatpush.bf16.msra.mxu0 %v2458
    %3463 = vmatpush.bf16.msra.mxu0 %v2448
    %3464 = vmatpush.bf16.msra.mxu0 %v2438
    %3465 = vmatpush.bf16.msra.mxu0 %v2428
    %3466 = vmatmul.bf16.gmra.mxu0 %v277
    %v3467 = vpop.f32.mrf.mxu0
    %v3468 = vadd.f32 %v3455, %v3467
    %v3469 = vpop.f32.mrf.mxu0
    %3470 = vdwg.mxu0
    %3471 = vmatpush.bf16.msra.mxu0 %v2578
    %3472 = vmatpush.bf16.msra.mxu0 %v2568
    %3473 = vmatpush.bf16.msra.mxu0 %v2558
    %3474 = vmatpush.bf16.msra.mxu0 %v2548
    %3475 = vmatpush.bf16.msra.mxu0 %v2538
    %3476 = vmatpush.bf16.msra.mxu0 %v2528
    %3477 = vmatpush.bf16.msra.mxu0 %v2518
    %3478 = vmatpush.bf16.msra.mxu0 %v2508
    %3479 = vmatmul.bf16.gmra.mxu0 %v278
    %v3480 = vpop.f32.mrf.mxu0
    %v3481 = vadd.f32 %v3468, %v3480
    %v3482 = vpop.f32.mrf.mxu0
    %3483 = vdwg.mxu0
    %3484 = vmatpush.bf16.msra.mxu0 %v2658
    %3485 = vmatpush.bf16.msra.mxu0 %v2648
    %3486 = vmatpush.bf16.msra.mxu0 %v2638
    %3487 = vmatpush.bf16.msra.mxu0 %v2628
    %3488 = vmatpush.bf16.msra.mxu0 %v2618
    %3489 = vmatpush.bf16.msra.mxu0 %v2608
    %3490 = vmatpush.bf16.msra.mxu0 %v2598
    %3491 = vmatpush.bf16.msra.mxu0 %v2588
    %3492 = vmatmul.bf16.gmra.mxu0 %v279
    %v3493 = vpop.f32.mrf.mxu0
    %v3494 = vadd.f32 %v3481, %v3493
    %v3495 = vpop.f32.mrf.mxu0
    %3496 = vdwg.mxu0
    %3497 = vmatpush.bf16.msra.mxu0 %v2738
    %3498 = vmatpush.bf16.msra.mxu0 %v2728
    %3499 = vmatpush.bf16.msra.mxu0 %v2718
    %3500 = vmatpush.bf16.msra.mxu0 %v2708
    %3501 = vmatpush.bf16.msra.mxu0 %v2698
    %3502 = vmatpush.bf16.msra.mxu0 %v2688
    %3503 = vmatpush.bf16.msra.mxu0 %v2678
    %3504 = vmatpush.bf16.msra.mxu0 %v2668
    %3505 = vmatmul.bf16.gmra.mxu0 %v280
    %v3506 = vpop.f32.mrf.mxu0
    %v3507 = vadd.f32 %v3494, %v3506
    %v3508 = vpop.f32.mrf.mxu0
    %3509 = vdwg.mxu0
    %3510 = vmatpush.bf16.msra.mxu0 0
    %3511 = vmatpush.bf16.msra.mxu0 0
    %3512 = vmatpush.bf16.msra.mxu0 0
    %3513 = vmatpush.bf16.msra.mxu0 0
    %3514 = vmatpush.bf16.msra.mxu0 0
    %3515 = vmatpush.bf16.msra.mxu0 0
    %3516 = vmatpush.bf16.msra.mxu0 0
    %3517 = vmatpush.bf16.msra.mxu0 %v2748
    %3518 = vmatmul.bf16.gmra.mxu0 %v3248
    %v3519 = vpop.f32.mrf.mxu0
    %v3520 = vadd.f32 %v3507, %v3519
    %v3521 = vpop.f32.mrf.mxu0
    %3522 = vdwg.mxu0
    %3523 = vmatpush.bf16.msra.mxu0 %v2339
    %3524 = vmatpush.bf16.msra.mxu0 %v2329
    %3525 = vmatpush.bf16.msra.mxu0 %v2319
    %3526 = vmatpush.bf16.msra.mxu0 %v2309
    %3527 = vmatpush.bf16.msra.mxu0 %v2299
    %3528 = vmatpush.bf16.msra.mxu0 %v2289
    %3529 = vmatpush.bf16.msra.mxu0 %v2279
    %3530 = vmatpush.bf16.msra.mxu0 %v2269
    %3531 = vmatmul.bf16.gmra.mxu0 %v275
    %v3532 = vpop.f32.mrf.mxu0
    %v3533 = vadd.f32 %v779, %v3532
    %v3534 = vpop.f32.mrf.mxu0
    %3535 = vdwg.mxu0
    %3536 = vmatpush.bf16.msra.mxu0 %v2419
    %3537 = vmatpush.bf16.msra.mxu0 %v2409
    %3538 = vmatpush.bf16.msra.mxu0 %v2399
    %3539 = vmatpush.bf16.msra.mxu0 %v2389
    %3540 = vmatpush.bf16.msra.mxu0 %v2379
    %3541 = vmatpush.bf16.msra.mxu0 %v2369
    %3542 = vmatpush.bf16.msra.mxu0 %v2359
    %3543 = vmatpush.bf16.msra.mxu0 %v2349
    %3544 = vmatmul.bf16.gmra.mxu0 %v276
    %v3545 = vpop.f32.mrf.mxu0
    %v3546 = vadd.f32 %v3533, %v3545
    %v3547 = vpop.f32.mrf.mxu0
    %3548 = vdwg.mxu0
    %3549 = vmatpush.bf16.msra.mxu0 %v2499
    %3550 = vmatpush.bf16.msra.mxu0 %v2489
    %3551 = vmatpush.bf16.msra.mxu0 %v2479
    %3552 = vmatpush.bf16.msra.mxu0 %v2469
    %3553 = vmatpush.bf16.msra.mxu0 %v2459
    %3554 = vmatpush.bf16.msra.mxu0 %v2449
    %3555 = vmatpush.bf16.msra.mxu0 %v2439
    %3556 = vmatpush.bf16.msra.mxu0 %v2429
    %3557 = vmatmul.bf16.gmra.mxu0 %v277
    %v3558 = vpop.f32.mrf.mxu0
    %v3559 = vadd.f32 %v3546, %v3558
    %v3560 = vpop.f32.mrf.mxu0
    %3561 = vdwg.mxu0
    %3562 = vmatpush.bf16.msra.mxu0 %v2579
    %3563 = vmatpush.bf16.msra.mxu0 %v2569
    %3564 = vmatpush.bf16.msra.mxu0 %v2559
    %3565 = vmatpush.bf16.msra.mxu0 %v2549
    %3566 = vmatpush.bf16.msra.mxu0 %v2539
    %3567 = vmatpush.bf16.msra.mxu0 %v2529
    %3568 = vmatpush.bf16.msra.mxu0 %v2519
    %3569 = vmatpush.bf16.msra.mxu0 %v2509
    %3570 = vmatmul.bf16.gmra.mxu0 %v278
    %v3571 = vpop.f32.mrf.mxu0
    %v3572 = vadd.f32 %v3559, %v3571
    %v3573 = vpop.f32.mrf.mxu0
    %3574 = vdwg.mxu0
    %3575 = vmatpush.bf16.msra.mxu0 %v2659
    %3576 = vmatpush.bf16.msra.mxu0 %v2649
    %3577 = vmatpush.bf16.msra.mxu0 %v2639
    %3578 = vmatpush.bf16.msra.mxu0 %v2629
    %3579 = vmatpush.bf16.msra.mxu0 %v2619
    %3580 = vmatpush.bf16.msra.mxu0 %v2609
    %3581 = vmatpush.bf16.msra.mxu0 %v2599
    %3582 = vmatpush.bf16.msra.mxu0 %v2589
    %3583 = vmatmul.bf16.gmra.mxu0 %v279
    %v3584 = vpop.f32.mrf.mxu0
    %v3585 = vadd.f32 %v3572, %v3584
    %v3586 = vpop.f32.mrf.mxu0
    %3587 = vdwg.mxu0
    %3588 = vmatpush.bf16.msra.mxu0 %v2739
    %3589 = vmatpush.bf16.msra.mxu0 %v2729
    %3590 = vmatpush.bf16.msra.mxu0 %v2719
    %3591 = vmatpush.bf16.msra.mxu0 %v2709
    %3592 = vmatpush.bf16.msra.mxu0 %v2699
    %3593 = vmatpush.bf16.msra.mxu0 %v2689
    %3594 = vmatpush.bf16.msra.mxu0 %v2679
    %3595 = vmatpush.bf16.msra.mxu0 %v2669
    %3596 = vmatmul.bf16.gmra.mxu0 %v280
    %v3597 = vpop.f32.mrf.mxu0
    %v3598 = vadd.f32 %v3585, %v3597
    %v3599 = vpop.f32.mrf.mxu0
    %3600 = vdwg.mxu0
    %3601 = vmatpush.bf16.msra.mxu0 0
    %3602 = vmatpush.bf16.msra.mxu0 0
    %3603 = vmatpush.bf16.msra.mxu0 0
    %3604 = vmatpush.bf16.msra.mxu0 0
    %3605 = vmatpush.bf16.msra.mxu0 0
    %3606 = vmatpush.bf16.msra.mxu0 0
    %3607 = vmatpush.bf16.msra.mxu0 0
    %3608 = vmatpush.bf16.msra.mxu0 %v2749
    %3609 = vmatmul.bf16.gmra.mxu0 %v3248
    %v3610 = vpop.f32.mrf.mxu0
    %v3611 = vadd.f32 %v3598, %v3610
    %v3612 = vpop.f32.mrf.mxu0
    %3613 = vdwg.mxu0
    %3614 = vmatpush.bf16.msra.mxu0 %v2340
    %3615 = vmatpush.bf16.msra.mxu0 %v2330
    %3616 = vmatpush.bf16.msra.mxu0 %v2320
    %3617 = vmatpush.bf16.msra.mxu0 %v2310
    %3618 = vmatpush.bf16.msra.mxu0 %v2300
    %3619 = vmatpush.bf16.msra.mxu0 %v2290
    %3620 = vmatpush.bf16.msra.mxu0 %v2280
    %3621 = vmatpush.bf16.msra.mxu0 %v2270
    %3622 = vmatmul.bf16.gmra.mxu0 %v275
    %v3623 = vpop.f32.mrf.mxu0
    %v3624 = vadd.f32 %v780, %v3623
    %v3625 = vpop.f32.mrf.mxu0
    %3626 = vdwg.mxu0
    %3627 = vmatpush.bf16.msra.mxu0 %v2420
    %3628 = vmatpush.bf16.msra.mxu0 %v2410
    %3629 = vmatpush.bf16.msra.mxu0 %v2400
    %3630 = vmatpush.bf16.msra.mxu0 %v2390
    %3631 = vmatpush.bf16.msra.mxu0 %v2380
    %3632 = vmatpush.bf16.msra.mxu0 %v2370
    %3633 = vmatpush.bf16.msra.mxu0 %v2360
    %3634 = vmatpush.bf16.msra.mxu0 %v2350
    %3635 = vmatmul.bf16.gmra.mxu0 %v276
    %v3636 = vpop.f32.mrf.mxu0
    %v3637 = vadd.f32 %v3624, %v3636
    %v3638 = vpop.f32.mrf.mxu0
    %3639 = vdwg.mxu0
    %3640 = vmatpush.bf16.msra.mxu0 %v2500
    %3641 = vmatpush.bf16.msra.mxu0 %v2490
    %3642 = vmatpush.bf16.msra.mxu0 %v2480
    %3643 = vmatpush.bf16.msra.mxu0 %v2470
    %3644 = vmatpush.bf16.msra.mxu0 %v2460
    %3645 = vmatpush.bf16.msra.mxu0 %v2450
    %3646 = vmatpush.bf16.msra.mxu0 %v2440
    %3647 = vmatpush.bf16.msra.mxu0 %v2430
    %3648 = vmatmul.bf16.gmra.mxu0 %v277
    %v3649 = vpop.f32.mrf.mxu0
    %v3650 = vadd.f32 %v3637, %v3649
    %v3651 = vpop.f32.mrf.mxu0
    %3652 = vdwg.mxu0
    %3653 = vmatpush.bf16.msra.mxu0 %v2580
    %3654 = vmatpush.bf16.msra.mxu0 %v2570
    %3655 = vmatpush.bf16.msra.mxu0 %v2560
    %3656 = vmatpush.bf16.msra.mxu0 %v2550
    %3657 = vmatpush.bf16.msra.mxu0 %v2540
    %3658 = vmatpush.bf16.msra.mxu0 %v2530
    %3659 = vmatpush.bf16.msra.mxu0 %v2520
    %3660 = vmatpush.bf16.msra.mxu0 %v2510
    %3661 = vmatmul.bf16.gmra.mxu0 %v278
    %v3662 = vpop.f32.mrf.mxu0
    %v3663 = vadd.f32 %v3650, %v3662
    %v3664 = vpop.f32.mrf.mxu0
    %3665 = vdwg.mxu0
    %3666 = vmatpush.bf16.msra.mxu0 %v2660
    %3667 = vmatpush.bf16.msra.mxu0 %v2650
    %3668 = vmatpush.bf16.msra.mxu0 %v2640
    %3669 = vmatpush.bf16.msra.mxu0 %v2630
    %3670 = vmatpush.bf16.msra.mxu0 %v2620
    %3671 = vmatpush.bf16.msra.mxu0 %v2610
    %3672 = vmatpush.bf16.msra.mxu0 %v2600
    %3673 = vmatpush.bf16.msra.mxu0 %v2590
    %3674 = vmatmul.bf16.gmra.mxu0 %v279
    %v3675 = vpop.f32.mrf.mxu0
    %v3676 = vadd.f32 %v3663, %v3675
    %v3677 = vpop.f32.mrf.mxu0
    %3678 = vdwg.mxu0
    %3679 = vmatpush.bf16.msra.mxu0 %v2740
    %3680 = vmatpush.bf16.msra.mxu0 %v2730
    %3681 = vmatpush.bf16.msra.mxu0 %v2720
    %3682 = vmatpush.bf16.msra.mxu0 %v2710
    %3683 = vmatpush.bf16.msra.mxu0 %v2700
    %3684 = vmatpush.bf16.msra.mxu0 %v2690
    %3685 = vmatpush.bf16.msra.mxu0 %v2680
    %3686 = vmatpush.bf16.msra.mxu0 %v2670
    %3687 = vmatmul.bf16.gmra.mxu0 %v280
    %v3688 = vpop.f32.mrf.mxu0
    %v3689 = vadd.f32 %v3676, %v3688
    %v3690 = vpop.f32.mrf.mxu0
    %3691 = vdwg.mxu0
    %3692 = vmatpush.bf16.msra.mxu0 0
    %3693 = vmatpush.bf16.msra.mxu0 0
    %3694 = vmatpush.bf16.msra.mxu0 0
    %3695 = vmatpush.bf16.msra.mxu0 0
    %3696 = vmatpush.bf16.msra.mxu0 0
    %3697 = vmatpush.bf16.msra.mxu0 0
    %3698 = vmatpush.bf16.msra.mxu0 0
    %3699 = vmatpush.bf16.msra.mxu0 %v2750
    %3700 = vmatmul.bf16.gmra.mxu0 %v3248
    %v3701 = vpop.f32.mrf.mxu0
    %v3702 = vadd.f32 %v3689, %v3701
    %v3703 = vpop.f32.mrf.mxu0
    %3704 = vdwg.mxu0
    %3705 = vmatpush.bf16.msra.mxu0 %v2341
    %3706 = vmatpush.bf16.msra.mxu0 %v2331
    %3707 = vmatpush.bf16.msra.mxu0 %v2321
    %3708 = vmatpush.bf16.msra.mxu0 %v2311
    %3709 = vmatpush.bf16.msra.mxu0 %v2301
    %3710 = vmatpush.bf16.msra.mxu0 %v2291
    %3711 = vmatpush.bf16.msra.mxu0 %v2281
    %3712 = vmatpush.bf16.msra.mxu0 %v2271
    %3713 = vmatmul.bf16.gmra.mxu0 %v275
    %v3714 = vpop.f32.mrf.mxu0
    %v3715 = vadd.f32 %v781, %v3714
    %v3716 = vpop.f32.mrf.mxu0
    %3717 = vdwg.mxu0
    %3718 = vmatpush.bf16.msra.mxu0 %v2421
    %3719 = vmatpush.bf16.msra.mxu0 %v2411
    %3720 = vmatpush.bf16.msra.mxu0 %v2401
    %3721 = vmatpush.bf16.msra.mxu0 %v2391
    %3722 = vmatpush.bf16.msra.mxu0 %v2381
    %3723 = vmatpush.bf16.msra.mxu0 %v2371
    %3724 = vmatpush.bf16.msra.mxu0 %v2361
    %3725 = vmatpush.bf16.msra.mxu0 %v2351
    %3726 = vmatmul.bf16.gmra.mxu0 %v276
    %v3727 = vpop.f32.mrf.mxu0
    %v3728 = vadd.f32 %v3715, %v3727
    %v3729 = vpop.f32.mrf.mxu0
    %3730 = vdwg.mxu0
    %3731 = vmatpush.bf16.msra.mxu0 %v2501
    %3732 = vmatpush.bf16.msra.mxu0 %v2491
    %3733 = vmatpush.bf16.msra.mxu0 %v2481
    %3734 = vmatpush.bf16.msra.mxu0 %v2471
    %3735 = vmatpush.bf16.msra.mxu0 %v2461
    %3736 = vmatpush.bf16.msra.mxu0 %v2451
    %3737 = vmatpush.bf16.msra.mxu0 %v2441
    %3738 = vmatpush.bf16.msra.mxu0 %v2431
    %3739 = vmatmul.bf16.gmra.mxu0 %v277
    %v3740 = vpop.f32.mrf.mxu0
    %v3741 = vadd.f32 %v3728, %v3740
    %v3742 = vpop.f32.mrf.mxu0
    %3743 = vdwg.mxu0
    %3744 = vmatpush.bf16.msra.mxu0 %v2581
    %3745 = vmatpush.bf16.msra.mxu0 %v2571
    %3746 = vmatpush.bf16.msra.mxu0 %v2561
    %3747 = vmatpush.bf16.msra.mxu0 %v2551
    %3748 = vmatpush.bf16.msra.mxu0 %v2541
    %3749 = vmatpush.bf16.msra.mxu0 %v2531
    %3750 = vmatpush.bf16.msra.mxu0 %v2521
    %3751 = vmatpush.bf16.msra.mxu0 %v2511
    %3752 = vmatmul.bf16.gmra.mxu0 %v278
    %v3753 = vpop.f32.mrf.mxu0
    %v3754 = vadd.f32 %v3741, %v3753
    %v3755 = vpop.f32.mrf.mxu0
    %3756 = vdwg.mxu0
    %3757 = vmatpush.bf16.msra.mxu0 %v2661
    %3758 = vmatpush.bf16.msra.mxu0 %v2651
    %3759 = vmatpush.bf16.msra.mxu0 %v2641
    %3760 = vmatpush.bf16.msra.mxu0 %v2631
    %3761 = vmatpush.bf16.msra.mxu0 %v2621
    %3762 = vmatpush.bf16.msra.mxu0 %v2611
    %3763 = vmatpush.bf16.msra.mxu0 %v2601
    %3764 = vmatpush.bf16.msra.mxu0 %v2591
    %3765 = vmatmul.bf16.gmra.mxu0 %v279
    %v3766 = vpop.f32.mrf.mxu0
    %v3767 = vadd.f32 %v3754, %v3766
    %v3768 = vpop.f32.mrf.mxu0
    %3769 = vdwg.mxu0
    %3770 = vmatpush.bf16.msra.mxu0 %v2741
    %3771 = vmatpush.bf16.msra.mxu0 %v2731
    %3772 = vmatpush.bf16.msra.mxu0 %v2721
    %3773 = vmatpush.bf16.msra.mxu0 %v2711
    %3774 = vmatpush.bf16.msra.mxu0 %v2701
    %3775 = vmatpush.bf16.msra.mxu0 %v2691
    %3776 = vmatpush.bf16.msra.mxu0 %v2681
    %3777 = vmatpush.bf16.msra.mxu0 %v2671
    %3778 = vmatmul.bf16.gmra.mxu0 %v280
    %v3779 = vpop.f32.mrf.mxu0
    %v3780 = vadd.f32 %v3767, %v3779
    %v3781 = vpop.f32.mrf.mxu0
    %3782 = vdwg.mxu0
    %3783 = vmatpush.bf16.msra.mxu0 0
    %3784 = vmatpush.bf16.msra.mxu0 0
    %3785 = vmatpush.bf16.msra.mxu0 0
    %3786 = vmatpush.bf16.msra.mxu0 0
    %3787 = vmatpush.bf16.msra.mxu0 0
    %3788 = vmatpush.bf16.msra.mxu0 0
    %3789 = vmatpush.bf16.msra.mxu0 0
    %3790 = vmatpush.bf16.msra.mxu0 %v2751
    %3791 = vmatmul.bf16.gmra.mxu0 %v3248
    %v3792 = vpop.f32.mrf.mxu0
    %v3793 = vadd.f32 %v3780, %v3792
    %v3794 = vpop.f32.mrf.mxu0
    %3795 = vdwg.mxu0
    %3796 = vmatpush.bf16.msra.mxu0 %v2342
    %3797 = vmatpush.bf16.msra.mxu0 %v2332
    %3798 = vmatpush.bf16.msra.mxu0 %v2322
    %3799 = vmatpush.bf16.msra.mxu0 %v2312
    %3800 = vmatpush.bf16.msra.mxu0 %v2302
    %3801 = vmatpush.bf16.msra.mxu0 %v2292
    %3802 = vmatpush.bf16.msra.mxu0 %v2282
    %3803 = vmatpush.bf16.msra.mxu0 %v2272
    %3804 = vmatmul.bf16.gmra.mxu0 %v275
    %v3805 = vpop.f32.mrf.mxu0
    %v3806 = vadd.f32 %v782, %v3805
    %v3807 = vpop.f32.mrf.mxu0
    %3808 = vdwg.mxu0
    %3809 = vmatpush.bf16.msra.mxu0 %v2422
    %3810 = vmatpush.bf16.msra.mxu0 %v2412
    %3811 = vmatpush.bf16.msra.mxu0 %v2402
    %3812 = vmatpush.bf16.msra.mxu0 %v2392
    %3813 = vmatpush.bf16.msra.mxu0 %v2382
    %3814 = vmatpush.bf16.msra.mxu0 %v2372
    %3815 = vmatpush.bf16.msra.mxu0 %v2362
    %3816 = vmatpush.bf16.msra.mxu0 %v2352
    %3817 = vmatmul.bf16.gmra.mxu0 %v276
    %v3818 = vpop.f32.mrf.mxu0
    %v3819 = vadd.f32 %v3806, %v3818
    %v3820 = vpop.f32.mrf.mxu0
    %3821 = vdwg.mxu0
    %3822 = vmatpush.bf16.msra.mxu0 %v2502
    %3823 = vmatpush.bf16.msra.mxu0 %v2492
    %3824 = vmatpush.bf16.msra.mxu0 %v2482
    %3825 = vmatpush.bf16.msra.mxu0 %v2472
    %3826 = vmatpush.bf16.msra.mxu0 %v2462
    %3827 = vmatpush.bf16.msra.mxu0 %v2452
    %3828 = vmatpush.bf16.msra.mxu0 %v2442
    %3829 = vmatpush.bf16.msra.mxu0 %v2432
    %3830 = vmatmul.bf16.gmra.mxu0 %v277
    %v3831 = vpop.f32.mrf.mxu0
    %v3832 = vadd.f32 %v3819, %v3831
    %v3833 = vpop.f32.mrf.mxu0
    %3834 = vdwg.mxu0
    %3835 = vmatpush.bf16.msra.mxu0 %v2582
    %3836 = vmatpush.bf16.msra.mxu0 %v2572
    %3837 = vmatpush.bf16.msra.mxu0 %v2562
    %3838 = vmatpush.bf16.msra.mxu0 %v2552
    %3839 = vmatpush.bf16.msra.mxu0 %v2542
    %3840 = vmatpush.bf16.msra.mxu0 %v2532
    %3841 = vmatpush.bf16.msra.mxu0 %v2522
    %3842 = vmatpush.bf16.msra.mxu0 %v2512
    %3843 = vmatmul.bf16.gmra.mxu0 %v278
    %v3844 = vpop.f32.mrf.mxu0
    %v3845 = vadd.f32 %v3832, %v3844
    %v3846 = vpop.f32.mrf.mxu0
    %3847 = vdwg.mxu0
    %3848 = vmatpush.bf16.msra.mxu0 %v2662
    %3849 = vmatpush.bf16.msra.mxu0 %v2652
    %3850 = vmatpush.bf16.msra.mxu0 %v2642
    %3851 = vmatpush.bf16.msra.mxu0 %v2632
    %3852 = vmatpush.bf16.msra.mxu0 %v2622
    %3853 = vmatpush.bf16.msra.mxu0 %v2612
    %3854 = vmatpush.bf16.msra.mxu0 %v2602
    %3855 = vmatpush.bf16.msra.mxu0 %v2592
    %3856 = vmatmul.bf16.gmra.mxu0 %v279
    %v3857 = vpop.f32.mrf.mxu0
    %v3858 = vadd.f32 %v3845, %v3857
    %v3859 = vpop.f32.mrf.mxu0
    %3860 = vdwg.mxu0
    %3861 = vmatpush.bf16.msra.mxu0 %v2742
    %3862 = vmatpush.bf16.msra.mxu0 %v2732
    %3863 = vmatpush.bf16.msra.mxu0 %v2722
    %3864 = vmatpush.bf16.msra.mxu0 %v2712
    %3865 = vmatpush.bf16.msra.mxu0 %v2702
    %3866 = vmatpush.bf16.msra.mxu0 %v2692
    %3867 = vmatpush.bf16.msra.mxu0 %v2682
    %3868 = vmatpush.bf16.msra.mxu0 %v2672
    %3869 = vmatmul.bf16.gmra.mxu0 %v280
    %v3870 = vpop.f32.mrf.mxu0
    %v3871 = vadd.f32 %v3858, %v3870
    %v3872 = vpop.f32.mrf.mxu0
    %3873 = vdwg.mxu0
    %3874 = vmatpush.bf16.msra.mxu0 0
    %3875 = vmatpush.bf16.msra.mxu0 0
    %3876 = vmatpush.bf16.msra.mxu0 0
    %3877 = vmatpush.bf16.msra.mxu0 0
    %3878 = vmatpush.bf16.msra.mxu0 0
    %3879 = vmatpush.bf16.msra.mxu0 0
    %3880 = vmatpush.bf16.msra.mxu0 0
    %3881 = vmatpush.bf16.msra.mxu0 %v2752
    %3882 = vmatmul.bf16.gmra.mxu0 %v3248
    %v3883 = vpop.f32.mrf.mxu0
    %v3884 = vadd.f32 %v3871, %v3883
    %v3885 = vpop.f32.mrf.mxu0
    %3886 = vdwg.mxu0
    %3887 = vmatpush.bf16.msra.mxu0 %v2343
    %3888 = vmatpush.bf16.msra.mxu0 %v2333
    %3889 = vmatpush.bf16.msra.mxu0 %v2323
    %3890 = vmatpush.bf16.msra.mxu0 %v2313
    %3891 = vmatpush.bf16.msra.mxu0 %v2303
    %3892 = vmatpush.bf16.msra.mxu0 %v2293
    %3893 = vmatpush.bf16.msra.mxu0 %v2283
    %3894 = vmatpush.bf16.msra.mxu0 %v2273
    %3895 = vmatmul.bf16.gmra.mxu0 %v275
    %v3896 = vpop.f32.mrf.mxu0
    %v3897 = vadd.f32 %v783, %v3896
    %v3898 = vpop.f32.mrf.mxu0
    %3899 = vdwg.mxu0
    %3900 = vmatpush.bf16.msra.mxu0 %v2423
    %3901 = vmatpush.bf16.msra.mxu0 %v2413
    %3902 = vmatpush.bf16.msra.mxu0 %v2403
    %3903 = vmatpush.bf16.msra.mxu0 %v2393
    %3904 = vmatpush.bf16.msra.mxu0 %v2383
    %3905 = vmatpush.bf16.msra.mxu0 %v2373
    %3906 = vmatpush.bf16.msra.mxu0 %v2363
    %3907 = vmatpush.bf16.msra.mxu0 %v2353
    %3908 = vmatmul.bf16.gmra.mxu0 %v276
    %v3909 = vpop.f32.mrf.mxu0
    %v3910 = vadd.f32 %v3897, %v3909
    %v3911 = vpop.f32.mrf.mxu0
    %3912 = vdwg.mxu0
    %3913 = vmatpush.bf16.msra.mxu0 %v2503
    %3914 = vmatpush.bf16.msra.mxu0 %v2493
    %3915 = vmatpush.bf16.msra.mxu0 %v2483
    %3916 = vmatpush.bf16.msra.mxu0 %v2473
    %3917 = vmatpush.bf16.msra.mxu0 %v2463
    %3918 = vmatpush.bf16.msra.mxu0 %v2453
    %3919 = vmatpush.bf16.msra.mxu0 %v2443
    %3920 = vmatpush.bf16.msra.mxu0 %v2433
    %3921 = vmatmul.bf16.gmra.mxu0 %v277
    %v3922 = vpop.f32.mrf.mxu0
    %v3923 = vadd.f32 %v3910, %v3922
    %v3924 = vpop.f32.mrf.mxu0
    %3925 = vdwg.mxu0
    %3926 = vmatpush.bf16.msra.mxu0 %v2583
    %3927 = vmatpush.bf16.msra.mxu0 %v2573
    %3928 = vmatpush.bf16.msra.mxu0 %v2563
    %3929 = vmatpush.bf16.msra.mxu0 %v2553
    %3930 = vmatpush.bf16.msra.mxu0 %v2543
    %3931 = vmatpush.bf16.msra.mxu0 %v2533
    %3932 = vmatpush.bf16.msra.mxu0 %v2523
    %3933 = vmatpush.bf16.msra.mxu0 %v2513
    %3934 = vmatmul.bf16.gmra.mxu0 %v278
    %v3935 = vpop.f32.mrf.mxu0
    %v3936 = vadd.f32 %v3923, %v3935
    %v3937 = vpop.f32.mrf.mxu0
    %3938 = vdwg.mxu0
    %3939 = vmatpush.bf16.msra.mxu0 %v2663
    %3940 = vmatpush.bf16.msra.mxu0 %v2653
    %3941 = vmatpush.bf16.msra.mxu0 %v2643
    %3942 = vmatpush.bf16.msra.mxu0 %v2633
    %3943 = vmatpush.bf16.msra.mxu0 %v2623
    %3944 = vmatpush.bf16.msra.mxu0 %v2613
    %3945 = vmatpush.bf16.msra.mxu0 %v2603
    %3946 = vmatpush.bf16.msra.mxu0 %v2593
    %3947 = vmatmul.bf16.gmra.mxu0 %v279
    %v3948 = vpop.f32.mrf.mxu0
    %v3949 = vadd.f32 %v3936, %v3948
    %v3950 = vpop.f32.mrf.mxu0
    %3951 = vdwg.mxu0
    %3952 = vmatpush.bf16.msra.mxu0 %v2743
    %3953 = vmatpush.bf16.msra.mxu0 %v2733
    %3954 = vmatpush.bf16.msra.mxu0 %v2723
    %3955 = vmatpush.bf16.msra.mxu0 %v2713
    %3956 = vmatpush.bf16.msra.mxu0 %v2703
    %3957 = vmatpush.bf16.msra.mxu0 %v2693
    %3958 = vmatpush.bf16.msra.mxu0 %v2683
    %3959 = vmatpush.bf16.msra.mxu0 %v2673
    %3960 = vmatmul.bf16.gmra.mxu0 %v280
    %v3961 = vpop.f32.mrf.mxu0
    %v3962 = vadd.f32 %v3949, %v3961
    %v3963 = vpop.f32.mrf.mxu0
    %3964 = vdwg.mxu0
    %3965 = vmatpush.bf16.msra.mxu0 0
    %3966 = vmatpush.bf16.msra.mxu0 0
    %3967 = vmatpush.bf16.msra.mxu0 0
    %3968 = vmatpush.bf16.msra.mxu0 0
    %3969 = vmatpush.bf16.msra.mxu0 0
    %3970 = vmatpush.bf16.msra.mxu0 0
    %3971 = vmatpush.bf16.msra.mxu0 0
    %3972 = vmatpush.bf16.msra.mxu0 %v2753
    %3973 = vmatmul.bf16.gmra.mxu0 %v3248
    %v3974 = vpop.f32.mrf.mxu0
    %v3975 = vadd.f32 %v3962, %v3974
    %v3976 = vpop.f32.mrf.mxu0
    %3977 = vdwg.mxu0
    %3978 = vmatpush.bf16.msra.mxu0 %v2344
    %3979 = vmatpush.bf16.msra.mxu0 %v2334
    %3980 = vmatpush.bf16.msra.mxu0 %v2324
    %3981 = vmatpush.bf16.msra.mxu0 %v2314
    %3982 = vmatpush.bf16.msra.mxu0 %v2304
    %3983 = vmatpush.bf16.msra.mxu0 %v2294
    %3984 = vmatpush.bf16.msra.mxu0 %v2284
    %3985 = vmatpush.bf16.msra.mxu0 %v2274
    %3986 = vmatmul.bf16.gmra.mxu0 %v275
    %v3987 = vpop.f32.mrf.mxu0
    %v3988 = vadd.f32 %v784, %v3987
    %v3989 = vpop.f32.mrf.mxu0
    %3990 = vdwg.mxu0
    %3991 = vmatpush.bf16.msra.mxu0 %v2424
    %3992 = vmatpush.bf16.msra.mxu0 %v2414
    %3993 = vmatpush.bf16.msra.mxu0 %v2404
    %3994 = vmatpush.bf16.msra.mxu0 %v2394
    %3995 = vmatpush.bf16.msra.mxu0 %v2384
    %3996 = vmatpush.bf16.msra.mxu0 %v2374
    %3997 = vmatpush.bf16.msra.mxu0 %v2364
    %3998 = vmatpush.bf16.msra.mxu0 %v2354
    %3999 = vmatmul.bf16.gmra.mxu0 %v276
    %v4000 = vpop.f32.mrf.mxu0
    %v4001 = vadd.f32 %v3988, %v4000
    %v4002 = vpop.f32.mrf.mxu0
    %4003 = vdwg.mxu0
    %4004 = vmatpush.bf16.msra.mxu0 %v2504
    %4005 = vmatpush.bf16.msra.mxu0 %v2494
    %4006 = vmatpush.bf16.msra.mxu0 %v2484
    %4007 = vmatpush.bf16.msra.mxu0 %v2474
    %4008 = vmatpush.bf16.msra.mxu0 %v2464
    %4009 = vmatpush.bf16.msra.mxu0 %v2454
    %4010 = vmatpush.bf16.msra.mxu0 %v2444
    %4011 = vmatpush.bf16.msra.mxu0 %v2434
    %4012 = vmatmul.bf16.gmra.mxu0 %v277
    %v4013 = vpop.f32.mrf.mxu0
    %v4014 = vadd.f32 %v4001, %v4013
    %v4015 = vpop.f32.mrf.mxu0
    %4016 = vdwg.mxu0
    %4017 = vmatpush.bf16.msra.mxu0 %v2584
    %4018 = vmatpush.bf16.msra.mxu0 %v2574
    %4019 = vmatpush.bf16.msra.mxu0 %v2564
    %4020 = vmatpush.bf16.msra.mxu0 %v2554
    %4021 = vmatpush.bf16.msra.mxu0 %v2544
    %4022 = vmatpush.bf16.msra.mxu0 %v2534
    %4023 = vmatpush.bf16.msra.mxu0 %v2524
    %4024 = vmatpush.bf16.msra.mxu0 %v2514
    %4025 = vmatmul.bf16.gmra.mxu0 %v278
    %v4026 = vpop.f32.mrf.mxu0
    %v4027 = vadd.f32 %v4014, %v4026
    %v4028 = vpop.f32.mrf.mxu0
    %4029 = vdwg.mxu0
    %4030 = vmatpush.bf16.msra.mxu0 %v2664
    %4031 = vmatpush.bf16.msra.mxu0 %v2654
    %4032 = vmatpush.bf16.msra.mxu0 %v2644
    %4033 = vmatpush.bf16.msra.mxu0 %v2634
    %4034 = vmatpush.bf16.msra.mxu0 %v2624
    %4035 = vmatpush.bf16.msra.mxu0 %v2614
    %4036 = vmatpush.bf16.msra.mxu0 %v2604
    %4037 = vmatpush.bf16.msra.mxu0 %v2594
    %4038 = vmatmul.bf16.gmra.mxu0 %v279
    %v4039 = vpop.f32.mrf.mxu0
    %v4040 = vadd.f32 %v4027, %v4039
    %v4041 = vpop.f32.mrf.mxu0
    %4042 = vdwg.mxu0
    %4043 = vmatpush.bf16.msra.mxu0 %v2744
    %4044 = vmatpush.bf16.msra.mxu0 %v2734
    %4045 = vmatpush.bf16.msra.mxu0 %v2724
    %4046 = vmatpush.bf16.msra.mxu0 %v2714
    %4047 = vmatpush.bf16.msra.mxu0 %v2704
    %4048 = vmatpush.bf16.msra.mxu0 %v2694
    %4049 = vmatpush.bf16.msra.mxu0 %v2684
    %4050 = vmatpush.bf16.msra.mxu0 %v2674
    %4051 = vmatmul.bf16.gmra.mxu0 %v280
    %v4052 = vpop.f32.mrf.mxu0
    %v4053 = vadd.f32 %v4040, %v4052
    %v4054 = vpop.f32.mrf.mxu0
    %4055 = vdwg.mxu0
    %4056 = vmatpush.bf16.msra.mxu0 0
    %4057 = vmatpush.bf16.msra.mxu0 0
    %4058 = vmatpush.bf16.msra.mxu0 0
    %4059 = vmatpush.bf16.msra.mxu0 0
    %4060 = vmatpush.bf16.msra.mxu0 0
    %4061 = vmatpush.bf16.msra.mxu0 0
    %4062 = vmatpush.bf16.msra.mxu0 0
    %4063 = vmatpush.bf16.msra.mxu0 %v2754
    %4064 = vmatmul.bf16.gmra.mxu0 %v3248
    %v4065 = vpop.f32.mrf.mxu0
    %v4066 = vadd.f32 %v4053, %v4065
    %v4067 = vpop.f32.mrf.mxu0
    %4068 = vdwg.mxu0
    %4069 = vmatpush.bf16.msra.mxu0 %v2345
    %4070 = vmatpush.bf16.msra.mxu0 %v2335
    %4071 = vmatpush.bf16.msra.mxu0 %v2325
    %4072 = vmatpush.bf16.msra.mxu0 %v2315
    %4073 = vmatpush.bf16.msra.mxu0 %v2305
    %4074 = vmatpush.bf16.msra.mxu0 %v2295
    %4075 = vmatpush.bf16.msra.mxu0 %v2285
    %4076 = vmatpush.bf16.msra.mxu0 %v2275
    %4077 = vmatmul.bf16.gmra.mxu0 %v275
    %v4078 = vpop.f32.mrf.mxu0
    %v4079 = vadd.f32 %v785, %v4078
    %v4080 = vpop.f32.mrf.mxu0
    %4081 = vdwg.mxu0
    %4082 = vmatpush.bf16.msra.mxu0 %v2425
    %4083 = vmatpush.bf16.msra.mxu0 %v2415
    %4084 = vmatpush.bf16.msra.mxu0 %v2405
    %4085 = vmatpush.bf16.msra.mxu0 %v2395
    %4086 = vmatpush.bf16.msra.mxu0 %v2385
    %4087 = vmatpush.bf16.msra.mxu0 %v2375
    %4088 = vmatpush.bf16.msra.mxu0 %v2365
    %4089 = vmatpush.bf16.msra.mxu0 %v2355
    %4090 = vmatmul.bf16.gmra.mxu0 %v276
    %v4091 = vpop.f32.mrf.mxu0
    %v4092 = vadd.f32 %v4079, %v4091
    %v4093 = vpop.f32.mrf.mxu0
    %4094 = vdwg.mxu0
    %4095 = vmatpush.bf16.msra.mxu0 %v2505
    %4096 = vmatpush.bf16.msra.mxu0 %v2495
    %4097 = vmatpush.bf16.msra.mxu0 %v2485
    %4098 = vmatpush.bf16.msra.mxu0 %v2475
    %4099 = vmatpush.bf16.msra.mxu0 %v2465
    %4100 = vmatpush.bf16.msra.mxu0 %v2455
    %4101 = vmatpush.bf16.msra.mxu0 %v2445
    %4102 = vmatpush.bf16.msra.mxu0 %v2435
    %4103 = vmatmul.bf16.gmra.mxu0 %v277
    %v4104 = vpop.f32.mrf.mxu0
    %v4105 = vadd.f32 %v4092, %v4104
    %v4106 = vpop.f32.mrf.mxu0
    %4107 = vdwg.mxu0
    %4108 = vmatpush.bf16.msra.mxu0 %v2585
    %4109 = vmatpush.bf16.msra.mxu0 %v2575
    %4110 = vmatpush.bf16.msra.mxu0 %v2565
    %4111 = vmatpush.bf16.msra.mxu0 %v2555
    %4112 = vmatpush.bf16.msra.mxu0 %v2545
    %4113 = vmatpush.bf16.msra.mxu0 %v2535
    %4114 = vmatpush.bf16.msra.mxu0 %v2525
    %4115 = vmatpush.bf16.msra.mxu0 %v2515
    %4116 = vmatmul.bf16.gmra.mxu0 %v278
    %v4117 = vpop.f32.mrf.mxu0
    %v4118 = vadd.f32 %v4105, %v4117
    %v4119 = vpop.f32.mrf.mxu0
    %4120 = vdwg.mxu0
    %4121 = vmatpush.bf16.msra.mxu0 %v2665
    %4122 = vmatpush.bf16.msra.mxu0 %v2655
    %4123 = vmatpush.bf16.msra.mxu0 %v2645
    %4124 = vmatpush.bf16.msra.mxu0 %v2635
    %4125 = vmatpush.bf16.msra.mxu0 %v2625
    %4126 = vmatpush.bf16.msra.mxu0 %v2615
    %4127 = vmatpush.bf16.msra.mxu0 %v2605
    %4128 = vmatpush.bf16.msra.mxu0 %v2595
    %4129 = vmatmul.bf16.gmra.mxu0 %v279
    %v4130 = vpop.f32.mrf.mxu0
    %v4131 = vadd.f32 %v4118, %v4130
    %v4132 = vpop.f32.mrf.mxu0
    %4133 = vdwg.mxu0
    %4134 = vmatpush.bf16.msra.mxu0 %v2745
    %4135 = vmatpush.bf16.msra.mxu0 %v2735
    %4136 = vmatpush.bf16.msra.mxu0 %v2725
    %4137 = vmatpush.bf16.msra.mxu0 %v2715
    %4138 = vmatpush.bf16.msra.mxu0 %v2705
    %4139 = vmatpush.bf16.msra.mxu0 %v2695
    %4140 = vmatpush.bf16.msra.mxu0 %v2685
    %4141 = vmatpush.bf16.msra.mxu0 %v2675
    %4142 = vmatmul.bf16.gmra.mxu0 %v280
    %v4143 = vpop.f32.mrf.mxu0
    %v4144 = vadd.f32 %v4131, %v4143
    %v4145 = vpop.f32.mrf.mxu0
    %4146 = vdwg.mxu0
    %4147 = vmatpush.bf16.msra.mxu0 0
    %4148 = vmatpush.bf16.msra.mxu0 0
    %4149 = vmatpush.bf16.msra.mxu0 0
    %4150 = vmatpush.bf16.msra.mxu0 0
    %4151 = vmatpush.bf16.msra.mxu0 0
    %4152 = vmatpush.bf16.msra.mxu0 0
    %4153 = vmatpush.bf16.msra.mxu0 0
    %4154 = vmatpush.bf16.msra.mxu0 %v2755
    %4155 = vmatmul.bf16.gmra.mxu0 %v3248
    %v4156 = vpop.f32.mrf.mxu0
    %v4157 = vadd.f32 %v4144, %v4156
    %v4158 = vpop.f32.mrf.mxu0
    %4159 = vdwg.mxu0
    %v4160 = vmax.f32 %v3338, 0.0
    %v4161 = vmax.f32 %v3429, 0.0
    %v4162 = vmax.f32 %v3520, 0.0
    %v4163 = vmax.f32 %v3611, 0.0
    %v4164 = vmax.f32 %v3702, 0.0
    %v4165 = vmax.f32 %v3793, 0.0
    %v4166 = vmax.f32 %v3884, 0.0
    %v4167 = vmax.f32 %v3975, 0.0
    %v4168 = vmax.f32 %v4066, 0.0
    %v4169 = vmax.f32 %v4157, 0.0
    %s4170 = sxor.u32 %s135, 572662306
    %v4171 = vadd.s32 %v147, 896
    %v4172 = vadd.s32 %v147, 1024
    %v4173 = vadd.s32 %v147, 1152
    %v4174 = vmul.u32 %v4171, 2246822519
    %v4175 = vmul.u32 %v4172, 2246822519
    %v4176 = vmul.u32 %v4173, 2246822519
    %v4177 = vxor.u32 %v154, %v4174
    %v4178 = vxor.u32 %v154, %v4175
    %v4179 = vxor.u32 %v154, %v4176
    %v4180 = vstv %s4170
    %v4181 = vxor.u32 %v162, %v4180
    %v4182 = vxor.u32 %v163, %v4180
    %v4183 = vxor.u32 %v164, %v4180
    %v4184 = vxor.u32 %v165, %v4180
    %v4185 = vxor.u32 %v166, %v4180
    %v4186 = vxor.u32 %v167, %v4180
    %v4187 = vxor.u32 %v168, %v4180
    %v4188 = vxor.u32 %v4177, %v4180
    %v4189 = vxor.u32 %v4178, %v4180
    %v4190 = vxor.u32 %v4179, %v4180
    %v4191 = vmul.u32 %v4181, 3266489917
    %v4192 = vmul.u32 %v4182, 3266489917
    %v4193 = vmul.u32 %v4183, 3266489917
    %v4194 = vmul.u32 %v4184, 3266489917
    %v4195 = vmul.u32 %v4185, 3266489917
    %v4196 = vmul.u32 %v4186, 3266489917
    %v4197 = vmul.u32 %v4187, 3266489917
    %v4198 = vmul.u32 %v4188, 3266489917
    %v4199 = vmul.u32 %v4189, 3266489917
    %v4200 = vmul.u32 %v4190, 3266489917
    %v4201 = vshrl.u32 %v4191, 15
    %v4202 = vshrl.u32 %v4192, 15
    %v4203 = vshrl.u32 %v4193, 15
    %v4204 = vshrl.u32 %v4194, 15
    %v4205 = vshrl.u32 %v4195, 15
    %v4206 = vshrl.u32 %v4196, 15
    %v4207 = vshrl.u32 %v4197, 15
    %v4208 = vshrl.u32 %v4198, 15
    %v4209 = vshrl.u32 %v4199, 15
    %v4210 = vshrl.u32 %v4200, 15
    %v4211 = vxor.u32 %v4191, %v4201
    %v4212 = vxor.u32 %v4192, %v4202
    %v4213 = vxor.u32 %v4193, %v4203
    %v4214 = vxor.u32 %v4194, %v4204
    %v4215 = vxor.u32 %v4195, %v4205
    %v4216 = vxor.u32 %v4196, %v4206
    %v4217 = vxor.u32 %v4197, %v4207
    %v4218 = vxor.u32 %v4198, %v4208
    %v4219 = vxor.u32 %v4199, %v4209
    %v4220 = vxor.u32 %v4200, %v4210
    %v4221 = vmul.u32 %v4211, 668265263
    %v4222 = vmul.u32 %v4212, 668265263
    %v4223 = vmul.u32 %v4213, 668265263
    %v4224 = vmul.u32 %v4214, 668265263
    %v4225 = vmul.u32 %v4215, 668265263
    %v4226 = vmul.u32 %v4216, 668265263
    %v4227 = vmul.u32 %v4217, 668265263
    %v4228 = vmul.u32 %v4218, 668265263
    %v4229 = vmul.u32 %v4219, 668265263
    %v4230 = vmul.u32 %v4220, 668265263
    %v4231 = vshrl.u32 %v4221, 13
    %v4232 = vshrl.u32 %v4222, 13
    %v4233 = vshrl.u32 %v4223, 13
    %v4234 = vshrl.u32 %v4224, 13
    %v4235 = vshrl.u32 %v4225, 13
    %v4236 = vshrl.u32 %v4226, 13
    %v4237 = vshrl.u32 %v4227, 13
    %v4238 = vshrl.u32 %v4228, 13
    %v4239 = vshrl.u32 %v4229, 13
    %v4240 = vshrl.u32 %v4230, 13
    %v4241 = vxor.u32 %v4221, %v4231
    %v4242 = vxor.u32 %v4222, %v4232
    %v4243 = vxor.u32 %v4223, %v4233
    %v4244 = vxor.u32 %v4224, %v4234
    %v4245 = vxor.u32 %v4225, %v4235
    %v4246 = vxor.u32 %v4226, %v4236
    %v4247 = vxor.u32 %v4227, %v4237
    %v4248 = vxor.u32 %v4228, %v4238
    %v4249 = vxor.u32 %v4229, %v4239
    %v4250 = vxor.u32 %v4230, %v4240
    %v4251 = vmul.u32 %v4241, 374761393
    %v4252 = vmul.u32 %v4242, 374761393
    %v4253 = vmul.u32 %v4243, 374761393
    %v4254 = vmul.u32 %v4244, 374761393
    %v4255 = vmul.u32 %v4245, 374761393
    %v4256 = vmul.u32 %v4246, 374761393
    %v4257 = vmul.u32 %v4247, 374761393
    %v4258 = vmul.u32 %v4248, 374761393
    %v4259 = vmul.u32 %v4249, 374761393
    %v4260 = vmul.u32 %v4250, 374761393
    %v4261 = vshrl.u32 %v4251, 16
    %v4262 = vshrl.u32 %v4252, 16
    %v4263 = vshrl.u32 %v4253, 16
    %v4264 = vshrl.u32 %v4254, 16
    %v4265 = vshrl.u32 %v4255, 16
    %v4266 = vshrl.u32 %v4256, 16
    %v4267 = vshrl.u32 %v4257, 16
    %v4268 = vshrl.u32 %v4258, 16
    %v4269 = vshrl.u32 %v4259, 16
    %v4270 = vshrl.u32 %v4260, 16
    %v4271 = vxor.u32 %v4251, %v4261
    %v4272 = vxor.u32 %v4252, %v4262
    %v4273 = vxor.u32 %v4253, %v4263
    %v4274 = vxor.u32 %v4254, %v4264
    %v4275 = vxor.u32 %v4255, %v4265
    %v4276 = vxor.u32 %v4256, %v4266
    %v4277 = vxor.u32 %v4257, %v4267
    %v4278 = vxor.u32 %v4258, %v4268
    %v4279 = vxor.u32 %v4259, %v4269
    %v4280 = vxor.u32 %v4260, %v4270
    %v4281 = vadd.s32 %v4271, 2147483648
    %vm4283 = vcmp.ge.s32.totalorder %v4281, 0
    %v4284 = vadd.s32 %v4272, 2147483648
    %vm4286 = vcmp.ge.s32.totalorder %v4284, 0
    %v4287 = vadd.s32 %v4273, 2147483648
    %vm4289 = vcmp.ge.s32.totalorder %v4287, 0
    %v4290 = vadd.s32 %v4274, 2147483648
    %vm4292 = vcmp.ge.s32.totalorder %v4290, 0
    %v4293 = vadd.s32 %v4275, 2147483648
    %vm4295 = vcmp.ge.s32.totalorder %v4293, 0
    %v4296 = vadd.s32 %v4276, 2147483648
    %vm4298 = vcmp.ge.s32.totalorder %v4296, 0
    %v4299 = vadd.s32 %v4277, 2147483648
    %vm4301 = vcmp.ge.s32.totalorder %v4299, 0
    %v4302 = vadd.s32 %v4278, 2147483648
    %vm4304 = vcmp.ge.s32.totalorder %v4302, 0
    %v4305 = vadd.s32 %v4279, 2147483648
    %vm4307 = vcmp.ge.s32.totalorder %v4305, 0
    %v4308 = vadd.s32 %v4280, 2147483648
    %vm4310 = vcmp.ge.s32.totalorder %v4308, 0
    %v4311 = vmul.f32 %v4160, 2.0
    %v4312 = vmul.f32 %v4161, 2.0
    %v4313 = vmul.f32 %v4162, 2.0
    %v4314 = vmul.f32 %v4163, 2.0
    %v4315 = vmul.f32 %v4164, 2.0
    %v4316 = vmul.f32 %v4165, 2.0
    %v4317 = vmul.f32 %v4166, 2.0
    %v4318 = vmul.f32 %v4167, 2.0
    %v4319 = vmul.f32 %v4168, 2.0
    %v4320 = vmul.f32 %v4169, 2.0
    %v4321 = vsel %vm4283, %v4311, 0.0
    %v4322 = vsel %vm4286, %v4312, 0.0
    %v4323 = vsel %vm4289, %v4313, 0.0
    %v4324 = vsel %vm4292, %v4314, 0.0
    %v4325 = vsel %vm4295, %v4315, 0.0
    %v4326 = vsel %vm4298, %v4316, 0.0
    %v4327 = vsel %vm4301, %v4317, 0.0
    %v4328 = vsel %vm4304, %v4318, 0.0
    %v4329 = vsel %vm4307, %v4319, 0.0
    %v4330 = vsel %vm4310, %v4320, 0.0
    %v4331 = vpack.c.bf16 %v4321, %v4321
    %v4332 = vpack.c.bf16 %v4322, %v4322
    %v4333 = vpack.c.bf16 %v4323, %v4323
    %v4334 = vpack.c.bf16 %v4324, %v4324
    %v4335 = vpack.c.bf16 %v4325, %v4325
    %v4336 = vpack.c.bf16 %v4326, %v4326
    %v4337 = vpack.c.bf16 %v4327, %v4327
    %v4338 = vpack.c.bf16 %v4328, %v4328
    %v4339 = vpack.c.bf16 %v4329, %v4329
    %v4340 = vpack.c.bf16 %v4330, %v4330
    %v4341 = vld [vmem:[#allocation9] sm:$0xff]
    %v4342 = vld [vmem:[#allocation9 + $0x8] sm:$0xff]
    %v4343 = vld [vmem:[#allocation9 + $0x10] sm:$0xff]
    %v4344 = vld [vmem:[#allocation9 + $0x18] sm:$0xff]
    %v4345 = vld [vmem:[#allocation9 + $0x20] sm:$0xff]
    %v4346 = vld [vmem:[#allocation9 + $0x28] sm:$0xff]
    %v4347 = vld [vmem:[#allocation9 + $0x30] sm:$0xff]
    %v4348 = vld [vmem:[#allocation9 + $0x38] sm:$0xff]
    %v4349 = vld [vmem:[#allocation9 + $0x40] sm:$0xff]
    %v4350 = vld [vmem:[#allocation9 + $0x48] sm:$0xff]
    %v4351 = vld [vmem:[#allocation9 + $0x50] sm:$0xff]
    %v4352 = vld [vmem:[#allocation9 + $0x58] sm:$0xff]
    %v4353 = vld [vmem:[#allocation9 + $0x60] sm:$0xff]
    %v4354 = vld [vmem:[#allocation9 + $0x68] sm:$0xff]
    %v4355 = vld [vmem:[#allocation9 + $0x70] sm:$0xff]
    %v4356 = vld [vmem:[#allocation9 + $0x78] sm:$0xff]
    %v4357 = vld [vmem:[#allocation9 + $0x80] sm:$0xff]
    %v4358 = vld [vmem:[#allocation9 + $0x88] sm:$0xff]
    %v4359 = vld [vmem:[#allocation9 + $0x90] sm:$0xff]
    %v4360 = vld [vmem:[#allocation9 + $0x98] sm:$0xff]
    %v4361 = vld [vmem:[#allocation9 + $0xa0] sm:$0xff]
    %v4362 = vld [vmem:[#allocation9 + $0xa8] sm:$0xff]
    %v4363 = vld [vmem:[#allocation9 + $0xb0] sm:$0xff]
    %v4364 = vld [vmem:[#allocation9 + $0xb8] sm:$0xff]
    %v4365 = vld [vmem:[#allocation9 + $0xc0] sm:$0xff]
    %v4366 = vld [vmem:[#allocation9 + $0xc8] sm:$0xff]
    %v4367 = vld [vmem:[#allocation9 + $0xd0] sm:$0xff]
    %v4368 = vld [vmem:[#allocation9 + $0xd8] sm:$0xff]
    %v4369 = vld [vmem:[#allocation9 + $0xe0] sm:$0xff]
    %v4370 = vld [vmem:[#allocation9 + $0xe8] sm:$0xff]
    %v4371 = vld [vmem:[#allocation9 + $0xf0] sm:$0xff]
    %v4372 = vld [vmem:[#allocation9 + $0xf8] sm:$0xff]
    %v4373 = vld [vmem:[#allocation9 + $0x100] sm:$0xff]
    %v4374 = vld [vmem:[#allocation9 + $0x108] sm:$0xff]
    %v4375 = vld [vmem:[#allocation9 + $0x110] sm:$0xff]
    %v4376 = vld [vmem:[#allocation9 + $0x118] sm:$0xff]
    %v4377 = vld [vmem:[#allocation9 + $0x120] sm:$0xff]
    %v4378 = vld [vmem:[#allocation9 + $0x128] sm:$0xff]
    %v4379 = vld [vmem:[#allocation9 + $0x130] sm:$0xff]
    %v4380 = vld [vmem:[#allocation9 + $0x138] sm:$0xff]
    %v4381 = vld [vmem:[#allocation9 + $0x140] sm:$0xff]
    %v4382 = vld [vmem:[#allocation9 + $0x148] sm:$0xff]
    %v4383 = vld [vmem:[#allocation9 + $0x150] sm:$0xff]
    %v4384 = vld [vmem:[#allocation9 + $0x158] sm:$0xff]
    %v4385 = vld [vmem:[#allocation9 + $0x160] sm:$0xff]
    %v4386 = vld [vmem:[#allocation9 + $0x168] sm:$0xff]
    %v4387 = vld [vmem:[#allocation9 + $0x170] sm:$0xff]
    %v4388 = vld [vmem:[#allocation9 + $0x178] sm:$0xff]
    %v4389 = vld [vmem:[#allocation9 + $0x180] sm:$0xff]
    %v4390 = vld [vmem:[#allocation9 + $0x188] sm:$0xff]
    %v4391 = vld [vmem:[#allocation9 + $0x190] sm:$0xff]
    %v4392 = vld [vmem:[#allocation9 + $0x198] sm:$0xff]
    %v4393 = vld [vmem:[#allocation9 + $0x1a0] sm:$0xff]
    %v4394 = vld [vmem:[#allocation9 + $0x1a8] sm:$0xff]
    %v4395 = vld [vmem:[#allocation9 + $0x1b0] sm:$0xff]
    %v4396 = vld [vmem:[#allocation9 + $0x1b8] sm:$0xff]
    %v4397 = vld [vmem:[#allocation9 + $0x1c0] sm:$0xff]
    %v4398 = vld [vmem:[#allocation9 + $0x1c8] sm:$0xff]
    %v4399 = vld [vmem:[#allocation9 + $0x1d0] sm:$0xff]
    %v4400 = vld [vmem:[#allocation9 + $0x1d8] sm:$0xff]
    %v4401 = vld [vmem:[#allocation9 + $0x1e0] sm:$0xff]
    %v4402 = vld [vmem:[#allocation9 + $0x1e8] sm:$0xff]
    %v4403 = vld [vmem:[#allocation9 + $0x1f0] sm:$0xff]
    %v4404 = vld [vmem:[#allocation9 + $0x1f8] sm:$0xff]
    %v4405 = vld [vmem:[#allocation9 + $0x200] sm:$0xff]
    %v4406 = vld [vmem:[#allocation9 + $0x208] sm:$0xff]
    %v4407 = vld [vmem:[#allocation9 + $0x210] sm:$0xff]
    %v4408 = vld [vmem:[#allocation9 + $0x218] sm:$0xff]
    %v4409 = vld [vmem:[#allocation9 + $0x220] sm:$0xff]
    %v4410 = vld [vmem:[#allocation9 + $0x228] sm:$0xff]
    %v4411 = vld [vmem:[#allocation9 + $0x230] sm:$0xff]
    %v4412 = vld [vmem:[#allocation9 + $0x238] sm:$0xff]
    %v4413 = vld [vmem:[#allocation9 + $0x240] sm:$0xff]
    %v4414 = vld [vmem:[#allocation9 + $0x248] sm:$0xff]
    %v4415 = vld [vmem:[#allocation9 + $0x250] sm:$0xff]
    %v4416 = vld [vmem:[#allocation9 + $0x258] sm:$0xff]
    %v4417 = vld [vmem:[#allocation9 + $0x260] sm:$0xff]
    %v4418 = vld [vmem:[#allocation9 + $0x268] sm:$0xff]
    %v4419 = vld [vmem:[#allocation9 + $0x270] sm:$0xff]
    %v4420 = vld [vmem:[#allocation9 + $0x278] sm:$0xff]
    %v4421 = vld [vmem:[#allocation9 + $0x280] sm:$0xff]
    %v4422 = vld [vmem:[#allocation9 + $0x288] sm:$0xff]
    %v4423 = vld [vmem:[#allocation9 + $0x290] sm:$0xff]
    %v4424 = vld [vmem:[#allocation9 + $0x298] sm:$0xff]
    %v4425 = vld [vmem:[#allocation9 + $0x2a0] sm:$0xff]
    %v4426 = vld [vmem:[#allocation9 + $0x2a8] sm:$0xff]
    %v4427 = vld [vmem:[#allocation9 + $0x2b0] sm:$0xff]
    %v4428 = vld [vmem:[#allocation9 + $0x2b8] sm:$0xff]
    %v4429 = vld [vmem:[#allocation9 + $0x2c0] sm:$0xff]
    %v4430 = vld [vmem:[#allocation9 + $0x2c8] sm:$0xff]
    %v4431 = vld [vmem:[#allocation9 + $0x2d0] sm:$0xff]
    %v4432 = vld [vmem:[#allocation9 + $0x2d8] sm:$0xff]
    %v4433 = vld [vmem:[#allocation9 + $0x2e0] sm:$0xff]
    %v4434 = vld [vmem:[#allocation9 + $0x2e8] sm:$0xff]
    %v4435 = vld [vmem:[#allocation9 + $0x2f0] sm:$0xff]
    %v4436 = vld [vmem:[#allocation9 + $0x2f8] sm:$0xff]
    %v4437 = vld [vmem:[#allocation9 + $0x300] sm:$0xff]
    %v4438 = vld [vmem:[#allocation9 + $0x308] sm:$0xff]
    %v4439 = vld [vmem:[#allocation9 + $0x310] sm:$0xff]
    %v4440 = vld [vmem:[#allocation9 + $0x318] sm:$0xff]
    %v4441 = vld [vmem:[#allocation9 + $0x320] sm:$0xff]
    %v4442 = vld [vmem:[#allocation9 + $0x328] sm:$0xff]
    %v4443 = vld [vmem:[#allocation9 + $0x330] sm:$0xff]
    %v4444 = vld [vmem:[#allocation9 + $0x338] sm:$0xff]
    %v4445 = vld [vmem:[#allocation9 + $0x340] sm:$0xff]
    %v4446 = vld [vmem:[#allocation9 + $0x348] sm:$0xff]
    %v4447 = vld [vmem:[#allocation9 + $0x350] sm:$0xff]
    %v4448 = vld [vmem:[#allocation9 + $0x358] sm:$0xff]
    %v4449 = vld [vmem:[#allocation9 + $0x360] sm:$0xff]
    %v4450 = vld [vmem:[#allocation9 + $0x368] sm:$0xff]
    %v4451 = vld [vmem:[#allocation9 + $0x370] sm:$0xff]
    %v4452 = vld [vmem:[#allocation9 + $0x378] sm:$0xff]
    %v4453 = vld [vmem:[#allocation9 + $0x380] sm:$0xff]
    %v4454 = vld [vmem:[#allocation9 + $0x388] sm:$0xff]
    %v4455 = vld [vmem:[#allocation9 + $0x390] sm:$0xff]
    %v4456 = vld [vmem:[#allocation9 + $0x398] sm:$0xff]
    %v4457 = vld [vmem:[#allocation9 + $0x3a0] sm:$0xff]
    %v4458 = vld [vmem:[#allocation9 + $0x3a8] sm:$0xff]
    %v4459 = vld [vmem:[#allocation9 + $0x3b0] sm:$0xff]
    %v4460 = vld [vmem:[#allocation9 + $0x3b8] sm:$0xff]
    %v4461 = vld [vmem:[#allocation9 + $0x3c0] sm:$0xff]
    %v4462 = vld [vmem:[#allocation9 + $0x3c8] sm:$0xff]
    %v4463 = vld [vmem:[#allocation9 + $0x3d0] sm:$0xff]
    %v4464 = vld [vmem:[#allocation9 + $0x3d8] sm:$0xff]
    %v4465 = vld [vmem:[#allocation9 + $0x3e0] sm:$0xff]
    %v4466 = vld [vmem:[#allocation9 + $0x3e8] sm:$0xff]
    %v4467 = vld [vmem:[#allocation9 + $0x3f0] sm:$0xff]
    %v4468 = vld [vmem:[#allocation9 + $0x3f8] sm:$0xff]
    %v4469 = vld [vmem:[#allocation9 + $0x400] sm:$0xff]
    %v4470 = vld [vmem:[#allocation9 + $0x408] sm:$0xff]
    %v4471 = vld [vmem:[#allocation9 + $0x410] sm:$0xff]
    %v4472 = vld [vmem:[#allocation9 + $0x418] sm:$0xff]
    %v4473 = vld [vmem:[#allocation9 + $0x420] sm:$0xff]
    %v4474 = vld [vmem:[#allocation9 + $0x428] sm:$0xff]
    %v4475 = vld [vmem:[#allocation9 + $0x430] sm:$0xff]
    %v4476 = vld [vmem:[#allocation9 + $0x438] sm:$0xff]
    %v4477 = vld [vmem:[#allocation9 + $0x440] sm:$0xff]
    %v4478 = vld [vmem:[#allocation9 + $0x448] sm:$0xff]
    %v4479 = vld [vmem:[#allocation9 + $0x450] sm:$0xff]
    %v4480 = vld [vmem:[#allocation9 + $0x458] sm:$0xff]
    %v4481 = vld [vmem:[#allocation9 + $0x460] sm:$0xff]
    %v4482 = vld [vmem:[#allocation9 + $0x468] sm:$0xff]
    %v4483 = vld [vmem:[#allocation9 + $0x470] sm:$0xff]
    %v4484 = vld [vmem:[#allocation9 + $0x478] sm:$0xff]
    %v4485 = vld [vmem:[#allocation9 + $0x480] sm:$0xff]
    %v4486 = vld [vmem:[#allocation9 + $0x488] sm:$0xff]
    %v4487 = vld [vmem:[#allocation9 + $0x490] sm:$0xff]
    %v4488 = vld [vmem:[#allocation9 + $0x498] sm:$0xff]
    %v4489 = vld [vmem:[#allocation9 + $0x4a0] sm:$0xff]
    %v4490 = vld [vmem:[#allocation9 + $0x4a8] sm:$0xff]
    %v4491 = vld [vmem:[#allocation9 + $0x4b0] sm:$0xff]
    %v4492 = vld [vmem:[#allocation9 + $0x4b8] sm:$0xff]
    %v4493 = vld [vmem:[#allocation9 + $0x4c0] sm:$0xff]
    %v4494 = vld [vmem:[#allocation9 + $0x4c8] sm:$0xff]
    %v4495 = vld [vmem:[#allocation9 + $0x4d0] sm:$0xff]
    %v4496 = vld [vmem:[#allocation9 + $0x4d8] sm:$0xff]
    %v4497 = vld [vmem:[#allocation9 + $0x4e0] sm:$0xff]
    %v4498 = vld [vmem:[#allocation9 + $0x4e8] sm:$0xff]
    %v4499 = vld [vmem:[#allocation9 + $0x4f0] sm:$0xff]
    %v4500 = vld [vmem:[#allocation9 + $0x4f8] sm:$0xff]
    %v4501 = vld [vmem:[#allocation9 + $0x500] sm:$0xff]
    %v4502 = vld [vmem:[#allocation9 + $0x508] sm:$0xff]
    %v4503 = vld [vmem:[#allocation9 + $0x510] sm:$0xff]
    %v4504 = vld [vmem:[#allocation9 + $0x518] sm:$0xff]
    %v4505 = vld [vmem:[#allocation9 + $0x520] sm:$0xff]
    %v4506 = vld [vmem:[#allocation9 + $0x528] sm:$0xff]
    %v4507 = vld [vmem:[#allocation9 + $0x530] sm:$0xff]
    %v4508 = vld [vmem:[#allocation9 + $0x538] sm:$0xff]
    %v4509 = vld [vmem:[#allocation9 + $0x540] sm:$0xff]
    %v4510 = vld [vmem:[#allocation9 + $0x548] sm:$0xff]
    %v4511 = vld [vmem:[#allocation9 + $0x550] sm:$0xff]
    %v4512 = vld [vmem:[#allocation9 + $0x558] sm:$0xff]
    %v4513 = vld [vmem:[#allocation9 + $0x560] sm:$0xff]
    %v4514 = vld [vmem:[#allocation9 + $0x568] sm:$0xff]
    %v4515 = vld [vmem:[#allocation9 + $0x570] sm:$0xff]
    %v4516 = vld [vmem:[#allocation9 + $0x578] sm:$0xff]
    %v4517 = vld [vmem:[#allocation9 + $0x580] sm:$0xff]
    %v4518 = vld [vmem:[#allocation9 + $0x588] sm:$0xff]
    %v4519 = vld [vmem:[#allocation9 + $0x590] sm:$0xff]
    %v4520 = vld [vmem:[#allocation9 + $0x598] sm:$0xff]
    %v4521 = vld [vmem:[#allocation9 + $0x5a0] sm:$0xff]
    %v4522 = vld [vmem:[#allocation9 + $0x5a8] sm:$0xff]
    %v4523 = vld [vmem:[#allocation9 + $0x5b0] sm:$0xff]
    %v4524 = vld [vmem:[#allocation9 + $0x5b8] sm:$0xff]
    %v4525 = vld [vmem:[#allocation9 + $0x5c0] sm:$0xff]
    %v4526 = vld [vmem:[#allocation9 + $0x5c8] sm:$0xff]
    %v4527 = vld [vmem:[#allocation9 + $0x5d0] sm:$0xff]
    %v4528 = vld [vmem:[#allocation9 + $0x5d8] sm:$0xff]
    %v4529 = vld [vmem:[#allocation9 + $0x5e0] sm:$0xff]
    %v4530 = vld [vmem:[#allocation9 + $0x5e8] sm:$0xff]
    %v4531 = vld [vmem:[#allocation9 + $0x5f0] sm:$0xff]
    %v4532 = vld [vmem:[#allocation9 + $0x5f8] sm:$0xff]
    %v4533 = vld [vmem:[#allocation9 + $0x600] sm:$0xff]
    %v4534 = vld [vmem:[#allocation9 + $0x608] sm:$0xff]
    %v4535 = vld [vmem:[#allocation9 + $0x610] sm:$0xff]
    %v4536 = vld [vmem:[#allocation9 + $0x618] sm:$0xff]
    %v4537 = vld [vmem:[#allocation9 + $0x620] sm:$0xff]
    %v4538 = vld [vmem:[#allocation9 + $0x628] sm:$0xff]
    %v4539 = vld [vmem:[#allocation9 + $0x630] sm:$0xff]
    %v4540 = vld [vmem:[#allocation9 + $0x638] sm:$0xff]
    %v4541 = vld [vmem:[#allocation9 + $0x640] sm:$0xff]
    %v4542 = vld [vmem:[#allocation9 + $0x648] sm:$0xff]
    %v4543 = vld [vmem:[#allocation9 + $0x650] sm:$0xff]
    %v4544 = vld [vmem:[#allocation9 + $0x658] sm:$0xff]
    %v4545 = vld [vmem:[#allocation9 + $0x660] sm:$0xff]
    %v4546 = vld [vmem:[#allocation9 + $0x668] sm:$0xff]
    %v4547 = vld [vmem:[#allocation9 + $0x670] sm:$0xff]
    %v4548 = vld [vmem:[#allocation9 + $0x678] sm:$0xff]
    %v4549 = vld [vmem:[#allocation9 + $0x680] sm:$0xff]
    %v4550 = vld [vmem:[#allocation9 + $0x688] sm:$0xff]
    %v4551 = vld [vmem:[#allocation9 + $0x690] sm:$0xff]
    %v4552 = vld [vmem:[#allocation9 + $0x698] sm:$0xff]
    %v4553 = vld [vmem:[#allocation9 + $0x6a0] sm:$0xff]
    %v4554 = vld [vmem:[#allocation9 + $0x6a8] sm:$0xff]
    %v4555 = vld [vmem:[#allocation9 + $0x6b0] sm:$0xff]
    %v4556 = vld [vmem:[#allocation9 + $0x6b8] sm:$0xff]
    %v4557 = vld [vmem:[#allocation9 + $0x6c0] sm:$0xff]
    %v4558 = vld [vmem:[#allocation9 + $0x6c8] sm:$0xff]
    %v4559 = vld [vmem:[#allocation9 + $0x6d0] sm:$0xff]
    %v4560 = vld [vmem:[#allocation9 + $0x6d8] sm:$0xff]
    %v4561 = vld [vmem:[#allocation9 + $0x6e0] sm:$0xff]
    %v4562 = vld [vmem:[#allocation9 + $0x6e8] sm:$0xff]
    %v4563 = vld [vmem:[#allocation9 + $0x6f0] sm:$0xff]
    %v4564 = vld [vmem:[#allocation9 + $0x6f8] sm:$0xff]
    %v4565 = vld [vmem:[#allocation9 + $0x700] sm:$0xff]
    %v4566 = vld [vmem:[#allocation9 + $0x708] sm:$0xff]
    %v4567 = vld [vmem:[#allocation9 + $0x710] sm:$0xff]
    %v4568 = vld [vmem:[#allocation9 + $0x718] sm:$0xff]
    %v4569 = vld [vmem:[#allocation9 + $0x720] sm:$0xff]
    %v4570 = vld [vmem:[#allocation9 + $0x728] sm:$0xff]
    %v4571 = vld [vmem:[#allocation9 + $0x730] sm:$0xff]
    %v4572 = vld [vmem:[#allocation9 + $0x738] sm:$0xff]
    %v4573 = vld [vmem:[#allocation9 + $0x740] sm:$0xff]
    %v4574 = vld [vmem:[#allocation9 + $0x748] sm:$0xff]
    %v4575 = vld [vmem:[#allocation9 + $0x750] sm:$0xff]
    %v4576 = vld [vmem:[#allocation9 + $0x758] sm:$0xff]
    %v4577 = vld [vmem:[#allocation9 + $0x760] sm:$0xff]
    %v4578 = vld [vmem:[#allocation9 + $0x768] sm:$0xff]
    %v4579 = vld [vmem:[#allocation9 + $0x770] sm:$0xff]
    %v4580 = vld [vmem:[#allocation9 + $0x778] sm:$0xff]
    %v4581 = vld [vmem:[#allocation9 + $0x780] sm:$0xff]
    %v4582 = vld [vmem:[#allocation9 + $0x788] sm:$0xff]
    %v4583 = vld [vmem:[#allocation9 + $0x790] sm:$0xff]
    %v4584 = vld [vmem:[#allocation9 + $0x798] sm:$0xff]
    %v4585 = vld [vmem:[#allocation9 + $0x7a0] sm:$0xff]
    %v4586 = vld [vmem:[#allocation9 + $0x7a8] sm:$0xff]
    %v4587 = vld [vmem:[#allocation9 + $0x7b0] sm:$0xff]
    %v4588 = vld [vmem:[#allocation9 + $0x7b8] sm:$0xff]
    %v4589 = vld [vmem:[#allocation9 + $0x7c0] sm:$0xff]
    %v4590 = vld [vmem:[#allocation9 + $0x7c8] sm:$0xff]
    %v4591 = vld [vmem:[#allocation9 + $0x7d0] sm:$0xff]
    %v4592 = vld [vmem:[#allocation9 + $0x7d8] sm:$0xff]
    %v4593 = vld [vmem:[#allocation9 + $0x7e0] sm:$0xff]
    %v4594 = vld [vmem:[#allocation9 + $0x7e8] sm:$0xff]
    %v4595 = vld [vmem:[#allocation9 + $0x7f0] sm:$0xff]
    %v4596 = vld [vmem:[#allocation9 + $0x7f8] sm:$0xff]
    %v4597 = vld [vmem:[#allocation9 + $0x800] sm:$0xff]
    %v4598 = vld [vmem:[#allocation9 + $0x808] sm:$0xff]
    %v4599 = vld [vmem:[#allocation9 + $0x810] sm:$0xff]
    %v4600 = vld [vmem:[#allocation9 + $0x818] sm:$0xff]
    %v4601 = vld [vmem:[#allocation9 + $0x820] sm:$0xff]
    %v4602 = vld [vmem:[#allocation9 + $0x828] sm:$0xff]
    %v4603 = vld [vmem:[#allocation9 + $0x830] sm:$0xff]
    %v4604 = vld [vmem:[#allocation9 + $0x838] sm:$0xff]
    %v4605 = vld [vmem:[#allocation9 + $0x840] sm:$0xff]
    %v4606 = vld [vmem:[#allocation9 + $0x848] sm:$0xff]
    %v4607 = vld [vmem:[#allocation9 + $0x850] sm:$0xff]
    %v4608 = vld [vmem:[#allocation9 + $0x858] sm:$0xff]
    %v4609 = vld [vmem:[#allocation9 + $0x860] sm:$0xff]
    %v4610 = vld [vmem:[#allocation9 + $0x868] sm:$0xff]
    %v4611 = vld [vmem:[#allocation9 + $0x870] sm:$0xff]
    %v4612 = vld [vmem:[#allocation9 + $0x878] sm:$0xff]
    %v4613 = vld [vmem:[#allocation9 + $0x880] sm:$0xff]
    %v4614 = vld [vmem:[#allocation9 + $0x888] sm:$0xff]
    %v4615 = vld [vmem:[#allocation9 + $0x890] sm:$0xff]
    %v4616 = vld [vmem:[#allocation9 + $0x898] sm:$0xff]
    %v4617 = vld [vmem:[#allocation9 + $0x8a0] sm:$0xff]
    %v4618 = vld [vmem:[#allocation9 + $0x8a8] sm:$0xff]
    %v4619 = vld [vmem:[#allocation9 + $0x8b0] sm:$0xff]
    %v4620 = vld [vmem:[#allocation9 + $0x8b8] sm:$0xff]
    %v4621 = vld [vmem:[#allocation9 + $0x8c0] sm:$0xff]
    %v4622 = vld [vmem:[#allocation9 + $0x8c8] sm:$0xff]
    %v4623 = vld [vmem:[#allocation9 + $0x8d0] sm:$0xff]
    %v4624 = vld [vmem:[#allocation9 + $0x8d8] sm:$0xff]
    %v4625 = vld [vmem:[#allocation9 + $0x8e0] sm:$0xff]
    %v4626 = vld [vmem:[#allocation9 + $0x8e8] sm:$0xff]
    %v4627 = vld [vmem:[#allocation9 + $0x8f0] sm:$0xff]
    %v4628 = vld [vmem:[#allocation9 + $0x8f8] sm:$0xff]
    %v4629 = vld [vmem:[#allocation9 + $0x900] sm:$0xff]
    %v4630 = vld [vmem:[#allocation9 + $0x908] sm:$0xff]
    %v4631 = vld [vmem:[#allocation9 + $0x910] sm:$0xff]
    %v4632 = vld [vmem:[#allocation9 + $0x918] sm:$0xff]
    %v4633 = vld [vmem:[#allocation9 + $0x920] sm:$0xff]
    %v4634 = vld [vmem:[#allocation9 + $0x928] sm:$0xff]
    %v4635 = vld [vmem:[#allocation9 + $0x930] sm:$0xff]
    %v4636 = vld [vmem:[#allocation9 + $0x938] sm:$0xff]
    %v4637 = vld [vmem:[#allocation9 + $0x940] sm:$0xff]
    %v4638 = vld [vmem:[#allocation9 + $0x948] sm:$0xff]
    %v4639 = vld [vmem:[#allocation9 + $0x950] sm:$0xff]
    %v4640 = vld [vmem:[#allocation9 + $0x958] sm:$0xff]
    %v4641 = vld [vmem:[#allocation9 + $0x960] sm:$0xff]
    %v4642 = vld [vmem:[#allocation9 + $0x968] sm:$0xff]
    %v4643 = vld [vmem:[#allocation9 + $0x970] sm:$0xff]
    %v4644 = vld [vmem:[#allocation9 + $0x978] sm:$0xff]
    %v4645 = vld [vmem:[#allocation9 + $0x980] sm:$0xff]
    %v4646 = vld [vmem:[#allocation9 + $0x988] sm:$0xff]
    %v4647 = vld [vmem:[#allocation9 + $0x990] sm:$0xff]
    %v4648 = vld [vmem:[#allocation9 + $0x998] sm:$0xff]
    %v4649 = vld [vmem:[#allocation9 + $0x9a0] sm:$0xff]
    %v4650 = vld [vmem:[#allocation9 + $0x9a8] sm:$0xff]
    %v4651 = vld [vmem:[#allocation9 + $0x9b0] sm:$0xff]
    %v4652 = vld [vmem:[#allocation9 + $0x9b8] sm:$0xff]
    %v4653 = vld [vmem:[#allocation9 + $0x9c0] sm:$0xff]
    %v4654 = vld [vmem:[#allocation9 + $0x9c8] sm:$0xff]
    %v4655 = vld [vmem:[#allocation9 + $0x9d0] sm:$0xff]
    %v4656 = vld [vmem:[#allocation9 + $0x9d8] sm:$0xff]
    %v4657 = vld [vmem:[#allocation9 + $0x9e0] sm:$0xff]
    %v4658 = vld [vmem:[#allocation9 + $0x9e8] sm:$0xff]
    %v4659 = vld [vmem:[#allocation9 + $0x9f0] sm:$0xff]
    %v4660 = vld [vmem:[#allocation9 + $0x9f8] sm:$0xff]
    %v4661 = vld [vmem:[#allocation9 + $0xa00] sm:$0xff]
    %v4662 = vld [vmem:[#allocation9 + $0xa08] sm:$0xff]
    %v4663 = vld [vmem:[#allocation9 + $0xa10] sm:$0xff]
    %v4664 = vld [vmem:[#allocation9 + $0xa18] sm:$0xff]
    %v4665 = vld [vmem:[#allocation9 + $0xa20] sm:$0xff]
    %v4666 = vld [vmem:[#allocation9 + $0xa28] sm:$0xff]
    %v4667 = vld [vmem:[#allocation9 + $0xa30] sm:$0xff]
    %v4668 = vld [vmem:[#allocation9 + $0xa38] sm:$0xff]
    %v4669 = vld [vmem:[#allocation9 + $0xa40] sm:$0xff]
    %v4670 = vld [vmem:[#allocation9 + $0xa48] sm:$0xff]
    %v4671 = vld [vmem:[#allocation9 + $0xa50] sm:$0xff]
    %v4672 = vld [vmem:[#allocation9 + $0xa58] sm:$0xff]
    %v4673 = vld [vmem:[#allocation9 + $0xa60] sm:$0xff]
    %v4674 = vld [vmem:[#allocation9 + $0xa68] sm:$0xff]
    %v4675 = vld [vmem:[#allocation9 + $0xa70] sm:$0xff]
    %v4676 = vld [vmem:[#allocation9 + $0xa78] sm:$0xff]
    %v4677 = vld [vmem:[#allocation9 + $0xa80] sm:$0xff]
    %v4678 = vld [vmem:[#allocation9 + $0xa88] sm:$0xff]
    %v4679 = vld [vmem:[#allocation9 + $0xa90] sm:$0xff]
    %v4680 = vld [vmem:[#allocation9 + $0xa98] sm:$0xff]
    %v4681 = vld [vmem:[#allocation9 + $0xaa0] sm:$0xff]
    %v4682 = vld [vmem:[#allocation9 + $0xaa8] sm:$0xff]
    %v4683 = vld [vmem:[#allocation9 + $0xab0] sm:$0xff]
    %v4684 = vld [vmem:[#allocation9 + $0xab8] sm:$0xff]
    %v4685 = vld [vmem:[#allocation9 + $0xac0] sm:$0xff]
    %v4686 = vld [vmem:[#allocation9 + $0xac8] sm:$0xff]
    %v4687 = vld [vmem:[#allocation9 + $0xad0] sm:$0xff]
    %v4688 = vld [vmem:[#allocation9 + $0xad8] sm:$0xff]
    %v4689 = vld [vmem:[#allocation9 + $0xae0] sm:$0xff]
    %v4690 = vld [vmem:[#allocation9 + $0xae8] sm:$0xff]
    %v4691 = vld [vmem:[#allocation9 + $0xaf0] sm:$0xff]
    %v4692 = vld [vmem:[#allocation9 + $0xaf8] sm:$0xff]
    %v4693 = vld [vmem:[#allocation9 + $0xb00] sm:$0xff]
    %v4694 = vld [vmem:[#allocation9 + $0xb08] sm:$0xff]
    %v4695 = vld [vmem:[#allocation9 + $0xb10] sm:$0xff]
    %v4696 = vld [vmem:[#allocation9 + $0xb18] sm:$0xff]
    %v4697 = vld [vmem:[#allocation9 + $0xb20] sm:$0xff]
    %v4698 = vld [vmem:[#allocation9 + $0xb28] sm:$0xff]
    %v4699 = vld [vmem:[#allocation9 + $0xb30] sm:$0xff]
    %v4700 = vld [vmem:[#allocation9 + $0xb38] sm:$0xff]
    %v4701 = vld [vmem:[#allocation9 + $0xb40] sm:$0xff]
    %v4702 = vld [vmem:[#allocation9 + $0xb48] sm:$0xff]
    %v4703 = vld [vmem:[#allocation9 + $0xb50] sm:$0xff]
    %v4704 = vld [vmem:[#allocation9 + $0xb58] sm:$0xff]
    %v4705 = vld [vmem:[#allocation9 + $0xb60] sm:$0xff]
    %v4706 = vld [vmem:[#allocation9 + $0xb68] sm:$0xff]
    %v4707 = vld [vmem:[#allocation9 + $0xb70] sm:$0xff]
    %v4708 = vld [vmem:[#allocation9 + $0xb78] sm:$0xff]
    %v4709 = vld [vmem:[#allocation9 + $0xb80] sm:$0xff]
    %v4710 = vld [vmem:[#allocation9 + $0xb88] sm:$0xff]
    %v4711 = vld [vmem:[#allocation9 + $0xb90] sm:$0xff]
    %v4712 = vld [vmem:[#allocation9 + $0xb98] sm:$0xff]
    %v4713 = vld [vmem:[#allocation9 + $0xba0] sm:$0xff]
    %v4714 = vld [vmem:[#allocation9 + $0xba8] sm:$0xff]
    %v4715 = vld [vmem:[#allocation9 + $0xbb0] sm:$0xff]
    %v4716 = vld [vmem:[#allocation9 + $0xbb8] sm:$0xff]
    %v4717 = vld [vmem:[#allocation9 + $0xbc0] sm:$0xff]
    %v4718 = vld [vmem:[#allocation9 + $0xbc8] sm:$0xff]
    %v4719 = vld [vmem:[#allocation9 + $0xbd0] sm:$0xff]
    %v4720 = vld [vmem:[#allocation9 + $0xbd8] sm:$0xff]
    %v4721 = vld [vmem:[#allocation9 + $0xbe0] sm:$0xff]
    %v4722 = vld [vmem:[#allocation9 + $0xbe8] sm:$0xff]
    %v4723 = vld [vmem:[#allocation9 + $0xbf0] sm:$0xff]
    %v4724 = vld [vmem:[#allocation9 + $0xbf8] sm:$0xff]
    %v4725 = vld [vmem:[#allocation9 + $0xc00] sm:$0xff]
    %v4726 = vld [vmem:[#allocation9 + $0xc08] sm:$0xff]
    %v4727 = vld [vmem:[#allocation9 + $0xc10] sm:$0xff]
    %v4728 = vld [vmem:[#allocation9 + $0xc18] sm:$0xff]
    %v4729 = vld [vmem:[#allocation9 + $0xc20] sm:$0xff]
    %v4730 = vld [vmem:[#allocation9 + $0xc28] sm:$0xff]
    %v4731 = vld [vmem:[#allocation9 + $0xc30] sm:$0xff]
    %v4732 = vld [vmem:[#allocation9 + $0xc38] sm:$0xff]
    %v4733 = vld [vmem:[#allocation9 + $0xc40] sm:$0xff]
    %v4734 = vld [vmem:[#allocation9 + $0xc48] sm:$0xff]
    %v4735 = vld [vmem:[#allocation9 + $0xc50] sm:$0xff]
    %v4736 = vld [vmem:[#allocation9 + $0xc58] sm:$0xff]
    %v4737 = vld [vmem:[#allocation9 + $0xc60] sm:$0xff]
    %v4738 = vld [vmem:[#allocation9 + $0xc68] sm:$0xff]
    %v4739 = vld [vmem:[#allocation9 + $0xc70] sm:$0xff]
    %v4740 = vld [vmem:[#allocation9 + $0xc78] sm:$0xff]
    %v4741 = vld [vmem:[#allocation9 + $0xc80] sm:$0xff]
    %v4742 = vld [vmem:[#allocation9 + $0xc88] sm:$0xff]
    %v4743 = vld [vmem:[#allocation9 + $0xc90] sm:$0xff]
    %v4744 = vld [vmem:[#allocation9 + $0xc98] sm:$0xff]
    %v4745 = vld [vmem:[#allocation9 + $0xca0] sm:$0xff]
    %v4746 = vld [vmem:[#allocation9 + $0xca8] sm:$0xff]
    %v4747 = vld [vmem:[#allocation9 + $0xcb0] sm:$0xff]
    %v4748 = vld [vmem:[#allocation9 + $0xcb8] sm:$0xff]
    %v4749 = vld [vmem:[#allocation9 + $0xcc0] sm:$0xff]
    %v4750 = vld [vmem:[#allocation9 + $0xcc8] sm:$0xff]
    %v4751 = vld [vmem:[#allocation9 + $0xcd0] sm:$0xff]
    %v4752 = vld [vmem:[#allocation9 + $0xcd8] sm:$0xff]
    %v4753 = vld [vmem:[#allocation9 + $0xce0] sm:$0xff]
    %v4754 = vld [vmem:[#allocation9 + $0xce8] sm:$0xff]
    %v4755 = vld [vmem:[#allocation9 + $0xcf0] sm:$0xff]
    %v4756 = vld [vmem:[#allocation9 + $0xcf8] sm:$0xff]
    %v4757 = vld [vmem:[#allocation9 + $0xd00] sm:$0xff]
    %v4758 = vld [vmem:[#allocation9 + $0xd08] sm:$0xff]
    %v4759 = vld [vmem:[#allocation9 + $0xd10] sm:$0xff]
    %v4760 = vld [vmem:[#allocation9 + $0xd18] sm:$0xff]
    %v4761 = vld [vmem:[#allocation9 + $0xd20] sm:$0xff]
    %v4762 = vld [vmem:[#allocation9 + $0xd28] sm:$0xff]
    %v4763 = vld [vmem:[#allocation9 + $0xd30] sm:$0xff]
    %v4764 = vld [vmem:[#allocation9 + $0xd38] sm:$0xff]
    %v4765 = vld [vmem:[#allocation9 + $0xd40] sm:$0xff]
    %v4766 = vld [vmem:[#allocation9 + $0xd48] sm:$0xff]
    %v4767 = vld [vmem:[#allocation9 + $0xd50] sm:$0xff]
    %v4768 = vld [vmem:[#allocation9 + $0xd58] sm:$0xff]
    %v4769 = vld [vmem:[#allocation9 + $0xd60] sm:$0xff]
    %v4770 = vld [vmem:[#allocation9 + $0xd68] sm:$0xff]
    %v4771 = vld [vmem:[#allocation9 + $0xd70] sm:$0xff]
    %v4772 = vld [vmem:[#allocation9 + $0xd78] sm:$0xff]
    %v4773 = vld [vmem:[#allocation9 + $0xd80] sm:$0xff]
    %v4774 = vld [vmem:[#allocation9 + $0xd88] sm:$0xff]
    %v4775 = vld [vmem:[#allocation9 + $0xd90] sm:$0xff]
    %v4776 = vld [vmem:[#allocation9 + $0xd98] sm:$0xff]
    %v4777 = vld [vmem:[#allocation9 + $0xda0] sm:$0xff]
    %v4778 = vld [vmem:[#allocation9 + $0xda8] sm:$0xff]
    %v4779 = vld [vmem:[#allocation9 + $0xdb0] sm:$0xff]
    %v4780 = vld [vmem:[#allocation9 + $0xdb8] sm:$0xff]
    %v4781 = vld [vmem:[#allocation9 + $0xdc0] sm:$0xff]
    %v4782 = vld [vmem:[#allocation9 + $0xdc8] sm:$0xff]
    %v4783 = vld [vmem:[#allocation9 + $0xdd0] sm:$0xff]
    %v4784 = vld [vmem:[#allocation9 + $0xdd8] sm:$0xff]
    %v4785 = vld [vmem:[#allocation9 + $0xde0] sm:$0xff]
    %v4786 = vld [vmem:[#allocation9 + $0xde8] sm:$0xff]
    %v4787 = vld [vmem:[#allocation9 + $0xdf0] sm:$0xff]
    %v4788 = vld [vmem:[#allocation9 + $0xdf8] sm:$0xff]
    %v4789 = vld [vmem:[#allocation9 + $0xe00] sm:$0xff]
    %v4790 = vld [vmem:[#allocation9 + $0xe08] sm:$0xff]
    %v4791 = vld [vmem:[#allocation9 + $0xe10] sm:$0xff]
    %v4792 = vld [vmem:[#allocation9 + $0xe18] sm:$0xff]
    %v4793 = vld [vmem:[#allocation9 + $0xe20] sm:$0xff]
    %v4794 = vld [vmem:[#allocation9 + $0xe28] sm:$0xff]
    %v4795 = vld [vmem:[#allocation9 + $0xe30] sm:$0xff]
    %v4796 = vld [vmem:[#allocation9 + $0xe38] sm:$0xff]
    %v4797 = vld [vmem:[#allocation9 + $0xe40] sm:$0xff]
    %v4798 = vld [vmem:[#allocation9 + $0xe48] sm:$0xff]
    %v4799 = vld [vmem:[#allocation9 + $0xe50] sm:$0xff]
    %v4800 = vld [vmem:[#allocation9 + $0xe58] sm:$0xff]
    %v4801 = vld [vmem:[#allocation9 + $0xe60] sm:$0xff]
    %v4802 = vld [vmem:[#allocation9 + $0xe68] sm:$0xff]
    %v4803 = vld [vmem:[#allocation9 + $0xe70] sm:$0xff]
    %v4804 = vld [vmem:[#allocation9 + $0xe78] sm:$0xff]
    %v4805 = vld [vmem:[#allocation9 + $0xe80] sm:$0xff]
    %v4806 = vld [vmem:[#allocation9 + $0xe88] sm:$0xff]
    %v4807 = vld [vmem:[#allocation9 + $0xe90] sm:$0xff]
    %v4808 = vld [vmem:[#allocation9 + $0xe98] sm:$0xff]
    %v4809 = vld [vmem:[#allocation9 + $0xea0] sm:$0xff]
    %v4810 = vld [vmem:[#allocation9 + $0xea8] sm:$0xff]
    %v4811 = vld [vmem:[#allocation9 + $0xeb0] sm:$0xff]
    %v4812 = vld [vmem:[#allocation9 + $0xeb8] sm:$0xff]
    %v4813 = vld [vmem:[#allocation9 + $0xec0] sm:$0xff]
    %v4814 = vld [vmem:[#allocation9 + $0xec8] sm:$0xff]
    %v4815 = vld [vmem:[#allocation9 + $0xed0] sm:$0xff]
    %v4816 = vld [vmem:[#allocation9 + $0xed8] sm:$0xff]
    %v4817 = vld [vmem:[#allocation9 + $0xee0] sm:$0xff]
    %v4818 = vld [vmem:[#allocation9 + $0xee8] sm:$0xff]
    %v4819 = vld [vmem:[#allocation9 + $0xef0] sm:$0xff]
    %v4820 = vld [vmem:[#allocation9 + $0xef8] sm:$0xff]
    %v4821 = vld [vmem:[#allocation9 + $0xf00] sm:$0xff]
    %v4822 = vld [vmem:[#allocation9 + $0xf08] sm:$0xff]
    %v4823 = vld [vmem:[#allocation9 + $0xf10] sm:$0xff]
    %v4824 = vld [vmem:[#allocation9 + $0xf18] sm:$0xff]
    %v4825 = vld [vmem:[#allocation9 + $0xf20] sm:$0xff]
    %v4826 = vld [vmem:[#allocation9 + $0xf28] sm:$0xff]
    %v4827 = vld [vmem:[#allocation9 + $0xf30] sm:$0xff]
    %v4828 = vld [vmem:[#allocation9 + $0xf38] sm:$0xff]
    %v4829 = vld [vmem:[#allocation9 + $0xf40] sm:$0xff]
    %v4830 = vld [vmem:[#allocation9 + $0xf48] sm:$0xff]
    %v4831 = vld [vmem:[#allocation9 + $0xf50] sm:$0xff]
    %v4832 = vld [vmem:[#allocation9 + $0xf58] sm:$0xff]
    %v4833 = vld [vmem:[#allocation9 + $0xf60] sm:$0xff]
    %v4834 = vld [vmem:[#allocation9 + $0xf68] sm:$0xff]
    %v4835 = vld [vmem:[#allocation9 + $0xf70] sm:$0xff]
    %v4836 = vld [vmem:[#allocation9 + $0xf78] sm:$0xff]
    %v4837 = vld [vmem:[#allocation9 + $0xf80] sm:$0xff]
    %v4838 = vld [vmem:[#allocation9 + $0xf88] sm:$0xff]
    %v4839 = vld [vmem:[#allocation9 + $0xf90] sm:$0xff]
    %v4840 = vld [vmem:[#allocation9 + $0xf98] sm:$0xff]
    %v4841 = vld [vmem:[#allocation9 + $0xfa0] sm:$0xff]
    %v4842 = vld [vmem:[#allocation9 + $0xfa8] sm:$0xff]
    %v4843 = vld [vmem:[#allocation9 + $0xfb0] sm:$0xff]
    %v4844 = vld [vmem:[#allocation9 + $0xfb8] sm:$0xff]
    %v4845 = vld [vmem:[#allocation9 + $0xfc0] sm:$0xff]
    %v4846 = vld [vmem:[#allocation9 + $0xfc8] sm:$0xff]
    %v4847 = vld [vmem:[#allocation9 + $0xfd0] sm:$0xff]
    %v4848 = vld [vmem:[#allocation9 + $0xfd8] sm:$0xff]
    %v4849 = vld [vmem:[#allocation9 + $0xfe0] sm:$0xff]
    %v4850 = vld [vmem:[#allocation9 + $0xfe8] sm:$0xff]
    %v4851 = vld [vmem:[#allocation9 + $0xff0] sm:$0xff]
    %v4852 = vld [vmem:[#allocation9 + $0xff8] sm:$0xff]
    %v4853 = vld [vmem:[#allocation9 + $0x1000] sm:$0xff]
    %v4854 = vld [vmem:[#allocation9 + $0x1008] sm:$0xff]
    %v4855 = vld [vmem:[#allocation9 + $0x1010] sm:$0xff]
    %v4856 = vld [vmem:[#allocation9 + $0x1018] sm:$0xff]
    %v4857 = vld [vmem:[#allocation9 + $0x1020] sm:$0xff]
    %v4858 = vld [vmem:[#allocation9 + $0x1028] sm:$0xff]
    %v4859 = vld [vmem:[#allocation9 + $0x1030] sm:$0xff]
    %v4860 = vld [vmem:[#allocation9 + $0x1038] sm:$0xff]
    %v4861 = vld [vmem:[#allocation9 + $0x1040] sm:$0xff]
    %v4862 = vld [vmem:[#allocation9 + $0x1048] sm:$0xff]
    %v4863 = vld [vmem:[#allocation9 + $0x1050] sm:$0xff]
    %v4864 = vld [vmem:[#allocation9 + $0x1058] sm:$0xff]
    %v4865 = vld [vmem:[#allocation9 + $0x1060] sm:$0xff]
    %v4866 = vld [vmem:[#allocation9 + $0x1068] sm:$0xff]
    %v4867 = vld [vmem:[#allocation9 + $0x1070] sm:$0xff]
    %v4868 = vld [vmem:[#allocation9 + $0x1078] sm:$0xff]
    %v4869 = vld [vmem:[#allocation9 + $0x1080] sm:$0xff]
    %v4870 = vld [vmem:[#allocation9 + $0x1088] sm:$0xff]
    %v4871 = vld [vmem:[#allocation9 + $0x1090] sm:$0xff]
    %v4872 = vld [vmem:[#allocation9 + $0x1098] sm:$0xff]
    %v4873 = vld [vmem:[#allocation9 + $0x10a0] sm:$0xff]
    %v4874 = vld [vmem:[#allocation9 + $0x10a8] sm:$0xff]
    %v4875 = vld [vmem:[#allocation9 + $0x10b0] sm:$0xff]
    %v4876 = vld [vmem:[#allocation9 + $0x10b8] sm:$0xff]
    %v4877 = vld [vmem:[#allocation9 + $0x10c0] sm:$0xff]
    %v4878 = vld [vmem:[#allocation9 + $0x10c8] sm:$0xff]
    %v4879 = vld [vmem:[#allocation9 + $0x10d0] sm:$0xff]
    %v4880 = vld [vmem:[#allocation9 + $0x10d8] sm:$0xff]
    %v4881 = vld [vmem:[#allocation9 + $0x10e0] sm:$0xff]
    %v4882 = vld [vmem:[#allocation9 + $0x10e8] sm:$0xff]
    %v4883 = vld [vmem:[#allocation9 + $0x10f0] sm:$0xff]
    %v4884 = vld [vmem:[#allocation9 + $0x10f8] sm:$0xff]
    %v4885 = vld [vmem:[#allocation9 + $0x1100] sm:$0xff]
    %v4886 = vld [vmem:[#allocation9 + $0x1108] sm:$0xff]
    %v4887 = vld [vmem:[#allocation9 + $0x1110] sm:$0xff]
    %v4888 = vld [vmem:[#allocation9 + $0x1118] sm:$0xff]
    %v4889 = vld [vmem:[#allocation9 + $0x1120] sm:$0xff]
    %v4890 = vld [vmem:[#allocation9 + $0x1128] sm:$0xff]
    %v4891 = vld [vmem:[#allocation9 + $0x1130] sm:$0xff]
    %v4892 = vld [vmem:[#allocation9 + $0x1138] sm:$0xff]
    %v4893 = vld [vmem:[#allocation9 + $0x1140] sm:$0xff]
    %v4894 = vld [vmem:[#allocation9 + $0x1148] sm:$0xff]
    %v4895 = vld [vmem:[#allocation9 + $0x1150] sm:$0xff]
    %v4896 = vld [vmem:[#allocation9 + $0x1158] sm:$0xff]
    %v4897 = vld [vmem:[#allocation9 + $0x1160] sm:$0xff]
    %v4898 = vld [vmem:[#allocation9 + $0x1168] sm:$0xff]
    %v4899 = vld [vmem:[#allocation9 + $0x1170] sm:$0xff]
    %v4900 = vld [vmem:[#allocation9 + $0x1178] sm:$0xff]
    %v4901 = vld [vmem:[#allocation9 + $0x1180] sm:$0xff]
    %v4902 = vld [vmem:[#allocation9 + $0x1188] sm:$0xff]
    %v4903 = vld [vmem:[#allocation9 + $0x1190] sm:$0xff]
    %v4904 = vld [vmem:[#allocation9 + $0x1198] sm:$0xff]
    %v4905 = vld [vmem:[#allocation9 + $0x11a0] sm:$0xff]
    %v4906 = vld [vmem:[#allocation9 + $0x11a8] sm:$0xff]
    %v4907 = vld [vmem:[#allocation9 + $0x11b0] sm:$0xff]
    %v4908 = vld [vmem:[#allocation9 + $0x11b8] sm:$0xff]
    %v4909 = vld [vmem:[#allocation9 + $0x11c0] sm:$0xff]
    %v4910 = vld [vmem:[#allocation9 + $0x11c8] sm:$0xff]
    %v4911 = vld [vmem:[#allocation9 + $0x11d0] sm:$0xff]
    %v4912 = vld [vmem:[#allocation9 + $0x11d8] sm:$0xff]
    %v4913 = vld [vmem:[#allocation9 + $0x11e0] sm:$0xff]
    %v4914 = vld [vmem:[#allocation9 + $0x11e8] sm:$0xff]
    %v4915 = vld [vmem:[#allocation9 + $0x11f0] sm:$0xff]
    %v4916 = vld [vmem:[#allocation9 + $0x11f8] sm:$0xff]
    %v4917 = vld [vmem:[#allocation9 + $0x1200] sm:$0xff]
    %v4918 = vld [vmem:[#allocation9 + $0x1208] sm:$0xff]
    %v4919 = vld [vmem:[#allocation9 + $0x1210] sm:$0xff]
    %v4920 = vld [vmem:[#allocation9 + $0x1218] sm:$0xff]
    %v4921 = vld [vmem:[#allocation9 + $0x1220] sm:$0xff]
    %v4922 = vld [vmem:[#allocation9 + $0x1228] sm:$0xff]
    %v4923 = vld [vmem:[#allocation9 + $0x1230] sm:$0xff]
    %v4924 = vld [vmem:[#allocation9 + $0x1238] sm:$0xff]
    %v4925 = vld [vmem:[#allocation9 + $0x1240] sm:$0xff]
    %v4926 = vld [vmem:[#allocation9 + $0x1248] sm:$0xff]
    %v4927 = vld [vmem:[#allocation9 + $0x1250] sm:$0xff]
    %v4928 = vld [vmem:[#allocation9 + $0x1258] sm:$0xff]
    %v4929 = vld [vmem:[#allocation9 + $0x1260] sm:$0xff]
    %v4930 = vld [vmem:[#allocation9 + $0x1268] sm:$0xff]
    %v4931 = vld [vmem:[#allocation9 + $0x1270] sm:$0xff]
    %v4932 = vld [vmem:[#allocation9 + $0x1278] sm:$0xff]
    %v4933 = vld [vmem:[#allocation9 + $0x1280] sm:$0xff]
    %v4934 = vld [vmem:[#allocation9 + $0x1288] sm:$0xff]
    %v4935 = vld [vmem:[#allocation9 + $0x1290] sm:$0xff]
    %v4936 = vld [vmem:[#allocation9 + $0x1298] sm:$0xff]
    %v4937 = vld [vmem:[#allocation9 + $0x12a0] sm:$0xff]
    %v4938 = vld [vmem:[#allocation9 + $0x12a8] sm:$0xff]
    %v4939 = vld [vmem:[#allocation9 + $0x12b0] sm:$0xff]
    %v4940 = vld [vmem:[#allocation9 + $0x12b8] sm:$0xff]
    %v4941 = vld [vmem:[#allocation9 + $0x12c0] sm:$0xff]
    %v4942 = vld [vmem:[#allocation9 + $0x12c8] sm:$0xff]
    %v4943 = vld [vmem:[#allocation9 + $0x12d0] sm:$0xff]
    %v4944 = vld [vmem:[#allocation9 + $0x12d8] sm:$0xff]
    %v4945 = vld [vmem:[#allocation9 + $0x12e0] sm:$0xff]
    %v4946 = vld [vmem:[#allocation9 + $0x12e8] sm:$0xff]
    %v4947 = vld [vmem:[#allocation9 + $0x12f0] sm:$0xff]
    %v4948 = vld [vmem:[#allocation9 + $0x12f8] sm:$0xff]
    %v4949 = vld [vmem:[#allocation9 + $0x1300] sm:$0xff]
    %v4950 = vld [vmem:[#allocation9 + $0x1308] sm:$0xff]
    %v4951 = vld [vmem:[#allocation9 + $0x1310] sm:$0xff]
    %v4952 = vld [vmem:[#allocation9 + $0x1318] sm:$0xff]
    %v4953 = vld [vmem:[#allocation9 + $0x1320] sm:$0xff]
    %v4954 = vld [vmem:[#allocation9 + $0x1328] sm:$0xff]
    %v4955 = vld [vmem:[#allocation9 + $0x1330] sm:$0xff]
    %v4956 = vld [vmem:[#allocation9 + $0x1338] sm:$0xff]
    %v4957 = vld [vmem:[#allocation9 + $0x1340] sm:$0xff]
    %v4958 = vld [vmem:[#allocation9 + $0x1348] sm:$0xff]
    %v4959 = vld [vmem:[#allocation9 + $0x1350] sm:$0xff]
    %v4960 = vld [vmem:[#allocation9 + $0x1358] sm:$0xff]
    %v4961 = vld [vmem:[#allocation9 + $0x1360] sm:$0xff]
    %v4962 = vld [vmem:[#allocation9 + $0x1368] sm:$0xff]
    %v4963 = vld [vmem:[#allocation9 + $0x1370] sm:$0xff]
    %v4964 = vld [vmem:[#allocation9 + $0x1378] sm:$0xff]
    %v4965 = vld [vmem:[#allocation9 + $0x1380] sm:$0xff]
    %v4966 = vld [vmem:[#allocation9 + $0x1388] sm:$0xff]
    %v4967 = vld [vmem:[#allocation9 + $0x1390] sm:$0xff]
    %v4968 = vld [vmem:[#allocation9 + $0x1398] sm:$0xff]
    %v4969 = vld [vmem:[#allocation9 + $0x13a0] sm:$0xff]
    %v4970 = vld [vmem:[#allocation9 + $0x13a8] sm:$0xff]
    %v4971 = vld [vmem:[#allocation9 + $0x13b0] sm:$0xff]
    %v4972 = vld [vmem:[#allocation9 + $0x13b8] sm:$0xff]
    %v4973 = vld [vmem:[#allocation9 + $0x13c0] sm:$0xff]
    %v4974 = vld [vmem:[#allocation9 + $0x13c8] sm:$0xff]
    %v4975 = vld [vmem:[#allocation9 + $0x13d0] sm:$0xff]
    %v4976 = vld [vmem:[#allocation9 + $0x13d8] sm:$0xff]
    %v4977 = vld [vmem:[#allocation9 + $0x13e0] sm:$0xff]
    %v4978 = vld [vmem:[#allocation9 + $0x13e8] sm:$0xff]
    %v4979 = vld [vmem:[#allocation9 + $0x13f0] sm:$0xff]
    %v4980 = vld [vmem:[#allocation9 + $0x13f8] sm:$0xff]
    %v4981 = vld [vmem:[#allocation9 + $0x1400] sm:$0xff]
    %v4982 = vld [vmem:[#allocation9 + $0x1408] sm:$0xff]
    %v4983 = vld [vmem:[#allocation9 + $0x1410] sm:$0xff]
    %v4984 = vld [vmem:[#allocation9 + $0x1418] sm:$0xff]
    %v4985 = vld [vmem:[#allocation9 + $0x1420] sm:$0xff]
    %v4986 = vld [vmem:[#allocation9 + $0x1428] sm:$0xff]
    %v4987 = vld [vmem:[#allocation9 + $0x1430] sm:$0xff]
    %v4988 = vld [vmem:[#allocation9 + $0x1438] sm:$0xff]
    %v4989 = vld [vmem:[#allocation9 + $0x1440] sm:$0xff]
    %v4990 = vld [vmem:[#allocation9 + $0x1448] sm:$0xff]
    %v4991 = vld [vmem:[#allocation9 + $0x1450] sm:$0xff]
    %v4992 = vld [vmem:[#allocation9 + $0x1458] sm:$0xff]
    %v4993 = vld [vmem:[#allocation9 + $0x1460] sm:$0xff]
    %v4994 = vld [vmem:[#allocation9 + $0x1468] sm:$0xff]
    %v4995 = vld [vmem:[#allocation9 + $0x1470] sm:$0xff]
    %v4996 = vld [vmem:[#allocation9 + $0x1478] sm:$0xff]
    %v4997 = vld [vmem:[#allocation9 + $0x1480] sm:$0xff]
    %v4998 = vld [vmem:[#allocation9 + $0x1488] sm:$0xff]
    %v4999 = vld [vmem:[#allocation9 + $0x1490] sm:$0xff]
    %v5000 = vld [vmem:[#allocation9 + $0x1498] sm:$0xff]
    %v5001 = vld [vmem:[#allocation9 + $0x14a0] sm:$0xff]
    %v5002 = vld [vmem:[#allocation9 + $0x14a8] sm:$0xff]
    %v5003 = vld [vmem:[#allocation9 + $0x14b0] sm:$0xff]
    %v5004 = vld [vmem:[#allocation9 + $0x14b8] sm:$0xff]
    %v5005 = vld [vmem:[#allocation9 + $0x14c0] sm:$0xff]
    %v5006 = vld [vmem:[#allocation9 + $0x14c8] sm:$0xff]
    %v5007 = vld [vmem:[#allocation9 + $0x14d0] sm:$0xff]
    %v5008 = vld [vmem:[#allocation9 + $0x14d8] sm:$0xff]
    %v5009 = vld [vmem:[#allocation9 + $0x14e0] sm:$0xff]
    %v5010 = vld [vmem:[#allocation9 + $0x14e8] sm:$0xff]
    %v5011 = vld [vmem:[#allocation9 + $0x14f0] sm:$0xff]
    %v5012 = vld [vmem:[#allocation9 + $0x14f8] sm:$0xff]
    %v5013 = vld [vmem:[#allocation9 + $0x1500] sm:$0xff]
    %v5014 = vld [vmem:[#allocation9 + $0x1508] sm:$0xff]
    %v5015 = vld [vmem:[#allocation9 + $0x1510] sm:$0xff]
    %v5016 = vld [vmem:[#allocation9 + $0x1518] sm:$0xff]
    %v5017 = vld [vmem:[#allocation9 + $0x1520] sm:$0xff]
    %v5018 = vld [vmem:[#allocation9 + $0x1528] sm:$0xff]
    %v5019 = vld [vmem:[#allocation9 + $0x1530] sm:$0xff]
    %v5020 = vld [vmem:[#allocation9 + $0x1538] sm:$0xff]
    %v5021 = vld [vmem:[#allocation9 + $0x1540] sm:$0xff]
    %v5022 = vld [vmem:[#allocation9 + $0x1548] sm:$0xff]
    %v5023 = vld [vmem:[#allocation9 + $0x1550] sm:$0xff]
    %v5024 = vld [vmem:[#allocation9 + $0x1558] sm:$0xff]
    %v5025 = vld [vmem:[#allocation9 + $0x1560] sm:$0xff]
    %v5026 = vld [vmem:[#allocation9 + $0x1568] sm:$0xff]
    %v5027 = vld [vmem:[#allocation9 + $0x1570] sm:$0xff]
    %v5028 = vld [vmem:[#allocation9 + $0x1578] sm:$0xff]
    %v5029 = vld [vmem:[#allocation9 + $0x1580] sm:$0xff]
    %v5030 = vld [vmem:[#allocation9 + $0x1588] sm:$0xff]
    %v5031 = vld [vmem:[#allocation9 + $0x1590] sm:$0xff]
    %v5032 = vld [vmem:[#allocation9 + $0x1598] sm:$0xff]
    %v5033 = vld [vmem:[#allocation9 + $0x15a0] sm:$0xff]
    %v5034 = vld [vmem:[#allocation9 + $0x15a8] sm:$0xff]
    %v5035 = vld [vmem:[#allocation9 + $0x15b0] sm:$0xff]
    %v5036 = vld [vmem:[#allocation9 + $0x15b8] sm:$0xff]
    %v5037 = vld [vmem:[#allocation9 + $0x15c0] sm:$0xff]
    %v5038 = vld [vmem:[#allocation9 + $0x15c8] sm:$0xff]
    %v5039 = vld [vmem:[#allocation9 + $0x15d0] sm:$0xff]
    %v5040 = vld [vmem:[#allocation9 + $0x15d8] sm:$0xff]
    %v5041 = vld [vmem:[#allocation9 + $0x15e0] sm:$0xff]
    %v5042 = vld [vmem:[#allocation9 + $0x15e8] sm:$0xff]
    %v5043 = vld [vmem:[#allocation9 + $0x15f0] sm:$0xff]
    %v5044 = vld [vmem:[#allocation9 + $0x15f8] sm:$0xff]
    %v5045 = vld [vmem:[#allocation9 + $0x1600] sm:$0xff]
    %v5046 = vld [vmem:[#allocation9 + $0x1608] sm:$0xff]
    %v5047 = vld [vmem:[#allocation9 + $0x1610] sm:$0xff]
    %v5048 = vld [vmem:[#allocation9 + $0x1618] sm:$0xff]
    %v5049 = vld [vmem:[#allocation9 + $0x1620] sm:$0xff]
    %v5050 = vld [vmem:[#allocation9 + $0x1628] sm:$0xff]
    %v5051 = vld [vmem:[#allocation9 + $0x1630] sm:$0xff]
    %v5052 = vld [vmem:[#allocation9 + $0x1638] sm:$0xff]
    %v5053 = vld [vmem:[#allocation9 + $0x1640] sm:$0xff]
    %v5054 = vld [vmem:[#allocation9 + $0x1648] sm:$0xff]
    %v5055 = vld [vmem:[#allocation9 + $0x1650] sm:$0xff]
    %v5056 = vld [vmem:[#allocation9 + $0x1658] sm:$0xff]
    %v5057 = vld [vmem:[#allocation9 + $0x1660] sm:$0xff]
    %v5058 = vld [vmem:[#allocation9 + $0x1668] sm:$0xff]
    %v5059 = vld [vmem:[#allocation9 + $0x1670] sm:$0xff]
    %v5060 = vld [vmem:[#allocation9 + $0x1678] sm:$0xff]
    %v5061 = vld [vmem:[#allocation9 + $0x1680] sm:$0xff]
    %v5062 = vld [vmem:[#allocation9 + $0x1688] sm:$0xff]
    %v5063 = vld [vmem:[#allocation9 + $0x1690] sm:$0xff]
    %v5064 = vld [vmem:[#allocation9 + $0x1698] sm:$0xff]
    %v5065 = vld [vmem:[#allocation9 + $0x16a0] sm:$0xff]
    %v5066 = vld [vmem:[#allocation9 + $0x16a8] sm:$0xff]
    %v5067 = vld [vmem:[#allocation9 + $0x16b0] sm:$0xff]
    %v5068 = vld [vmem:[#allocation9 + $0x16b8] sm:$0xff]
    %v5069 = vld [vmem:[#allocation9 + $0x16c0] sm:$0xff]
    %v5070 = vld [vmem:[#allocation9 + $0x16c8] sm:$0xff]
    %v5071 = vld [vmem:[#allocation9 + $0x16d0] sm:$0xff]
    %v5072 = vld [vmem:[#allocation9 + $0x16d8] sm:$0xff]
    %v5073 = vld [vmem:[#allocation9 + $0x16e0] sm:$0xff]
    %v5074 = vld [vmem:[#allocation9 + $0x16e8] sm:$0xff]
    %v5075 = vld [vmem:[#allocation9 + $0x16f0] sm:$0xff]
    %v5076 = vld [vmem:[#allocation9 + $0x16f8] sm:$0xff]
    %v5077 = vld [vmem:[#allocation9 + $0x1700] sm:$0xff]
    %v5078 = vld [vmem:[#allocation9 + $0x1708] sm:$0xff]
    %v5079 = vld [vmem:[#allocation9 + $0x1710] sm:$0xff]
    %v5080 = vld [vmem:[#allocation9 + $0x1718] sm:$0xff]
    %v5081 = vld [vmem:[#allocation9 + $0x1720] sm:$0xff]
    %v5082 = vld [vmem:[#allocation9 + $0x1728] sm:$0xff]
    %v5083 = vld [vmem:[#allocation9 + $0x1730] sm:$0xff]
    %v5084 = vld [vmem:[#allocation9 + $0x1738] sm:$0xff]
    %v5085 = vld [vmem:[#allocation9 + $0x1740] sm:$0xff]
    %v5086 = vld [vmem:[#allocation9 + $0x1748] sm:$0xff]
    %v5087 = vld [vmem:[#allocation9 + $0x1750] sm:$0xff]
    %v5088 = vld [vmem:[#allocation9 + $0x1758] sm:$0xff]
    %v5089 = vld [vmem:[#allocation9 + $0x1760] sm:$0xff]
    %v5090 = vld [vmem:[#allocation9 + $0x1768] sm:$0xff]
    %v5091 = vld [vmem:[#allocation11] sm:$0xff]
    %v5092 = vld [vmem:[#allocation11 + $0x8] sm:$0x3]
    %v5095 = vperm.slane %v5091, 0
    %v5096 = vperm.slane %v5091, 1
    %v5097 = vperm.slane %v5091, 2
    %v5098 = vperm.slane %v5091, 3
    %v5099 = vperm.slane %v5091, 4
    %v5100 = vperm.slane %v5091, 5
    %v5101 = vperm.slane %v5091, 6
    %v5102 = vperm.slane %v5091, 7
    %v5103 = vperm.slane %v5092, 0
    %v5104 = vperm.slane %v5092, 1
    %v5865 = vunpack.c.l.b16 %v4341
    %v5866 = vunpack.c.h.b16 %v4341
    %v5867 = vunpack.c.l.b16 %v4342
    %v5868 = vunpack.c.h.b16 %v4342
    %v5869 = vunpack.c.l.b16 %v4343
    %v5870 = vunpack.c.h.b16 %v4343
    %v5871 = vunpack.c.l.b16 %v4344
    %v5872 = vunpack.c.h.b16 %v4344
    %v5873 = vunpack.c.l.b16 %v4345
    %v5874 = vunpack.c.h.b16 %v4345
    %v5875 = vunpack.c.l.b16 %v4346
    %v5876 = vunpack.c.h.b16 %v4346
    %v5877 = vunpack.c.l.b16 %v4347
    %v5878 = vunpack.c.h.b16 %v4347
    %v5879 = vunpack.c.l.b16 %v4348
    %v5880 = vunpack.c.h.b16 %v4348
    %v5881 = vunpack.c.l.b16 %v4349
    %v5882 = vunpack.c.h.b16 %v4349
    %v5883 = vunpack.c.l.b16 %v4350
    %v5884 = vunpack.c.h.b16 %v4350
    %v5885 = vunpack.c.l.b16 %v4351
    %v5886 = vunpack.c.h.b16 %v4351
    %v5887 = vunpack.c.l.b16 %v4352
    %v5888 = vunpack.c.h.b16 %v4352
    %v5889 = vunpack.c.l.b16 %v4353
    %v5890 = vunpack.c.h.b16 %v4353
    %v5891 = vunpack.c.l.b16 %v4354
    %v5892 = vunpack.c.h.b16 %v4354
    %v5893 = vunpack.c.l.b16 %v4355
    %v5894 = vunpack.c.h.b16 %v4355
    %v5895 = vunpack.c.l.b16 %v4356
    %v5896 = vunpack.c.h.b16 %v4356
    %v5897 = vunpack.c.l.b16 %v4357
    %v5898 = vunpack.c.h.b16 %v4357
    %v5899 = vunpack.c.l.b16 %v4358
    %v5900 = vunpack.c.h.b16 %v4358
    %v5901 = vunpack.c.l.b16 %v4359
    %v5902 = vunpack.c.h.b16 %v4359
    %v5903 = vunpack.c.l.b16 %v4360
    %v5904 = vunpack.c.h.b16 %v4360
    %v5905 = vunpack.c.l.b16 %v4361
    %v5906 = vunpack.c.h.b16 %v4361
    %v5907 = vunpack.c.l.b16 %v4362
    %v5908 = vunpack.c.h.b16 %v4362
    %v5909 = vunpack.c.l.b16 %v4363
    %v5910 = vunpack.c.h.b16 %v4363
    %v5911 = vunpack.c.l.b16 %v4364
    %v5912 = vunpack.c.h.b16 %v4364
    %v5913 = vunpack.c.l.b16 %v4365
    %v5914 = vunpack.c.h.b16 %v4365
    %v5915 = vunpack.c.l.b16 %v4366
    %v5916 = vunpack.c.h.b16 %v4366
    %v5917 = vunpack.c.l.b16 %v4367
    %v5918 = vunpack.c.h.b16 %v4367
    %v5919 = vunpack.c.l.b16 %v4368
    %v5920 = vunpack.c.h.b16 %v4368
    %v5921 = vunpack.c.l.b16 %v4369
    %v5922 = vunpack.c.h.b16 %v4369
    %v5923 = vunpack.c.l.b16 %v4370
    %v5924 = vunpack.c.h.b16 %v4370
    %v5925 = vunpack.c.l.b16 %v4371
    %v5926 = vunpack.c.h.b16 %v4371
    %v5927 = vunpack.c.l.b16 %v4372
    %v5928 = vunpack.c.h.b16 %v4372
    %v5929 = vunpack.c.l.b16 %v4373
    %v5930 = vunpack.c.h.b16 %v4373
    %v5931 = vunpack.c.l.b16 %v4374
    %v5932 = vunpack.c.h.b16 %v4374
    %v5933 = vunpack.c.l.b16 %v4375
    %v5934 = vunpack.c.h.b16 %v4375
    %v5935 = vunpack.c.l.b16 %v4376
    %v5936 = vunpack.c.h.b16 %v4376
    %v5937 = vunpack.c.l.b16 %v4377
    %v5938 = vunpack.c.h.b16 %v4377
    %v5939 = vunpack.c.l.b16 %v4378
    %v5940 = vunpack.c.h.b16 %v4378
    %v5941 = vunpack.c.l.b16 %v4379
    %v5942 = vunpack.c.h.b16 %v4379
    %v5943 = vunpack.c.l.b16 %v4380
    %v5944 = vunpack.c.h.b16 %v4380
    %v5945 = vunpack.c.l.b16 %v4381
    %v5946 = vunpack.c.h.b16 %v4381
    %v5947 = vunpack.c.l.b16 %v4382
    %v5948 = vunpack.c.h.b16 %v4382
    %v5949 = vunpack.c.l.b16 %v4383
    %v5950 = vunpack.c.h.b16 %v4383
    %v5951 = vunpack.c.l.b16 %v4384
    %v5952 = vunpack.c.h.b16 %v4384
    %v5953 = vunpack.c.l.b16 %v4385
    %v5954 = vunpack.c.h.b16 %v4385
    %v5955 = vunpack.c.l.b16 %v4386
    %v5956 = vunpack.c.h.b16 %v4386
    %v5957 = vunpack.c.l.b16 %v4387
    %v5958 = vunpack.c.h.b16 %v4387
    %v5959 = vunpack.c.l.b16 %v4388
    %v5960 = vunpack.c.h.b16 %v4388
    %v5961 = vunpack.c.l.b16 %v4389
    %v5962 = vunpack.c.h.b16 %v4389
    %v5963 = vunpack.c.l.b16 %v4390
    %v5964 = vunpack.c.h.b16 %v4390
    %v5965 = vunpack.c.l.b16 %v4391
    %v5966 = vunpack.c.h.b16 %v4391
    %v5967 = vunpack.c.l.b16 %v4392
    %v5968 = vunpack.c.h.b16 %v4392
    %v5969 = vunpack.c.l.b16 %v4393
    %v5970 = vunpack.c.h.b16 %v4393
    %v5971 = vunpack.c.l.b16 %v4394
    %v5972 = vunpack.c.h.b16 %v4394
    %v5973 = vunpack.c.l.b16 %v4395
    %v5974 = vunpack.c.h.b16 %v4395
    %v5975 = vunpack.c.l.b16 %v4396
    %v5976 = vunpack.c.h.b16 %v4396
    %v5977 = vunpack.c.l.b16 %v4397
    %v5978 = vunpack.c.h.b16 %v4397
    %v5979 = vunpack.c.l.b16 %v4398
    %v5980 = vunpack.c.h.b16 %v4398
    %v5981 = vunpack.c.l.b16 %v4399
    %v5982 = vunpack.c.h.b16 %v4399
    %v5983 = vunpack.c.l.b16 %v4400
    %v5984 = vunpack.c.h.b16 %v4400
    %v5985 = vunpack.c.l.b16 %v4401
    %v5986 = vunpack.c.h.b16 %v4401
    %v5987 = vunpack.c.l.b16 %v4402
    %v5988 = vunpack.c.h.b16 %v4402
    %v5989 = vunpack.c.l.b16 %v4403
    %v5990 = vunpack.c.h.b16 %v4403
    %v5991 = vunpack.c.l.b16 %v4404
    %v5992 = vunpack.c.h.b16 %v4404
    %v5993 = vunpack.c.l.b16 %v4405
    %v5994 = vunpack.c.h.b16 %v4405
    %v5995 = vunpack.c.l.b16 %v4406
    %v5996 = vunpack.c.h.b16 %v4406
    %v5997 = vunpack.c.l.b16 %v4407
    %v5998 = vunpack.c.h.b16 %v4407
    %v5999 = vunpack.c.l.b16 %v4408
    %v6000 = vunpack.c.h.b16 %v4408
    %v6001 = vunpack.c.l.b16 %v4409
    %v6002 = vunpack.c.h.b16 %v4409
    %v6003 = vunpack.c.l.b16 %v4410
    %v6004 = vunpack.c.h.b16 %v4410
    %v6005 = vunpack.c.l.b16 %v4411
    %v6006 = vunpack.c.h.b16 %v4411
    %v6007 = vunpack.c.l.b16 %v4412
    %v6008 = vunpack.c.h.b16 %v4412
    %v6009 = vunpack.c.l.b16 %v4413
    %v6010 = vunpack.c.h.b16 %v4413
    %v6011 = vunpack.c.l.b16 %v4414
    %v6012 = vunpack.c.h.b16 %v4414
    %v6013 = vunpack.c.l.b16 %v4415
    %v6014 = vunpack.c.h.b16 %v4415
    %v6015 = vunpack.c.l.b16 %v4416
    %v6016 = vunpack.c.h.b16 %v4416
    %v6017 = vunpack.c.l.b16 %v4417
    %v6018 = vunpack.c.h.b16 %v4417
    %v6019 = vunpack.c.l.b16 %v4418
    %v6020 = vunpack.c.h.b16 %v4418
    %v6021 = vunpack.c.l.b16 %v4419
    %v6022 = vunpack.c.h.b16 %v4419
    %v6023 = vunpack.c.l.b16 %v4420
    %v6024 = vunpack.c.h.b16 %v4420
    %v6025 = vunpack.c.l.b16 %v4421
    %v6026 = vunpack.c.h.b16 %v4421
    %v6027 = vunpack.c.l.b16 %v4422
    %v6028 = vunpack.c.h.b16 %v4422
    %v6029 = vunpack.c.l.b16 %v4423
    %v6030 = vunpack.c.h.b16 %v4423
    %v6031 = vunpack.c.l.b16 %v4424
    %v6032 = vunpack.c.h.b16 %v4424
    %v6033 = vunpack.c.l.b16 %v4425
    %v6034 = vunpack.c.h.b16 %v4425
    %v6035 = vunpack.c.l.b16 %v4426
    %v6036 = vunpack.c.h.b16 %v4426
    %v6037 = vunpack.c.l.b16 %v4427
    %v6038 = vunpack.c.h.b16 %v4427
    %v6039 = vunpack.c.l.b16 %v4428
    %v6040 = vunpack.c.h.b16 %v4428
    %v6041 = vunpack.c.l.b16 %v4429
    %v6042 = vunpack.c.h.b16 %v4429
    %v6043 = vunpack.c.l.b16 %v4430
    %v6044 = vunpack.c.h.b16 %v4430
    %v6045 = vunpack.c.l.b16 %v4431
    %v6046 = vunpack.c.h.b16 %v4431
    %v6047 = vunpack.c.l.b16 %v4432
    %v6048 = vunpack.c.h.b16 %v4432
    %v6049 = vunpack.c.l.b16 %v4433
    %v6050 = vunpack.c.h.b16 %v4433
    %v6051 = vunpack.c.l.b16 %v4434
    %v6052 = vunpack.c.h.b16 %v4434
    %v6053 = vunpack.c.l.b16 %v4435
    %v6054 = vunpack.c.h.b16 %v4435
    %v6055 = vunpack.c.l.b16 %v4436
    %v6056 = vunpack.c.h.b16 %v4436
    %v6057 = vunpack.c.l.b16 %v4437
    %v6058 = vunpack.c.h.b16 %v4437
    %v6059 = vunpack.c.l.b16 %v4438
    %v6060 = vunpack.c.h.b16 %v4438
    %v6061 = vunpack.c.l.b16 %v4439
    %v6062 = vunpack.c.h.b16 %v4439
    %v6063 = vunpack.c.l.b16 %v4440
    %v6064 = vunpack.c.h.b16 %v4440
    %v6065 = vunpack.c.l.b16 %v4441
    %v6066 = vunpack.c.h.b16 %v4441
    %v6067 = vunpack.c.l.b16 %v4442
    %v6068 = vunpack.c.h.b16 %v4442
    %v6069 = vunpack.c.l.b16 %v4443
    %v6070 = vunpack.c.h.b16 %v4443
    %v6071 = vunpack.c.l.b16 %v4444
    %v6072 = vunpack.c.h.b16 %v4444
    %v6073 = vunpack.c.l.b16 %v4445
    %v6074 = vunpack.c.h.b16 %v4445
    %v6075 = vunpack.c.l.b16 %v4446
    %v6076 = vunpack.c.h.b16 %v4446
    %v6077 = vunpack.c.l.b16 %v4447
    %v6078 = vunpack.c.h.b16 %v4447
    %v6079 = vunpack.c.l.b16 %v4448
    %v6080 = vunpack.c.h.b16 %v4448
    %v6081 = vunpack.c.l.b16 %v4449
    %v6082 = vunpack.c.h.b16 %v4449
    %v6083 = vunpack.c.l.b16 %v4450
    %v6084 = vunpack.c.h.b16 %v4450
    %v6085 = vunpack.c.l.b16 %v4451
    %v6086 = vunpack.c.h.b16 %v4451
    %v6087 = vunpack.c.l.b16 %v4452
    %v6088 = vunpack.c.h.b16 %v4452
    %v6089 = vunpack.c.l.b16 %v4453
    %v6090 = vunpack.c.h.b16 %v4453
    %v6091 = vunpack.c.l.b16 %v4454
    %v6092 = vunpack.c.h.b16 %v4454
    %v6093 = vunpack.c.l.b16 %v4455
    %v6094 = vunpack.c.h.b16 %v4455
    %v6095 = vunpack.c.l.b16 %v4456
    %v6096 = vunpack.c.h.b16 %v4456
    %v6097 = vunpack.c.l.b16 %v4457
    %v6098 = vunpack.c.h.b16 %v4457
    %v6099 = vunpack.c.l.b16 %v4458
    %v6100 = vunpack.c.h.b16 %v4458
    %v6101 = vunpack.c.l.b16 %v4459
    %v6102 = vunpack.c.h.b16 %v4459
    %v6103 = vunpack.c.l.b16 %v4460
    %v6104 = vunpack.c.h.b16 %v4460
    %v6105 = vunpack.c.l.b16 %v4461
    %v6106 = vunpack.c.h.b16 %v4461
    %v6107 = vunpack.c.l.b16 %v4462
    %v6108 = vunpack.c.h.b16 %v4462
    %v6109 = vunpack.c.l.b16 %v4463
    %v6110 = vunpack.c.h.b16 %v4463
    %v6111 = vunpack.c.l.b16 %v4464
    %v6112 = vunpack.c.h.b16 %v4464
    %v6113 = vunpack.c.l.b16 %v4465
    %v6114 = vunpack.c.h.b16 %v4465
    %v6115 = vunpack.c.l.b16 %v4466
    %v6116 = vunpack.c.h.b16 %v4466
    %v6117 = vunpack.c.l.b16 %v4467
    %v6118 = vunpack.c.h.b16 %v4467
    %v6119 = vunpack.c.l.b16 %v4468
    %v6120 = vunpack.c.h.b16 %v4468
    %v6121 = vunpack.c.l.b16 %v4469
    %v6122 = vunpack.c.h.b16 %v4469
    %v6123 = vunpack.c.l.b16 %v4470
    %v6124 = vunpack.c.h.b16 %v4470
    %v6125 = vunpack.c.l.b16 %v4471
    %v6126 = vunpack.c.h.b16 %v4471
    %v6127 = vunpack.c.l.b16 %v4472
    %v6128 = vunpack.c.h.b16 %v4472
    %v6129 = vunpack.c.l.b16 %v4473
    %v6130 = vunpack.c.h.b16 %v4473
    %v6131 = vunpack.c.l.b16 %v4474
    %v6132 = vunpack.c.h.b16 %v4474
    %v6133 = vunpack.c.l.b16 %v4475
    %v6134 = vunpack.c.h.b16 %v4475
    %v6135 = vunpack.c.l.b16 %v4476
    %v6136 = vunpack.c.h.b16 %v4476
    %v6137 = vunpack.c.l.b16 %v4477
    %v6138 = vunpack.c.h.b16 %v4477
    %v6139 = vunpack.c.l.b16 %v4478
    %v6140 = vunpack.c.h.b16 %v4478
    %v6141 = vunpack.c.l.b16 %v4479
    %v6142 = vunpack.c.h.b16 %v4479
    %v6143 = vunpack.c.l.b16 %v4480
    %v6144 = vunpack.c.h.b16 %v4480
    %v6145 = vunpack.c.l.b16 %v4481
    %v6146 = vunpack.c.h.b16 %v4481
    %v6147 = vunpack.c.l.b16 %v4482
    %v6148 = vunpack.c.h.b16 %v4482
    %v6149 = vunpack.c.l.b16 %v4483
    %v6150 = vunpack.c.h.b16 %v4483
    %v6151 = vunpack.c.l.b16 %v4484
    %v6152 = vunpack.c.h.b16 %v4484
    %v6153 = vunpack.c.l.b16 %v4485
    %v6154 = vunpack.c.h.b16 %v4485
    %v6155 = vunpack.c.l.b16 %v4486
    %v6156 = vunpack.c.h.b16 %v4486
    %v6157 = vunpack.c.l.b16 %v4487
    %v6158 = vunpack.c.h.b16 %v4487
    %v6159 = vunpack.c.l.b16 %v4488
    %v6160 = vunpack.c.h.b16 %v4488
    %v6161 = vunpack.c.l.b16 %v4489
    %v6162 = vunpack.c.h.b16 %v4489
    %v6163 = vunpack.c.l.b16 %v4490
    %v6164 = vunpack.c.h.b16 %v4490
    %v6165 = vunpack.c.l.b16 %v4491
    %v6166 = vunpack.c.h.b16 %v4491
    %v6167 = vunpack.c.l.b16 %v4492
    %v6168 = vunpack.c.h.b16 %v4492
    %v6169 = vunpack.c.l.b16 %v4493
    %v6170 = vunpack.c.h.b16 %v4493
    %v6171 = vunpack.c.l.b16 %v4494
    %v6172 = vunpack.c.h.b16 %v4494
    %v6173 = vunpack.c.l.b16 %v4495
    %v6174 = vunpack.c.h.b16 %v4495
    %v6175 = vunpack.c.l.b16 %v4496
    %v6176 = vunpack.c.h.b16 %v4496
    %v6177 = vunpack.c.l.b16 %v4497
    %v6178 = vunpack.c.h.b16 %v4497
    %v6179 = vunpack.c.l.b16 %v4498
    %v6180 = vunpack.c.h.b16 %v4498
    %v6181 = vunpack.c.l.b16 %v4499
    %v6182 = vunpack.c.h.b16 %v4499
    %v6183 = vunpack.c.l.b16 %v4500
    %v6184 = vunpack.c.h.b16 %v4500
    %v6185 = vunpack.c.l.b16 %v4501
    %v6186 = vunpack.c.h.b16 %v4501
    %v6187 = vunpack.c.l.b16 %v4502
    %v6188 = vunpack.c.h.b16 %v4502
    %v6189 = vunpack.c.l.b16 %v4503
    %v6190 = vunpack.c.h.b16 %v4503
    %v6191 = vunpack.c.l.b16 %v4504
    %v6192 = vunpack.c.h.b16 %v4504
    %v6193 = vunpack.c.l.b16 %v4505
    %v6194 = vunpack.c.h.b16 %v4505
    %v6195 = vunpack.c.l.b16 %v4506
    %v6196 = vunpack.c.h.b16 %v4506
    %v6197 = vunpack.c.l.b16 %v4507
    %v6198 = vunpack.c.h.b16 %v4507
    %v6199 = vunpack.c.l.b16 %v4508
    %v6200 = vunpack.c.h.b16 %v4508
    %v6201 = vunpack.c.l.b16 %v4509
    %v6202 = vunpack.c.h.b16 %v4509
    %v6203 = vunpack.c.l.b16 %v4510
    %v6204 = vunpack.c.h.b16 %v4510
    %v6205 = vunpack.c.l.b16 %v4511
    %v6206 = vunpack.c.h.b16 %v4511
    %v6207 = vunpack.c.l.b16 %v4512
    %v6208 = vunpack.c.h.b16 %v4512
    %v6209 = vunpack.c.l.b16 %v4513
    %v6210 = vunpack.c.h.b16 %v4513
    %v6211 = vunpack.c.l.b16 %v4514
    %v6212 = vunpack.c.h.b16 %v4514
    %v6213 = vunpack.c.l.b16 %v4515
    %v6214 = vunpack.c.h.b16 %v4515
    %v6215 = vunpack.c.l.b16 %v4516
    %v6216 = vunpack.c.h.b16 %v4516
    %v6217 = vunpack.c.l.b16 %v4517
    %v6218 = vunpack.c.h.b16 %v4517
    %v6219 = vunpack.c.l.b16 %v4518
    %v6220 = vunpack.c.h.b16 %v4518
    %v6221 = vunpack.c.l.b16 %v4519
    %v6222 = vunpack.c.h.b16 %v4519
    %v6223 = vunpack.c.l.b16 %v4520
    %v6224 = vunpack.c.h.b16 %v4520
    %v6225 = vunpack.c.l.b16 %v4521
    %v6226 = vunpack.c.h.b16 %v4521
    %v6227 = vunpack.c.l.b16 %v4522
    %v6228 = vunpack.c.h.b16 %v4522
    %v6229 = vunpack.c.l.b16 %v4523
    %v6230 = vunpack.c.h.b16 %v4523
    %v6231 = vunpack.c.l.b16 %v4524
    %v6232 = vunpack.c.h.b16 %v4524
    %v6233 = vunpack.c.l.b16 %v4525
    %v6234 = vunpack.c.h.b16 %v4525
    %v6235 = vunpack.c.l.b16 %v4526
    %v6236 = vunpack.c.h.b16 %v4526
    %v6237 = vunpack.c.l.b16 %v4527
    %v6238 = vunpack.c.h.b16 %v4527
    %v6239 = vunpack.c.l.b16 %v4528
    %v6240 = vunpack.c.h.b16 %v4528
    %v6241 = vunpack.c.l.b16 %v4529
    %v6242 = vunpack.c.h.b16 %v4529
    %v6243 = vunpack.c.l.b16 %v4530
    %v6244 = vunpack.c.h.b16 %v4530
    %v6245 = vunpack.c.l.b16 %v4531
    %v6246 = vunpack.c.h.b16 %v4531
    %v6247 = vunpack.c.l.b16 %v4532
    %v6248 = vunpack.c.h.b16 %v4532
    %v6249 = vunpack.c.l.b16 %v4533
    %v6250 = vunpack.c.h.b16 %v4533
    %v6251 = vunpack.c.l.b16 %v4534
    %v6252 = vunpack.c.h.b16 %v4534
    %v6253 = vunpack.c.l.b16 %v4535
    %v6254 = vunpack.c.h.b16 %v4535
    %v6255 = vunpack.c.l.b16 %v4536
    %v6256 = vunpack.c.h.b16 %v4536
    %v6257 = vunpack.c.l.b16 %v4537
    %v6258 = vunpack.c.h.b16 %v4537
    %v6259 = vunpack.c.l.b16 %v4538
    %v6260 = vunpack.c.h.b16 %v4538
    %v6261 = vunpack.c.l.b16 %v4539
    %v6262 = vunpack.c.h.b16 %v4539
    %v6263 = vunpack.c.l.b16 %v4540
    %v6264 = vunpack.c.h.b16 %v4540
    %v6265 = vunpack.c.l.b16 %v4541
    %v6266 = vunpack.c.h.b16 %v4541
    %v6267 = vunpack.c.l.b16 %v4542
    %v6268 = vunpack.c.h.b16 %v4542
    %v6269 = vunpack.c.l.b16 %v4543
    %v6270 = vunpack.c.h.b16 %v4543
    %v6271 = vunpack.c.l.b16 %v4544
    %v6272 = vunpack.c.h.b16 %v4544
    %v6273 = vunpack.c.l.b16 %v4545
    %v6274 = vunpack.c.h.b16 %v4545
    %v6275 = vunpack.c.l.b16 %v4546
    %v6276 = vunpack.c.h.b16 %v4546
    %v6277 = vunpack.c.l.b16 %v4547
    %v6278 = vunpack.c.h.b16 %v4547
    %v6279 = vunpack.c.l.b16 %v4548
    %v6280 = vunpack.c.h.b16 %v4548
    %v6281 = vunpack.c.l.b16 %v4549
    %v6282 = vunpack.c.h.b16 %v4549
    %v6283 = vunpack.c.l.b16 %v4550
    %v6284 = vunpack.c.h.b16 %v4550
    %v6285 = vunpack.c.l.b16 %v4551
    %v6286 = vunpack.c.h.b16 %v4551
    %v6287 = vunpack.c.l.b16 %v4552
    %v6288 = vunpack.c.h.b16 %v4552
    %v6289 = vunpack.c.l.b16 %v4553
    %v6290 = vunpack.c.h.b16 %v4553
    %v6291 = vunpack.c.l.b16 %v4554
    %v6292 = vunpack.c.h.b16 %v4554
    %v6293 = vunpack.c.l.b16 %v4555
    %v6294 = vunpack.c.h.b16 %v4555
    %v6295 = vunpack.c.l.b16 %v4556
    %v6296 = vunpack.c.h.b16 %v4556
    %v6297 = vunpack.c.l.b16 %v4557
    %v6298 = vunpack.c.h.b16 %v4557
    %v6299 = vunpack.c.l.b16 %v4558
    %v6300 = vunpack.c.h.b16 %v4558
    %v6301 = vunpack.c.l.b16 %v4559
    %v6302 = vunpack.c.h.b16 %v4559
    %v6303 = vunpack.c.l.b16 %v4560
    %v6304 = vunpack.c.h.b16 %v4560
    %v6305 = vunpack.c.l.b16 %v4561
    %v6306 = vunpack.c.h.b16 %v4561
    %v6307 = vunpack.c.l.b16 %v4562
    %v6308 = vunpack.c.h.b16 %v4562
    %v6309 = vunpack.c.l.b16 %v4563
    %v6310 = vunpack.c.h.b16 %v4563
    %v6311 = vunpack.c.l.b16 %v4564
    %v6312 = vunpack.c.h.b16 %v4564
    %v6313 = vunpack.c.l.b16 %v4565
    %v6314 = vunpack.c.h.b16 %v4565
    %v6315 = vunpack.c.l.b16 %v4566
    %v6316 = vunpack.c.h.b16 %v4566
    %v6317 = vunpack.c.l.b16 %v4567
    %v6318 = vunpack.c.h.b16 %v4567
    %v6319 = vunpack.c.l.b16 %v4568
    %v6320 = vunpack.c.h.b16 %v4568
    %v6321 = vunpack.c.l.b16 %v4569
    %v6322 = vunpack.c.h.b16 %v4569
    %v6323 = vunpack.c.l.b16 %v4570
    %v6324 = vunpack.c.h.b16 %v4570
    %v6325 = vunpack.c.l.b16 %v4571
    %v6326 = vunpack.c.h.b16 %v4571
    %v6327 = vunpack.c.l.b16 %v4572
    %v6328 = vunpack.c.h.b16 %v4572
    %v6329 = vunpack.c.l.b16 %v4573
    %v6330 = vunpack.c.h.b16 %v4573
    %v6331 = vunpack.c.l.b16 %v4574
    %v6332 = vunpack.c.h.b16 %v4574
    %v6333 = vunpack.c.l.b16 %v4575
    %v6334 = vunpack.c.h.b16 %v4575
    %v6335 = vunpack.c.l.b16 %v4576
    %v6336 = vunpack.c.h.b16 %v4576
    %v6337 = vunpack.c.l.b16 %v4577
    %v6338 = vunpack.c.h.b16 %v4577
    %v6339 = vunpack.c.l.b16 %v4578
    %v6340 = vunpack.c.h.b16 %v4578
    %v6341 = vunpack.c.l.b16 %v4579
    %v6342 = vunpack.c.h.b16 %v4579
    %v6343 = vunpack.c.l.b16 %v4580
    %v6344 = vunpack.c.h.b16 %v4580
    %v6345 = vunpack.c.l.b16 %v4581
    %v6346 = vunpack.c.h.b16 %v4581
    %v6347 = vunpack.c.l.b16 %v4582
    %v6348 = vunpack.c.h.b16 %v4582
    %v6349 = vunpack.c.l.b16 %v4583
    %v6350 = vunpack.c.h.b16 %v4583
    %v6351 = vunpack.c.l.b16 %v4584
    %v6352 = vunpack.c.h.b16 %v4584
    %v6353 = vunpack.c.l.b16 %v4585
    %v6354 = vunpack.c.h.b16 %v4585
    %v6355 = vunpack.c.l.b16 %v4586
    %v6356 = vunpack.c.h.b16 %v4586
    %v6357 = vunpack.c.l.b16 %v4587
    %v6358 = vunpack.c.h.b16 %v4587
    %v6359 = vunpack.c.l.b16 %v4588
    %v6360 = vunpack.c.h.b16 %v4588
    %v6361 = vunpack.c.l.b16 %v4589
    %v6362 = vunpack.c.h.b16 %v4589
    %v6363 = vunpack.c.l.b16 %v4590
    %v6364 = vunpack.c.h.b16 %v4590
    %v6365 = vunpack.c.l.b16 %v4591
    %v6366 = vunpack.c.h.b16 %v4591
    %v6367 = vunpack.c.l.b16 %v4592
    %v6368 = vunpack.c.h.b16 %v4592
    %v6369 = vunpack.c.l.b16 %v4593
    %v6370 = vunpack.c.h.b16 %v4593
    %v6371 = vunpack.c.l.b16 %v4594
    %v6372 = vunpack.c.h.b16 %v4594
    %v6373 = vunpack.c.l.b16 %v4595
    %v6374 = vunpack.c.h.b16 %v4595
    %v6375 = vunpack.c.l.b16 %v4596
    %v6376 = vunpack.c.h.b16 %v4596
    %v6377 = vunpack.c.l.b16 %v4597
    %v6378 = vunpack.c.h.b16 %v4597
    %v6379 = vunpack.c.l.b16 %v4598
    %v6380 = vunpack.c.h.b16 %v4598
    %v6381 = vunpack.c.l.b16 %v4599
    %v6382 = vunpack.c.h.b16 %v4599
    %v6383 = vunpack.c.l.b16 %v4600
    %v6384 = vunpack.c.h.b16 %v4600
    %v6385 = vunpack.c.l.b16 %v4601
    %v6386 = vunpack.c.h.b16 %v4601
    %v6387 = vunpack.c.l.b16 %v4602
    %v6388 = vunpack.c.h.b16 %v4602
    %v6389 = vunpack.c.l.b16 %v4603
    %v6390 = vunpack.c.h.b16 %v4603
    %v6391 = vunpack.c.l.b16 %v4604
    %v6392 = vunpack.c.h.b16 %v4604
    %v6393 = vunpack.c.l.b16 %v4605
    %v6394 = vunpack.c.h.b16 %v4605
    %v6395 = vunpack.c.l.b16 %v4606
    %v6396 = vunpack.c.h.b16 %v4606
    %v6397 = vunpack.c.l.b16 %v4607
    %v6398 = vunpack.c.h.b16 %v4607
    %v6399 = vunpack.c.l.b16 %v4608
    %v6400 = vunpack.c.h.b16 %v4608
    %v6401 = vunpack.c.l.b16 %v4609
    %v6402 = vunpack.c.h.b16 %v4609
    %v6403 = vunpack.c.l.b16 %v4610
    %v6404 = vunpack.c.h.b16 %v4610
    %v6405 = vunpack.c.l.b16 %v4611
    %v6406 = vunpack.c.h.b16 %v4611
    %v6407 = vunpack.c.l.b16 %v4612
    %v6408 = vunpack.c.h.b16 %v4612
    %v6409 = vunpack.c.l.b16 %v4613
    %v6410 = vunpack.c.h.b16 %v4613
    %v6411 = vunpack.c.l.b16 %v4614
    %v6412 = vunpack.c.h.b16 %v4614
    %v6413 = vunpack.c.l.b16 %v4615
    %v6414 = vunpack.c.h.b16 %v4615
    %v6415 = vunpack.c.l.b16 %v4616
    %v6416 = vunpack.c.h.b16 %v4616
    %v6417 = vunpack.c.l.b16 %v4617
    %v6418 = vunpack.c.h.b16 %v4617
    %v6419 = vunpack.c.l.b16 %v4618
    %v6420 = vunpack.c.h.b16 %v4618
    %v6421 = vunpack.c.l.b16 %v4619
    %v6422 = vunpack.c.h.b16 %v4619
    %v6423 = vunpack.c.l.b16 %v4620
    %v6424 = vunpack.c.h.b16 %v4620
    %v6425 = vunpack.c.l.b16 %v4621
    %v6426 = vunpack.c.h.b16 %v4621
    %v6427 = vunpack.c.l.b16 %v4622
    %v6428 = vunpack.c.h.b16 %v4622
    %v6429 = vunpack.c.l.b16 %v4623
    %v6430 = vunpack.c.h.b16 %v4623
    %v6431 = vunpack.c.l.b16 %v4624
    %v6432 = vunpack.c.h.b16 %v4624
    %v6433 = vunpack.c.l.b16 %v4625
    %v6434 = vunpack.c.h.b16 %v4625
    %v6435 = vunpack.c.l.b16 %v4626
    %v6436 = vunpack.c.h.b16 %v4626
    %v6437 = vunpack.c.l.b16 %v4627
    %v6438 = vunpack.c.h.b16 %v4627
    %v6439 = vunpack.c.l.b16 %v4628
    %v6440 = vunpack.c.h.b16 %v4628
    %v6441 = vunpack.c.l.b16 %v4629
    %v6442 = vunpack.c.h.b16 %v4629
    %v6443 = vunpack.c.l.b16 %v4630
    %v6444 = vunpack.c.h.b16 %v4630
    %v6445 = vunpack.c.l.b16 %v4631
    %v6446 = vunpack.c.h.b16 %v4631
    %v6447 = vunpack.c.l.b16 %v4632
    %v6448 = vunpack.c.h.b16 %v4632
    %v6449 = vunpack.c.l.b16 %v4633
    %v6450 = vunpack.c.h.b16 %v4633
    %v6451 = vunpack.c.l.b16 %v4634
    %v6452 = vunpack.c.h.b16 %v4634
    %v6453 = vunpack.c.l.b16 %v4635
    %v6454 = vunpack.c.h.b16 %v4635
    %v6455 = vunpack.c.l.b16 %v4636
    %v6456 = vunpack.c.h.b16 %v4636
    %v6457 = vunpack.c.l.b16 %v4637
    %v6458 = vunpack.c.h.b16 %v4637
    %v6459 = vunpack.c.l.b16 %v4638
    %v6460 = vunpack.c.h.b16 %v4638
    %v6461 = vunpack.c.l.b16 %v4639
    %v6462 = vunpack.c.h.b16 %v4639
    %v6463 = vunpack.c.l.b16 %v4640
    %v6464 = vunpack.c.h.b16 %v4640
    %v6465 = vunpack.c.l.b16 %v4641
    %v6466 = vunpack.c.h.b16 %v4641
    %v6467 = vunpack.c.l.b16 %v4642
    %v6468 = vunpack.c.h.b16 %v4642
    %v6469 = vunpack.c.l.b16 %v4643
    %v6470 = vunpack.c.h.b16 %v4643
    %v6471 = vunpack.c.l.b16 %v4644
    %v6472 = vunpack.c.h.b16 %v4644
    %v6473 = vunpack.c.l.b16 %v4645
    %v6474 = vunpack.c.h.b16 %v4645
    %v6475 = vunpack.c.l.b16 %v4646
    %v6476 = vunpack.c.h.b16 %v4646
    %v6477 = vunpack.c.l.b16 %v4647
    %v6478 = vunpack.c.h.b16 %v4647
    %v6479 = vunpack.c.l.b16 %v4648
    %v6480 = vunpack.c.h.b16 %v4648
    %v6481 = vunpack.c.l.b16 %v4649
    %v6482 = vunpack.c.h.b16 %v4649
    %v6483 = vunpack.c.l.b16 %v4650
    %v6484 = vunpack.c.h.b16 %v4650
    %v6485 = vunpack.c.l.b16 %v4651
    %v6486 = vunpack.c.h.b16 %v4651
    %v6487 = vunpack.c.l.b16 %v4652
    %v6488 = vunpack.c.h.b16 %v4652
    %v6489 = vunpack.c.l.b16 %v4653
    %v6490 = vunpack.c.h.b16 %v4653
    %v6491 = vunpack.c.l.b16 %v4654
    %v6492 = vunpack.c.h.b16 %v4654
    %v6493 = vunpack.c.l.b16 %v4655
    %v6494 = vunpack.c.h.b16 %v4655
    %v6495 = vunpack.c.l.b16 %v4656
    %v6496 = vunpack.c.h.b16 %v4656
    %v6497 = vunpack.c.l.b16 %v4657
    %v6498 = vunpack.c.h.b16 %v4657
    %v6499 = vunpack.c.l.b16 %v4658
    %v6500 = vunpack.c.h.b16 %v4658
    %v6501 = vunpack.c.l.b16 %v4659
    %v6502 = vunpack.c.h.b16 %v4659
    %v6503 = vunpack.c.l.b16 %v4660
    %v6504 = vunpack.c.h.b16 %v4660
    %v6505 = vunpack.c.l.b16 %v4661
    %v6506 = vunpack.c.h.b16 %v4661
    %v6507 = vunpack.c.l.b16 %v4662
    %v6508 = vunpack.c.h.b16 %v4662
    %v6509 = vunpack.c.l.b16 %v4663
    %v6510 = vunpack.c.h.b16 %v4663
    %v6511 = vunpack.c.l.b16 %v4664
    %v6512 = vunpack.c.h.b16 %v4664
    %v6513 = vunpack.c.l.b16 %v4665
    %v6514 = vunpack.c.h.b16 %v4665
    %v6515 = vunpack.c.l.b16 %v4666
    %v6516 = vunpack.c.h.b16 %v4666
    %v6517 = vunpack.c.l.b16 %v4667
    %v6518 = vunpack.c.h.b16 %v4667
    %v6519 = vunpack.c.l.b16 %v4668
    %v6520 = vunpack.c.h.b16 %v4668
    %v6521 = vunpack.c.l.b16 %v4669
    %v6522 = vunpack.c.h.b16 %v4669
    %v6523 = vunpack.c.l.b16 %v4670
    %v6524 = vunpack.c.h.b16 %v4670
    %v6525 = vunpack.c.l.b16 %v4671
    %v6526 = vunpack.c.h.b16 %v4671
    %v6527 = vunpack.c.l.b16 %v4672
    %v6528 = vunpack.c.h.b16 %v4672
    %v6529 = vunpack.c.l.b16 %v4673
    %v6530 = vunpack.c.h.b16 %v4673
    %v6531 = vunpack.c.l.b16 %v4674
    %v6532 = vunpack.c.h.b16 %v4674
    %v6533 = vunpack.c.l.b16 %v4675
    %v6534 = vunpack.c.h.b16 %v4675
    %v6535 = vunpack.c.l.b16 %v4676
    %v6536 = vunpack.c.h.b16 %v4676
    %v6537 = vunpack.c.l.b16 %v4677
    %v6538 = vunpack.c.h.b16 %v4677
    %v6539 = vunpack.c.l.b16 %v4678
    %v6540 = vunpack.c.h.b16 %v4678
    %v6541 = vunpack.c.l.b16 %v4679
    %v6542 = vunpack.c.h.b16 %v4679
    %v6543 = vunpack.c.l.b16 %v4680
    %v6544 = vunpack.c.h.b16 %v4680
    %v6545 = vunpack.c.l.b16 %v4681
    %v6546 = vunpack.c.h.b16 %v4681
    %v6547 = vunpack.c.l.b16 %v4682
    %v6548 = vunpack.c.h.b16 %v4682
    %v6549 = vunpack.c.l.b16 %v4683
    %v6550 = vunpack.c.h.b16 %v4683
    %v6551 = vunpack.c.l.b16 %v4684
    %v6552 = vunpack.c.h.b16 %v4684
    %v6553 = vunpack.c.l.b16 %v4685
    %v6554 = vunpack.c.h.b16 %v4685
    %v6555 = vunpack.c.l.b16 %v4686
    %v6556 = vunpack.c.h.b16 %v4686
    %v6557 = vunpack.c.l.b16 %v4687
    %v6558 = vunpack.c.h.b16 %v4687
    %v6559 = vunpack.c.l.b16 %v4688
    %v6560 = vunpack.c.h.b16 %v4688
    %v6561 = vunpack.c.l.b16 %v4689
    %v6562 = vunpack.c.h.b16 %v4689
    %v6563 = vunpack.c.l.b16 %v4690
    %v6564 = vunpack.c.h.b16 %v4690
    %v6565 = vunpack.c.l.b16 %v4691
    %v6566 = vunpack.c.h.b16 %v4691
    %v6567 = vunpack.c.l.b16 %v4692
    %v6568 = vunpack.c.h.b16 %v4692
    %v6569 = vunpack.c.l.b16 %v4693
    %v6570 = vunpack.c.h.b16 %v4693
    %v6571 = vunpack.c.l.b16 %v4694
    %v6572 = vunpack.c.h.b16 %v4694
    %v6573 = vunpack.c.l.b16 %v4695
    %v6574 = vunpack.c.h.b16 %v4695
    %v6575 = vunpack.c.l.b16 %v4696
    %v6576 = vunpack.c.h.b16 %v4696
    %v6577 = vunpack.c.l.b16 %v4697
    %v6578 = vunpack.c.h.b16 %v4697
    %v6579 = vunpack.c.l.b16 %v4698
    %v6580 = vunpack.c.h.b16 %v4698
    %v6581 = vunpack.c.l.b16 %v4699
    %v6582 = vunpack.c.h.b16 %v4699
    %v6583 = vunpack.c.l.b16 %v4700
    %v6584 = vunpack.c.h.b16 %v4700
    %v6585 = vunpack.c.l.b16 %v4701
    %v6586 = vunpack.c.h.b16 %v4701
    %v6587 = vunpack.c.l.b16 %v4702
    %v6588 = vunpack.c.h.b16 %v4702
    %v6589 = vunpack.c.l.b16 %v4703
    %v6590 = vunpack.c.h.b16 %v4703
    %v6591 = vunpack.c.l.b16 %v4704
    %v6592 = vunpack.c.h.b16 %v4704
    %v6593 = vunpack.c.l.b16 %v4705
    %v6594 = vunpack.c.h.b16 %v4705
    %v6595 = vunpack.c.l.b16 %v4706
    %v6596 = vunpack.c.h.b16 %v4706
    %v6597 = vunpack.c.l.b16 %v4707
    %v6598 = vunpack.c.h.b16 %v4707
    %v6599 = vunpack.c.l.b16 %v4708
    %v6600 = vunpack.c.h.b16 %v4708
    %v6601 = vunpack.c.l.b16 %v4709
    %v6602 = vunpack.c.h.b16 %v4709
    %v6603 = vunpack.c.l.b16 %v4710
    %v6604 = vunpack.c.h.b16 %v4710
    %v6605 = vunpack.c.l.b16 %v4711
    %v6606 = vunpack.c.h.b16 %v4711
    %v6607 = vunpack.c.l.b16 %v4712
    %v6608 = vunpack.c.h.b16 %v4712
    %v6609 = vunpack.c.l.b16 %v4713
    %v6610 = vunpack.c.h.b16 %v4713
    %v6611 = vunpack.c.l.b16 %v4714
    %v6612 = vunpack.c.h.b16 %v4714
    %v6613 = vunpack.c.l.b16 %v4715
    %v6614 = vunpack.c.h.b16 %v4715
    %v6615 = vunpack.c.l.b16 %v4716
    %v6616 = vunpack.c.h.b16 %v4716
    %v6617 = vunpack.c.l.b16 %v4717
    %v6618 = vunpack.c.h.b16 %v4717
    %v6619 = vunpack.c.l.b16 %v4718
    %v6620 = vunpack.c.h.b16 %v4718
    %v6621 = vunpack.c.l.b16 %v4719
    %v6622 = vunpack.c.h.b16 %v4719
    %v6623 = vunpack.c.l.b16 %v4720
    %v6624 = vunpack.c.h.b16 %v4720
    %v6625 = vunpack.c.l.b16 %v4721
    %v6626 = vunpack.c.h.b16 %v4721
    %v6627 = vunpack.c.l.b16 %v4722
    %v6628 = vunpack.c.h.b16 %v4722
    %v6629 = vunpack.c.l.b16 %v4723
    %v6630 = vunpack.c.h.b16 %v4723
    %v6631 = vunpack.c.l.b16 %v4724
    %v6632 = vunpack.c.h.b16 %v4724
    %v6633 = vunpack.c.l.b16 %v4725
    %v6634 = vunpack.c.h.b16 %v4725
    %v6635 = vunpack.c.l.b16 %v4726
    %v6636 = vunpack.c.h.b16 %v4726
    %v6637 = vunpack.c.l.b16 %v4727
    %v6638 = vunpack.c.h.b16 %v4727
    %v6639 = vunpack.c.l.b16 %v4728
    %v6640 = vunpack.c.h.b16 %v4728
    %v6641 = vunpack.c.l.b16 %v4729
    %v6642 = vunpack.c.h.b16 %v4729
    %v6643 = vunpack.c.l.b16 %v4730
    %v6644 = vunpack.c.h.b16 %v4730
    %v6645 = vunpack.c.l.b16 %v4731
    %v6646 = vunpack.c.h.b16 %v4731
    %v6647 = vunpack.c.l.b16 %v4732
    %v6648 = vunpack.c.h.b16 %v4732
    %v6649 = vunpack.c.l.b16 %v4733
    %v6650 = vunpack.c.h.b16 %v4733
    %v6651 = vunpack.c.l.b16 %v4734
    %v6652 = vunpack.c.h.b16 %v4734
    %v6653 = vunpack.c.l.b16 %v4735
    %v6654 = vunpack.c.h.b16 %v4735
    %v6655 = vunpack.c.l.b16 %v4736
    %v6656 = vunpack.c.h.b16 %v4736
    %v6657 = vunpack.c.l.b16 %v4737
    %v6658 = vunpack.c.h.b16 %v4737
    %v6659 = vunpack.c.l.b16 %v4738
    %v6660 = vunpack.c.h.b16 %v4738
    %v6661 = vunpack.c.l.b16 %v4739
    %v6662 = vunpack.c.h.b16 %v4739
    %v6663 = vunpack.c.l.b16 %v4740
    %v6664 = vunpack.c.h.b16 %v4740
    %v6665 = vunpack.c.l.b16 %v4741
    %v6666 = vunpack.c.h.b16 %v4741
    %v6667 = vunpack.c.l.b16 %v4742
    %v6668 = vunpack.c.h.b16 %v4742
    %v6669 = vunpack.c.l.b16 %v4743
    %v6670 = vunpack.c.h.b16 %v4743
    %v6671 = vunpack.c.l.b16 %v4744
    %v6672 = vunpack.c.h.b16 %v4744
    %v6673 = vunpack.c.l.b16 %v4745
    %v6674 = vunpack.c.h.b16 %v4745
    %v6675 = vunpack.c.l.b16 %v4746
    %v6676 = vunpack.c.h.b16 %v4746
    %v6677 = vunpack.c.l.b16 %v4747
    %v6678 = vunpack.c.h.b16 %v4747
    %v6679 = vunpack.c.l.b16 %v4748
    %v6680 = vunpack.c.h.b16 %v4748
    %v6681 = vunpack.c.l.b16 %v4749
    %v6682 = vunpack.c.h.b16 %v4749
    %v6683 = vunpack.c.l.b16 %v4750
    %v6684 = vunpack.c.h.b16 %v4750
    %v6685 = vunpack.c.l.b16 %v4751
    %v6686 = vunpack.c.h.b16 %v4751
    %v6687 = vunpack.c.l.b16 %v4752
    %v6688 = vunpack.c.h.b16 %v4752
    %v6689 = vunpack.c.l.b16 %v4753
    %v6690 = vunpack.c.h.b16 %v4753
    %v6691 = vunpack.c.l.b16 %v4754
    %v6692 = vunpack.c.h.b16 %v4754
    %v6693 = vunpack.c.l.b16 %v4755
    %v6694 = vunpack.c.h.b16 %v4755
    %v6695 = vunpack.c.l.b16 %v4756
    %v6696 = vunpack.c.h.b16 %v4756
    %v6697 = vunpack.c.l.b16 %v4757
    %v6698 = vunpack.c.h.b16 %v4757
    %v6699 = vunpack.c.l.b16 %v4758
    %v6700 = vunpack.c.h.b16 %v4758
    %v6701 = vunpack.c.l.b16 %v4759
    %v6702 = vunpack.c.h.b16 %v4759
    %v6703 = vunpack.c.l.b16 %v4760
    %v6704 = vunpack.c.h.b16 %v4760
    %v6705 = vunpack.c.l.b16 %v4761
    %v6706 = vunpack.c.h.b16 %v4761
    %v6707 = vunpack.c.l.b16 %v4762
    %v6708 = vunpack.c.h.b16 %v4762
    %v6709 = vunpack.c.l.b16 %v4763
    %v6710 = vunpack.c.h.b16 %v4763
    %v6711 = vunpack.c.l.b16 %v4764
    %v6712 = vunpack.c.h.b16 %v4764
    %v6713 = vunpack.c.l.b16 %v4765
    %v6714 = vunpack.c.h.b16 %v4765
    %v6715 = vunpack.c.l.b16 %v4766
    %v6716 = vunpack.c.h.b16 %v4766
    %v6717 = vunpack.c.l.b16 %v4767
    %v6718 = vunpack.c.h.b16 %v4767
    %v6719 = vunpack.c.l.b16 %v4768
    %v6720 = vunpack.c.h.b16 %v4768
    %v6721 = vunpack.c.l.b16 %v4769
    %v6722 = vunpack.c.h.b16 %v4769
    %v6723 = vunpack.c.l.b16 %v4770
    %v6724 = vunpack.c.h.b16 %v4770
    %v6725 = vunpack.c.l.b16 %v4771
    %v6726 = vunpack.c.h.b16 %v4771
    %v6727 = vunpack.c.l.b16 %v4772
    %v6728 = vunpack.c.h.b16 %v4772
    %v6729 = vunpack.c.l.b16 %v4773
    %v6730 = vunpack.c.h.b16 %v4773
    %v6731 = vunpack.c.l.b16 %v4774
    %v6732 = vunpack.c.h.b16 %v4774
    %v6733 = vunpack.c.l.b16 %v4775
    %v6734 = vunpack.c.h.b16 %v4775
    %v6735 = vunpack.c.l.b16 %v4776
    %v6736 = vunpack.c.h.b16 %v4776
    %v6737 = vunpack.c.l.b16 %v4777
    %v6738 = vunpack.c.h.b16 %v4777
    %v6739 = vunpack.c.l.b16 %v4778
    %v6740 = vunpack.c.h.b16 %v4778
    %v6741 = vunpack.c.l.b16 %v4779
    %v6742 = vunpack.c.h.b16 %v4779
    %v6743 = vunpack.c.l.b16 %v4780
    %v6744 = vunpack.c.h.b16 %v4780
    %v6745 = vunpack.c.l.b16 %v4781
    %v6746 = vunpack.c.h.b16 %v4781
    %v6747 = vunpack.c.l.b16 %v4782
    %v6748 = vunpack.c.h.b16 %v4782
    %v6749 = vunpack.c.l.b16 %v4783
    %v6750 = vunpack.c.h.b16 %v4783
    %v6751 = vunpack.c.l.b16 %v4784
    %v6752 = vunpack.c.h.b16 %v4784
    %v6753 = vunpack.c.l.b16 %v4785
    %v6754 = vunpack.c.h.b16 %v4785
    %v6755 = vunpack.c.l.b16 %v4786
    %v6756 = vunpack.c.h.b16 %v4786
    %v6757 = vunpack.c.l.b16 %v4787
    %v6758 = vunpack.c.h.b16 %v4787
    %v6759 = vunpack.c.l.b16 %v4788
    %v6760 = vunpack.c.h.b16 %v4788
    %v6761 = vunpack.c.l.b16 %v4789
    %v6762 = vunpack.c.h.b16 %v4789
    %v6763 = vunpack.c.l.b16 %v4790
    %v6764 = vunpack.c.h.b16 %v4790
    %v6765 = vunpack.c.l.b16 %v4791
    %v6766 = vunpack.c.h.b16 %v4791
    %v6767 = vunpack.c.l.b16 %v4792
    %v6768 = vunpack.c.h.b16 %v4792
    %v6769 = vunpack.c.l.b16 %v4793
    %v6770 = vunpack.c.h.b16 %v4793
    %v6771 = vunpack.c.l.b16 %v4794
    %v6772 = vunpack.c.h.b16 %v4794
    %v6773 = vunpack.c.l.b16 %v4795
    %v6774 = vunpack.c.h.b16 %v4795
    %v6775 = vunpack.c.l.b16 %v4796
    %v6776 = vunpack.c.h.b16 %v4796
    %v6777 = vunpack.c.l.b16 %v4797
    %v6778 = vunpack.c.h.b16 %v4797
    %v6779 = vunpack.c.l.b16 %v4798
    %v6780 = vunpack.c.h.b16 %v4798
    %v6781 = vunpack.c.l.b16 %v4799
    %v6782 = vunpack.c.h.b16 %v4799
    %v6783 = vunpack.c.l.b16 %v4800
    %v6784 = vunpack.c.h.b16 %v4800
    %v6785 = vunpack.c.l.b16 %v4801
    %v6786 = vunpack.c.h.b16 %v4801
    %v6787 = vunpack.c.l.b16 %v4802
    %v6788 = vunpack.c.h.b16 %v4802
    %v6789 = vunpack.c.l.b16 %v4803
    %v6790 = vunpack.c.h.b16 %v4803
    %v6791 = vunpack.c.l.b16 %v4804
    %v6792 = vunpack.c.h.b16 %v4804
    %v6793 = vunpack.c.l.b16 %v4805
    %v6794 = vunpack.c.h.b16 %v4805
    %v6795 = vunpack.c.l.b16 %v4806
    %v6796 = vunpack.c.h.b16 %v4806
    %v6797 = vunpack.c.l.b16 %v4807
    %v6798 = vunpack.c.h.b16 %v4807
    %v6799 = vunpack.c.l.b16 %v4808
    %v6800 = vunpack.c.h.b16 %v4808
    %v6801 = vunpack.c.l.b16 %v4809
    %v6802 = vunpack.c.h.b16 %v4809
    %v6803 = vunpack.c.l.b16 %v4810
    %v6804 = vunpack.c.h.b16 %v4810
    %v6805 = vunpack.c.l.b16 %v4811
    %v6806 = vunpack.c.h.b16 %v4811
    %v6807 = vunpack.c.l.b16 %v4812
    %v6808 = vunpack.c.h.b16 %v4812
    %v6809 = vunpack.c.l.b16 %v4813
    %v6810 = vunpack.c.h.b16 %v4813
    %v6811 = vunpack.c.l.b16 %v4814
    %v6812 = vunpack.c.h.b16 %v4814
    %v6813 = vunpack.c.l.b16 %v4815
    %v6814 = vunpack.c.h.b16 %v4815
    %v6815 = vunpack.c.l.b16 %v4816
    %v6816 = vunpack.c.h.b16 %v4816
    %v6817 = vunpack.c.l.b16 %v4817
    %v6818 = vunpack.c.h.b16 %v4817
    %v6819 = vunpack.c.l.b16 %v4818
    %v6820 = vunpack.c.h.b16 %v4818
    %v6821 = vunpack.c.l.b16 %v4819
    %v6822 = vunpack.c.h.b16 %v4819
    %v6823 = vunpack.c.l.b16 %v4820
    %v6824 = vunpack.c.h.b16 %v4820
    %v6825 = vunpack.c.l.b16 %v4821
    %v6826 = vunpack.c.h.b16 %v4821
    %v6827 = vunpack.c.l.b16 %v4822
    %v6828 = vunpack.c.h.b16 %v4822
    %v6829 = vunpack.c.l.b16 %v4823
    %v6830 = vunpack.c.h.b16 %v4823
    %v6831 = vunpack.c.l.b16 %v4824
    %v6832 = vunpack.c.h.b16 %v4824
    %v6833 = vunpack.c.l.b16 %v4825
    %v6834 = vunpack.c.h.b16 %v4825
    %v6835 = vunpack.c.l.b16 %v4826
    %v6836 = vunpack.c.h.b16 %v4826
    %v6837 = vunpack.c.l.b16 %v4827
    %v6838 = vunpack.c.h.b16 %v4827
    %v6839 = vunpack.c.l.b16 %v4828
    %v6840 = vunpack.c.h.b16 %v4828
    %v6841 = vunpack.c.l.b16 %v4829
    %v6842 = vunpack.c.h.b16 %v4829
    %v6843 = vunpack.c.l.b16 %v4830
    %v6844 = vunpack.c.h.b16 %v4830
    %v6845 = vunpack.c.l.b16 %v4831
    %v6846 = vunpack.c.h.b16 %v4831
    %v6847 = vunpack.c.l.b16 %v4832
    %v6848 = vunpack.c.h.b16 %v4832
    %v6849 = vunpack.c.l.b16 %v4833
    %v6850 = vunpack.c.h.b16 %v4833
    %v6851 = vunpack.c.l.b16 %v4834
    %v6852 = vunpack.c.h.b16 %v4834
    %v6853 = vunpack.c.l.b16 %v4835
    %v6854 = vunpack.c.h.b16 %v4835
    %v6855 = vunpack.c.l.b16 %v4836
    %v6856 = vunpack.c.h.b16 %v4836
    %v6857 = vunpack.c.l.b16 %v4837
    %v6858 = vunpack.c.h.b16 %v4837
    %v6859 = vunpack.c.l.b16 %v4838
    %v6860 = vunpack.c.h.b16 %v4838
    %v6861 = vunpack.c.l.b16 %v4839
    %v6862 = vunpack.c.h.b16 %v4839
    %v6863 = vunpack.c.l.b16 %v4840
    %v6864 = vunpack.c.h.b16 %v4840
    %v6865 = vunpack.c.l.b16 %v4841
    %v6866 = vunpack.c.h.b16 %v4841
    %v6867 = vunpack.c.l.b16 %v4842
    %v6868 = vunpack.c.h.b16 %v4842
    %v6869 = vunpack.c.l.b16 %v4843
    %v6870 = vunpack.c.h.b16 %v4843
    %v6871 = vunpack.c.l.b16 %v4844
    %v6872 = vunpack.c.h.b16 %v4844
    %v6873 = vunpack.c.l.b16 %v4845
    %v6874 = vunpack.c.h.b16 %v4845
    %v6875 = vunpack.c.l.b16 %v4846
    %v6876 = vunpack.c.h.b16 %v4846
    %v6877 = vunpack.c.l.b16 %v4847
    %v6878 = vunpack.c.h.b16 %v4847
    %v6879 = vunpack.c.l.b16 %v4848
    %v6880 = vunpack.c.h.b16 %v4848
    %v6881 = vunpack.c.l.b16 %v4849
    %v6882 = vunpack.c.h.b16 %v4849
    %v6883 = vunpack.c.l.b16 %v4850
    %v6884 = vunpack.c.h.b16 %v4850
    %v6885 = vunpack.c.l.b16 %v4851
    %v6886 = vunpack.c.h.b16 %v4851
    %v6887 = vunpack.c.l.b16 %v4852
    %v6888 = vunpack.c.h.b16 %v4852
    %v6889 = vunpack.c.l.b16 %v4853
    %v6890 = vunpack.c.h.b16 %v4853
    %v6891 = vunpack.c.l.b16 %v4854
    %v6892 = vunpack.c.h.b16 %v4854
    %v6893 = vunpack.c.l.b16 %v4855
    %v6894 = vunpack.c.h.b16 %v4855
    %v6895 = vunpack.c.l.b16 %v4856
    %v6896 = vunpack.c.h.b16 %v4856
    %v6897 = vunpack.c.l.b16 %v4857
    %v6898 = vunpack.c.h.b16 %v4857
    %v6899 = vunpack.c.l.b16 %v4858
    %v6900 = vunpack.c.h.b16 %v4858
    %v6901 = vunpack.c.l.b16 %v4859
    %v6902 = vunpack.c.h.b16 %v4859
    %v6903 = vunpack.c.l.b16 %v4860
    %v6904 = vunpack.c.h.b16 %v4860
    %v6905 = vunpack.c.l.b16 %v4861
    %v6906 = vunpack.c.h.b16 %v4861
    %v6907 = vunpack.c.l.b16 %v4862
    %v6908 = vunpack.c.h.b16 %v4862
    %v6909 = vunpack.c.l.b16 %v4863
    %v6910 = vunpack.c.h.b16 %v4863
    %v6911 = vunpack.c.l.b16 %v4864
    %v6912 = vunpack.c.h.b16 %v4864
    %v6913 = vunpack.c.l.b16 %v4865
    %v6914 = vunpack.c.h.b16 %v4865
    %v6915 = vunpack.c.l.b16 %v4866
    %v6916 = vunpack.c.h.b16 %v4866
    %v6917 = vunpack.c.l.b16 %v4867
    %v6918 = vunpack.c.h.b16 %v4867
    %v6919 = vunpack.c.l.b16 %v4868
    %v6920 = vunpack.c.h.b16 %v4868
    %v6921 = vunpack.c.l.b16 %v4869
    %v6922 = vunpack.c.h.b16 %v4869
    %v6923 = vunpack.c.l.b16 %v4870
    %v6924 = vunpack.c.h.b16 %v4870
    %v6925 = vunpack.c.l.b16 %v4871
    %v6926 = vunpack.c.h.b16 %v4871
    %v6927 = vunpack.c.l.b16 %v4872
    %v6928 = vunpack.c.h.b16 %v4872
    %v6929 = vunpack.c.l.b16 %v4873
    %v6930 = vunpack.c.h.b16 %v4873
    %v6931 = vunpack.c.l.b16 %v4874
    %v6932 = vunpack.c.h.b16 %v4874
    %v6933 = vunpack.c.l.b16 %v4875
    %v6934 = vunpack.c.h.b16 %v4875
    %v6935 = vunpack.c.l.b16 %v4876
    %v6936 = vunpack.c.h.b16 %v4876
    %v6937 = vunpack.c.l.b16 %v4877
    %v6938 = vunpack.c.h.b16 %v4877
    %v6939 = vunpack.c.l.b16 %v4878
    %v6940 = vunpack.c.h.b16 %v4878
    %v6941 = vunpack.c.l.b16 %v4879
    %v6942 = vunpack.c.h.b16 %v4879
    %v6943 = vunpack.c.l.b16 %v4880
    %v6944 = vunpack.c.h.b16 %v4880
    %v6945 = vunpack.c.l.b16 %v4881
    %v6946 = vunpack.c.h.b16 %v4881
    %v6947 = vunpack.c.l.b16 %v4882
    %v6948 = vunpack.c.h.b16 %v4882
    %v6949 = vunpack.c.l.b16 %v4883
    %v6950 = vunpack.c.h.b16 %v4883
    %v6951 = vunpack.c.l.b16 %v4884
    %v6952 = vunpack.c.h.b16 %v4884
    %v6953 = vunpack.c.l.b16 %v4885
    %v6954 = vunpack.c.h.b16 %v4885
    %v6955 = vunpack.c.l.b16 %v4886
    %v6956 = vunpack.c.h.b16 %v4886
    %v6957 = vunpack.c.l.b16 %v4887
    %v6958 = vunpack.c.h.b16 %v4887
    %v6959 = vunpack.c.l.b16 %v4888
    %v6960 = vunpack.c.h.b16 %v4888
    %v6961 = vunpack.c.l.b16 %v4889
    %v6962 = vunpack.c.h.b16 %v4889
    %v6963 = vunpack.c.l.b16 %v4890
    %v6964 = vunpack.c.h.b16 %v4890
    %v6965 = vunpack.c.l.b16 %v4891
    %v6966 = vunpack.c.h.b16 %v4891
    %v6967 = vunpack.c.l.b16 %v4892
    %v6968 = vunpack.c.h.b16 %v4892
    %v6969 = vunpack.c.l.b16 %v4893
    %v6970 = vunpack.c.h.b16 %v4893
    %v6971 = vunpack.c.l.b16 %v4894
    %v6972 = vunpack.c.h.b16 %v4894
    %v6973 = vunpack.c.l.b16 %v4895
    %v6974 = vunpack.c.h.b16 %v4895
    %v6975 = vunpack.c.l.b16 %v4896
    %v6976 = vunpack.c.h.b16 %v4896
    %v6977 = vunpack.c.l.b16 %v4897
    %v6978 = vunpack.c.h.b16 %v4897
    %v6979 = vunpack.c.l.b16 %v4898
    %v6980 = vunpack.c.h.b16 %v4898
    %v6981 = vunpack.c.l.b16 %v4899
    %v6982 = vunpack.c.h.b16 %v4899
    %v6983 = vunpack.c.l.b16 %v4900
    %v6984 = vunpack.c.h.b16 %v4900
    %v6985 = vunpack.c.l.b16 %v4901
    %v6986 = vunpack.c.h.b16 %v4901
    %v6987 = vunpack.c.l.b16 %v4902
    %v6988 = vunpack.c.h.b16 %v4902
    %v6989 = vunpack.c.l.b16 %v4903
    %v6990 = vunpack.c.h.b16 %v4903
    %v6991 = vunpack.c.l.b16 %v4904
    %v6992 = vunpack.c.h.b16 %v4904
    %v6993 = vunpack.c.l.b16 %v4905
    %v6994 = vunpack.c.h.b16 %v4905
    %v6995 = vunpack.c.l.b16 %v4906
    %v6996 = vunpack.c.h.b16 %v4906
    %v6997 = vunpack.c.l.b16 %v4907
    %v6998 = vunpack.c.h.b16 %v4907
    %v6999 = vunpack.c.l.b16 %v4908
    %v7000 = vunpack.c.h.b16 %v4908
    %v7001 = vunpack.c.l.b16 %v4909
    %v7002 = vunpack.c.h.b16 %v4909
    %v7003 = vunpack.c.l.b16 %v4910
    %v7004 = vunpack.c.h.b16 %v4910
    %v7005 = vunpack.c.l.b16 %v4911
    %v7006 = vunpack.c.h.b16 %v4911
    %v7007 = vunpack.c.l.b16 %v4912
    %v7008 = vunpack.c.h.b16 %v4912
    %v7009 = vunpack.c.l.b16 %v4913
    %v7010 = vunpack.c.h.b16 %v4913
    %v7011 = vunpack.c.l.b16 %v4914
    %v7012 = vunpack.c.h.b16 %v4914
    %v7013 = vunpack.c.l.b16 %v4915
    %v7014 = vunpack.c.h.b16 %v4915
    %v7015 = vunpack.c.l.b16 %v4916
    %v7016 = vunpack.c.h.b16 %v4916
    %v7017 = vunpack.c.l.b16 %v4917
    %v7018 = vunpack.c.h.b16 %v4917
    %v7019 = vunpack.c.l.b16 %v4918
    %v7020 = vunpack.c.h.b16 %v4918
    %v7021 = vunpack.c.l.b16 %v4919
    %v7022 = vunpack.c.h.b16 %v4919
    %v7023 = vunpack.c.l.b16 %v4920
    %v7024 = vunpack.c.h.b16 %v4920
    %v7025 = vunpack.c.l.b16 %v4921
    %v7026 = vunpack.c.h.b16 %v4921
    %v7027 = vunpack.c.l.b16 %v4922
    %v7028 = vunpack.c.h.b16 %v4922
    %v7029 = vunpack.c.l.b16 %v4923
    %v7030 = vunpack.c.h.b16 %v4923
    %v7031 = vunpack.c.l.b16 %v4924
    %v7032 = vunpack.c.h.b16 %v4924
    %v7033 = vunpack.c.l.b16 %v4925
    %v7034 = vunpack.c.h.b16 %v4925
    %v7035 = vunpack.c.l.b16 %v4926
    %v7036 = vunpack.c.h.b16 %v4926
    %v7037 = vunpack.c.l.b16 %v4927
    %v7038 = vunpack.c.h.b16 %v4927
    %v7039 = vunpack.c.l.b16 %v4928
    %v7040 = vunpack.c.h.b16 %v4928
    %v7041 = vunpack.c.l.b16 %v4929
    %v7042 = vunpack.c.h.b16 %v4929
    %v7043 = vunpack.c.l.b16 %v4930
    %v7044 = vunpack.c.h.b16 %v4930
    %v7045 = vunpack.c.l.b16 %v4931
    %v7046 = vunpack.c.h.b16 %v4931
    %v7047 = vunpack.c.l.b16 %v4932
    %v7048 = vunpack.c.h.b16 %v4932
    %v7049 = vunpack.c.l.b16 %v4933
    %v7050 = vunpack.c.h.b16 %v4933
    %v7051 = vunpack.c.l.b16 %v4934
    %v7052 = vunpack.c.h.b16 %v4934
    %v7053 = vunpack.c.l.b16 %v4935
    %v7054 = vunpack.c.h.b16 %v4935
    %v7055 = vunpack.c.l.b16 %v4936
    %v7056 = vunpack.c.h.b16 %v4936
    %v7057 = vunpack.c.l.b16 %v4937
    %v7058 = vunpack.c.h.b16 %v4937
    %v7059 = vunpack.c.l.b16 %v4938
    %v7060 = vunpack.c.h.b16 %v4938
    %v7061 = vunpack.c.l.b16 %v4939
    %v7062 = vunpack.c.h.b16 %v4939
    %v7063 = vunpack.c.l.b16 %v4940
    %v7064 = vunpack.c.h.b16 %v4940
    %v7065 = vunpack.c.l.b16 %v4941
    %v7066 = vunpack.c.h.b16 %v4941
    %v7067 = vunpack.c.l.b16 %v4942
    %v7068 = vunpack.c.h.b16 %v4942
    %v7069 = vunpack.c.l.b16 %v4943
    %v7070 = vunpack.c.h.b16 %v4943
    %v7071 = vunpack.c.l.b16 %v4944
    %v7072 = vunpack.c.h.b16 %v4944
    %v7073 = vunpack.c.l.b16 %v4945
    %v7074 = vunpack.c.h.b16 %v4945
    %v7075 = vunpack.c.l.b16 %v4946
    %v7076 = vunpack.c.h.b16 %v4946
    %v7077 = vunpack.c.l.b16 %v4947
    %v7078 = vunpack.c.h.b16 %v4947
    %v7079 = vunpack.c.l.b16 %v4948
    %v7080 = vunpack.c.h.b16 %v4948
    %v7081 = vunpack.c.l.b16 %v4949
    %v7082 = vunpack.c.h.b16 %v4949
    %v7083 = vunpack.c.l.b16 %v4950
    %v7084 = vunpack.c.h.b16 %v4950
    %v7085 = vunpack.c.l.b16 %v4951
    %v7086 = vunpack.c.h.b16 %v4951
    %v7087 = vunpack.c.l.b16 %v4952
    %v7088 = vunpack.c.h.b16 %v4952
    %v7089 = vunpack.c.l.b16 %v4953
    %v7090 = vunpack.c.h.b16 %v4953
    %v7091 = vunpack.c.l.b16 %v4954
    %v7092 = vunpack.c.h.b16 %v4954
    %v7093 = vunpack.c.l.b16 %v4955
    %v7094 = vunpack.c.h.b16 %v4955
    %v7095 = vunpack.c.l.b16 %v4956
    %v7096 = vunpack.c.h.b16 %v4956
    %v7097 = vunpack.c.l.b16 %v4957
    %v7098 = vunpack.c.h.b16 %v4957
    %v7099 = vunpack.c.l.b16 %v4958
    %v7100 = vunpack.c.h.b16 %v4958
    %v7101 = vunpack.c.l.b16 %v4959
    %v7102 = vunpack.c.h.b16 %v4959
    %v7103 = vunpack.c.l.b16 %v4960
    %v7104 = vunpack.c.h.b16 %v4960
    %v7105 = vunpack.c.l.b16 %v4961
    %v7106 = vunpack.c.h.b16 %v4961
    %v7107 = vunpack.c.l.b16 %v4962
    %v7108 = vunpack.c.h.b16 %v4962
    %v7109 = vunpack.c.l.b16 %v4963
    %v7110 = vunpack.c.h.b16 %v4963
    %v7111 = vunpack.c.l.b16 %v4964
    %v7112 = vunpack.c.h.b16 %v4964
    %v7113 = vunpack.c.l.b16 %v4965
    %v7114 = vunpack.c.h.b16 %v4965
    %v7115 = vunpack.c.l.b16 %v4966
    %v7116 = vunpack.c.h.b16 %v4966
    %v7117 = vunpack.c.l.b16 %v4967
    %v7118 = vunpack.c.h.b16 %v4967
    %v7119 = vunpack.c.l.b16 %v4968
    %v7120 = vunpack.c.h.b16 %v4968
    %v7121 = vunpack.c.l.b16 %v4969
    %v7122 = vunpack.c.h.b16 %v4969
    %v7123 = vunpack.c.l.b16 %v4970
    %v7124 = vunpack.c.h.b16 %v4970
    %v7125 = vunpack.c.l.b16 %v4971
    %v7126 = vunpack.c.h.b16 %v4971
    %v7127 = vunpack.c.l.b16 %v4972
    %v7128 = vunpack.c.h.b16 %v4972
    %v7129 = vunpack.c.l.b16 %v4973
    %v7130 = vunpack.c.h.b16 %v4973
    %v7131 = vunpack.c.l.b16 %v4974
    %v7132 = vunpack.c.h.b16 %v4974
    %v7133 = vunpack.c.l.b16 %v4975
    %v7134 = vunpack.c.h.b16 %v4975
    %v7135 = vunpack.c.l.b16 %v4976
    %v7136 = vunpack.c.h.b16 %v4976
    %v7137 = vunpack.c.l.b16 %v4977
    %v7138 = vunpack.c.h.b16 %v4977
    %v7139 = vunpack.c.l.b16 %v4978
    %v7140 = vunpack.c.h.b16 %v4978
    %v7141 = vunpack.c.l.b16 %v4979
    %v7142 = vunpack.c.h.b16 %v4979
    %v7143 = vunpack.c.l.b16 %v4980
    %v7144 = vunpack.c.h.b16 %v4980
    %v7145 = vunpack.c.l.b16 %v4981
    %v7146 = vunpack.c.h.b16 %v4981
    %v7147 = vunpack.c.l.b16 %v4982
    %v7148 = vunpack.c.h.b16 %v4982
    %v7149 = vunpack.c.l.b16 %v4983
    %v7150 = vunpack.c.h.b16 %v4983
    %v7151 = vunpack.c.l.b16 %v4984
    %v7152 = vunpack.c.h.b16 %v4984
    %v7153 = vunpack.c.l.b16 %v4985
    %v7154 = vunpack.c.h.b16 %v4985
    %v7155 = vunpack.c.l.b16 %v4986
    %v7156 = vunpack.c.h.b16 %v4986
    %v7157 = vunpack.c.l.b16 %v4987
    %v7158 = vunpack.c.h.b16 %v4987
    %v7159 = vunpack.c.l.b16 %v4988
    %v7160 = vunpack.c.h.b16 %v4988
    %v7161 = vunpack.c.l.b16 %v4989
    %v7162 = vunpack.c.h.b16 %v4989
    %v7163 = vunpack.c.l.b16 %v4990
    %v7164 = vunpack.c.h.b16 %v4990
    %v7165 = vunpack.c.l.b16 %v4991
    %v7166 = vunpack.c.h.b16 %v4991
    %v7167 = vunpack.c.l.b16 %v4992
    %v7168 = vunpack.c.h.b16 %v4992
    %v7169 = vunpack.c.l.b16 %v4993
    %v7170 = vunpack.c.h.b16 %v4993
    %v7171 = vunpack.c.l.b16 %v4994
    %v7172 = vunpack.c.h.b16 %v4994
    %v7173 = vunpack.c.l.b16 %v4995
    %v7174 = vunpack.c.h.b16 %v4995
    %v7175 = vunpack.c.l.b16 %v4996
    %v7176 = vunpack.c.h.b16 %v4996
    %v7177 = vunpack.c.l.b16 %v4997
    %v7178 = vunpack.c.h.b16 %v4997
    %v7179 = vunpack.c.l.b16 %v4998
    %v7180 = vunpack.c.h.b16 %v4998
    %v7181 = vunpack.c.l.b16 %v4999
    %v7182 = vunpack.c.h.b16 %v4999
    %v7183 = vunpack.c.l.b16 %v5000
    %v7184 = vunpack.c.h.b16 %v5000
    %v7185 = vunpack.c.l.b16 %v5001
    %v7186 = vunpack.c.h.b16 %v5001
    %v7187 = vunpack.c.l.b16 %v5002
    %v7188 = vunpack.c.h.b16 %v5002
    %v7189 = vunpack.c.l.b16 %v5003
    %v7190 = vunpack.c.h.b16 %v5003
    %v7191 = vunpack.c.l.b16 %v5004
    %v7192 = vunpack.c.h.b16 %v5004
    %v7193 = vunpack.c.l.b16 %v5005
    %v7194 = vunpack.c.h.b16 %v5005
    %v7195 = vunpack.c.l.b16 %v5006
    %v7196 = vunpack.c.h.b16 %v5006
    %v7197 = vunpack.c.l.b16 %v5007
    %v7198 = vunpack.c.h.b16 %v5007
    %v7199 = vunpack.c.l.b16 %v5008
    %v7200 = vunpack.c.h.b16 %v5008
    %v7201 = vunpack.c.l.b16 %v5009
    %v7202 = vunpack.c.h.b16 %v5009
    %v7203 = vunpack.c.l.b16 %v5010
    %v7204 = vunpack.c.h.b16 %v5010
    %v7205 = vunpack.c.l.b16 %v5011
    %v7206 = vunpack.c.h.b16 %v5011
    %v7207 = vunpack.c.l.b16 %v5012
    %v7208 = vunpack.c.h.b16 %v5012
    %v7209 = vunpack.c.l.b16 %v5013
    %v7210 = vunpack.c.h.b16 %v5013
    %v7211 = vunpack.c.l.b16 %v5014
    %v7212 = vunpack.c.h.b16 %v5014
    %v7213 = vunpack.c.l.b16 %v5015
    %v7214 = vunpack.c.h.b16 %v5015
    %v7215 = vunpack.c.l.b16 %v5016
    %v7216 = vunpack.c.h.b16 %v5016
    %v7217 = vunpack.c.l.b16 %v5017
    %v7218 = vunpack.c.h.b16 %v5017
    %v7219 = vunpack.c.l.b16 %v5018
    %v7220 = vunpack.c.h.b16 %v5018
    %v7221 = vunpack.c.l.b16 %v5019
    %v7222 = vunpack.c.h.b16 %v5019
    %v7223 = vunpack.c.l.b16 %v5020
    %v7224 = vunpack.c.h.b16 %v5020
    %v7225 = vunpack.c.l.b16 %v5021
    %v7226 = vunpack.c.h.b16 %v5021
    %v7227 = vunpack.c.l.b16 %v5022
    %v7228 = vunpack.c.h.b16 %v5022
    %v7229 = vunpack.c.l.b16 %v5023
    %v7230 = vunpack.c.h.b16 %v5023
    %v7231 = vunpack.c.l.b16 %v5024
    %v7232 = vunpack.c.h.b16 %v5024
    %v7233 = vunpack.c.l.b16 %v5025
    %v7234 = vunpack.c.h.b16 %v5025
    %v7235 = vunpack.c.l.b16 %v5026
    %v7236 = vunpack.c.h.b16 %v5026
    %v7237 = vunpack.c.l.b16 %v5027
    %v7238 = vunpack.c.h.b16 %v5027
    %v7239 = vunpack.c.l.b16 %v5028
    %v7240 = vunpack.c.h.b16 %v5028
    %v7241 = vunpack.c.l.b16 %v5029
    %v7242 = vunpack.c.h.b16 %v5029
    %v7243 = vunpack.c.l.b16 %v5030
    %v7244 = vunpack.c.h.b16 %v5030
    %v7245 = vunpack.c.l.b16 %v5031
    %v7246 = vunpack.c.h.b16 %v5031
    %v7247 = vunpack.c.l.b16 %v5032
    %v7248 = vunpack.c.h.b16 %v5032
    %v7249 = vunpack.c.l.b16 %v5033
    %v7250 = vunpack.c.h.b16 %v5033
    %v7251 = vunpack.c.l.b16 %v5034
    %v7252 = vunpack.c.h.b16 %v5034
    %v7253 = vunpack.c.l.b16 %v5035
    %v7254 = vunpack.c.h.b16 %v5035
    %v7255 = vunpack.c.l.b16 %v5036
    %v7256 = vunpack.c.h.b16 %v5036
    %v7257 = vunpack.c.l.b16 %v5037
    %v7258 = vunpack.c.h.b16 %v5037
    %v7259 = vunpack.c.l.b16 %v5038
    %v7260 = vunpack.c.h.b16 %v5038
    %v7261 = vunpack.c.l.b16 %v5039
    %v7262 = vunpack.c.h.b16 %v5039
    %v7263 = vunpack.c.l.b16 %v5040
    %v7264 = vunpack.c.h.b16 %v5040
    %v7265 = vunpack.c.l.b16 %v5041
    %v7266 = vunpack.c.h.b16 %v5041
    %v7267 = vunpack.c.l.b16 %v5042
    %v7268 = vunpack.c.h.b16 %v5042
    %v7269 = vunpack.c.l.b16 %v5043
    %v7270 = vunpack.c.h.b16 %v5043
    %v7271 = vunpack.c.l.b16 %v5044
    %v7272 = vunpack.c.h.b16 %v5044
    %v7273 = vunpack.c.l.b16 %v5045
    %v7274 = vunpack.c.h.b16 %v5045
    %v7275 = vunpack.c.l.b16 %v5046
    %v7276 = vunpack.c.h.b16 %v5046
    %v7277 = vunpack.c.l.b16 %v5047
    %v7278 = vunpack.c.h.b16 %v5047
    %v7279 = vunpack.c.l.b16 %v5048
    %v7280 = vunpack.c.h.b16 %v5048
    %v7281 = vunpack.c.l.b16 %v5049
    %v7282 = vunpack.c.h.b16 %v5049
    %v7283 = vunpack.c.l.b16 %v5050
    %v7284 = vunpack.c.h.b16 %v5050
    %v7285 = vunpack.c.l.b16 %v5051
    %v7286 = vunpack.c.h.b16 %v5051
    %v7287 = vunpack.c.l.b16 %v5052
    %v7288 = vunpack.c.h.b16 %v5052
    %v7289 = vunpack.c.l.b16 %v5053
    %v7290 = vunpack.c.h.b16 %v5053
    %v7291 = vunpack.c.l.b16 %v5054
    %v7292 = vunpack.c.h.b16 %v5054
    %v7293 = vunpack.c.l.b16 %v5055
    %v7294 = vunpack.c.h.b16 %v5055
    %v7295 = vunpack.c.l.b16 %v5056
    %v7296 = vunpack.c.h.b16 %v5056
    %v7297 = vunpack.c.l.b16 %v5057
    %v7298 = vunpack.c.h.b16 %v5057
    %v7299 = vunpack.c.l.b16 %v5058
    %v7300 = vunpack.c.h.b16 %v5058
    %v7301 = vunpack.c.l.b16 %v5059
    %v7302 = vunpack.c.h.b16 %v5059
    %v7303 = vunpack.c.l.b16 %v5060
    %v7304 = vunpack.c.h.b16 %v5060
    %v7305 = vunpack.c.l.b16 %v5061
    %v7306 = vunpack.c.h.b16 %v5061
    %v7307 = vunpack.c.l.b16 %v5062
    %v7308 = vunpack.c.h.b16 %v5062
    %v7309 = vunpack.c.l.b16 %v5063
    %v7310 = vunpack.c.h.b16 %v5063
    %v7311 = vunpack.c.l.b16 %v5064
    %v7312 = vunpack.c.h.b16 %v5064
    %v7313 = vunpack.c.l.b16 %v5065
    %v7314 = vunpack.c.h.b16 %v5065
    %v7315 = vunpack.c.l.b16 %v5066
    %v7316 = vunpack.c.h.b16 %v5066
    %v7317 = vunpack.c.l.b16 %v5067
    %v7318 = vunpack.c.h.b16 %v5067
    %v7319 = vunpack.c.l.b16 %v5068
    %v7320 = vunpack.c.h.b16 %v5068
    %v7321 = vunpack.c.l.b16 %v5069
    %v7322 = vunpack.c.h.b16 %v5069
    %v7323 = vunpack.c.l.b16 %v5070
    %v7324 = vunpack.c.h.b16 %v5070
    %v7325 = vunpack.c.l.b16 %v5071
    %v7326 = vunpack.c.h.b16 %v5071
    %v7327 = vunpack.c.l.b16 %v5072
    %v7328 = vunpack.c.h.b16 %v5072
    %v7329 = vunpack.c.l.b16 %v5073
    %v7330 = vunpack.c.h.b16 %v5073
    %v7331 = vunpack.c.l.b16 %v5074
    %v7332 = vunpack.c.h.b16 %v5074
    %v7333 = vunpack.c.l.b16 %v5075
    %v7334 = vunpack.c.h.b16 %v5075
    %v7335 = vunpack.c.l.b16 %v5076
    %v7336 = vunpack.c.h.b16 %v5076
    %v7337 = vunpack.c.l.b16 %v5077
    %v7338 = vunpack.c.h.b16 %v5077
    %v7339 = vunpack.c.l.b16 %v5078
    %v7340 = vunpack.c.h.b16 %v5078
    %v7341 = vunpack.c.l.b16 %v5079
    %v7342 = vunpack.c.h.b16 %v5079
    %v7343 = vunpack.c.l.b16 %v5080
    %v7344 = vunpack.c.h.b16 %v5080
    %v7345 = vunpack.c.l.b16 %v5081
    %v7346 = vunpack.c.h.b16 %v5081
    %v7347 = vunpack.c.l.b16 %v5082
    %v7348 = vunpack.c.h.b16 %v5082
    %v7349 = vunpack.c.l.b16 %v5083
    %v7350 = vunpack.c.h.b16 %v5083
    %v7351 = vunpack.c.l.b16 %v5084
    %v7352 = vunpack.c.h.b16 %v5084
    %v7353 = vunpack.c.l.b16 %v5085
    %v7354 = vunpack.c.h.b16 %v5085
    %v7355 = vunpack.c.l.b16 %v5086
    %v7356 = vunpack.c.h.b16 %v5086
    %v7357 = vunpack.c.l.b16 %v5087
    %v7358 = vunpack.c.h.b16 %v5087
    %v7359 = vunpack.c.l.b16 %v5088
    %v7360 = vunpack.c.h.b16 %v5088
    %v7361 = vunpack.c.l.b16 %v5089
    %v7362 = vunpack.c.h.b16 %v5089
    %v7363 = vunpack.c.l.b16 %v5090
    %v7364 = vunpack.c.h.b16 %v5090
    %v7365 = vpack.c.b16 %v5875, %v5865
    %v7366 = vpack.c.b16 %v5876, %v5866
    %v7367 = vpack.c.b16 %v5877, %v5867
    %v7368 = vpack.c.b16 %v5878, %v5868
    %v7369 = vpack.c.b16 %v5879, %v5869
    %v7370 = vpack.c.b16 %v5880, %v5870
    %v7371 = vpack.c.b16 %v5881, %v5871
    %v7372 = vpack.c.b16 %v5882, %v5872
    %v7373 = vpack.c.b16 %v5883, %v5873
    %v7374 = vpack.c.b16 %v5884, %v5874
    %v7375 = vpack.c.b16 %v5895, %v5885
    %v7376 = vpack.c.b16 %v5896, %v5886
    %v7377 = vpack.c.b16 %v5897, %v5887
    %v7378 = vpack.c.b16 %v5898, %v5888
    %v7379 = vpack.c.b16 %v5899, %v5889
    %v7380 = vpack.c.b16 %v5900, %v5890
    %v7381 = vpack.c.b16 %v5901, %v5891
    %v7382 = vpack.c.b16 %v5902, %v5892
    %v7383 = vpack.c.b16 %v5903, %v5893
    %v7384 = vpack.c.b16 %v5904, %v5894
    %v7385 = vpack.c.b16 %v5915, %v5905
    %v7386 = vpack.c.b16 %v5916, %v5906
    %v7387 = vpack.c.b16 %v5917, %v5907
    %v7388 = vpack.c.b16 %v5918, %v5908
    %v7389 = vpack.c.b16 %v5919, %v5909
    %v7390 = vpack.c.b16 %v5920, %v5910
    %v7391 = vpack.c.b16 %v5921, %v5911
    %v7392 = vpack.c.b16 %v5922, %v5912
    %v7393 = vpack.c.b16 %v5923, %v5913
    %v7394 = vpack.c.b16 %v5924, %v5914
    %v7395 = vpack.c.b16 %v5935, %v5925
    %v7396 = vpack.c.b16 %v5936, %v5926
    %v7397 = vpack.c.b16 %v5937, %v5927
    %v7398 = vpack.c.b16 %v5938, %v5928
    %v7399 = vpack.c.b16 %v5939, %v5929
    %v7400 = vpack.c.b16 %v5940, %v5930
    %v7401 = vpack.c.b16 %v5941, %v5931
    %v7402 = vpack.c.b16 %v5942, %v5932
    %v7403 = vpack.c.b16 %v5943, %v5933
    %v7404 = vpack.c.b16 %v5944, %v5934
    %v7405 = vpack.c.b16 %v5955, %v5945
    %v7406 = vpack.c.b16 %v5956, %v5946
    %v7407 = vpack.c.b16 %v5957, %v5947
    %v7408 = vpack.c.b16 %v5958, %v5948
    %v7409 = vpack.c.b16 %v5959, %v5949
    %v7410 = vpack.c.b16 %v5960, %v5950
    %v7411 = vpack.c.b16 %v5961, %v5951
    %v7412 = vpack.c.b16 %v5962, %v5952
    %v7413 = vpack.c.b16 %v5963, %v5953
    %v7414 = vpack.c.b16 %v5964, %v5954
    %v7415 = vpack.c.b16 %v5975, %v5965
    %v7416 = vpack.c.b16 %v5976, %v5966
    %v7417 = vpack.c.b16 %v5977, %v5967
    %v7418 = vpack.c.b16 %v5978, %v5968
    %v7419 = vpack.c.b16 %v5979, %v5969
    %v7420 = vpack.c.b16 %v5980, %v5970
    %v7421 = vpack.c.b16 %v5981, %v5971
    %v7422 = vpack.c.b16 %v5982, %v5972
    %v7423 = vpack.c.b16 %v5983, %v5973
    %v7424 = vpack.c.b16 %v5984, %v5974
    %v7425 = vpack.c.b16 %v5995, %v5985
    %v7426 = vpack.c.b16 %v5996, %v5986
    %v7427 = vpack.c.b16 %v5997, %v5987
    %v7428 = vpack.c.b16 %v5998, %v5988
    %v7429 = vpack.c.b16 %v5999, %v5989
    %v7430 = vpack.c.b16 %v6000, %v5990
    %v7431 = vpack.c.b16 %v6001, %v5991
    %v7432 = vpack.c.b16 %v6002, %v5992
    %v7433 = vpack.c.b16 %v6003, %v5993
    %v7434 = vpack.c.b16 %v6004, %v5994
    %v7435 = vpack.c.b16 %v6015, %v6005
    %v7436 = vpack.c.b16 %v6016, %v6006
    %v7437 = vpack.c.b16 %v6017, %v6007
    %v7438 = vpack.c.b16 %v6018, %v6008
    %v7439 = vpack.c.b16 %v6019, %v6009
    %v7440 = vpack.c.b16 %v6020, %v6010
    %v7441 = vpack.c.b16 %v6021, %v6011
    %v7442 = vpack.c.b16 %v6022, %v6012
    %v7443 = vpack.c.b16 %v6023, %v6013
    %v7444 = vpack.c.b16 %v6024, %v6014
    %v7445 = vpack.c.b16 %v6035, %v6025
    %v7446 = vpack.c.b16 %v6036, %v6026
    %v7447 = vpack.c.b16 %v6037, %v6027
    %v7448 = vpack.c.b16 %v6038, %v6028
    %v7449 = vpack.c.b16 %v6039, %v6029
    %v7450 = vpack.c.b16 %v6040, %v6030
    %v7451 = vpack.c.b16 %v6041, %v6031
    %v7452 = vpack.c.b16 %v6042, %v6032
    %v7453 = vpack.c.b16 %v6043, %v6033
    %v7454 = vpack.c.b16 %v6044, %v6034
    %v7455 = vpack.c.b16 %v6055, %v6045
    %v7456 = vpack.c.b16 %v6056, %v6046
    %v7457 = vpack.c.b16 %v6057, %v6047
    %v7458 = vpack.c.b16 %v6058, %v6048
    %v7459 = vpack.c.b16 %v6059, %v6049
    %v7460 = vpack.c.b16 %v6060, %v6050
    %v7461 = vpack.c.b16 %v6061, %v6051
    %v7462 = vpack.c.b16 %v6062, %v6052
    %v7463 = vpack.c.b16 %v6063, %v6053
    %v7464 = vpack.c.b16 %v6064, %v6054
    %v7465 = vpack.c.b16 %v6075, %v6065
    %v7466 = vpack.c.b16 %v6076, %v6066
    %v7467 = vpack.c.b16 %v6077, %v6067
    %v7468 = vpack.c.b16 %v6078, %v6068
    %v7469 = vpack.c.b16 %v6079, %v6069
    %v7470 = vpack.c.b16 %v6080, %v6070
    %v7471 = vpack.c.b16 %v6081, %v6071
    %v7472 = vpack.c.b16 %v6082, %v6072
    %v7473 = vpack.c.b16 %v6083, %v6073
    %v7474 = vpack.c.b16 %v6084, %v6074
    %v7475 = vpack.c.b16 %v6095, %v6085
    %v7476 = vpack.c.b16 %v6096, %v6086
    %v7477 = vpack.c.b16 %v6097, %v6087
    %v7478 = vpack.c.b16 %v6098, %v6088
    %v7479 = vpack.c.b16 %v6099, %v6089
    %v7480 = vpack.c.b16 %v6100, %v6090
    %v7481 = vpack.c.b16 %v6101, %v6091
    %v7482 = vpack.c.b16 %v6102, %v6092
    %v7483 = vpack.c.b16 %v6103, %v6093
    %v7484 = vpack.c.b16 %v6104, %v6094
    %v7485 = vpack.c.b16 %v6115, %v6105
    %v7486 = vpack.c.b16 %v6116, %v6106
    %v7487 = vpack.c.b16 %v6117, %v6107
    %v7488 = vpack.c.b16 %v6118, %v6108
    %v7489 = vpack.c.b16 %v6119, %v6109
    %v7490 = vpack.c.b16 %v6120, %v6110
    %v7491 = vpack.c.b16 %v6121, %v6111
    %v7492 = vpack.c.b16 %v6122, %v6112
    %v7493 = vpack.c.b16 %v6123, %v6113
    %v7494 = vpack.c.b16 %v6124, %v6114
    %v7495 = vpack.c.b16 %v6135, %v6125
    %v7496 = vpack.c.b16 %v6136, %v6126
    %v7497 = vpack.c.b16 %v6137, %v6127
    %v7498 = vpack.c.b16 %v6138, %v6128
    %v7499 = vpack.c.b16 %v6139, %v6129
    %v7500 = vpack.c.b16 %v6140, %v6130
    %v7501 = vpack.c.b16 %v6141, %v6131
    %v7502 = vpack.c.b16 %v6142, %v6132
    %v7503 = vpack.c.b16 %v6143, %v6133
    %v7504 = vpack.c.b16 %v6144, %v6134
    %v7505 = vpack.c.b16 %v6155, %v6145
    %v7506 = vpack.c.b16 %v6156, %v6146
    %v7507 = vpack.c.b16 %v6157, %v6147
    %v7508 = vpack.c.b16 %v6158, %v6148
    %v7509 = vpack.c.b16 %v6159, %v6149
    %v7510 = vpack.c.b16 %v6160, %v6150
    %v7511 = vpack.c.b16 %v6161, %v6151
    %v7512 = vpack.c.b16 %v6162, %v6152
    %v7513 = vpack.c.b16 %v6163, %v6153
    %v7514 = vpack.c.b16 %v6164, %v6154
    %v7515 = vpack.c.b16 %v6175, %v6165
    %v7516 = vpack.c.b16 %v6176, %v6166
    %v7517 = vpack.c.b16 %v6177, %v6167
    %v7518 = vpack.c.b16 %v6178, %v6168
    %v7519 = vpack.c.b16 %v6179, %v6169
    %v7520 = vpack.c.b16 %v6180, %v6170
    %v7521 = vpack.c.b16 %v6181, %v6171
    %v7522 = vpack.c.b16 %v6182, %v6172
    %v7523 = vpack.c.b16 %v6183, %v6173
    %v7524 = vpack.c.b16 %v6184, %v6174
    %v7525 = vpack.c.b16 %v6195, %v6185
    %v7526 = vpack.c.b16 %v6196, %v6186
    %v7527 = vpack.c.b16 %v6197, %v6187
    %v7528 = vpack.c.b16 %v6198, %v6188
    %v7529 = vpack.c.b16 %v6199, %v6189
    %v7530 = vpack.c.b16 %v6200, %v6190
    %v7531 = vpack.c.b16 %v6201, %v6191
    %v7532 = vpack.c.b16 %v6202, %v6192
    %v7533 = vpack.c.b16 %v6203, %v6193
    %v7534 = vpack.c.b16 %v6204, %v6194
    %v7535 = vpack.c.b16 %v6215, %v6205
    %v7536 = vpack.c.b16 %v6216, %v6206
    %v7537 = vpack.c.b16 %v6217, %v6207
    %v7538 = vpack.c.b16 %v6218, %v6208
    %v7539 = vpack.c.b16 %v6219, %v6209
    %v7540 = vpack.c.b16 %v6220, %v6210
    %v7541 = vpack.c.b16 %v6221, %v6211
    %v7542 = vpack.c.b16 %v6222, %v6212
    %v7543 = vpack.c.b16 %v6223, %v6213
    %v7544 = vpack.c.b16 %v6224, %v6214
    %v7545 = vpack.c.b16 %v6235, %v6225
    %v7546 = vpack.c.b16 %v6236, %v6226
    %v7547 = vpack.c.b16 %v6237, %v6227
    %v7548 = vpack.c.b16 %v6238, %v6228
    %v7549 = vpack.c.b16 %v6239, %v6229
    %v7550 = vpack.c.b16 %v6240, %v6230
    %v7551 = vpack.c.b16 %v6241, %v6231
    %v7552 = vpack.c.b16 %v6242, %v6232
    %v7553 = vpack.c.b16 %v6243, %v6233
    %v7554 = vpack.c.b16 %v6244, %v6234
    %v7555 = vpack.c.b16 %v6255, %v6245
    %v7556 = vpack.c.b16 %v6256, %v6246
    %v7557 = vpack.c.b16 %v6257, %v6247
    %v7558 = vpack.c.b16 %v6258, %v6248
    %v7559 = vpack.c.b16 %v6259, %v6249
    %v7560 = vpack.c.b16 %v6260, %v6250
    %v7561 = vpack.c.b16 %v6261, %v6251
    %v7562 = vpack.c.b16 %v6262, %v6252
    %v7563 = vpack.c.b16 %v6263, %v6253
    %v7564 = vpack.c.b16 %v6264, %v6254
    %v7565 = vpack.c.b16 %v6275, %v6265
    %v7566 = vpack.c.b16 %v6276, %v6266
    %v7567 = vpack.c.b16 %v6277, %v6267
    %v7568 = vpack.c.b16 %v6278, %v6268
    %v7569 = vpack.c.b16 %v6279, %v6269
    %v7570 = vpack.c.b16 %v6280, %v6270
    %v7571 = vpack.c.b16 %v6281, %v6271
    %v7572 = vpack.c.b16 %v6282, %v6272
    %v7573 = vpack.c.b16 %v6283, %v6273
    %v7574 = vpack.c.b16 %v6284, %v6274
    %v7575 = vpack.c.b16 %v6295, %v6285
    %v7576 = vpack.c.b16 %v6296, %v6286
    %v7577 = vpack.c.b16 %v6297, %v6287
    %v7578 = vpack.c.b16 %v6298, %v6288
    %v7579 = vpack.c.b16 %v6299, %v6289
    %v7580 = vpack.c.b16 %v6300, %v6290
    %v7581 = vpack.c.b16 %v6301, %v6291
    %v7582 = vpack.c.b16 %v6302, %v6292
    %v7583 = vpack.c.b16 %v6303, %v6293
    %v7584 = vpack.c.b16 %v6304, %v6294
    %v7585 = vpack.c.b16 %v6315, %v6305
    %v7586 = vpack.c.b16 %v6316, %v6306
    %v7587 = vpack.c.b16 %v6317, %v6307
    %v7588 = vpack.c.b16 %v6318, %v6308
    %v7589 = vpack.c.b16 %v6319, %v6309
    %v7590 = vpack.c.b16 %v6320, %v6310
    %v7591 = vpack.c.b16 %v6321, %v6311
    %v7592 = vpack.c.b16 %v6322, %v6312
    %v7593 = vpack.c.b16 %v6323, %v6313
    %v7594 = vpack.c.b16 %v6324, %v6314
    %v7595 = vpack.c.b16 %v6335, %v6325
    %v7596 = vpack.c.b16 %v6336, %v6326
    %v7597 = vpack.c.b16 %v6337, %v6327
    %v7598 = vpack.c.b16 %v6338, %v6328
    %v7599 = vpack.c.b16 %v6339, %v6329
    %v7600 = vpack.c.b16 %v6340, %v6330
    %v7601 = vpack.c.b16 %v6341, %v6331
    %v7602 = vpack.c.b16 %v6342, %v6332
    %v7603 = vpack.c.b16 %v6343, %v6333
    %v7604 = vpack.c.b16 %v6344, %v6334
    %v7605 = vpack.c.b16 %v6355, %v6345
    %v7606 = vpack.c.b16 %v6356, %v6346
    %v7607 = vpack.c.b16 %v6357, %v6347
    %v7608 = vpack.c.b16 %v6358, %v6348
    %v7609 = vpack.c.b16 %v6359, %v6349
    %v7610 = vpack.c.b16 %v6360, %v6350
    %v7611 = vpack.c.b16 %v6361, %v6351
    %v7612 = vpack.c.b16 %v6362, %v6352
    %v7613 = vpack.c.b16 %v6363, %v6353
    %v7614 = vpack.c.b16 %v6364, %v6354
    %v7615 = vpack.c.b16 %v6375, %v6365
    %v7616 = vpack.c.b16 %v6376, %v6366
    %v7617 = vpack.c.b16 %v6377, %v6367
    %v7618 = vpack.c.b16 %v6378, %v6368
    %v7619 = vpack.c.b16 %v6379, %v6369
    %v7620 = vpack.c.b16 %v6380, %v6370
    %v7621 = vpack.c.b16 %v6381, %v6371
    %v7622 = vpack.c.b16 %v6382, %v6372
    %v7623 = vpack.c.b16 %v6383, %v6373
    %v7624 = vpack.c.b16 %v6384, %v6374
    %v7625 = vpack.c.b16 %v6395, %v6385
    %v7626 = vpack.c.b16 %v6396, %v6386
    %v7627 = vpack.c.b16 %v6397, %v6387
    %v7628 = vpack.c.b16 %v6398, %v6388
    %v7629 = vpack.c.b16 %v6399, %v6389
    %v7630 = vpack.c.b16 %v6400, %v6390
    %v7631 = vpack.c.b16 %v6401, %v6391
    %v7632 = vpack.c.b16 %v6402, %v6392
    %v7633 = vpack.c.b16 %v6403, %v6393
    %v7634 = vpack.c.b16 %v6404, %v6394
    %v7635 = vpack.c.b16 %v6415, %v6405
    %v7636 = vpack.c.b16 %v6416, %v6406
    %v7637 = vpack.c.b16 %v6417, %v6407
    %v7638 = vpack.c.b16 %v6418, %v6408
    %v7639 = vpack.c.b16 %v6419, %v6409
    %v7640 = vpack.c.b16 %v6420, %v6410
    %v7641 = vpack.c.b16 %v6421, %v6411
    %v7642 = vpack.c.b16 %v6422, %v6412
    %v7643 = vpack.c.b16 %v6423, %v6413
    %v7644 = vpack.c.b16 %v6424, %v6414
    %v7645 = vpack.c.b16 %v6435, %v6425
    %v7646 = vpack.c.b16 %v6436, %v6426
    %v7647 = vpack.c.b16 %v6437, %v6427
    %v7648 = vpack.c.b16 %v6438, %v6428
    %v7649 = vpack.c.b16 %v6439, %v6429
    %v7650 = vpack.c.b16 %v6440, %v6430
    %v7651 = vpack.c.b16 %v6441, %v6431
    %v7652 = vpack.c.b16 %v6442, %v6432
    %v7653 = vpack.c.b16 %v6443, %v6433
    %v7654 = vpack.c.b16 %v6444, %v6434
    %v7655 = vpack.c.b16 %v6455, %v6445
    %v7656 = vpack.c.b16 %v6456, %v6446
    %v7657 = vpack.c.b16 %v6457, %v6447
    %v7658 = vpack.c.b16 %v6458, %v6448
    %v7659 = vpack.c.b16 %v6459, %v6449
    %v7660 = vpack.c.b16 %v6460, %v6450
    %v7661 = vpack.c.b16 %v6461, %v6451
    %v7662 = vpack.c.b16 %v6462, %v6452
    %v7663 = vpack.c.b16 %v6463, %v6453
    %v7664 = vpack.c.b16 %v6464, %v6454
    %v7665 = vpack.c.b16 %v6475, %v6465
    %v7666 = vpack.c.b16 %v6476, %v6466
    %v7667 = vpack.c.b16 %v6477, %v6467
    %v7668 = vpack.c.b16 %v6478, %v6468
    %v7669 = vpack.c.b16 %v6479, %v6469
    %v7670 = vpack.c.b16 %v6480, %v6470
    %v7671 = vpack.c.b16 %v6481, %v6471
    %v7672 = vpack.c.b16 %v6482, %v6472
    %v7673 = vpack.c.b16 %v6483, %v6473
    %v7674 = vpack.c.b16 %v6484, %v6474
    %v7675 = vpack.c.b16 %v6495, %v6485
    %v7676 = vpack.c.b16 %v6496, %v6486
    %v7677 = vpack.c.b16 %v6497, %v6487
    %v7678 = vpack.c.b16 %v6498, %v6488
    %v7679 = vpack.c.b16 %v6499, %v6489
    %v7680 = vpack.c.b16 %v6500, %v6490
    %v7681 = vpack.c.b16 %v6501, %v6491
    %v7682 = vpack.c.b16 %v6502, %v6492
    %v7683 = vpack.c.b16 %v6503, %v6493
    %v7684 = vpack.c.b16 %v6504, %v6494
    %v7685 = vpack.c.b16 %v6515, %v6505
    %v7686 = vpack.c.b16 %v6516, %v6506
    %v7687 = vpack.c.b16 %v6517, %v6507
    %v7688 = vpack.c.b16 %v6518, %v6508
    %v7689 = vpack.c.b16 %v6519, %v6509
    %v7690 = vpack.c.b16 %v6520, %v6510
    %v7691 = vpack.c.b16 %v6521, %v6511
    %v7692 = vpack.c.b16 %v6522, %v6512
    %v7693 = vpack.c.b16 %v6523, %v6513
    %v7694 = vpack.c.b16 %v6524, %v6514
    %v7695 = vpack.c.b16 %v6535, %v6525
    %v7696 = vpack.c.b16 %v6536, %v6526
    %v7697 = vpack.c.b16 %v6537, %v6527
    %v7698 = vpack.c.b16 %v6538, %v6528
    %v7699 = vpack.c.b16 %v6539, %v6529
    %v7700 = vpack.c.b16 %v6540, %v6530
    %v7701 = vpack.c.b16 %v6541, %v6531
    %v7702 = vpack.c.b16 %v6542, %v6532
    %v7703 = vpack.c.b16 %v6543, %v6533
    %v7704 = vpack.c.b16 %v6544, %v6534
    %v7705 = vpack.c.b16 %v6555, %v6545
    %v7706 = vpack.c.b16 %v6556, %v6546
    %v7707 = vpack.c.b16 %v6557, %v6547
    %v7708 = vpack.c.b16 %v6558, %v6548
    %v7709 = vpack.c.b16 %v6559, %v6549
    %v7710 = vpack.c.b16 %v6560, %v6550
    %v7711 = vpack.c.b16 %v6561, %v6551
    %v7712 = vpack.c.b16 %v6562, %v6552
    %v7713 = vpack.c.b16 %v6563, %v6553
    %v7714 = vpack.c.b16 %v6564, %v6554
    %v7715 = vpack.c.b16 %v6575, %v6565
    %v7716 = vpack.c.b16 %v6576, %v6566
    %v7717 = vpack.c.b16 %v6577, %v6567
    %v7718 = vpack.c.b16 %v6578, %v6568
    %v7719 = vpack.c.b16 %v6579, %v6569
    %v7720 = vpack.c.b16 %v6580, %v6570
    %v7721 = vpack.c.b16 %v6581, %v6571
    %v7722 = vpack.c.b16 %v6582, %v6572
    %v7723 = vpack.c.b16 %v6583, %v6573
    %v7724 = vpack.c.b16 %v6584, %v6574
    %v7725 = vpack.c.b16 %v6595, %v6585
    %v7726 = vpack.c.b16 %v6596, %v6586
    %v7727 = vpack.c.b16 %v6597, %v6587
    %v7728 = vpack.c.b16 %v6598, %v6588
    %v7729 = vpack.c.b16 %v6599, %v6589
    %v7730 = vpack.c.b16 %v6600, %v6590
    %v7731 = vpack.c.b16 %v6601, %v6591
    %v7732 = vpack.c.b16 %v6602, %v6592
    %v7733 = vpack.c.b16 %v6603, %v6593
    %v7734 = vpack.c.b16 %v6604, %v6594
    %v7735 = vpack.c.b16 %v6615, %v6605
    %v7736 = vpack.c.b16 %v6616, %v6606
    %v7737 = vpack.c.b16 %v6617, %v6607
    %v7738 = vpack.c.b16 %v6618, %v6608
    %v7739 = vpack.c.b16 %v6619, %v6609
    %v7740 = vpack.c.b16 %v6620, %v6610
    %v7741 = vpack.c.b16 %v6621, %v6611
    %v7742 = vpack.c.b16 %v6622, %v6612
    %v7743 = vpack.c.b16 %v6623, %v6613
    %v7744 = vpack.c.b16 %v6624, %v6614
    %v7745 = vpack.c.b16 %v6635, %v6625
    %v7746 = vpack.c.b16 %v6636, %v6626
    %v7747 = vpack.c.b16 %v6637, %v6627
    %v7748 = vpack.c.b16 %v6638, %v6628
    %v7749 = vpack.c.b16 %v6639, %v6629
    %v7750 = vpack.c.b16 %v6640, %v6630
    %v7751 = vpack.c.b16 %v6641, %v6631
    %v7752 = vpack.c.b16 %v6642, %v6632
    %v7753 = vpack.c.b16 %v6643, %v6633
    %v7754 = vpack.c.b16 %v6644, %v6634
    %v7755 = vpack.c.b16 %v6655, %v6645
    %v7756 = vpack.c.b16 %v6656, %v6646
    %v7757 = vpack.c.b16 %v6657, %v6647
    %v7758 = vpack.c.b16 %v6658, %v6648
    %v7759 = vpack.c.b16 %v6659, %v6649
    %v7760 = vpack.c.b16 %v6660, %v6650
    %v7761 = vpack.c.b16 %v6661, %v6651
    %v7762 = vpack.c.b16 %v6662, %v6652
    %v7763 = vpack.c.b16 %v6663, %v6653
    %v7764 = vpack.c.b16 %v6664, %v6654
    %v7765 = vpack.c.b16 %v6675, %v6665
    %v7766 = vpack.c.b16 %v6676, %v6666
    %v7767 = vpack.c.b16 %v6677, %v6667
    %v7768 = vpack.c.b16 %v6678, %v6668
    %v7769 = vpack.c.b16 %v6679, %v6669
    %v7770 = vpack.c.b16 %v6680, %v6670
    %v7771 = vpack.c.b16 %v6681, %v6671
    %v7772 = vpack.c.b16 %v6682, %v6672
    %v7773 = vpack.c.b16 %v6683, %v6673
    %v7774 = vpack.c.b16 %v6684, %v6674
    %v7775 = vpack.c.b16 %v6695, %v6685
    %v7776 = vpack.c.b16 %v6696, %v6686
    %v7777 = vpack.c.b16 %v6697, %v6687
    %v7778 = vpack.c.b16 %v6698, %v6688
    %v7779 = vpack.c.b16 %v6699, %v6689
    %v7780 = vpack.c.b16 %v6700, %v6690
    %v7781 = vpack.c.b16 %v6701, %v6691
    %v7782 = vpack.c.b16 %v6702, %v6692
    %v7783 = vpack.c.b16 %v6703, %v6693
    %v7784 = vpack.c.b16 %v6704, %v6694
    %v7785 = vpack.c.b16 %v6715, %v6705
    %v7786 = vpack.c.b16 %v6716, %v6706
    %v7787 = vpack.c.b16 %v6717, %v6707
    %v7788 = vpack.c.b16 %v6718, %v6708
    %v7789 = vpack.c.b16 %v6719, %v6709
    %v7790 = vpack.c.b16 %v6720, %v6710
    %v7791 = vpack.c.b16 %v6721, %v6711
    %v7792 = vpack.c.b16 %v6722, %v6712
    %v7793 = vpack.c.b16 %v6723, %v6713
    %v7794 = vpack.c.b16 %v6724, %v6714
    %v7795 = vpack.c.b16 %v6735, %v6725
    %v7796 = vpack.c.b16 %v6736, %v6726
    %v7797 = vpack.c.b16 %v6737, %v6727
    %v7798 = vpack.c.b16 %v6738, %v6728
    %v7799 = vpack.c.b16 %v6739, %v6729
    %v7800 = vpack.c.b16 %v6740, %v6730
    %v7801 = vpack.c.b16 %v6741, %v6731
    %v7802 = vpack.c.b16 %v6742, %v6732
    %v7803 = vpack.c.b16 %v6743, %v6733
    %v7804 = vpack.c.b16 %v6744, %v6734
    %v7805 = vpack.c.b16 %v6755, %v6745
    %v7806 = vpack.c.b16 %v6756, %v6746
    %v7807 = vpack.c.b16 %v6757, %v6747
    %v7808 = vpack.c.b16 %v6758, %v6748
    %v7809 = vpack.c.b16 %v6759, %v6749
    %v7810 = vpack.c.b16 %v6760, %v6750
    %v7811 = vpack.c.b16 %v6761, %v6751
    %v7812 = vpack.c.b16 %v6762, %v6752
    %v7813 = vpack.c.b16 %v6763, %v6753
    %v7814 = vpack.c.b16 %v6764, %v6754
    %v7815 = vpack.c.b16 %v6775, %v6765
    %v7816 = vpack.c.b16 %v6776, %v6766
    %v7817 = vpack.c.b16 %v6777, %v6767
    %v7818 = vpack.c.b16 %v6778, %v6768
    %v7819 = vpack.c.b16 %v6779, %v6769
    %v7820 = vpack.c.b16 %v6780, %v6770
    %v7821 = vpack.c.b16 %v6781, %v6771
    %v7822 = vpack.c.b16 %v6782, %v6772
    %v7823 = vpack.c.b16 %v6783, %v6773
    %v7824 = vpack.c.b16 %v6784, %v6774
    %v7825 = vpack.c.b16 %v6795, %v6785
    %v7826 = vpack.c.b16 %v6796, %v6786
    %v7827 = vpack.c.b16 %v6797, %v6787
    %v7828 = vpack.c.b16 %v6798, %v6788
    %v7829 = vpack.c.b16 %v6799, %v6789
    %v7830 = vpack.c.b16 %v6800, %v6790
    %v7831 = vpack.c.b16 %v6801, %v6791
    %v7832 = vpack.c.b16 %v6802, %v6792
    %v7833 = vpack.c.b16 %v6803, %v6793
    %v7834 = vpack.c.b16 %v6804, %v6794
    %v7835 = vpack.c.b16 %v6815, %v6805
    %v7836 = vpack.c.b16 %v6816, %v6806
    %v7837 = vpack.c.b16 %v6817, %v6807
    %v7838 = vpack.c.b16 %v6818, %v6808
    %v7839 = vpack.c.b16 %v6819, %v6809
    %v7840 = vpack.c.b16 %v6820, %v6810
    %v7841 = vpack.c.b16 %v6821, %v6811
    %v7842 = vpack.c.b16 %v6822, %v6812
    %v7843 = vpack.c.b16 %v6823, %v6813
    %v7844 = vpack.c.b16 %v6824, %v6814
    %v7845 = vpack.c.b16 %v6835, %v6825
    %v7846 = vpack.c.b16 %v6836, %v6826
    %v7847 = vpack.c.b16 %v6837, %v6827
    %v7848 = vpack.c.b16 %v6838, %v6828
    %v7849 = vpack.c.b16 %v6839, %v6829
    %v7850 = vpack.c.b16 %v6840, %v6830
    %v7851 = vpack.c.b16 %v6841, %v6831
    %v7852 = vpack.c.b16 %v6842, %v6832
    %v7853 = vpack.c.b16 %v6843, %v6833
    %v7854 = vpack.c.b16 %v6844, %v6834
    %v7855 = vpack.c.b16 %v6855, %v6845
    %v7856 = vpack.c.b16 %v6856, %v6846
    %v7857 = vpack.c.b16 %v6857, %v6847
    %v7858 = vpack.c.b16 %v6858, %v6848
    %v7859 = vpack.c.b16 %v6859, %v6849
    %v7860 = vpack.c.b16 %v6860, %v6850
    %v7861 = vpack.c.b16 %v6861, %v6851
    %v7862 = vpack.c.b16 %v6862, %v6852
    %v7863 = vpack.c.b16 %v6863, %v6853
    %v7864 = vpack.c.b16 %v6864, %v6854
    %v7865 = vpack.c.b16 %v6875, %v6865
    %v7866 = vpack.c.b16 %v6876, %v6866
    %v7867 = vpack.c.b16 %v6877, %v6867
    %v7868 = vpack.c.b16 %v6878, %v6868
    %v7869 = vpack.c.b16 %v6879, %v6869
    %v7870 = vpack.c.b16 %v6880, %v6870
    %v7871 = vpack.c.b16 %v6881, %v6871
    %v7872 = vpack.c.b16 %v6882, %v6872
    %v7873 = vpack.c.b16 %v6883, %v6873
    %v7874 = vpack.c.b16 %v6884, %v6874
    %v7875 = vpack.c.b16 %v6895, %v6885
    %v7876 = vpack.c.b16 %v6896, %v6886
    %v7877 = vpack.c.b16 %v6897, %v6887
    %v7878 = vpack.c.b16 %v6898, %v6888
    %v7879 = vpack.c.b16 %v6899, %v6889
    %v7880 = vpack.c.b16 %v6900, %v6890
    %v7881 = vpack.c.b16 %v6901, %v6891
    %v7882 = vpack.c.b16 %v6902, %v6892
    %v7883 = vpack.c.b16 %v6903, %v6893
    %v7884 = vpack.c.b16 %v6904, %v6894
    %v7885 = vpack.c.b16 %v6915, %v6905
    %v7886 = vpack.c.b16 %v6916, %v6906
    %v7887 = vpack.c.b16 %v6917, %v6907
    %v7888 = vpack.c.b16 %v6918, %v6908
    %v7889 = vpack.c.b16 %v6919, %v6909
    %v7890 = vpack.c.b16 %v6920, %v6910
    %v7891 = vpack.c.b16 %v6921, %v6911
    %v7892 = vpack.c.b16 %v6922, %v6912
    %v7893 = vpack.c.b16 %v6923, %v6913
    %v7894 = vpack.c.b16 %v6924, %v6914
    %v7895 = vpack.c.b16 %v6935, %v6925
    %v7896 = vpack.c.b16 %v6936, %v6926
    %v7897 = vpack.c.b16 %v6937, %v6927
    %v7898 = vpack.c.b16 %v6938, %v6928
    %v7899 = vpack.c.b16 %v6939, %v6929
    %v7900 = vpack.c.b16 %v6940, %v6930
    %v7901 = vpack.c.b16 %v6941, %v6931
    %v7902 = vpack.c.b16 %v6942, %v6932
    %v7903 = vpack.c.b16 %v6943, %v6933
    %v7904 = vpack.c.b16 %v6944, %v6934
    %v7905 = vpack.c.b16 %v6955, %v6945
    %v7906 = vpack.c.b16 %v6956, %v6946
    %v7907 = vpack.c.b16 %v6957, %v6947
    %v7908 = vpack.c.b16 %v6958, %v6948
    %v7909 = vpack.c.b16 %v6959, %v6949
    %v7910 = vpack.c.b16 %v6960, %v6950
    %v7911 = vpack.c.b16 %v6961, %v6951
    %v7912 = vpack.c.b16 %v6962, %v6952
    %v7913 = vpack.c.b16 %v6963, %v6953
    %v7914 = vpack.c.b16 %v6964, %v6954
    %v7915 = vpack.c.b16 %v6975, %v6965
    %v7916 = vpack.c.b16 %v6976, %v6966
    %v7917 = vpack.c.b16 %v6977, %v6967
    %v7918 = vpack.c.b16 %v6978, %v6968
    %v7919 = vpack.c.b16 %v6979, %v6969
    %v7920 = vpack.c.b16 %v6980, %v6970
    %v7921 = vpack.c.b16 %v6981, %v6971
    %v7922 = vpack.c.b16 %v6982, %v6972
    %v7923 = vpack.c.b16 %v6983, %v6973
    %v7924 = vpack.c.b16 %v6984, %v6974
    %v7925 = vpack.c.b16 %v6995, %v6985
    %v7926 = vpack.c.b16 %v6996, %v6986
    %v7927 = vpack.c.b16 %v6997, %v6987
    %v7928 = vpack.c.b16 %v6998, %v6988
    %v7929 = vpack.c.b16 %v6999, %v6989
    %v7930 = vpack.c.b16 %v7000, %v6990
    %v7931 = vpack.c.b16 %v7001, %v6991
    %v7932 = vpack.c.b16 %v7002, %v6992
    %v7933 = vpack.c.b16 %v7003, %v6993
    %v7934 = vpack.c.b16 %v7004, %v6994
    %v7935 = vpack.c.b16 %v7015, %v7005
    %v7936 = vpack.c.b16 %v7016, %v7006
    %v7937 = vpack.c.b16 %v7017, %v7007
    %v7938 = vpack.c.b16 %v7018, %v7008
    %v7939 = vpack.c.b16 %v7019, %v7009
    %v7940 = vpack.c.b16 %v7020, %v7010
    %v7941 = vpack.c.b16 %v7021, %v7011
    %v7942 = vpack.c.b16 %v7022, %v7012
    %v7943 = vpack.c.b16 %v7023, %v7013
    %v7944 = vpack.c.b16 %v7024, %v7014
    %v7945 = vpack.c.b16 %v7035, %v7025
    %v7946 = vpack.c.b16 %v7036, %v7026
    %v7947 = vpack.c.b16 %v7037, %v7027
    %v7948 = vpack.c.b16 %v7038, %v7028
    %v7949 = vpack.c.b16 %v7039, %v7029
    %v7950 = vpack.c.b16 %v7040, %v7030
    %v7951 = vpack.c.b16 %v7041, %v7031
    %v7952 = vpack.c.b16 %v7042, %v7032
    %v7953 = vpack.c.b16 %v7043, %v7033
    %v7954 = vpack.c.b16 %v7044, %v7034
    %v7955 = vpack.c.b16 %v7055, %v7045
    %v7956 = vpack.c.b16 %v7056, %v7046
    %v7957 = vpack.c.b16 %v7057, %v7047
    %v7958 = vpack.c.b16 %v7058, %v7048
    %v7959 = vpack.c.b16 %v7059, %v7049
    %v7960 = vpack.c.b16 %v7060, %v7050
    %v7961 = vpack.c.b16 %v7061, %v7051
    %v7962 = vpack.c.b16 %v7062, %v7052
    %v7963 = vpack.c.b16 %v7063, %v7053
    %v7964 = vpack.c.b16 %v7064, %v7054
    %v7965 = vpack.c.b16 %v7075, %v7065
    %v7966 = vpack.c.b16 %v7076, %v7066
    %v7967 = vpack.c.b16 %v7077, %v7067
    %v7968 = vpack.c.b16 %v7078, %v7068
    %v7969 = vpack.c.b16 %v7079, %v7069
    %v7970 = vpack.c.b16 %v7080, %v7070
    %v7971 = vpack.c.b16 %v7081, %v7071
    %v7972 = vpack.c.b16 %v7082, %v7072
    %v7973 = vpack.c.b16 %v7083, %v7073
    %v7974 = vpack.c.b16 %v7084, %v7074
    %v7975 = vpack.c.b16 %v7095, %v7085
    %v7976 = vpack.c.b16 %v7096, %v7086
    %v7977 = vpack.c.b16 %v7097, %v7087
    %v7978 = vpack.c.b16 %v7098, %v7088
    %v7979 = vpack.c.b16 %v7099, %v7089
    %v7980 = vpack.c.b16 %v7100, %v7090
    %v7981 = vpack.c.b16 %v7101, %v7091
    %v7982 = vpack.c.b16 %v7102, %v7092
    %v7983 = vpack.c.b16 %v7103, %v7093
    %v7984 = vpack.c.b16 %v7104, %v7094
    %v7985 = vpack.c.b16 %v7115, %v7105
    %v7986 = vpack.c.b16 %v7116, %v7106
    %v7987 = vpack.c.b16 %v7117, %v7107
    %v7988 = vpack.c.b16 %v7118, %v7108
    %v7989 = vpack.c.b16 %v7119, %v7109
    %v7990 = vpack.c.b16 %v7120, %v7110
    %v7991 = vpack.c.b16 %v7121, %v7111
    %v7992 = vpack.c.b16 %v7122, %v7112
    %v7993 = vpack.c.b16 %v7123, %v7113
    %v7994 = vpack.c.b16 %v7124, %v7114
    %v7995 = vpack.c.b16 %v7135, %v7125
    %v7996 = vpack.c.b16 %v7136, %v7126
    %v7997 = vpack.c.b16 %v7137, %v7127
    %v7998 = vpack.c.b16 %v7138, %v7128
    %v7999 = vpack.c.b16 %v7139, %v7129
    %v8000 = vpack.c.b16 %v7140, %v7130
    %v8001 = vpack.c.b16 %v7141, %v7131
    %v8002 = vpack.c.b16 %v7142, %v7132
    %v8003 = vpack.c.b16 %v7143, %v7133
    %v8004 = vpack.c.b16 %v7144, %v7134
    %v8005 = vpack.c.b16 %v7155, %v7145
    %v8006 = vpack.c.b16 %v7156, %v7146
    %v8007 = vpack.c.b16 %v7157, %v7147
    %v8008 = vpack.c.b16 %v7158, %v7148
    %v8009 = vpack.c.b16 %v7159, %v7149
    %v8010 = vpack.c.b16 %v7160, %v7150
    %v8011 = vpack.c.b16 %v7161, %v7151
    %v8012 = vpack.c.b16 %v7162, %v7152
    %v8013 = vpack.c.b16 %v7163, %v7153
    %v8014 = vpack.c.b16 %v7164, %v7154
    %v8015 = vpack.c.b16 %v7175, %v7165
    %v8016 = vpack.c.b16 %v7176, %v7166
    %v8017 = vpack.c.b16 %v7177, %v7167
    %v8018 = vpack.c.b16 %v7178, %v7168
    %v8019 = vpack.c.b16 %v7179, %v7169
    %v8020 = vpack.c.b16 %v7180, %v7170
    %v8021 = vpack.c.b16 %v7181, %v7171
    %v8022 = vpack.c.b16 %v7182, %v7172
    %v8023 = vpack.c.b16 %v7183, %v7173
    %v8024 = vpack.c.b16 %v7184, %v7174
    %v8025 = vpack.c.b16 %v7195, %v7185
    %v8026 = vpack.c.b16 %v7196, %v7186
    %v8027 = vpack.c.b16 %v7197, %v7187
    %v8028 = vpack.c.b16 %v7198, %v7188
    %v8029 = vpack.c.b16 %v7199, %v7189
    %v8030 = vpack.c.b16 %v7200, %v7190
    %v8031 = vpack.c.b16 %v7201, %v7191
    %v8032 = vpack.c.b16 %v7202, %v7192
    %v8033 = vpack.c.b16 %v7203, %v7193
    %v8034 = vpack.c.b16 %v7204, %v7194
    %v8035 = vpack.c.b16 %v7215, %v7205
    %v8036 = vpack.c.b16 %v7216, %v7206
    %v8037 = vpack.c.b16 %v7217, %v7207
    %v8038 = vpack.c.b16 %v7218, %v7208
    %v8039 = vpack.c.b16 %v7219, %v7209
    %v8040 = vpack.c.b16 %v7220, %v7210
    %v8041 = vpack.c.b16 %v7221, %v7211
    %v8042 = vpack.c.b16 %v7222, %v7212
    %v8043 = vpack.c.b16 %v7223, %v7213
    %v8044 = vpack.c.b16 %v7224, %v7214
    %v8045 = vpack.c.b16 %v7235, %v7225
    %v8046 = vpack.c.b16 %v7236, %v7226
    %v8047 = vpack.c.b16 %v7237, %v7227
    %v8048 = vpack.c.b16 %v7238, %v7228
    %v8049 = vpack.c.b16 %v7239, %v7229
    %v8050 = vpack.c.b16 %v7240, %v7230
    %v8051 = vpack.c.b16 %v7241, %v7231
    %v8052 = vpack.c.b16 %v7242, %v7232
    %v8053 = vpack.c.b16 %v7243, %v7233
    %v8054 = vpack.c.b16 %v7244, %v7234
    %v8055 = vpack.c.b16 %v7255, %v7245
    %v8056 = vpack.c.b16 %v7256, %v7246
    %v8057 = vpack.c.b16 %v7257, %v7247
    %v8058 = vpack.c.b16 %v7258, %v7248
    %v8059 = vpack.c.b16 %v7259, %v7249
    %v8060 = vpack.c.b16 %v7260, %v7250
    %v8061 = vpack.c.b16 %v7261, %v7251
    %v8062 = vpack.c.b16 %v7262, %v7252
    %v8063 = vpack.c.b16 %v7263, %v7253
    %v8064 = vpack.c.b16 %v7264, %v7254
    %v8065 = vpack.c.b16 %v7275, %v7265
    %v8066 = vpack.c.b16 %v7276, %v7266
    %v8067 = vpack.c.b16 %v7277, %v7267
    %v8068 = vpack.c.b16 %v7278, %v7268
    %v8069 = vpack.c.b16 %v7279, %v7269
    %v8070 = vpack.c.b16 %v7280, %v7270
    %v8071 = vpack.c.b16 %v7281, %v7271
    %v8072 = vpack.c.b16 %v7282, %v7272
    %v8073 = vpack.c.b16 %v7283, %v7273
    %v8074 = vpack.c.b16 %v7284, %v7274
    %v8075 = vpack.c.b16 %v7295, %v7285
    %v8076 = vpack.c.b16 %v7296, %v7286
    %v8077 = vpack.c.b16 %v7297, %v7287
    %v8078 = vpack.c.b16 %v7298, %v7288
    %v8079 = vpack.c.b16 %v7299, %v7289
    %v8080 = vpack.c.b16 %v7300, %v7290
    %v8081 = vpack.c.b16 %v7301, %v7291
    %v8082 = vpack.c.b16 %v7302, %v7292
    %v8083 = vpack.c.b16 %v7303, %v7293
    %v8084 = vpack.c.b16 %v7304, %v7294
    %v8085 = vpack.c.b16 %v7315, %v7305
    %v8086 = vpack.c.b16 %v7316, %v7306
    %v8087 = vpack.c.b16 %v7317, %v7307
    %v8088 = vpack.c.b16 %v7318, %v7308
    %v8089 = vpack.c.b16 %v7319, %v7309
    %v8090 = vpack.c.b16 %v7320, %v7310
    %v8091 = vpack.c.b16 %v7321, %v7311
    %v8092 = vpack.c.b16 %v7322, %v7312
    %v8093 = vpack.c.b16 %v7323, %v7313
    %v8094 = vpack.c.b16 %v7324, %v7314
    %v8095 = vpack.c.b16 %v7335, %v7325
    %v8096 = vpack.c.b16 %v7336, %v7326
    %v8097 = vpack.c.b16 %v7337, %v7327
    %v8098 = vpack.c.b16 %v7338, %v7328
    %v8099 = vpack.c.b16 %v7339, %v7329
    %v8100 = vpack.c.b16 %v7340, %v7330
    %v8101 = vpack.c.b16 %v7341, %v7331
    %v8102 = vpack.c.b16 %v7342, %v7332
    %v8103 = vpack.c.b16 %v7343, %v7333
    %v8104 = vpack.c.b16 %v7344, %v7334
    %v8105 = vpack.c.b16 %v7355, %v7345
    %v8106 = vpack.c.b16 %v7356, %v7346
    %v8107 = vpack.c.b16 %v7357, %v7347
    %v8108 = vpack.c.b16 %v7358, %v7348
    %v8109 = vpack.c.b16 %v7359, %v7349
    %v8110 = vpack.c.b16 %v7360, %v7350
    %v8111 = vpack.c.b16 %v7361, %v7351
    %v8112 = vpack.c.b16 %v7362, %v7352
    %v8113 = vpack.c.b16 %v7363, %v7353
    %v8114 = vpack.c.b16 %v7364, %v7354
    %vm8865 = vcmask 392192
    %v8867 = vsel %vm8865, %v4340, 0
    %8869 = vmatpush.bf16.msra.mxu0 %v7435
    %8870 = vmatpush.bf16.msra.mxu0 %v7425
    %8871 = vmatpush.bf16.msra.mxu0 %v7415
    %8872 = vmatpush.bf16.msra.mxu0 %v7405
    %8873 = vmatpush.bf16.msra.mxu0 %v7395
    %8874 = vmatpush.bf16.msra.mxu0 %v7385
    %8875 = vmatpush.bf16.msra.mxu0 %v7375
    %8876 = vmatpush.bf16.msra.mxu0 %v7365
    %8877 = vmatmul.bf16.gmra.mxu0 %v4331
    %v8878 = vpop.f32.mrf.mxu0
    %v8879 = vadd.f32 %v5095, %v8878
    %v8880 = vpop.f32.mrf.mxu0
    %8881 = vdwg.mxu0
    %8882 = vmatpush.bf16.msra.mxu0 %v7515
    %8883 = vmatpush.bf16.msra.mxu0 %v7505
    %8884 = vmatpush.bf16.msra.mxu0 %v7495
    %8885 = vmatpush.bf16.msra.mxu0 %v7485
    %8886 = vmatpush.bf16.msra.mxu0 %v7475
    %8887 = vmatpush.bf16.msra.mxu0 %v7465
    %8888 = vmatpush.bf16.msra.mxu0 %v7455
    %8889 = vmatpush.bf16.msra.mxu0 %v7445
    %8890 = vmatmul.bf16.gmra.mxu0 %v4332
    %v8891 = vpop.f32.mrf.mxu0
    %v8892 = vadd.f32 %v8879, %v8891
    %v8893 = vpop.f32.mrf.mxu0
    %8894 = vdwg.mxu0
    %8895 = vmatpush.bf16.msra.mxu0 %v7595
    %8896 = vmatpush.bf16.msra.mxu0 %v7585
    %8897 = vmatpush.bf16.msra.mxu0 %v7575
    %8898 = vmatpush.bf16.msra.mxu0 %v7565
    %8899 = vmatpush.bf16.msra.mxu0 %v7555
    %8900 = vmatpush.bf16.msra.mxu0 %v7545
    %8901 = vmatpush.bf16.msra.mxu0 %v7535
    %8902 = vmatpush.bf16.msra.mxu0 %v7525
    %8903 = vmatmul.bf16.gmra.mxu0 %v4333
    %v8904 = vpop.f32.mrf.mxu0
    %v8905 = vadd.f32 %v8892, %v8904
    %v8906 = vpop.f32.mrf.mxu0
    %8907 = vdwg.mxu0
    %8908 = vmatpush.bf16.msra.mxu0 %v7675
    %8909 = vmatpush.bf16.msra.mxu0 %v7665
    %8910 = vmatpush.bf16.msra.mxu0 %v7655
    %8911 = vmatpush.bf16.msra.mxu0 %v7645
    %8912 = vmatpush.bf16.msra.mxu0 %v7635
    %8913 = vmatpush.bf16.msra.mxu0 %v7625
    %8914 = vmatpush.bf16.msra.mxu0 %v7615
    %8915 = vmatpush.bf16.msra.mxu0 %v7605
    %8916 = vmatmul.bf16.gmra.mxu0 %v4334
    %v8917 = vpop.f32.mrf.mxu0
    %v8918 = vadd.f32 %v8905, %v8917
    %v8919 = vpop.f32.mrf.mxu0
    %8920 = vdwg.mxu0
    %8921 = vmatpush.bf16.msra.mxu0 %v7755
    %8922 = vmatpush.bf16.msra.mxu0 %v7745
    %8923 = vmatpush.bf16.msra.mxu0 %v7735
    %8924 = vmatpush.bf16.msra.mxu0 %v7725
    %8925 = vmatpush.bf16.msra.mxu0 %v7715
    %8926 = vmatpush.bf16.msra.mxu0 %v7705
    %8927 = vmatpush.bf16.msra.mxu0 %v7695
    %8928 = vmatpush.bf16.msra.mxu0 %v7685
    %8929 = vmatmul.bf16.gmra.mxu0 %v4335
    %v8930 = vpop.f32.mrf.mxu0
    %v8931 = vadd.f32 %v8918, %v8930
    %v8932 = vpop.f32.mrf.mxu0
    %8933 = vdwg.mxu0
    %8934 = vmatpush.bf16.msra.mxu0 %v7835
    %8935 = vmatpush.bf16.msra.mxu0 %v7825
    %8936 = vmatpush.bf16.msra.mxu0 %v7815
    %8937 = vmatpush.bf16.msra.mxu0 %v7805
    %8938 = vmatpush.bf16.msra.mxu0 %v7795
    %8939 = vmatpush.bf16.msra.mxu0 %v7785
    %8940 = vmatpush.bf16.msra.mxu0 %v7775
    %8941 = vmatpush.bf16.msra.mxu0 %v7765
    %8942 = vmatmul.bf16.gmra.mxu0 %v4336
    %v8943 = vpop.f32.mrf.mxu0
    %v8944 = vadd.f32 %v8931, %v8943
    %v8945 = vpop.f32.mrf.mxu0
    %8946 = vdwg.mxu0
    %8947 = vmatpush.bf16.msra.mxu0 %v7915
    %8948 = vmatpush.bf16.msra.mxu0 %v7905
    %8949 = vmatpush.bf16.msra.mxu0 %v7895
    %8950 = vmatpush.bf16.msra.mxu0 %v7885
    %8951 = vmatpush.bf16.msra.mxu0 %v7875
    %8952 = vmatpush.bf16.msra.mxu0 %v7865
    %8953 = vmatpush.bf16.msra.mxu0 %v7855
    %8954 = vmatpush.bf16.msra.mxu0 %v7845
    %8955 = vmatmul.bf16.gmra.mxu0 %v4337
    %v8956 = vpop.f32.mrf.mxu0
    %v8957 = vadd.f32 %v8944, %v8956
    %v8958 = vpop.f32.mrf.mxu0
    %8959 = vdwg.mxu0
    %8960 = vmatpush.bf16.msra.mxu0 %v7995
    %8961 = vmatpush.bf16.msra.mxu0 %v7985
    %8962 = vmatpush.bf16.msra.mxu0 %v7975
    %8963 = vmatpush.bf16.msra.mxu0 %v7965
    %8964 = vmatpush.bf16.msra.mxu0 %v7955
    %8965 = vmatpush.bf16.msra.mxu0 %v7945
    %8966 = vmatpush.bf16.msra.mxu0 %v7935
    %8967 = vmatpush.bf16.msra.mxu0 %v7925
    %8968 = vmatmul.bf16.gmra.mxu0 %v4338
    %v8969 = vpop.f32.mrf.mxu0
    %v8970 = vadd.f32 %v8957, %v8969
    %v8971 = vpop.f32.mrf.mxu0
    %8972 = vdwg.mxu0
    %8973 = vmatpush.bf16.msra.mxu0 %v8075
    %8974 = vmatpush.bf16.msra.mxu0 %v8065
    %8975 = vmatpush.bf16.msra.mxu0 %v8055
    %8976 = vmatpush.bf16.msra.mxu0 %v8045
    %8977 = vmatpush.bf16.msra.mxu0 %v8035
    %8978 = vmatpush.bf16.msra.mxu0 %v8025
    %8979 = vmatpush.bf16.msra.mxu0 %v8015
    %8980 = vmatpush.bf16.msra.mxu0 %v8005
    %8981 = vmatmul.bf16.gmra.mxu0 %v4339
    %v8982 = vpop.f32.mrf.mxu0
    %v8983 = vadd.f32 %v8970, %v8982
    %v8984 = vpop.f32.mrf.mxu0
    %8985 = vdwg.mxu0
    %8986 = vmatpush.bf16.msra.mxu0 0
    %8987 = vmatpush.bf16.msra.mxu0 0
    %8988 = vmatpush.bf16.msra.mxu0 0
    %8989 = vmatpush.bf16.msra.mxu0 0
    %8990 = vmatpush.bf16.msra.mxu0 0
    %8991 = vmatpush.bf16.msra.mxu0 %v8105
    %8992 = vmatpush.bf16.msra.mxu0 %v8095
    %8993 = vmatpush.bf16.msra.mxu0 %v8085
    %8994 = vmatmul.bf16.gmra.mxu0 %v8867
    %v8995 = vpop.f32.mrf.mxu0
    %v8996 = vadd.f32 %v8983, %v8995
    %v8997 = vpop.f32.mrf.mxu0
    %8998 = vdwg.mxu0
    %8999 = vmatpush.bf16.msra.mxu0 %v7436
    %9000 = vmatpush.bf16.msra.mxu0 %v7426
    %9001 = vmatpush.bf16.msra.mxu0 %v7416
    %9002 = vmatpush.bf16.msra.mxu0 %v7406
    %9003 = vmatpush.bf16.msra.mxu0 %v7396
    %9004 = vmatpush.bf16.msra.mxu0 %v7386
    %9005 = vmatpush.bf16.msra.mxu0 %v7376
    %9006 = vmatpush.bf16.msra.mxu0 %v7366
    %9007 = vmatmul.bf16.gmra.mxu0 %v4331
    %v9008 = vpop.f32.mrf.mxu0
    %v9009 = vadd.f32 %v5096, %v9008
    %v9010 = vpop.f32.mrf.mxu0
    %9011 = vdwg.mxu0
    %9012 = vmatpush.bf16.msra.mxu0 %v7516
    %9013 = vmatpush.bf16.msra.mxu0 %v7506
    %9014 = vmatpush.bf16.msra.mxu0 %v7496
    %9015 = vmatpush.bf16.msra.mxu0 %v7486
    %9016 = vmatpush.bf16.msra.mxu0 %v7476
    %9017 = vmatpush.bf16.msra.mxu0 %v7466
    %9018 = vmatpush.bf16.msra.mxu0 %v7456
    %9019 = vmatpush.bf16.msra.mxu0 %v7446
    %9020 = vmatmul.bf16.gmra.mxu0 %v4332
    %v9021 = vpop.f32.mrf.mxu0
    %v9022 = vadd.f32 %v9009, %v9021
    %v9023 = vpop.f32.mrf.mxu0
    %9024 = vdwg.mxu0
    %9025 = vmatpush.bf16.msra.mxu0 %v7596
    %9026 = vmatpush.bf16.msra.mxu0 %v7586
    %9027 = vmatpush.bf16.msra.mxu0 %v7576
    %9028 = vmatpush.bf16.msra.mxu0 %v7566
    %9029 = vmatpush.bf16.msra.mxu0 %v7556
    %9030 = vmatpush.bf16.msra.mxu0 %v7546
    %9031 = vmatpush.bf16.msra.mxu0 %v7536
    %9032 = vmatpush.bf16.msra.mxu0 %v7526
    %9033 = vmatmul.bf16.gmra.mxu0 %v4333
    %v9034 = vpop.f32.mrf.mxu0
    %v9035 = vadd.f32 %v9022, %v9034
    %v9036 = vpop.f32.mrf.mxu0
    %9037 = vdwg.mxu0
    %9038 = vmatpush.bf16.msra.mxu0 %v7676
    %9039 = vmatpush.bf16.msra.mxu0 %v7666
    %9040 = vmatpush.bf16.msra.mxu0 %v7656
    %9041 = vmatpush.bf16.msra.mxu0 %v7646
    %9042 = vmatpush.bf16.msra.mxu0 %v7636
    %9043 = vmatpush.bf16.msra.mxu0 %v7626
    %9044 = vmatpush.bf16.msra.mxu0 %v7616
    %9045 = vmatpush.bf16.msra.mxu0 %v7606
    %9046 = vmatmul.bf16.gmra.mxu0 %v4334
    %v9047 = vpop.f32.mrf.mxu0
    %v9048 = vadd.f32 %v9035, %v9047
    %v9049 = vpop.f32.mrf.mxu0
    %9050 = vdwg.mxu0
    %9051 = vmatpush.bf16.msra.mxu0 %v7756
    %9052 = vmatpush.bf16.msra.mxu0 %v7746
    %9053 = vmatpush.bf16.msra.mxu0 %v7736
    %9054 = vmatpush.bf16.msra.mxu0 %v7726
    %9055 = vmatpush.bf16.msra.mxu0 %v7716
    %9056 = vmatpush.bf16.msra.mxu0 %v7706
    %9057 = vmatpush.bf16.msra.mxu0 %v7696
    %9058 = vmatpush.bf16.msra.mxu0 %v7686
    %9059 = vmatmul.bf16.gmra.mxu0 %v4335
    %v9060 = vpop.f32.mrf.mxu0
    %v9061 = vadd.f32 %v9048, %v9060
    %v9062 = vpop.f32.mrf.mxu0
    %9063 = vdwg.mxu0
    %9064 = vmatpush.bf16.msra.mxu0 %v7836
    %9065 = vmatpush.bf16.msra.mxu0 %v7826
    %9066 = vmatpush.bf16.msra.mxu0 %v7816
    %9067 = vmatpush.bf16.msra.mxu0 %v7806
    %9068 = vmatpush.bf16.msra.mxu0 %v7796
    %9069 = vmatpush.bf16.msra.mxu0 %v7786
    %9070 = vmatpush.bf16.msra.mxu0 %v7776
    %9071 = vmatpush.bf16.msra.mxu0 %v7766
    %9072 = vmatmul.bf16.gmra.mxu0 %v4336
    %v9073 = vpop.f32.mrf.mxu0
    %v9074 = vadd.f32 %v9061, %v9073
    %v9075 = vpop.f32.mrf.mxu0
    %9076 = vdwg.mxu0
    %9077 = vmatpush.bf16.msra.mxu0 %v7916
    %9078 = vmatpush.bf16.msra.mxu0 %v7906
    %9079 = vmatpush.bf16.msra.mxu0 %v7896
    %9080 = vmatpush.bf16.msra.mxu0 %v7886
    %9081 = vmatpush.bf16.msra.mxu0 %v7876
    %9082 = vmatpush.bf16.msra.mxu0 %v7866
    %9083 = vmatpush.bf16.msra.mxu0 %v7856
    %9084 = vmatpush.bf16.msra.mxu0 %v7846
    %9085 = vmatmul.bf16.gmra.mxu0 %v4337
    %v9086 = vpop.f32.mrf.mxu0
    %v9087 = vadd.f32 %v9074, %v9086
    %v9088 = vpop.f32.mrf.mxu0
    %9089 = vdwg.mxu0
    %9090 = vmatpush.bf16.msra.mxu0 %v7996
    %9091 = vmatpush.bf16.msra.mxu0 %v7986
    %9092 = vmatpush.bf16.msra.mxu0 %v7976
    %9093 = vmatpush.bf16.msra.mxu0 %v7966
    %9094 = vmatpush.bf16.msra.mxu0 %v7956
    %9095 = vmatpush.bf16.msra.mxu0 %v7946
    %9096 = vmatpush.bf16.msra.mxu0 %v7936
    %9097 = vmatpush.bf16.msra.mxu0 %v7926
    %9098 = vmatmul.bf16.gmra.mxu0 %v4338
    %v9099 = vpop.f32.mrf.mxu0
    %v9100 = vadd.f32 %v9087, %v9099
    %v9101 = vpop.f32.mrf.mxu0
    %9102 = vdwg.mxu0
    %9103 = vmatpush.bf16.msra.mxu0 %v8076
    %9104 = vmatpush.bf16.msra.mxu0 %v8066
    %9105 = vmatpush.bf16.msra.mxu0 %v8056
    %9106 = vmatpush.bf16.msra.mxu0 %v8046
    %9107 = vmatpush.bf16.msra.mxu0 %v8036
    %9108 = vmatpush.bf16.msra.mxu0 %v8026
    %9109 = vmatpush.bf16.msra.mxu0 %v8016
    %9110 = vmatpush.bf16.msra.mxu0 %v8006
    %9111 = vmatmul.bf16.gmra.mxu0 %v4339
    %v9112 = vpop.f32.mrf.mxu0
    %v9113 = vadd.f32 %v9100, %v9112
    %v9114 = vpop.f32.mrf.mxu0
    %9115 = vdwg.mxu0
    %9116 = vmatpush.bf16.msra.mxu0 0
    %9117 = vmatpush.bf16.msra.mxu0 0
    %9118 = vmatpush.bf16.msra.mxu0 0
    %9119 = vmatpush.bf16.msra.mxu0 0
    %9120 = vmatpush.bf16.msra.mxu0 0
    %9121 = vmatpush.bf16.msra.mxu0 %v8106
    %9122 = vmatpush.bf16.msra.mxu0 %v8096
    %9123 = vmatpush.bf16.msra.mxu0 %v8086
    %9124 = vmatmul.bf16.gmra.mxu0 %v8867
    %v9125 = vpop.f32.mrf.mxu0
    %v9126 = vadd.f32 %v9113, %v9125
    %v9127 = vpop.f32.mrf.mxu0
    %9128 = vdwg.mxu0
    %9129 = vmatpush.bf16.msra.mxu0 %v7437
    %9130 = vmatpush.bf16.msra.mxu0 %v7427
    %9131 = vmatpush.bf16.msra.mxu0 %v7417
    %9132 = vmatpush.bf16.msra.mxu0 %v7407
    %9133 = vmatpush.bf16.msra.mxu0 %v7397
    %9134 = vmatpush.bf16.msra.mxu0 %v7387
    %9135 = vmatpush.bf16.msra.mxu0 %v7377
    %9136 = vmatpush.bf16.msra.mxu0 %v7367
    %9137 = vmatmul.bf16.gmra.mxu0 %v4331
    %v9138 = vpop.f32.mrf.mxu0
    %v9139 = vadd.f32 %v5097, %v9138
    %v9140 = vpop.f32.mrf.mxu0
    %9141 = vdwg.mxu0
    %9142 = vmatpush.bf16.msra.mxu0 %v7517
    %9143 = vmatpush.bf16.msra.mxu0 %v7507
    %9144 = vmatpush.bf16.msra.mxu0 %v7497
    %9145 = vmatpush.bf16.msra.mxu0 %v7487
    %9146 = vmatpush.bf16.msra.mxu0 %v7477
    %9147 = vmatpush.bf16.msra.mxu0 %v7467
    %9148 = vmatpush.bf16.msra.mxu0 %v7457
    %9149 = vmatpush.bf16.msra.mxu0 %v7447
    %9150 = vmatmul.bf16.gmra.mxu0 %v4332
    %v9151 = vpop.f32.mrf.mxu0
    %v9152 = vadd.f32 %v9139, %v9151
    %v9153 = vpop.f32.mrf.mxu0
    %9154 = vdwg.mxu0
    %9155 = vmatpush.bf16.msra.mxu0 %v7597
    %9156 = vmatpush.bf16.msra.mxu0 %v7587
    %9157 = vmatpush.bf16.msra.mxu0 %v7577
    %9158 = vmatpush.bf16.msra.mxu0 %v7567
    %9159 = vmatpush.bf16.msra.mxu0 %v7557
    %9160 = vmatpush.bf16.msra.mxu0 %v7547
    %9161 = vmatpush.bf16.msra.mxu0 %v7537
    %9162 = vmatpush.bf16.msra.mxu0 %v7527
    %9163 = vmatmul.bf16.gmra.mxu0 %v4333
    %v9164 = vpop.f32.mrf.mxu0
    %v9165 = vadd.f32 %v9152, %v9164
    %v9166 = vpop.f32.mrf.mxu0
    %9167 = vdwg.mxu0
    %9168 = vmatpush.bf16.msra.mxu0 %v7677
    %9169 = vmatpush.bf16.msra.mxu0 %v7667
    %9170 = vmatpush.bf16.msra.mxu0 %v7657
    %9171 = vmatpush.bf16.msra.mxu0 %v7647
    %9172 = vmatpush.bf16.msra.mxu0 %v7637
    %9173 = vmatpush.bf16.msra.mxu0 %v7627
    %9174 = vmatpush.bf16.msra.mxu0 %v7617
    %9175 = vmatpush.bf16.msra.mxu0 %v7607
    %9176 = vmatmul.bf16.gmra.mxu0 %v4334
    %v9177 = vpop.f32.mrf.mxu0
    %v9178 = vadd.f32 %v9165, %v9177
    %v9179 = vpop.f32.mrf.mxu0
    %9180 = vdwg.mxu0
    %9181 = vmatpush.bf16.msra.mxu0 %v7757
    %9182 = vmatpush.bf16.msra.mxu0 %v7747
    %9183 = vmatpush.bf16.msra.mxu0 %v7737
    %9184 = vmatpush.bf16.msra.mxu0 %v7727
    %9185 = vmatpush.bf16.msra.mxu0 %v7717
    %9186 = vmatpush.bf16.msra.mxu0 %v7707
    %9187 = vmatpush.bf16.msra.mxu0 %v7697
    %9188 = vmatpush.bf16.msra.mxu0 %v7687
    %9189 = vmatmul.bf16.gmra.mxu0 %v4335
    %v9190 = vpop.f32.mrf.mxu0
    %v9191 = vadd.f32 %v9178, %v9190
    %v9192 = vpop.f32.mrf.mxu0
    %9193 = vdwg.mxu0
    %9194 = vmatpush.bf16.msra.mxu0 %v7837
    %9195 = vmatpush.bf16.msra.mxu0 %v7827
    %9196 = vmatpush.bf16.msra.mxu0 %v7817
    %9197 = vmatpush.bf16.msra.mxu0 %v7807
    %9198 = vmatpush.bf16.msra.mxu0 %v7797
    %9199 = vmatpush.bf16.msra.mxu0 %v7787
    %9200 = vmatpush.bf16.msra.mxu0 %v7777
    %9201 = vmatpush.bf16.msra.mxu0 %v7767
    %9202 = vmatmul.bf16.gmra.mxu0 %v4336
    %v9203 = vpop.f32.mrf.mxu0
    %v9204 = vadd.f32 %v9191, %v9203
    %v9205 = vpop.f32.mrf.mxu0
    %9206 = vdwg.mxu0
    %9207 = vmatpush.bf16.msra.mxu0 %v7917
    %9208 = vmatpush.bf16.msra.mxu0 %v7907
    %9209 = vmatpush.bf16.msra.mxu0 %v7897
    %9210 = vmatpush.bf16.msra.mxu0 %v7887
    %9211 = vmatpush.bf16.msra.mxu0 %v7877
    %9212 = vmatpush.bf16.msra.mxu0 %v7867
    %9213 = vmatpush.bf16.msra.mxu0 %v7857
    %9214 = vmatpush.bf16.msra.mxu0 %v7847
    %9215 = vmatmul.bf16.gmra.mxu0 %v4337
    %v9216 = vpop.f32.mrf.mxu0
    %v9217 = vadd.f32 %v9204, %v9216
    %v9218 = vpop.f32.mrf.mxu0
    %9219 = vdwg.mxu0
    %9220 = vmatpush.bf16.msra.mxu0 %v7997
    %9221 = vmatpush.bf16.msra.mxu0 %v7987
    %9222 = vmatpush.bf16.msra.mxu0 %v7977
    %9223 = vmatpush.bf16.msra.mxu0 %v7967
    %9224 = vmatpush.bf16.msra.mxu0 %v7957
    %9225 = vmatpush.bf16.msra.mxu0 %v7947
    %9226 = vmatpush.bf16.msra.mxu0 %v7937
    %9227 = vmatpush.bf16.msra.mxu0 %v7927
    %9228 = vmatmul.bf16.gmra.mxu0 %v4338
    %v9229 = vpop.f32.mrf.mxu0
    %v9230 = vadd.f32 %v9217, %v9229
    %v9231 = vpop.f32.mrf.mxu0
    %9232 = vdwg.mxu0
    %9233 = vmatpush.bf16.msra.mxu0 %v8077
    %9234 = vmatpush.bf16.msra.mxu0 %v8067
    %9235 = vmatpush.bf16.msra.mxu0 %v8057
    %9236 = vmatpush.bf16.msra.mxu0 %v8047
    %9237 = vmatpush.bf16.msra.mxu0 %v8037
    %9238 = vmatpush.bf16.msra.mxu0 %v8027
    %9239 = vmatpush.bf16.msra.mxu0 %v8017
    %9240 = vmatpush.bf16.msra.mxu0 %v8007
    %9241 = vmatmul.bf16.gmra.mxu0 %v4339
    %v9242 = vpop.f32.mrf.mxu0
    %v9243 = vadd.f32 %v9230, %v9242
    %v9244 = vpop.f32.mrf.mxu0
    %9245 = vdwg.mxu0
    %9246 = vmatpush.bf16.msra.mxu0 0
    %9247 = vmatpush.bf16.msra.mxu0 0
    %9248 = vmatpush.bf16.msra.mxu0 0
    %9249 = vmatpush.bf16.msra.mxu0 0
    %9250 = vmatpush.bf16.msra.mxu0 0
    %9251 = vmatpush.bf16.msra.mxu0 %v8107
    %9252 = vmatpush.bf16.msra.mxu0 %v8097
    %9253 = vmatpush.bf16.msra.mxu0 %v8087
    %9254 = vmatmul.bf16.gmra.mxu0 %v8867
    %v9255 = vpop.f32.mrf.mxu0
    %v9256 = vadd.f32 %v9243, %v9255
    %v9257 = vpop.f32.mrf.mxu0
    %9258 = vdwg.mxu0
    %9259 = vmatpush.bf16.msra.mxu0 %v7438
    %9260 = vmatpush.bf16.msra.mxu0 %v7428
    %9261 = vmatpush.bf16.msra.mxu0 %v7418
    %9262 = vmatpush.bf16.msra.mxu0 %v7408
    %9263 = vmatpush.bf16.msra.mxu0 %v7398
    %9264 = vmatpush.bf16.msra.mxu0 %v7388
    %9265 = vmatpush.bf16.msra.mxu0 %v7378
    %9266 = vmatpush.bf16.msra.mxu0 %v7368
    %9267 = vmatmul.bf16.gmra.mxu0 %v4331
    %v9268 = vpop.f32.mrf.mxu0
    %v9269 = vadd.f32 %v5098, %v9268
    %v9270 = vpop.f32.mrf.mxu0
    %9271 = vdwg.mxu0
    %9272 = vmatpush.bf16.msra.mxu0 %v7518
    %9273 = vmatpush.bf16.msra.mxu0 %v7508
    %9274 = vmatpush.bf16.msra.mxu0 %v7498
    %9275 = vmatpush.bf16.msra.mxu0 %v7488
    %9276 = vmatpush.bf16.msra.mxu0 %v7478
    %9277 = vmatpush.bf16.msra.mxu0 %v7468
    %9278 = vmatpush.bf16.msra.mxu0 %v7458
    %9279 = vmatpush.bf16.msra.mxu0 %v7448
    %9280 = vmatmul.bf16.gmra.mxu0 %v4332
    %v9281 = vpop.f32.mrf.mxu0
    %v9282 = vadd.f32 %v9269, %v9281
    %v9283 = vpop.f32.mrf.mxu0
    %9284 = vdwg.mxu0
    %9285 = vmatpush.bf16.msra.mxu0 %v7598
    %9286 = vmatpush.bf16.msra.mxu0 %v7588
    %9287 = vmatpush.bf16.msra.mxu0 %v7578
    %9288 = vmatpush.bf16.msra.mxu0 %v7568
    %9289 = vmatpush.bf16.msra.mxu0 %v7558
    %9290 = vmatpush.bf16.msra.mxu0 %v7548
    %9291 = vmatpush.bf16.msra.mxu0 %v7538
    %9292 = vmatpush.bf16.msra.mxu0 %v7528
    %9293 = vmatmul.bf16.gmra.mxu0 %v4333
    %v9294 = vpop.f32.mrf.mxu0
    %v9295 = vadd.f32 %v9282, %v9294
    %v9296 = vpop.f32.mrf.mxu0
    %9297 = vdwg.mxu0
    %9298 = vmatpush.bf16.msra.mxu0 %v7678
    %9299 = vmatpush.bf16.msra.mxu0 %v7668
    %9300 = vmatpush.bf16.msra.mxu0 %v7658
    %9301 = vmatpush.bf16.msra.mxu0 %v7648
    %9302 = vmatpush.bf16.msra.mxu0 %v7638
    %9303 = vmatpush.bf16.msra.mxu0 %v7628
    %9304 = vmatpush.bf16.msra.mxu0 %v7618
    %9305 = vmatpush.bf16.msra.mxu0 %v7608
    %9306 = vmatmul.bf16.gmra.mxu0 %v4334
    %v9307 = vpop.f32.mrf.mxu0
    %v9308 = vadd.f32 %v9295, %v9307
    %v9309 = vpop.f32.mrf.mxu0
    %9310 = vdwg.mxu0
    %9311 = vmatpush.bf16.msra.mxu0 %v7758
    %9312 = vmatpush.bf16.msra.mxu0 %v7748
    %9313 = vmatpush.bf16.msra.mxu0 %v7738
    %9314 = vmatpush.bf16.msra.mxu0 %v7728
    %9315 = vmatpush.bf16.msra.mxu0 %v7718
    %9316 = vmatpush.bf16.msra.mxu0 %v7708
    %9317 = vmatpush.bf16.msra.mxu0 %v7698
    %9318 = vmatpush.bf16.msra.mxu0 %v7688
    %9319 = vmatmul.bf16.gmra.mxu0 %v4335
    %v9320 = vpop.f32.mrf.mxu0
    %v9321 = vadd.f32 %v9308, %v9320
    %v9322 = vpop.f32.mrf.mxu0
    %9323 = vdwg.mxu0
    %9324 = vmatpush.bf16.msra.mxu0 %v7838
    %9325 = vmatpush.bf16.msra.mxu0 %v7828
    %9326 = vmatpush.bf16.msra.mxu0 %v7818
    %9327 = vmatpush.bf16.msra.mxu0 %v7808
    %9328 = vmatpush.bf16.msra.mxu0 %v7798
    %9329 = vmatpush.bf16.msra.mxu0 %v7788
    %9330 = vmatpush.bf16.msra.mxu0 %v7778
    %9331 = vmatpush.bf16.msra.mxu0 %v7768
    %9332 = vmatmul.bf16.gmra.mxu0 %v4336
    %v9333 = vpop.f32.mrf.mxu0
    %v9334 = vadd.f32 %v9321, %v9333
    %v9335 = vpop.f32.mrf.mxu0
    %9336 = vdwg.mxu0
    %9337 = vmatpush.bf16.msra.mxu0 %v7918
    %9338 = vmatpush.bf16.msra.mxu0 %v7908
    %9339 = vmatpush.bf16.msra.mxu0 %v7898
    %9340 = vmatpush.bf16.msra.mxu0 %v7888
    %9341 = vmatpush.bf16.msra.mxu0 %v7878
    %9342 = vmatpush.bf16.msra.mxu0 %v7868
    %9343 = vmatpush.bf16.msra.mxu0 %v7858
    %9344 = vmatpush.bf16.msra.mxu0 %v7848
    %9345 = vmatmul.bf16.gmra.mxu0 %v4337
    %v9346 = vpop.f32.mrf.mxu0
    %v9347 = vadd.f32 %v9334, %v9346
    %v9348 = vpop.f32.mrf.mxu0
    %9349 = vdwg.mxu0
    %9350 = vmatpush.bf16.msra.mxu0 %v7998
    %9351 = vmatpush.bf16.msra.mxu0 %v7988
    %9352 = vmatpush.bf16.msra.mxu0 %v7978
    %9353 = vmatpush.bf16.msra.mxu0 %v7968
    %9354 = vmatpush.bf16.msra.mxu0 %v7958
    %9355 = vmatpush.bf16.msra.mxu0 %v7948
    %9356 = vmatpush.bf16.msra.mxu0 %v7938
    %9357 = vmatpush.bf16.msra.mxu0 %v7928
    %9358 = vmatmul.bf16.gmra.mxu0 %v4338
    %v9359 = vpop.f32.mrf.mxu0
    %v9360 = vadd.f32 %v9347, %v9359
    %v9361 = vpop.f32.mrf.mxu0
    %9362 = vdwg.mxu0
    %9363 = vmatpush.bf16.msra.mxu0 %v8078
    %9364 = vmatpush.bf16.msra.mxu0 %v8068
    %9365 = vmatpush.bf16.msra.mxu0 %v8058
    %9366 = vmatpush.bf16.msra.mxu0 %v8048
    %9367 = vmatpush.bf16.msra.mxu0 %v8038
    %9368 = vmatpush.bf16.msra.mxu0 %v8028
    %9369 = vmatpush.bf16.msra.mxu0 %v8018
    %9370 = vmatpush.bf16.msra.mxu0 %v8008
    %9371 = vmatmul.bf16.gmra.mxu0 %v4339
    %v9372 = vpop.f32.mrf.mxu0
    %v9373 = vadd.f32 %v9360, %v9372
    %v9374 = vpop.f32.mrf.mxu0
    %9375 = vdwg.mxu0
    %9376 = vmatpush.bf16.msra.mxu0 0
    %9377 = vmatpush.bf16.msra.mxu0 0
    %9378 = vmatpush.bf16.msra.mxu0 0
    %9379 = vmatpush.bf16.msra.mxu0 0
    %9380 = vmatpush.bf16.msra.mxu0 0
    %9381 = vmatpush.bf16.msra.mxu0 %v8108
    %9382 = vmatpush.bf16.msra.mxu0 %v8098
    %9383 = vmatpush.bf16.msra.mxu0 %v8088
    %9384 = vmatmul.bf16.gmra.mxu0 %v8867
    %v9385 = vpop.f32.mrf.mxu0
    %v9386 = vadd.f32 %v9373, %v9385
    %v9387 = vpop.f32.mrf.mxu0
    %9388 = vdwg.mxu0
    %9389 = vmatpush.bf16.msra.mxu0 %v7439
    %9390 = vmatpush.bf16.msra.mxu0 %v7429
    %9391 = vmatpush.bf16.msra.mxu0 %v7419
    %9392 = vmatpush.bf16.msra.mxu0 %v7409
    %9393 = vmatpush.bf16.msra.mxu0 %v7399
    %9394 = vmatpush.bf16.msra.mxu0 %v7389
    %9395 = vmatpush.bf16.msra.mxu0 %v7379
    %9396 = vmatpush.bf16.msra.mxu0 %v7369
    %9397 = vmatmul.bf16.gmra.mxu0 %v4331
    %v9398 = vpop.f32.mrf.mxu0
    %v9399 = vadd.f32 %v5099, %v9398
    %v9400 = vpop.f32.mrf.mxu0
    %9401 = vdwg.mxu0
    %9402 = vmatpush.bf16.msra.mxu0 %v7519
    %9403 = vmatpush.bf16.msra.mxu0 %v7509
    %9404 = vmatpush.bf16.msra.mxu0 %v7499
    %9405 = vmatpush.bf16.msra.mxu0 %v7489
    %9406 = vmatpush.bf16.msra.mxu0 %v7479
    %9407 = vmatpush.bf16.msra.mxu0 %v7469
    %9408 = vmatpush.bf16.msra.mxu0 %v7459
    %9409 = vmatpush.bf16.msra.mxu0 %v7449
    %9410 = vmatmul.bf16.gmra.mxu0 %v4332
    %v9411 = vpop.f32.mrf.mxu0
    %v9412 = vadd.f32 %v9399, %v9411
    %v9413 = vpop.f32.mrf.mxu0
    %9414 = vdwg.mxu0
    %9415 = vmatpush.bf16.msra.mxu0 %v7599
    %9416 = vmatpush.bf16.msra.mxu0 %v7589
    %9417 = vmatpush.bf16.msra.mxu0 %v7579
    %9418 = vmatpush.bf16.msra.mxu0 %v7569
    %9419 = vmatpush.bf16.msra.mxu0 %v7559
    %9420 = vmatpush.bf16.msra.mxu0 %v7549
    %9421 = vmatpush.bf16.msra.mxu0 %v7539
    %9422 = vmatpush.bf16.msra.mxu0 %v7529
    %9423 = vmatmul.bf16.gmra.mxu0 %v4333
    %v9424 = vpop.f32.mrf.mxu0
    %v9425 = vadd.f32 %v9412, %v9424
    %v9426 = vpop.f32.mrf.mxu0
    %9427 = vdwg.mxu0
    %9428 = vmatpush.bf16.msra.mxu0 %v7679
    %9429 = vmatpush.bf16.msra.mxu0 %v7669
    %9430 = vmatpush.bf16.msra.mxu0 %v7659
    %9431 = vmatpush.bf16.msra.mxu0 %v7649
    %9432 = vmatpush.bf16.msra.mxu0 %v7639
    %9433 = vmatpush.bf16.msra.mxu0 %v7629
    %9434 = vmatpush.bf16.msra.mxu0 %v7619
    %9435 = vmatpush.bf16.msra.mxu0 %v7609
    %9436 = vmatmul.bf16.gmra.mxu0 %v4334
    %v9437 = vpop.f32.mrf.mxu0
    %v9438 = vadd.f32 %v9425, %v9437
    %v9439 = vpop.f32.mrf.mxu0
    %9440 = vdwg.mxu0
    %9441 = vmatpush.bf16.msra.mxu0 %v7759
    %9442 = vmatpush.bf16.msra.mxu0 %v7749
    %9443 = vmatpush.bf16.msra.mxu0 %v7739
    %9444 = vmatpush.bf16.msra.mxu0 %v7729
    %9445 = vmatpush.bf16.msra.mxu0 %v7719
    %9446 = vmatpush.bf16.msra.mxu0 %v7709
    %9447 = vmatpush.bf16.msra.mxu0 %v7699
    %9448 = vmatpush.bf16.msra.mxu0 %v7689
    %9449 = vmatmul.bf16.gmra.mxu0 %v4335
    %v9450 = vpop.f32.mrf.mxu0
    %v9451 = vadd.f32 %v9438, %v9450
    %v9452 = vpop.f32.mrf.mxu0
    %9453 = vdwg.mxu0
    %9454 = vmatpush.bf16.msra.mxu0 %v7839
    %9455 = vmatpush.bf16.msra.mxu0 %v7829
    %9456 = vmatpush.bf16.msra.mxu0 %v7819
    %9457 = vmatpush.bf16.msra.mxu0 %v7809
    %9458 = vmatpush.bf16.msra.mxu0 %v7799
    %9459 = vmatpush.bf16.msra.mxu0 %v7789
    %9460 = vmatpush.bf16.msra.mxu0 %v7779
    %9461 = vmatpush.bf16.msra.mxu0 %v7769
    %9462 = vmatmul.bf16.gmra.mxu0 %v4336
    %v9463 = vpop.f32.mrf.mxu0
    %v9464 = vadd.f32 %v9451, %v9463
    %v9465 = vpop.f32.mrf.mxu0
    %9466 = vdwg.mxu0
    %9467 = vmatpush.bf16.msra.mxu0 %v7919
    %9468 = vmatpush.bf16.msra.mxu0 %v7909
    %9469 = vmatpush.bf16.msra.mxu0 %v7899
    %9470 = vmatpush.bf16.msra.mxu0 %v7889
    %9471 = vmatpush.bf16.msra.mxu0 %v7879
    %9472 = vmatpush.bf16.msra.mxu0 %v7869
    %9473 = vmatpush.bf16.msra.mxu0 %v7859
    %9474 = vmatpush.bf16.msra.mxu0 %v7849
    %9475 = vmatmul.bf16.gmra.mxu0 %v4337
    %v9476 = vpop.f32.mrf.mxu0
    %v9477 = vadd.f32 %v9464, %v9476
    %v9478 = vpop.f32.mrf.mxu0
    %9479 = vdwg.mxu0
    %9480 = vmatpush.bf16.msra.mxu0 %v7999
    %9481 = vmatpush.bf16.msra.mxu0 %v7989
    %9482 = vmatpush.bf16.msra.mxu0 %v7979
    %9483 = vmatpush.bf16.msra.mxu0 %v7969
    %9484 = vmatpush.bf16.msra.mxu0 %v7959
    %9485 = vmatpush.bf16.msra.mxu0 %v7949
    %9486 = vmatpush.bf16.msra.mxu0 %v7939
    %9487 = vmatpush.bf16.msra.mxu0 %v7929
    %9488 = vmatmul.bf16.gmra.mxu0 %v4338
    %v9489 = vpop.f32.mrf.mxu0
    %v9490 = vadd.f32 %v9477, %v9489
    %v9491 = vpop.f32.mrf.mxu0
    %9492 = vdwg.mxu0
    %9493 = vmatpush.bf16.msra.mxu0 %v8079
    %9494 = vmatpush.bf16.msra.mxu0 %v8069
    %9495 = vmatpush.bf16.msra.mxu0 %v8059
    %9496 = vmatpush.bf16.msra.mxu0 %v8049
    %9497 = vmatpush.bf16.msra.mxu0 %v8039
    %9498 = vmatpush.bf16.msra.mxu0 %v8029
    %9499 = vmatpush.bf16.msra.mxu0 %v8019
    %9500 = vmatpush.bf16.msra.mxu0 %v8009
    %9501 = vmatmul.bf16.gmra.mxu0 %v4339
    %v9502 = vpop.f32.mrf.mxu0
    %v9503 = vadd.f32 %v9490, %v9502
    %v9504 = vpop.f32.mrf.mxu0
    %9505 = vdwg.mxu0
    %9506 = vmatpush.bf16.msra.mxu0 0
    %9507 = vmatpush.bf16.msra.mxu0 0
    %9508 = vmatpush.bf16.msra.mxu0 0
    %9509 = vmatpush.bf16.msra.mxu0 0
    %9510 = vmatpush.bf16.msra.mxu0 0
    %9511 = vmatpush.bf16.msra.mxu0 %v8109
    %9512 = vmatpush.bf16.msra.mxu0 %v8099
    %9513 = vmatpush.bf16.msra.mxu0 %v8089
    %9514 = vmatmul.bf16.gmra.mxu0 %v8867
    %v9515 = vpop.f32.mrf.mxu0
    %v9516 = vadd.f32 %v9503, %v9515
    %v9517 = vpop.f32.mrf.mxu0
    %9518 = vdwg.mxu0
    %9519 = vmatpush.bf16.msra.mxu0 %v7440
    %9520 = vmatpush.bf16.msra.mxu0 %v7430
    %9521 = vmatpush.bf16.msra.mxu0 %v7420
    %9522 = vmatpush.bf16.msra.mxu0 %v7410
    %9523 = vmatpush.bf16.msra.mxu0 %v7400
    %9524 = vmatpush.bf16.msra.mxu0 %v7390
    %9525 = vmatpush.bf16.msra.mxu0 %v7380
    %9526 = vmatpush.bf16.msra.mxu0 %v7370
    %9527 = vmatmul.bf16.gmra.mxu0 %v4331
    %v9528 = vpop.f32.mrf.mxu0
    %v9529 = vadd.f32 %v5100, %v9528
    %v9530 = vpop.f32.mrf.mxu0
    %9531 = vdwg.mxu0
    %9532 = vmatpush.bf16.msra.mxu0 %v7520
    %9533 = vmatpush.bf16.msra.mxu0 %v7510
    %9534 = vmatpush.bf16.msra.mxu0 %v7500
    %9535 = vmatpush.bf16.msra.mxu0 %v7490
    %9536 = vmatpush.bf16.msra.mxu0 %v7480
    %9537 = vmatpush.bf16.msra.mxu0 %v7470
    %9538 = vmatpush.bf16.msra.mxu0 %v7460
    %9539 = vmatpush.bf16.msra.mxu0 %v7450
    %9540 = vmatmul.bf16.gmra.mxu0 %v4332
    %v9541 = vpop.f32.mrf.mxu0
    %v9542 = vadd.f32 %v9529, %v9541
    %v9543 = vpop.f32.mrf.mxu0
    %9544 = vdwg.mxu0
    %9545 = vmatpush.bf16.msra.mxu0 %v7600
    %9546 = vmatpush.bf16.msra.mxu0 %v7590
    %9547 = vmatpush.bf16.msra.mxu0 %v7580
    %9548 = vmatpush.bf16.msra.mxu0 %v7570
    %9549 = vmatpush.bf16.msra.mxu0 %v7560
    %9550 = vmatpush.bf16.msra.mxu0 %v7550
    %9551 = vmatpush.bf16.msra.mxu0 %v7540
    %9552 = vmatpush.bf16.msra.mxu0 %v7530
    %9553 = vmatmul.bf16.gmra.mxu0 %v4333
    %v9554 = vpop.f32.mrf.mxu0
    %v9555 = vadd.f32 %v9542, %v9554
    %v9556 = vpop.f32.mrf.mxu0
    %9557 = vdwg.mxu0
    %9558 = vmatpush.bf16.msra.mxu0 %v7680
    %9559 = vmatpush.bf16.msra.mxu0 %v7670
    %9560 = vmatpush.bf16.msra.mxu0 %v7660
    %9561 = vmatpush.bf16.msra.mxu0 %v7650
    %9562 = vmatpush.bf16.msra.mxu0 %v7640
    %9563 = vmatpush.bf16.msra.mxu0 %v7630
    %9564 = vmatpush.bf16.msra.mxu0 %v7620
    %9565 = vmatpush.bf16.msra.mxu0 %v7610
    %9566 = vmatmul.bf16.gmra.mxu0 %v4334
    %v9567 = vpop.f32.mrf.mxu0
    %v9568 = vadd.f32 %v9555, %v9567
    %v9569 = vpop.f32.mrf.mxu0
    %9570 = vdwg.mxu0
    %9571 = vmatpush.bf16.msra.mxu0 %v7760
    %9572 = vmatpush.bf16.msra.mxu0 %v7750
    %9573 = vmatpush.bf16.msra.mxu0 %v7740
    %9574 = vmatpush.bf16.msra.mxu0 %v7730
    %9575 = vmatpush.bf16.msra.mxu0 %v7720
    %9576 = vmatpush.bf16.msra.mxu0 %v7710
    %9577 = vmatpush.bf16.msra.mxu0 %v7700
    %9578 = vmatpush.bf16.msra.mxu0 %v7690
    %9579 = vmatmul.bf16.gmra.mxu0 %v4335
    %v9580 = vpop.f32.mrf.mxu0
    %v9581 = vadd.f32 %v9568, %v9580
    %v9582 = vpop.f32.mrf.mxu0
    %9583 = vdwg.mxu0
    %9584 = vmatpush.bf16.msra.mxu0 %v7840
    %9585 = vmatpush.bf16.msra.mxu0 %v7830
    %9586 = vmatpush.bf16.msra.mxu0 %v7820
    %9587 = vmatpush.bf16.msra.mxu0 %v7810
    %9588 = vmatpush.bf16.msra.mxu0 %v7800
    %9589 = vmatpush.bf16.msra.mxu0 %v7790
    %9590 = vmatpush.bf16.msra.mxu0 %v7780
    %9591 = vmatpush.bf16.msra.mxu0 %v7770
    %9592 = vmatmul.bf16.gmra.mxu0 %v4336
    %v9593 = vpop.f32.mrf.mxu0
    %v9594 = vadd.f32 %v9581, %v9593
    %v9595 = vpop.f32.mrf.mxu0
    %9596 = vdwg.mxu0
    %9597 = vmatpush.bf16.msra.mxu0 %v7920
    %9598 = vmatpush.bf16.msra.mxu0 %v7910
    %9599 = vmatpush.bf16.msra.mxu0 %v7900
    %9600 = vmatpush.bf16.msra.mxu0 %v7890
    %9601 = vmatpush.bf16.msra.mxu0 %v7880
    %9602 = vmatpush.bf16.msra.mxu0 %v7870
    %9603 = vmatpush.bf16.msra.mxu0 %v7860
    %9604 = vmatpush.bf16.msra.mxu0 %v7850
    %9605 = vmatmul.bf16.gmra.mxu0 %v4337
    %v9606 = vpop.f32.mrf.mxu0
    %v9607 = vadd.f32 %v9594, %v9606
    %v9608 = vpop.f32.mrf.mxu0
    %9609 = vdwg.mxu0
    %9610 = vmatpush.bf16.msra.mxu0 %v8000
    %9611 = vmatpush.bf16.msra.mxu0 %v7990
    %9612 = vmatpush.bf16.msra.mxu0 %v7980
    %9613 = vmatpush.bf16.msra.mxu0 %v7970
    %9614 = vmatpush.bf16.msra.mxu0 %v7960
    %9615 = vmatpush.bf16.msra.mxu0 %v7950
    %9616 = vmatpush.bf16.msra.mxu0 %v7940
    %9617 = vmatpush.bf16.msra.mxu0 %v7930
    %9618 = vmatmul.bf16.gmra.mxu0 %v4338
    %v9619 = vpop.f32.mrf.mxu0
    %v9620 = vadd.f32 %v9607, %v9619
    %v9621 = vpop.f32.mrf.mxu0
    %9622 = vdwg.mxu0
    %9623 = vmatpush.bf16.msra.mxu0 %v8080
    %9624 = vmatpush.bf16.msra.mxu0 %v8070
    %9625 = vmatpush.bf16.msra.mxu0 %v8060
    %9626 = vmatpush.bf16.msra.mxu0 %v8050
    %9627 = vmatpush.bf16.msra.mxu0 %v8040
    %9628 = vmatpush.bf16.msra.mxu0 %v8030
    %9629 = vmatpush.bf16.msra.mxu0 %v8020
    %9630 = vmatpush.bf16.msra.mxu0 %v8010
    %9631 = vmatmul.bf16.gmra.mxu0 %v4339
    %v9632 = vpop.f32.mrf.mxu0
    %v9633 = vadd.f32 %v9620, %v9632
    %v9634 = vpop.f32.mrf.mxu0
    %9635 = vdwg.mxu0
    %9636 = vmatpush.bf16.msra.mxu0 0
    %9637 = vmatpush.bf16.msra.mxu0 0
    %9638 = vmatpush.bf16.msra.mxu0 0
    %9639 = vmatpush.bf16.msra.mxu0 0
    %9640 = vmatpush.bf16.msra.mxu0 0
    %9641 = vmatpush.bf16.msra.mxu0 %v8110
    %9642 = vmatpush.bf16.msra.mxu0 %v8100
    %9643 = vmatpush.bf16.msra.mxu0 %v8090
    %9644 = vmatmul.bf16.gmra.mxu0 %v8867
    %v9645 = vpop.f32.mrf.mxu0
    %v9646 = vadd.f32 %v9633, %v9645
    %v9647 = vpop.f32.mrf.mxu0
    %9648 = vdwg.mxu0
    %9649 = vmatpush.bf16.msra.mxu0 %v7441
    %9650 = vmatpush.bf16.msra.mxu0 %v7431
    %9651 = vmatpush.bf16.msra.mxu0 %v7421
    %9652 = vmatpush.bf16.msra.mxu0 %v7411
    %9653 = vmatpush.bf16.msra.mxu0 %v7401
    %9654 = vmatpush.bf16.msra.mxu0 %v7391
    %9655 = vmatpush.bf16.msra.mxu0 %v7381
    %9656 = vmatpush.bf16.msra.mxu0 %v7371
    %9657 = vmatmul.bf16.gmra.mxu0 %v4331
    %v9658 = vpop.f32.mrf.mxu0
    %v9659 = vadd.f32 %v5101, %v9658
    %v9660 = vpop.f32.mrf.mxu0
    %9661 = vdwg.mxu0
    %9662 = vmatpush.bf16.msra.mxu0 %v7521
    %9663 = vmatpush.bf16.msra.mxu0 %v7511
    %9664 = vmatpush.bf16.msra.mxu0 %v7501
    %9665 = vmatpush.bf16.msra.mxu0 %v7491
    %9666 = vmatpush.bf16.msra.mxu0 %v7481
    %9667 = vmatpush.bf16.msra.mxu0 %v7471
    %9668 = vmatpush.bf16.msra.mxu0 %v7461
    %9669 = vmatpush.bf16.msra.mxu0 %v7451
    %9670 = vmatmul.bf16.gmra.mxu0 %v4332
    %v9671 = vpop.f32.mrf.mxu0
    %v9672 = vadd.f32 %v9659, %v9671
    %v9673 = vpop.f32.mrf.mxu0
    %9674 = vdwg.mxu0
    %9675 = vmatpush.bf16.msra.mxu0 %v7601
    %9676 = vmatpush.bf16.msra.mxu0 %v7591
    %9677 = vmatpush.bf16.msra.mxu0 %v7581
    %9678 = vmatpush.bf16.msra.mxu0 %v7571
    %9679 = vmatpush.bf16.msra.mxu0 %v7561
    %9680 = vmatpush.bf16.msra.mxu0 %v7551
    %9681 = vmatpush.bf16.msra.mxu0 %v7541
    %9682 = vmatpush.bf16.msra.mxu0 %v7531
    %9683 = vmatmul.bf16.gmra.mxu0 %v4333
    %v9684 = vpop.f32.mrf.mxu0
    %v9685 = vadd.f32 %v9672, %v9684
    %v9686 = vpop.f32.mrf.mxu0
    %9687 = vdwg.mxu0
    %9688 = vmatpush.bf16.msra.mxu0 %v7681
    %9689 = vmatpush.bf16.msra.mxu0 %v7671
    %9690 = vmatpush.bf16.msra.mxu0 %v7661
    %9691 = vmatpush.bf16.msra.mxu0 %v7651
    %9692 = vmatpush.bf16.msra.mxu0 %v7641
    %9693 = vmatpush.bf16.msra.mxu0 %v7631
    %9694 = vmatpush.bf16.msra.mxu0 %v7621
    %9695 = vmatpush.bf16.msra.mxu0 %v7611
    %9696 = vmatmul.bf16.gmra.mxu0 %v4334
    %v9697 = vpop.f32.mrf.mxu0
    %v9698 = vadd.f32 %v9685, %v9697
    %v9699 = vpop.f32.mrf.mxu0
    %9700 = vdwg.mxu0
    %9701 = vmatpush.bf16.msra.mxu0 %v7761
    %9702 = vmatpush.bf16.msra.mxu0 %v7751
    %9703 = vmatpush.bf16.msra.mxu0 %v7741
    %9704 = vmatpush.bf16.msra.mxu0 %v7731
    %9705 = vmatpush.bf16.msra.mxu0 %v7721
    %9706 = vmatpush.bf16.msra.mxu0 %v7711
    %9707 = vmatpush.bf16.msra.mxu0 %v7701
    %9708 = vmatpush.bf16.msra.mxu0 %v7691
    %9709 = vmatmul.bf16.gmra.mxu0 %v4335
    %v9710 = vpop.f32.mrf.mxu0
    %v9711 = vadd.f32 %v9698, %v9710
    %v9712 = vpop.f32.mrf.mxu0
    %9713 = vdwg.mxu0
    %9714 = vmatpush.bf16.msra.mxu0 %v7841
    %9715 = vmatpush.bf16.msra.mxu0 %v7831
    %9716 = vmatpush.bf16.msra.mxu0 %v7821
    %9717 = vmatpush.bf16.msra.mxu0 %v7811
    %9718 = vmatpush.bf16.msra.mxu0 %v7801
    %9719 = vmatpush.bf16.msra.mxu0 %v7791
    %9720 = vmatpush.bf16.msra.mxu0 %v7781
    %9721 = vmatpush.bf16.msra.mxu0 %v7771
    %9722 = vmatmul.bf16.gmra.mxu0 %v4336
    %v9723 = vpop.f32.mrf.mxu0
    %v9724 = vadd.f32 %v9711, %v9723
    %v9725 = vpop.f32.mrf.mxu0
    %9726 = vdwg.mxu0
    %9727 = vmatpush.bf16.msra.mxu0 %v7921
    %9728 = vmatpush.bf16.msra.mxu0 %v7911
    %9729 = vmatpush.bf16.msra.mxu0 %v7901
    %9730 = vmatpush.bf16.msra.mxu0 %v7891
    %9731 = vmatpush.bf16.msra.mxu0 %v7881
    %9732 = vmatpush.bf16.msra.mxu0 %v7871
    %9733 = vmatpush.bf16.msra.mxu0 %v7861
    %9734 = vmatpush.bf16.msra.mxu0 %v7851
    %9735 = vmatmul.bf16.gmra.mxu0 %v4337
    %v9736 = vpop.f32.mrf.mxu0
    %v9737 = vadd.f32 %v9724, %v9736
    %v9738 = vpop.f32.mrf.mxu0
    %9739 = vdwg.mxu0
    %9740 = vmatpush.bf16.msra.mxu0 %v8001
    %9741 = vmatpush.bf16.msra.mxu0 %v7991
    %9742 = vmatpush.bf16.msra.mxu0 %v7981
    %9743 = vmatpush.bf16.msra.mxu0 %v7971
    %9744 = vmatpush.bf16.msra.mxu0 %v7961
    %9745 = vmatpush.bf16.msra.mxu0 %v7951
    %9746 = vmatpush.bf16.msra.mxu0 %v7941
    %9747 = vmatpush.bf16.msra.mxu0 %v7931
    %9748 = vmatmul.bf16.gmra.mxu0 %v4338
    %v9749 = vpop.f32.mrf.mxu0
    %v9750 = vadd.f32 %v9737, %v9749
    %v9751 = vpop.f32.mrf.mxu0
    %9752 = vdwg.mxu0
    %9753 = vmatpush.bf16.msra.mxu0 %v8081
    %9754 = vmatpush.bf16.msra.mxu0 %v8071
    %9755 = vmatpush.bf16.msra.mxu0 %v8061
    %9756 = vmatpush.bf16.msra.mxu0 %v8051
    %9757 = vmatpush.bf16.msra.mxu0 %v8041
    %9758 = vmatpush.bf16.msra.mxu0 %v8031
    %9759 = vmatpush.bf16.msra.mxu0 %v8021
    %9760 = vmatpush.bf16.msra.mxu0 %v8011
    %9761 = vmatmul.bf16.gmra.mxu0 %v4339
    %v9762 = vpop.f32.mrf.mxu0
    %v9763 = vadd.f32 %v9750, %v9762
    %v9764 = vpop.f32.mrf.mxu0
    %9765 = vdwg.mxu0
    %9766 = vmatpush.bf16.msra.mxu0 0
    %9767 = vmatpush.bf16.msra.mxu0 0
    %9768 = vmatpush.bf16.msra.mxu0 0
    %9769 = vmatpush.bf16.msra.mxu0 0
    %9770 = vmatpush.bf16.msra.mxu0 0
    %9771 = vmatpush.bf16.msra.mxu0 %v8111
    %9772 = vmatpush.bf16.msra.mxu0 %v8101
    %9773 = vmatpush.bf16.msra.mxu0 %v8091
    %9774 = vmatmul.bf16.gmra.mxu0 %v8867
    %v9775 = vpop.f32.mrf.mxu0
    %v9776 = vadd.f32 %v9763, %v9775
    %v9777 = vpop.f32.mrf.mxu0
    %9778 = vdwg.mxu0
    %9779 = vmatpush.bf16.msra.mxu0 %v7442
    %9780 = vmatpush.bf16.msra.mxu0 %v7432
    %9781 = vmatpush.bf16.msra.mxu0 %v7422
    %9782 = vmatpush.bf16.msra.mxu0 %v7412
    %9783 = vmatpush.bf16.msra.mxu0 %v7402
    %9784 = vmatpush.bf16.msra.mxu0 %v7392
    %9785 = vmatpush.bf16.msra.mxu0 %v7382
    %9786 = vmatpush.bf16.msra.mxu0 %v7372
    %9787 = vmatmul.bf16.gmra.mxu0 %v4331
    %v9788 = vpop.f32.mrf.mxu0
    %v9789 = vadd.f32 %v5102, %v9788
    %v9790 = vpop.f32.mrf.mxu0
    %9791 = vdwg.mxu0
    %9792 = vmatpush.bf16.msra.mxu0 %v7522
    %9793 = vmatpush.bf16.msra.mxu0 %v7512
    %9794 = vmatpush.bf16.msra.mxu0 %v7502
    %9795 = vmatpush.bf16.msra.mxu0 %v7492
    %9796 = vmatpush.bf16.msra.mxu0 %v7482
    %9797 = vmatpush.bf16.msra.mxu0 %v7472
    %9798 = vmatpush.bf16.msra.mxu0 %v7462
    %9799 = vmatpush.bf16.msra.mxu0 %v7452
    %9800 = vmatmul.bf16.gmra.mxu0 %v4332
    %v9801 = vpop.f32.mrf.mxu0
    %v9802 = vadd.f32 %v9789, %v9801
    %v9803 = vpop.f32.mrf.mxu0
    %9804 = vdwg.mxu0
    %9805 = vmatpush.bf16.msra.mxu0 %v7602
    %9806 = vmatpush.bf16.msra.mxu0 %v7592
    %9807 = vmatpush.bf16.msra.mxu0 %v7582
    %9808 = vmatpush.bf16.msra.mxu0 %v7572
    %9809 = vmatpush.bf16.msra.mxu0 %v7562
    %9810 = vmatpush.bf16.msra.mxu0 %v7552
    %9811 = vmatpush.bf16.msra.mxu0 %v7542
    %9812 = vmatpush.bf16.msra.mxu0 %v7532
    %9813 = vmatmul.bf16.gmra.mxu0 %v4333
    %v9814 = vpop.f32.mrf.mxu0
    %v9815 = vadd.f32 %v9802, %v9814
    %v9816 = vpop.f32.mrf.mxu0
    %9817 = vdwg.mxu0
    %9818 = vmatpush.bf16.msra.mxu0 %v7682
    %9819 = vmatpush.bf16.msra.mxu0 %v7672
    %9820 = vmatpush.bf16.msra.mxu0 %v7662
    %9821 = vmatpush.bf16.msra.mxu0 %v7652
    %9822 = vmatpush.bf16.msra.mxu0 %v7642
    %9823 = vmatpush.bf16.msra.mxu0 %v7632
    %9824 = vmatpush.bf16.msra.mxu0 %v7622
    %9825 = vmatpush.bf16.msra.mxu0 %v7612
    %9826 = vmatmul.bf16.gmra.mxu0 %v4334
    %v9827 = vpop.f32.mrf.mxu0
    %v9828 = vadd.f32 %v9815, %v9827
    %v9829 = vpop.f32.mrf.mxu0
    %9830 = vdwg.mxu0
    %9831 = vmatpush.bf16.msra.mxu0 %v7762
    %9832 = vmatpush.bf16.msra.mxu0 %v7752
    %9833 = vmatpush.bf16.msra.mxu0 %v7742
    %9834 = vmatpush.bf16.msra.mxu0 %v7732
    %9835 = vmatpush.bf16.msra.mxu0 %v7722
    %9836 = vmatpush.bf16.msra.mxu0 %v7712
    %9837 = vmatpush.bf16.msra.mxu0 %v7702
    %9838 = vmatpush.bf16.msra.mxu0 %v7692
    %9839 = vmatmul.bf16.gmra.mxu0 %v4335
    %v9840 = vpop.f32.mrf.mxu0
    %v9841 = vadd.f32 %v9828, %v9840
    %v9842 = vpop.f32.mrf.mxu0
    %9843 = vdwg.mxu0
    %9844 = vmatpush.bf16.msra.mxu0 %v7842
    %9845 = vmatpush.bf16.msra.mxu0 %v7832
    %9846 = vmatpush.bf16.msra.mxu0 %v7822
    %9847 = vmatpush.bf16.msra.mxu0 %v7812
    %9848 = vmatpush.bf16.msra.mxu0 %v7802
    %9849 = vmatpush.bf16.msra.mxu0 %v7792
    %9850 = vmatpush.bf16.msra.mxu0 %v7782
    %9851 = vmatpush.bf16.msra.mxu0 %v7772
    %9852 = vmatmul.bf16.gmra.mxu0 %v4336
    %v9853 = vpop.f32.mrf.mxu0
    %v9854 = vadd.f32 %v9841, %v9853
    %v9855 = vpop.f32.mrf.mxu0
    %9856 = vdwg.mxu0
    %9857 = vmatpush.bf16.msra.mxu0 %v7922
    %9858 = vmatpush.bf16.msra.mxu0 %v7912
    %9859 = vmatpush.bf16.msra.mxu0 %v7902
    %9860 = vmatpush.bf16.msra.mxu0 %v7892
    %9861 = vmatpush.bf16.msra.mxu0 %v7882
    %9862 = vmatpush.bf16.msra.mxu0 %v7872
    %9863 = vmatpush.bf16.msra.mxu0 %v7862
    %9864 = vmatpush.bf16.msra.mxu0 %v7852
    %9865 = vmatmul.bf16.gmra.mxu0 %v4337
    %v9866 = vpop.f32.mrf.mxu0
    %v9867 = vadd.f32 %v9854, %v9866
    %v9868 = vpop.f32.mrf.mxu0
    %9869 = vdwg.mxu0
    %9870 = vmatpush.bf16.msra.mxu0 %v8002
    %9871 = vmatpush.bf16.msra.mxu0 %v7992
    %9872 = vmatpush.bf16.msra.mxu0 %v7982
    %9873 = vmatpush.bf16.msra.mxu0 %v7972
    %9874 = vmatpush.bf16.msra.mxu0 %v7962
    %9875 = vmatpush.bf16.msra.mxu0 %v7952
    %9876 = vmatpush.bf16.msra.mxu0 %v7942
    %9877 = vmatpush.bf16.msra.mxu0 %v7932
    %9878 = vmatmul.bf16.gmra.mxu0 %v4338
    %v9879 = vpop.f32.mrf.mxu0
    %v9880 = vadd.f32 %v9867, %v9879
    %v9881 = vpop.f32.mrf.mxu0
    %9882 = vdwg.mxu0
    %9883 = vmatpush.bf16.msra.mxu0 %v8082
    %9884 = vmatpush.bf16.msra.mxu0 %v8072
    %9885 = vmatpush.bf16.msra.mxu0 %v8062
    %9886 = vmatpush.bf16.msra.mxu0 %v8052
    %9887 = vmatpush.bf16.msra.mxu0 %v8042
    %9888 = vmatpush.bf16.msra.mxu0 %v8032
    %9889 = vmatpush.bf16.msra.mxu0 %v8022
    %9890 = vmatpush.bf16.msra.mxu0 %v8012
    %9891 = vmatmul.bf16.gmra.mxu0 %v4339
    %v9892 = vpop.f32.mrf.mxu0
    %v9893 = vadd.f32 %v9880, %v9892
    %v9894 = vpop.f32.mrf.mxu0
    %9895 = vdwg.mxu0
    %9896 = vmatpush.bf16.msra.mxu0 0
    %9897 = vmatpush.bf16.msra.mxu0 0
    %9898 = vmatpush.bf16.msra.mxu0 0
    %9899 = vmatpush.bf16.msra.mxu0 0
    %9900 = vmatpush.bf16.msra.mxu0 0
    %9901 = vmatpush.bf16.msra.mxu0 %v8112
    %9902 = vmatpush.bf16.msra.mxu0 %v8102
    %9903 = vmatpush.bf16.msra.mxu0 %v8092
    %9904 = vmatmul.bf16.gmra.mxu0 %v8867
    %v9905 = vpop.f32.mrf.mxu0
    %v9906 = vadd.f32 %v9893, %v9905
    %v9907 = vpop.f32.mrf.mxu0
    %9908 = vdwg.mxu0
    %9909 = vmatpush.bf16.msra.mxu0 %v7443
    %9910 = vmatpush.bf16.msra.mxu0 %v7433
    %9911 = vmatpush.bf16.msra.mxu0 %v7423
    %9912 = vmatpush.bf16.msra.mxu0 %v7413
    %9913 = vmatpush.bf16.msra.mxu0 %v7403
    %9914 = vmatpush.bf16.msra.mxu0 %v7393
    %9915 = vmatpush.bf16.msra.mxu0 %v7383
    %9916 = vmatpush.bf16.msra.mxu0 %v7373
    %9917 = vmatmul.bf16.gmra.mxu0 %v4331
    %v9918 = vpop.f32.mrf.mxu0
    %v9919 = vadd.f32 %v5103, %v9918
    %v9920 = vpop.f32.mrf.mxu0
    %9921 = vdwg.mxu0
    %9922 = vmatpush.bf16.msra.mxu0 %v7523
    %9923 = vmatpush.bf16.msra.mxu0 %v7513
    %9924 = vmatpush.bf16.msra.mxu0 %v7503
    %9925 = vmatpush.bf16.msra.mxu0 %v7493
    %9926 = vmatpush.bf16.msra.mxu0 %v7483
    %9927 = vmatpush.bf16.msra.mxu0 %v7473
    %9928 = vmatpush.bf16.msra.mxu0 %v7463
    %9929 = vmatpush.bf16.msra.mxu0 %v7453
    %9930 = vmatmul.bf16.gmra.mxu0 %v4332
    %v9931 = vpop.f32.mrf.mxu0
    %v9932 = vadd.f32 %v9919, %v9931
    %v9933 = vpop.f32.mrf.mxu0
    %9934 = vdwg.mxu0
    %9935 = vmatpush.bf16.msra.mxu0 %v7603
    %9936 = vmatpush.bf16.msra.mxu0 %v7593
    %9937 = vmatpush.bf16.msra.mxu0 %v7583
    %9938 = vmatpush.bf16.msra.mxu0 %v7573
    %9939 = vmatpush.bf16.msra.mxu0 %v7563
    %9940 = vmatpush.bf16.msra.mxu0 %v7553
    %9941 = vmatpush.bf16.msra.mxu0 %v7543
    %9942 = vmatpush.bf16.msra.mxu0 %v7533
    %9943 = vmatmul.bf16.gmra.mxu0 %v4333
    %v9944 = vpop.f32.mrf.mxu0
    %v9945 = vadd.f32 %v9932, %v9944
    %v9946 = vpop.f32.mrf.mxu0
    %9947 = vdwg.mxu0
    %9948 = vmatpush.bf16.msra.mxu0 %v7683
    %9949 = vmatpush.bf16.msra.mxu0 %v7673
    %9950 = vmatpush.bf16.msra.mxu0 %v7663
    %9951 = vmatpush.bf16.msra.mxu0 %v7653
    %9952 = vmatpush.bf16.msra.mxu0 %v7643
    %9953 = vmatpush.bf16.msra.mxu0 %v7633
    %9954 = vmatpush.bf16.msra.mxu0 %v7623
    %9955 = vmatpush.bf16.msra.mxu0 %v7613
    %9956 = vmatmul.bf16.gmra.mxu0 %v4334
    %v9957 = vpop.f32.mrf.mxu0
    %v9958 = vadd.f32 %v9945, %v9957
    %v9959 = vpop.f32.mrf.mxu0
    %9960 = vdwg.mxu0
    %9961 = vmatpush.bf16.msra.mxu0 %v7763
    %9962 = vmatpush.bf16.msra.mxu0 %v7753
    %9963 = vmatpush.bf16.msra.mxu0 %v7743
    %9964 = vmatpush.bf16.msra.mxu0 %v7733
    %9965 = vmatpush.bf16.msra.mxu0 %v7723
    %9966 = vmatpush.bf16.msra.mxu0 %v7713
    %9967 = vmatpush.bf16.msra.mxu0 %v7703
    %9968 = vmatpush.bf16.msra.mxu0 %v7693
    %9969 = vmatmul.bf16.gmra.mxu0 %v4335
    %v9970 = vpop.f32.mrf.mxu0
    %v9971 = vadd.f32 %v9958, %v9970
    %v9972 = vpop.f32.mrf.mxu0
    %9973 = vdwg.mxu0
    %9974 = vmatpush.bf16.msra.mxu0 %v7843
    %9975 = vmatpush.bf16.msra.mxu0 %v7833
    %9976 = vmatpush.bf16.msra.mxu0 %v7823
    %9977 = vmatpush.bf16.msra.mxu0 %v7813
    %9978 = vmatpush.bf16.msra.mxu0 %v7803
    %9979 = vmatpush.bf16.msra.mxu0 %v7793
    %9980 = vmatpush.bf16.msra.mxu0 %v7783
    %9981 = vmatpush.bf16.msra.mxu0 %v7773
    %9982 = vmatmul.bf16.gmra.mxu0 %v4336
    %v9983 = vpop.f32.mrf.mxu0
    %v9984 = vadd.f32 %v9971, %v9983
    %v9985 = vpop.f32.mrf.mxu0
    %9986 = vdwg.mxu0
    %9987 = vmatpush.bf16.msra.mxu0 %v7923
    %9988 = vmatpush.bf16.msra.mxu0 %v7913
    %9989 = vmatpush.bf16.msra.mxu0 %v7903
    %9990 = vmatpush.bf16.msra.mxu0 %v7893
    %9991 = vmatpush.bf16.msra.mxu0 %v7883
    %9992 = vmatpush.bf16.msra.mxu0 %v7873
    %9993 = vmatpush.bf16.msra.mxu0 %v7863
    %9994 = vmatpush.bf16.msra.mxu0 %v7853
    %9995 = vmatmul.bf16.gmra.mxu0 %v4337
    %v9996 = vpop.f32.mrf.mxu0
    %v9997 = vadd.f32 %v9984, %v9996
    %v9998 = vpop.f32.mrf.mxu0
    %9999 = vdwg.mxu0
    %10000 = vmatpush.bf16.msra.mxu0 %v8003
    %10001 = vmatpush.bf16.msra.mxu0 %v7993
    %10002 = vmatpush.bf16.msra.mxu0 %v7983
    %10003 = vmatpush.bf16.msra.mxu0 %v7973
    %10004 = vmatpush.bf16.msra.mxu0 %v7963
    %10005 = vmatpush.bf16.msra.mxu0 %v7953
    %10006 = vmatpush.bf16.msra.mxu0 %v7943
    %10007 = vmatpush.bf16.msra.mxu0 %v7933
    %10008 = vmatmul.bf16.gmra.mxu0 %v4338
    %v10009 = vpop.f32.mrf.mxu0
    %v10010 = vadd.f32 %v9997, %v10009
    %v10011 = vpop.f32.mrf.mxu0
    %10012 = vdwg.mxu0
    %10013 = vmatpush.bf16.msra.mxu0 %v8083
    %10014 = vmatpush.bf16.msra.mxu0 %v8073
    %10015 = vmatpush.bf16.msra.mxu0 %v8063
    %10016 = vmatpush.bf16.msra.mxu0 %v8053
    %10017 = vmatpush.bf16.msra.mxu0 %v8043
    %10018 = vmatpush.bf16.msra.mxu0 %v8033
    %10019 = vmatpush.bf16.msra.mxu0 %v8023
    %10020 = vmatpush.bf16.msra.mxu0 %v8013
    %10021 = vmatmul.bf16.gmra.mxu0 %v4339
    %v10022 = vpop.f32.mrf.mxu0
    %v10023 = vadd.f32 %v10010, %v10022
    %v10024 = vpop.f32.mrf.mxu0
    %10025 = vdwg.mxu0
    %10026 = vmatpush.bf16.msra.mxu0 0
    %10027 = vmatpush.bf16.msra.mxu0 0
    %10028 = vmatpush.bf16.msra.mxu0 0
    %10029 = vmatpush.bf16.msra.mxu0 0
    %10030 = vmatpush.bf16.msra.mxu0 0
    %10031 = vmatpush.bf16.msra.mxu0 %v8113
    %10032 = vmatpush.bf16.msra.mxu0 %v8103
    %10033 = vmatpush.bf16.msra.mxu0 %v8093
    %10034 = vmatmul.bf16.gmra.mxu0 %v8867
    %v10035 = vpop.f32.mrf.mxu0
    %v10036 = vadd.f32 %v10023, %v10035
    %v10037 = vpop.f32.mrf.mxu0
    %10038 = vdwg.mxu0
    %10039 = vmatpush.bf16.msra.mxu0 %v7444
    %10040 = vmatpush.bf16.msra.mxu0 %v7434
    %10041 = vmatpush.bf16.msra.mxu0 %v7424
    %10042 = vmatpush.bf16.msra.mxu0 %v7414
    %10043 = vmatpush.bf16.msra.mxu0 %v7404
    %10044 = vmatpush.bf16.msra.mxu0 %v7394
    %10045 = vmatpush.bf16.msra.mxu0 %v7384
    %10046 = vmatpush.bf16.msra.mxu0 %v7374
    %10047 = vmatmul.bf16.gmra.mxu0 %v4331
    %v10048 = vpop.f32.mrf.mxu0
    %v10049 = vadd.f32 %v5104, %v10048
    %v10050 = vpop.f32.mrf.mxu0
    %10051 = vdwg.mxu0
    %10052 = vmatpush.bf16.msra.mxu0 %v7524
    %10053 = vmatpush.bf16.msra.mxu0 %v7514
    %10054 = vmatpush.bf16.msra.mxu0 %v7504
    %10055 = vmatpush.bf16.msra.mxu0 %v7494
    %10056 = vmatpush.bf16.msra.mxu0 %v7484
    %10057 = vmatpush.bf16.msra.mxu0 %v7474
    %10058 = vmatpush.bf16.msra.mxu0 %v7464
    %10059 = vmatpush.bf16.msra.mxu0 %v7454
    %10060 = vmatmul.bf16.gmra.mxu0 %v4332
    %v10061 = vpop.f32.mrf.mxu0
    %v10062 = vadd.f32 %v10049, %v10061
    %v10063 = vpop.f32.mrf.mxu0
    %10064 = vdwg.mxu0
    %10065 = vmatpush.bf16.msra.mxu0 %v7604
    %10066 = vmatpush.bf16.msra.mxu0 %v7594
    %10067 = vmatpush.bf16.msra.mxu0 %v7584
    %10068 = vmatpush.bf16.msra.mxu0 %v7574
    %10069 = vmatpush.bf16.msra.mxu0 %v7564
    %10070 = vmatpush.bf16.msra.mxu0 %v7554
    %10071 = vmatpush.bf16.msra.mxu0 %v7544
    %10072 = vmatpush.bf16.msra.mxu0 %v7534
    %10073 = vmatmul.bf16.gmra.mxu0 %v4333
    %v10074 = vpop.f32.mrf.mxu0
    %v10075 = vadd.f32 %v10062, %v10074
    %v10076 = vpop.f32.mrf.mxu0
    %10077 = vdwg.mxu0
    %10078 = vmatpush.bf16.msra.mxu0 %v7684
    %10079 = vmatpush.bf16.msra.mxu0 %v7674
    %10080 = vmatpush.bf16.msra.mxu0 %v7664
    %10081 = vmatpush.bf16.msra.mxu0 %v7654
    %10082 = vmatpush.bf16.msra.mxu0 %v7644
    %10083 = vmatpush.bf16.msra.mxu0 %v7634
    %10084 = vmatpush.bf16.msra.mxu0 %v7624
    %10085 = vmatpush.bf16.msra.mxu0 %v7614
    %10086 = vmatmul.bf16.gmra.mxu0 %v4334
    %v10087 = vpop.f32.mrf.mxu0
    %v10088 = vadd.f32 %v10075, %v10087
    %v10089 = vpop.f32.mrf.mxu0
    %10090 = vdwg.mxu0
    %10091 = vmatpush.bf16.msra.mxu0 %v7764
    %10092 = vmatpush.bf16.msra.mxu0 %v7754
    %10093 = vmatpush.bf16.msra.mxu0 %v7744
    %10094 = vmatpush.bf16.msra.mxu0 %v7734
    %10095 = vmatpush.bf16.msra.mxu0 %v7724
    %10096 = vmatpush.bf16.msra.mxu0 %v7714
    %10097 = vmatpush.bf16.msra.mxu0 %v7704
    %10098 = vmatpush.bf16.msra.mxu0 %v7694
    %10099 = vmatmul.bf16.gmra.mxu0 %v4335
    %v10100 = vpop.f32.mrf.mxu0
    %v10101 = vadd.f32 %v10088, %v10100
    %v10102 = vpop.f32.mrf.mxu0
    %10103 = vdwg.mxu0
    %10104 = vmatpush.bf16.msra.mxu0 %v7844
    %10105 = vmatpush.bf16.msra.mxu0 %v7834
    %10106 = vmatpush.bf16.msra.mxu0 %v7824
    %10107 = vmatpush.bf16.msra.mxu0 %v7814
    %10108 = vmatpush.bf16.msra.mxu0 %v7804
    %10109 = vmatpush.bf16.msra.mxu0 %v7794
    %10110 = vmatpush.bf16.msra.mxu0 %v7784
    %10111 = vmatpush.bf16.msra.mxu0 %v7774
    %10112 = vmatmul.bf16.gmra.mxu0 %v4336
    %v10113 = vpop.f32.mrf.mxu0
    %v10114 = vadd.f32 %v10101, %v10113
    %v10115 = vpop.f32.mrf.mxu0
    %10116 = vdwg.mxu0
    %10117 = vmatpush.bf16.msra.mxu0 %v7924
    %10118 = vmatpush.bf16.msra.mxu0 %v7914
    %10119 = vmatpush.bf16.msra.mxu0 %v7904
    %10120 = vmatpush.bf16.msra.mxu0 %v7894
    %10121 = vmatpush.bf16.msra.mxu0 %v7884
    %10122 = vmatpush.bf16.msra.mxu0 %v7874
    %10123 = vmatpush.bf16.msra.mxu0 %v7864
    %10124 = vmatpush.bf16.msra.mxu0 %v7854
    %10125 = vmatmul.bf16.gmra.mxu0 %v4337
    %v10126 = vpop.f32.mrf.mxu0
    %v10127 = vadd.f32 %v10114, %v10126
    %v10128 = vpop.f32.mrf.mxu0
    %10129 = vdwg.mxu0
    %10130 = vmatpush.bf16.msra.mxu0 %v8004
    %10131 = vmatpush.bf16.msra.mxu0 %v7994
    %10132 = vmatpush.bf16.msra.mxu0 %v7984
    %10133 = vmatpush.bf16.msra.mxu0 %v7974
    %10134 = vmatpush.bf16.msra.mxu0 %v7964
    %10135 = vmatpush.bf16.msra.mxu0 %v7954
    %10136 = vmatpush.bf16.msra.mxu0 %v7944
    %10137 = vmatpush.bf16.msra.mxu0 %v7934
    %10138 = vmatmul.bf16.gmra.mxu0 %v4338
    %v10139 = vpop.f32.mrf.mxu0
    %v10140 = vadd.f32 %v10127, %v10139
    %v10141 = vpop.f32.mrf.mxu0
    %10142 = vdwg.mxu0
    %10143 = vmatpush.bf16.msra.mxu0 %v8084
    %10144 = vmatpush.bf16.msra.mxu0 %v8074
    %10145 = vmatpush.bf16.msra.mxu0 %v8064
    %10146 = vmatpush.bf16.msra.mxu0 %v8054
    %10147 = vmatpush.bf16.msra.mxu0 %v8044
    %10148 = vmatpush.bf16.msra.mxu0 %v8034
    %10149 = vmatpush.bf16.msra.mxu0 %v8024
    %10150 = vmatpush.bf16.msra.mxu0 %v8014
    %10151 = vmatmul.bf16.gmra.mxu0 %v4339
    %v10152 = vpop.f32.mrf.mxu0
    %v10153 = vadd.f32 %v10140, %v10152
    %v10154 = vpop.f32.mrf.mxu0
    %10155 = vdwg.mxu0
    %10156 = vmatpush.bf16.msra.mxu0 0
    %10157 = vmatpush.bf16.msra.mxu0 0
    %10158 = vmatpush.bf16.msra.mxu0 0
    %10159 = vmatpush.bf16.msra.mxu0 0
    %10160 = vmatpush.bf16.msra.mxu0 0
    %10161 = vmatpush.bf16.msra.mxu0 %v8114
    %10162 = vmatpush.bf16.msra.mxu0 %v8104
    %10163 = vmatpush.bf16.msra.mxu0 %v8094
    %10164 = vmatmul.bf16.gmra.mxu0 %v8867
    %v10165 = vpop.f32.mrf.mxu0
    %v10166 = vadd.f32 %v10153, %v10165
    %v10167 = vpop.f32.mrf.mxu0
    %10168 = vdwg.mxu0
    %v10169 = vmax.f32 %v8996, 0.0
    %v10170 = vmax.f32 %v9126, 0.0
    %v10171 = vmax.f32 %v9256, 0.0
    %v10172 = vmax.f32 %v9386, 0.0
    %v10173 = vmax.f32 %v9516, 0.0
    %v10174 = vmax.f32 %v9646, 0.0
    %v10175 = vmax.f32 %v9776, 0.0
    %v10176 = vmax.f32 %v9906, 0.0
    %v10177 = vmax.f32 %v10036, 0.0
    %v10178 = vmax.f32 %v10166, 0.0
    %s10179 = sxor.u32 %s135, 858993459
    %v10180 = vstv %s10179
    %v10181 = vxor.u32 %v162, %v10180
    %v10182 = vxor.u32 %v163, %v10180
    %v10183 = vxor.u32 %v164, %v10180
    %v10184 = vxor.u32 %v165, %v10180
    %v10185 = vxor.u32 %v166, %v10180
    %v10186 = vxor.u32 %v167, %v10180
    %v10187 = vxor.u32 %v168, %v10180
    %v10188 = vxor.u32 %v4177, %v10180
    %v10189 = vxor.u32 %v4178, %v10180
    %v10190 = vxor.u32 %v4179, %v10180
    %v10191 = vmul.u32 %v10181, 3266489917
    %v10192 = vmul.u32 %v10182, 3266489917
    %v10193 = vmul.u32 %v10183, 3266489917
    %v10194 = vmul.u32 %v10184, 3266489917
    %v10195 = vmul.u32 %v10185, 3266489917
    %v10196 = vmul.u32 %v10186, 3266489917
    %v10197 = vmul.u32 %v10187, 3266489917
    %v10198 = vmul.u32 %v10188, 3266489917
    %v10199 = vmul.u32 %v10189, 3266489917
    %v10200 = vmul.u32 %v10190, 3266489917
    %v10201 = vshrl.u32 %v10191, 15
    %v10202 = vshrl.u32 %v10192, 15
    %v10203 = vshrl.u32 %v10193, 15
    %v10204 = vshrl.u32 %v10194, 15
    %v10205 = vshrl.u32 %v10195, 15
    %v10206 = vshrl.u32 %v10196, 15
    %v10207 = vshrl.u32 %v10197, 15
    %v10208 = vshrl.u32 %v10198, 15
    %v10209 = vshrl.u32 %v10199, 15
    %v10210 = vshrl.u32 %v10200, 15
    %v10211 = vxor.u32 %v10191, %v10201
    %v10212 = vxor.u32 %v10192, %v10202
    %v10213 = vxor.u32 %v10193, %v10203
    %v10214 = vxor.u32 %v10194, %v10204
    %v10215 = vxor.u32 %v10195, %v10205
    %v10216 = vxor.u32 %v10196, %v10206
    %v10217 = vxor.u32 %v10197, %v10207
    %v10218 = vxor.u32 %v10198, %v10208
    %v10219 = vxor.u32 %v10199, %v10209
    %v10220 = vxor.u32 %v10200, %v10210
    %v10221 = vmul.u32 %v10211, 668265263
    %v10222 = vmul.u32 %v10212, 668265263
    %v10223 = vmul.u32 %v10213, 668265263
    %v10224 = vmul.u32 %v10214, 668265263
    %v10225 = vmul.u32 %v10215, 668265263
    %v10226 = vmul.u32 %v10216, 668265263
    %v10227 = vmul.u32 %v10217, 668265263
    %v10228 = vmul.u32 %v10218, 668265263
    %v10229 = vmul.u32 %v10219, 668265263
    %v10230 = vmul.u32 %v10220, 668265263
    %v10231 = vshrl.u32 %v10221, 13
    %v10232 = vshrl.u32 %v10222, 13
    %v10233 = vshrl.u32 %v10223, 13
    %v10234 = vshrl.u32 %v10224, 13
    %v10235 = vshrl.u32 %v10225, 13
    %v10236 = vshrl.u32 %v10226, 13
    %v10237 = vshrl.u32 %v10227, 13
    %v10238 = vshrl.u32 %v10228, 13
    %v10239 = vshrl.u32 %v10229, 13
    %v10240 = vshrl.u32 %v10230, 13
    %v10241 = vxor.u32 %v10221, %v10231
    %v10242 = vxor.u32 %v10222, %v10232
    %v10243 = vxor.u32 %v10223, %v10233
    %v10244 = vxor.u32 %v10224, %v10234
    %v10245 = vxor.u32 %v10225, %v10235
    %v10246 = vxor.u32 %v10226, %v10236
    %v10247 = vxor.u32 %v10227, %v10237
    %v10248 = vxor.u32 %v10228, %v10238
    %v10249 = vxor.u32 %v10229, %v10239
    %v10250 = vxor.u32 %v10230, %v10240
    %v10251 = vmul.u32 %v10241, 374761393
    %v10252 = vmul.u32 %v10242, 374761393
    %v10253 = vmul.u32 %v10243, 374761393
    %v10254 = vmul.u32 %v10244, 374761393
    %v10255 = vmul.u32 %v10245, 374761393
    %v10256 = vmul.u32 %v10246, 374761393
    %v10257 = vmul.u32 %v10247, 374761393
    %v10258 = vmul.u32 %v10248, 374761393
    %v10259 = vmul.u32 %v10249, 374761393
    %v10260 = vmul.u32 %v10250, 374761393
    %v10261 = vshrl.u32 %v10251, 16
    %v10262 = vshrl.u32 %v10252, 16
    %v10263 = vshrl.u32 %v10253, 16
    %v10264 = vshrl.u32 %v10254, 16
    %v10265 = vshrl.u32 %v10255, 16
    %v10266 = vshrl.u32 %v10256, 16
    %v10267 = vshrl.u32 %v10257, 16
    %v10268 = vshrl.u32 %v10258, 16
    %v10269 = vshrl.u32 %v10259, 16
    %v10270 = vshrl.u32 %v10260, 16
    %v10271 = vxor.u32 %v10251, %v10261
    %v10272 = vxor.u32 %v10252, %v10262
    %v10273 = vxor.u32 %v10253, %v10263
    %v10274 = vxor.u32 %v10254, %v10264
    %v10275 = vxor.u32 %v10255, %v10265
    %v10276 = vxor.u32 %v10256, %v10266
    %v10277 = vxor.u32 %v10257, %v10267
    %v10278 = vxor.u32 %v10258, %v10268
    %v10279 = vxor.u32 %v10259, %v10269
    %v10280 = vxor.u32 %v10260, %v10270
    %v10281 = vadd.s32 %v10271, 2147483648
    %vm10283 = vcmp.ge.s32.totalorder %v10281, 0
    %v10284 = vadd.s32 %v10272, 2147483648
    %vm10286 = vcmp.ge.s32.totalorder %v10284, 0
    %v10287 = vadd.s32 %v10273, 2147483648
    %vm10289 = vcmp.ge.s32.totalorder %v10287, 0
    %v10290 = vadd.s32 %v10274, 2147483648
    %vm10292 = vcmp.ge.s32.totalorder %v10290, 0
    %v10293 = vadd.s32 %v10275, 2147483648
    %vm10295 = vcmp.ge.s32.totalorder %v10293, 0
    %v10296 = vadd.s32 %v10276, 2147483648
    %vm10298 = vcmp.ge.s32.totalorder %v10296, 0
    %v10299 = vadd.s32 %v10277, 2147483648
    %vm10301 = vcmp.ge.s32.totalorder %v10299, 0
    %v10302 = vadd.s32 %v10278, 2147483648
    %vm10304 = vcmp.ge.s32.totalorder %v10302, 0
    %v10305 = vadd.s32 %v10279, 2147483648
    %vm10307 = vcmp.ge.s32.totalorder %v10305, 0
    %v10308 = vadd.s32 %v10280, 2147483648
    %vm10310 = vcmp.ge.s32.totalorder %v10308, 0
    %v10311 = vmul.f32 %v10169, 2.0
    %v10312 = vmul.f32 %v10170, 2.0
    %v10313 = vmul.f32 %v10171, 2.0
    %v10314 = vmul.f32 %v10172, 2.0
    %v10315 = vmul.f32 %v10173, 2.0
    %v10316 = vmul.f32 %v10174, 2.0
    %v10317 = vmul.f32 %v10175, 2.0
    %v10318 = vmul.f32 %v10176, 2.0
    %v10319 = vmul.f32 %v10177, 2.0
    %v10320 = vmul.f32 %v10178, 2.0
    %v10321 = vsel %vm10283, %v10311, 0.0
    %v10322 = vsel %vm10286, %v10312, 0.0
    %v10323 = vsel %vm10289, %v10313, 0.0
    %v10324 = vsel %vm10292, %v10314, 0.0
    %v10325 = vsel %vm10295, %v10315, 0.0
    %v10326 = vsel %vm10298, %v10316, 0.0
    %v10327 = vsel %vm10301, %v10317, 0.0
    %v10328 = vsel %vm10304, %v10318, 0.0
    %v10329 = vsel %vm10307, %v10319, 0.0
    %v10330 = vsel %vm10310, %v10320, 0.0
    %v10331 = vpack.c.bf16 %v10321, %v10321
    %v10332 = vpack.c.bf16 %v10322, %v10322
    %v10333 = vpack.c.bf16 %v10323, %v10323
    %v10334 = vpack.c.bf16 %v10324, %v10324
    %v10335 = vpack.c.bf16 %v10325, %v10325
    %v10336 = vpack.c.bf16 %v10326, %v10326
    %v10337 = vpack.c.bf16 %v10327, %v10327
    %v10338 = vpack.c.bf16 %v10328, %v10328
    %v10339 = vpack.c.bf16 %v10329, %v10329
    %v10340 = vpack.c.bf16 %v10330, %v10330
    %v10341 = vld [vmem:[#allocation12] sm:$0xf]
    %v10342 = vld [vmem:[#allocation12 + $0x4] sm:$0xf]
    %v10343 = vld [vmem:[#allocation12 + $0x8] sm:$0xf]
    %v10344 = vld [vmem:[#allocation12 + $0xc] sm:$0xf]
    %v10345 = vld [vmem:[#allocation12 + $0x10] sm:$0xf]
    %v10346 = vld [vmem:[#allocation12 + $0x14] sm:$0xf]
    %v10347 = vld [vmem:[#allocation12 + $0x18] sm:$0xf]
    %v10348 = vld [vmem:[#allocation12 + $0x1c] sm:$0xf]
    %v10349 = vld [vmem:[#allocation12 + $0x20] sm:$0xf]
    %v10350 = vld [vmem:[#allocation12 + $0x24] sm:$0xf]
    %v10351 = vld [vmem:[#allocation12 + $0x28] sm:$0xf]
    %v10352 = vld [vmem:[#allocation12 + $0x2c] sm:$0xf]
    %v10353 = vld [vmem:[#allocation12 + $0x30] sm:$0xf]
    %v10354 = vld [vmem:[#allocation12 + $0x34] sm:$0xf]
    %v10355 = vld [vmem:[#allocation12 + $0x38] sm:$0xf]
    %v10356 = vld [vmem:[#allocation12 + $0x3c] sm:$0xf]
    %v10357 = vld [vmem:[#allocation12 + $0x40] sm:$0xf]
    %v10358 = vld [vmem:[#allocation12 + $0x44] sm:$0xf]
    %v10359 = vld [vmem:[#allocation12 + $0x48] sm:$0xf]
    %v10360 = vld [vmem:[#allocation12 + $0x4c] sm:$0xf]
    %v10361 = vld [vmem:[#allocation12 + $0x50] sm:$0xf]
    %v10362 = vld [vmem:[#allocation12 + $0x54] sm:$0xf]
    %v10363 = vld [vmem:[#allocation12 + $0x58] sm:$0xf]
    %v10364 = vld [vmem:[#allocation12 + $0x5c] sm:$0xf]
    %v10365 = vld [vmem:[#allocation12 + $0x60] sm:$0xf]
    %v10366 = vld [vmem:[#allocation12 + $0x64] sm:$0xf]
    %v10367 = vld [vmem:[#allocation12 + $0x68] sm:$0xf]
    %v10368 = vld [vmem:[#allocation12 + $0x6c] sm:$0xf]
    %v10369 = vld [vmem:[#allocation12 + $0x70] sm:$0xf]
    %v10370 = vld [vmem:[#allocation12 + $0x74] sm:$0xf]
    %v10371 = vld [vmem:[#allocation12 + $0x78] sm:$0xf]
    %v10372 = vld [vmem:[#allocation12 + $0x7c] sm:$0xf]
    %v10373 = vld [vmem:[#allocation12 + $0x80] sm:$0xf]
    %v10374 = vld [vmem:[#allocation12 + $0x84] sm:$0xf]
    %v10375 = vld [vmem:[#allocation12 + $0x88] sm:$0xf]
    %v10376 = vld [vmem:[#allocation12 + $0x8c] sm:$0xf]
    %v10377 = vld [vmem:[#allocation12 + $0x90] sm:$0xf]
    %v10378 = vld [vmem:[#allocation12 + $0x94] sm:$0xf]
    %v10379 = vld [vmem:[#allocation12 + $0x98] sm:$0xf]
    %v10380 = vld [vmem:[#allocation12 + $0x9c] sm:$0xf]
    %v10381 = vld [vmem:[#allocation12 + $0xa0] sm:$0xf]
    %v10382 = vld [vmem:[#allocation12 + $0xa4] sm:$0xf]
    %v10383 = vld [vmem:[#allocation12 + $0xa8] sm:$0xf]
    %v10384 = vld [vmem:[#allocation12 + $0xac] sm:$0xf]
    %v10385 = vld [vmem:[#allocation12 + $0xb0] sm:$0xf]
    %v10386 = vld [vmem:[#allocation12 + $0xb4] sm:$0xf]
    %v10387 = vld [vmem:[#allocation12 + $0xb8] sm:$0xf]
    %v10388 = vld [vmem:[#allocation12 + $0xbc] sm:$0xf]
    %v10389 = vld [vmem:[#allocation12 + $0xc0] sm:$0xf]
    %v10390 = vld [vmem:[#allocation12 + $0xc4] sm:$0xf]
    %v10391 = vld [vmem:[#allocation12 + $0xc8] sm:$0xf]
    %v10392 = vld [vmem:[#allocation12 + $0xcc] sm:$0xf]
    %v10393 = vld [vmem:[#allocation12 + $0xd0] sm:$0xf]
    %v10394 = vld [vmem:[#allocation12 + $0xd4] sm:$0xf]
    %v10395 = vld [vmem:[#allocation12 + $0xd8] sm:$0xf]
    %v10396 = vld [vmem:[#allocation12 + $0xdc] sm:$0xf]
    %v10397 = vld [vmem:[#allocation12 + $0xe0] sm:$0xf]
    %v10398 = vld [vmem:[#allocation12 + $0xe4] sm:$0xf]
    %v10399 = vld [vmem:[#allocation12 + $0xe8] sm:$0xf]
    %v10400 = vld [vmem:[#allocation12 + $0xec] sm:$0xf]
    %v10401 = vld [vmem:[#allocation12 + $0xf0] sm:$0xf]
    %v10402 = vld [vmem:[#allocation12 + $0xf4] sm:$0xf]
    %v10403 = vld [vmem:[#allocation12 + $0xf8] sm:$0xf]
    %v10404 = vld [vmem:[#allocation12 + $0xfc] sm:$0xf]
    %v10405 = vld [vmem:[#allocation12 + $0x100] sm:$0xf]
    %v10406 = vld [vmem:[#allocation12 + $0x104] sm:$0xf]
    %v10407 = vld [vmem:[#allocation12 + $0x108] sm:$0xf]
    %v10408 = vld [vmem:[#allocation12 + $0x10c] sm:$0xf]
    %v10409 = vld [vmem:[#allocation12 + $0x110] sm:$0xf]
    %v10410 = vld [vmem:[#allocation12 + $0x114] sm:$0xf]
    %v10411 = vld [vmem:[#allocation12 + $0x118] sm:$0xf]
    %v10412 = vld [vmem:[#allocation12 + $0x11c] sm:$0xf]
    %v10413 = vld [vmem:[#allocation12 + $0x120] sm:$0xf]
    %v10414 = vld [vmem:[#allocation12 + $0x124] sm:$0xf]
    %v10415 = vld [vmem:[#allocation12 + $0x128] sm:$0xf]
    %v10416 = vld [vmem:[#allocation12 + $0x12c] sm:$0xf]
    %v10417 = vld [vmem:[#allocation12 + $0x130] sm:$0xf]
    %v10418 = vld [vmem:[#allocation12 + $0x134] sm:$0xf]
    %v10419 = vld [vmem:[#allocation12 + $0x138] sm:$0xf]
    %v10420 = vld [vmem:[#allocation12 + $0x13c] sm:$0xf]
    %v10421 = vld [vmem:[#allocation12 + $0x140] sm:$0xf]
    %v10422 = vld [vmem:[#allocation12 + $0x144] sm:$0xf]
    %v10423 = vld [vmem:[#allocation12 + $0x148] sm:$0xf]
    %v10424 = vld [vmem:[#allocation12 + $0x14c] sm:$0xf]
    %v10425 = vld [vmem:[#allocation12 + $0x150] sm:$0xf]
    %v10426 = vld [vmem:[#allocation12 + $0x154] sm:$0xf]
    %v10427 = vld [vmem:[#allocation12 + $0x158] sm:$0xf]
    %v10428 = vld [vmem:[#allocation12 + $0x15c] sm:$0xf]
    %v10429 = vld [vmem:[#allocation12 + $0x160] sm:$0xf]
    %v10430 = vld [vmem:[#allocation12 + $0x164] sm:$0xf]
    %v10431 = vld [vmem:[#allocation12 + $0x168] sm:$0xf]
    %v10432 = vld [vmem:[#allocation12 + $0x16c] sm:$0xf]
    %v10433 = vld [vmem:[#allocation12 + $0x170] sm:$0xf]
    %v10434 = vld [vmem:[#allocation12 + $0x174] sm:$0xf]
    %v10435 = vld [vmem:[#allocation12 + $0x178] sm:$0xf]
    %v10436 = vld [vmem:[#allocation12 + $0x17c] sm:$0xf]
    %v10437 = vld [vmem:[#allocation12 + $0x180] sm:$0xf]
    %v10438 = vld [vmem:[#allocation12 + $0x184] sm:$0xf]
    %v10439 = vld [vmem:[#allocation12 + $0x188] sm:$0xf]
    %v10440 = vld [vmem:[#allocation12 + $0x18c] sm:$0xf]
    %v10441 = vld [vmem:[#allocation12 + $0x190] sm:$0xf]
    %v10442 = vld [vmem:[#allocation12 + $0x194] sm:$0xf]
    %v10443 = vld [vmem:[#allocation12 + $0x198] sm:$0xf]
    %v10444 = vld [vmem:[#allocation12 + $0x19c] sm:$0xf]
    %v10445 = vld [vmem:[#allocation12 + $0x1a0] sm:$0xf]
    %v10446 = vld [vmem:[#allocation12 + $0x1a4] sm:$0xf]
    %v10447 = vld [vmem:[#allocation12 + $0x1a8] sm:$0xf]
    %v10448 = vld [vmem:[#allocation12 + $0x1ac] sm:$0xf]
    %v10449 = vld [vmem:[#allocation12 + $0x1b0] sm:$0xf]
    %v10450 = vld [vmem:[#allocation12 + $0x1b4] sm:$0xf]
    %v10451 = vld [vmem:[#allocation12 + $0x1b8] sm:$0xf]
    %v10452 = vld [vmem:[#allocation12 + $0x1bc] sm:$0xf]
    %v10453 = vld [vmem:[#allocation12 + $0x1c0] sm:$0xf]
    %v10454 = vld [vmem:[#allocation12 + $0x1c4] sm:$0xf]
    %v10455 = vld [vmem:[#allocation12 + $0x1c8] sm:$0xf]
    %v10456 = vld [vmem:[#allocation12 + $0x1cc] sm:$0xf]
    %v10457 = vld [vmem:[#allocation12 + $0x1d0] sm:$0xf]
    %v10458 = vld [vmem:[#allocation12 + $0x1d4] sm:$0xf]
    %v10459 = vld [vmem:[#allocation12 + $0x1d8] sm:$0xf]
    %v10460 = vld [vmem:[#allocation12 + $0x1dc] sm:$0xf]
    %v10461 = vld [vmem:[#allocation12 + $0x1e0] sm:$0xf]
    %v10462 = vld [vmem:[#allocation12 + $0x1e4] sm:$0xf]
    %v10463 = vld [vmem:[#allocation12 + $0x1e8] sm:$0xf]
    %v10464 = vld [vmem:[#allocation12 + $0x1ec] sm:$0xf]
    %v10465 = vld [vmem:[#allocation12 + $0x1f0] sm:$0xf]
    %v10466 = vld [vmem:[#allocation12 + $0x1f4] sm:$0xf]
    %v10467 = vld [vmem:[#allocation12 + $0x1f8] sm:$0xf]
    %v10468 = vld [vmem:[#allocation12 + $0x1fc] sm:$0xf]
    %v10469 = vld [vmem:[#allocation12 + $0x200] sm:$0xf]
    %v10470 = vld [vmem:[#allocation12 + $0x204] sm:$0xf]
    %v10471 = vld [vmem:[#allocation12 + $0x208] sm:$0xf]
    %v10472 = vld [vmem:[#allocation12 + $0x20c] sm:$0xf]
    %v10473 = vld [vmem:[#allocation12 + $0x210] sm:$0xf]
    %v10474 = vld [vmem:[#allocation12 + $0x214] sm:$0xf]
    %v10475 = vld [vmem:[#allocation12 + $0x218] sm:$0xf]
    %v10476 = vld [vmem:[#allocation12 + $0x21c] sm:$0xf]
    %v10477 = vld [vmem:[#allocation12 + $0x220] sm:$0xf]
    %v10478 = vld [vmem:[#allocation12 + $0x224] sm:$0xf]
    %v10479 = vld [vmem:[#allocation12 + $0x228] sm:$0xf]
    %v10480 = vld [vmem:[#allocation12 + $0x22c] sm:$0xf]
    %v10481 = vld [vmem:[#allocation12 + $0x230] sm:$0xf]
    %v10482 = vld [vmem:[#allocation12 + $0x234] sm:$0xf]
    %v10483 = vld [vmem:[#allocation12 + $0x238] sm:$0xf]
    %v10484 = vld [vmem:[#allocation12 + $0x23c] sm:$0xf]
    %v10485 = vld [vmem:[#allocation12 + $0x240] sm:$0xf]
    %v10486 = vld [vmem:[#allocation12 + $0x244] sm:$0xf]
    %v10487 = vld [vmem:[#allocation12 + $0x248] sm:$0xf]
    %v10488 = vld [vmem:[#allocation12 + $0x24c] sm:$0xf]
    %v10489 = vld [vmem:[#allocation12 + $0x250] sm:$0xf]
    %v10490 = vld [vmem:[#allocation12 + $0x254] sm:$0xf]
    %v10491 = vld [vmem:[#allocation14] sm:$0x1]
    %v10493 = vperm.slane %v10491, 0
    %v10645 = vunpack.c.l.b16 %v10341
    %v10646 = vunpack.c.l.b16 %v10342
    %v10647 = vunpack.c.l.b16 %v10343
    %v10648 = vunpack.c.l.b16 %v10344
    %v10649 = vunpack.c.l.b16 %v10345
    %v10650 = vunpack.c.l.b16 %v10346
    %v10651 = vunpack.c.l.b16 %v10347
    %v10652 = vunpack.c.l.b16 %v10348
    %v10653 = vunpack.c.l.b16 %v10349
    %v10654 = vunpack.c.l.b16 %v10350
    %v10655 = vunpack.c.l.b16 %v10351
    %v10656 = vunpack.c.l.b16 %v10352
    %v10657 = vunpack.c.l.b16 %v10353
    %v10658 = vunpack.c.l.b16 %v10354
    %v10659 = vunpack.c.l.b16 %v10355
    %v10660 = vunpack.c.l.b16 %v10356
    %v10661 = vunpack.c.l.b16 %v10357
    %v10662 = vunpack.c.l.b16 %v10358
    %v10663 = vunpack.c.l.b16 %v10359
    %v10664 = vunpack.c.l.b16 %v10360
    %v10665 = vunpack.c.l.b16 %v10361
    %v10666 = vunpack.c.l.b16 %v10362
    %v10667 = vunpack.c.l.b16 %v10363
    %v10668 = vunpack.c.l.b16 %v10364
    %v10669 = vunpack.c.l.b16 %v10365
    %v10670 = vunpack.c.l.b16 %v10366
    %v10671 = vunpack.c.l.b16 %v10367
    %v10672 = vunpack.c.l.b16 %v10368
    %v10673 = vunpack.c.l.b16 %v10369
    %v10674 = vunpack.c.l.b16 %v10370
    %v10675 = vunpack.c.l.b16 %v10371
    %v10676 = vunpack.c.l.b16 %v10372
    %v10677 = vunpack.c.l.b16 %v10373
    %v10678 = vunpack.c.l.b16 %v10374
    %v10679 = vunpack.c.l.b16 %v10375
    %v10680 = vunpack.c.l.b16 %v10376
    %v10681 = vunpack.c.l.b16 %v10377
    %v10682 = vunpack.c.l.b16 %v10378
    %v10683 = vunpack.c.l.b16 %v10379
    %v10684 = vunpack.c.l.b16 %v10380
    %v10685 = vunpack.c.l.b16 %v10381
    %v10686 = vunpack.c.l.b16 %v10382
    %v10687 = vunpack.c.l.b16 %v10383
    %v10688 = vunpack.c.l.b16 %v10384
    %v10689 = vunpack.c.l.b16 %v10385
    %v10690 = vunpack.c.l.b16 %v10386
    %v10691 = vunpack.c.l.b16 %v10387
    %v10692 = vunpack.c.l.b16 %v10388
    %v10693 = vunpack.c.l.b16 %v10389
    %v10694 = vunpack.c.l.b16 %v10390
    %v10695 = vunpack.c.l.b16 %v10391
    %v10696 = vunpack.c.l.b16 %v10392
    %v10697 = vunpack.c.l.b16 %v10393
    %v10698 = vunpack.c.l.b16 %v10394
    %v10699 = vunpack.c.l.b16 %v10395
    %v10700 = vunpack.c.l.b16 %v10396
    %v10701 = vunpack.c.l.b16 %v10397
    %v10702 = vunpack.c.l.b16 %v10398
    %v10703 = vunpack.c.l.b16 %v10399
    %v10704 = vunpack.c.l.b16 %v10400
    %v10705 = vunpack.c.l.b16 %v10401
    %v10706 = vunpack.c.l.b16 %v10402
    %v10707 = vunpack.c.l.b16 %v10403
    %v10708 = vunpack.c.l.b16 %v10404
    %v10709 = vunpack.c.l.b16 %v10405
    %v10710 = vunpack.c.l.b16 %v10406
    %v10711 = vunpack.c.l.b16 %v10407
    %v10712 = vunpack.c.l.b16 %v10408
    %v10713 = vunpack.c.l.b16 %v10409
    %v10714 = vunpack.c.l.b16 %v10410
    %v10715 = vunpack.c.l.b16 %v10411
    %v10716 = vunpack.c.l.b16 %v10412
    %v10717 = vunpack.c.l.b16 %v10413
    %v10718 = vunpack.c.l.b16 %v10414
    %v10719 = vunpack.c.l.b16 %v10415
    %v10720 = vunpack.c.l.b16 %v10416
    %v10721 = vunpack.c.l.b16 %v10417
    %v10722 = vunpack.c.l.b16 %v10418
    %v10723 = vunpack.c.l.b16 %v10419
    %v10724 = vunpack.c.l.b16 %v10420
    %v10725 = vunpack.c.l.b16 %v10421
    %v10726 = vunpack.c.l.b16 %v10422
    %v10727 = vunpack.c.l.b16 %v10423
    %v10728 = vunpack.c.l.b16 %v10424
    %v10729 = vunpack.c.l.b16 %v10425
    %v10730 = vunpack.c.l.b16 %v10426
    %v10731 = vunpack.c.l.b16 %v10427
    %v10732 = vunpack.c.l.b16 %v10428
    %v10733 = vunpack.c.l.b16 %v10429
    %v10734 = vunpack.c.l.b16 %v10430
    %v10735 = vunpack.c.l.b16 %v10431
    %v10736 = vunpack.c.l.b16 %v10432
    %v10737 = vunpack.c.l.b16 %v10433
    %v10738 = vunpack.c.l.b16 %v10434
    %v10739 = vunpack.c.l.b16 %v10435
    %v10740 = vunpack.c.l.b16 %v10436
    %v10741 = vunpack.c.l.b16 %v10437
    %v10742 = vunpack.c.l.b16 %v10438
    %v10743 = vunpack.c.l.b16 %v10439
    %v10744 = vunpack.c.l.b16 %v10440
    %v10745 = vunpack.c.l.b16 %v10441
    %v10746 = vunpack.c.l.b16 %v10442
    %v10747 = vunpack.c.l.b16 %v10443
    %v10748 = vunpack.c.l.b16 %v10444
    %v10749 = vunpack.c.l.b16 %v10445
    %v10750 = vunpack.c.l.b16 %v10446
    %v10751 = vunpack.c.l.b16 %v10447
    %v10752 = vunpack.c.l.b16 %v10448
    %v10753 = vunpack.c.l.b16 %v10449
    %v10754 = vunpack.c.l.b16 %v10450
    %v10755 = vunpack.c.l.b16 %v10451
    %v10756 = vunpack.c.l.b16 %v10452
    %v10757 = vunpack.c.l.b16 %v10453
    %v10758 = vunpack.c.l.b16 %v10454
    %v10759 = vunpack.c.l.b16 %v10455
    %v10760 = vunpack.c.l.b16 %v10456
    %v10761 = vunpack.c.l.b16 %v10457
    %v10762 = vunpack.c.l.b16 %v10458
    %v10763 = vunpack.c.l.b16 %v10459
    %v10764 = vunpack.c.l.b16 %v10460
    %v10765 = vunpack.c.l.b16 %v10461
    %v10766 = vunpack.c.l.b16 %v10462
    %v10767 = vunpack.c.l.b16 %v10463
    %v10768 = vunpack.c.l.b16 %v10464
    %v10769 = vunpack.c.l.b16 %v10465
    %v10770 = vunpack.c.l.b16 %v10466
    %v10771 = vunpack.c.l.b16 %v10467
    %v10772 = vunpack.c.l.b16 %v10468
    %v10773 = vunpack.c.l.b16 %v10469
    %v10774 = vunpack.c.l.b16 %v10470
    %v10775 = vunpack.c.l.b16 %v10471
    %v10776 = vunpack.c.l.b16 %v10472
    %v10777 = vunpack.c.l.b16 %v10473
    %v10778 = vunpack.c.l.b16 %v10474
    %v10779 = vunpack.c.l.b16 %v10475
    %v10780 = vunpack.c.l.b16 %v10476
    %v10781 = vunpack.c.l.b16 %v10477
    %v10782 = vunpack.c.l.b16 %v10478
    %v10783 = vunpack.c.l.b16 %v10479
    %v10784 = vunpack.c.l.b16 %v10480
    %v10785 = vunpack.c.l.b16 %v10481
    %v10786 = vunpack.c.l.b16 %v10482
    %v10787 = vunpack.c.l.b16 %v10483
    %v10788 = vunpack.c.l.b16 %v10484
    %v10789 = vunpack.c.l.b16 %v10485
    %v10790 = vunpack.c.l.b16 %v10486
    %v10791 = vunpack.c.l.b16 %v10487
    %v10792 = vunpack.c.l.b16 %v10488
    %v10793 = vunpack.c.l.b16 %v10489
    %v10794 = vunpack.c.l.b16 %v10490
    %v10795 = vpack.c.b16 %v10646, %v10645
    %v10796 = vpack.c.b16 %v10648, %v10647
    %v10797 = vpack.c.b16 %v10650, %v10649
    %v10798 = vpack.c.b16 %v10652, %v10651
    %v10799 = vpack.c.b16 %v10654, %v10653
    %v10800 = vpack.c.b16 %v10656, %v10655
    %v10801 = vpack.c.b16 %v10658, %v10657
    %v10802 = vpack.c.b16 %v10660, %v10659
    %v10803 = vpack.c.b16 %v10662, %v10661
    %v10804 = vpack.c.b16 %v10664, %v10663
    %v10805 = vpack.c.b16 %v10666, %v10665
    %v10806 = vpack.c.b16 %v10668, %v10667
    %v10807 = vpack.c.b16 %v10670, %v10669
    %v10808 = vpack.c.b16 %v10672, %v10671
    %v10809 = vpack.c.b16 %v10674, %v10673
    %v10810 = vpack.c.b16 %v10676, %v10675
    %v10811 = vpack.c.b16 %v10678, %v10677
    %v10812 = vpack.c.b16 %v10680, %v10679
    %v10813 = vpack.c.b16 %v10682, %v10681
    %v10814 = vpack.c.b16 %v10684, %v10683
    %v10815 = vpack.c.b16 %v10686, %v10685
    %v10816 = vpack.c.b16 %v10688, %v10687
    %v10817 = vpack.c.b16 %v10690, %v10689
    %v10818 = vpack.c.b16 %v10692, %v10691
    %v10819 = vpack.c.b16 %v10694, %v10693
    %v10820 = vpack.c.b16 %v10696, %v10695
    %v10821 = vpack.c.b16 %v10698, %v10697
    %v10822 = vpack.c.b16 %v10700, %v10699
    %v10823 = vpack.c.b16 %v10702, %v10701
    %v10824 = vpack.c.b16 %v10704, %v10703
    %v10825 = vpack.c.b16 %v10706, %v10705
    %v10826 = vpack.c.b16 %v10708, %v10707
    %v10827 = vpack.c.b16 %v10710, %v10709
    %v10828 = vpack.c.b16 %v10712, %v10711
    %v10829 = vpack.c.b16 %v10714, %v10713
    %v10830 = vpack.c.b16 %v10716, %v10715
    %v10831 = vpack.c.b16 %v10718, %v10717
    %v10832 = vpack.c.b16 %v10720, %v10719
    %v10833 = vpack.c.b16 %v10722, %v10721
    %v10834 = vpack.c.b16 %v10724, %v10723
    %v10835 = vpack.c.b16 %v10726, %v10725
    %v10836 = vpack.c.b16 %v10728, %v10727
    %v10837 = vpack.c.b16 %v10730, %v10729
    %v10838 = vpack.c.b16 %v10732, %v10731
    %v10839 = vpack.c.b16 %v10734, %v10733
    %v10840 = vpack.c.b16 %v10736, %v10735
    %v10841 = vpack.c.b16 %v10738, %v10737
    %v10842 = vpack.c.b16 %v10740, %v10739
    %v10843 = vpack.c.b16 %v10742, %v10741
    %v10844 = vpack.c.b16 %v10744, %v10743
    %v10845 = vpack.c.b16 %v10746, %v10745
    %v10846 = vpack.c.b16 %v10748, %v10747
    %v10847 = vpack.c.b16 %v10750, %v10749
    %v10848 = vpack.c.b16 %v10752, %v10751
    %v10849 = vpack.c.b16 %v10754, %v10753
    %v10850 = vpack.c.b16 %v10756, %v10755
    %v10851 = vpack.c.b16 %v10758, %v10757
    %v10852 = vpack.c.b16 %v10760, %v10759
    %v10853 = vpack.c.b16 %v10762, %v10761
    %v10854 = vpack.c.b16 %v10764, %v10763
    %v10855 = vpack.c.b16 %v10766, %v10765
    %v10856 = vpack.c.b16 %v10768, %v10767
    %v10857 = vpack.c.b16 %v10770, %v10769
    %v10858 = vpack.c.b16 %v10772, %v10771
    %v10859 = vpack.c.b16 %v10774, %v10773
    %v10860 = vpack.c.b16 %v10776, %v10775
    %v10861 = vpack.c.b16 %v10778, %v10777
    %v10862 = vpack.c.b16 %v10780, %v10779
    %v10863 = vpack.c.b16 %v10782, %v10781
    %v10864 = vpack.c.b16 %v10784, %v10783
    %v10865 = vpack.c.b16 %v10786, %v10785
    %v10866 = vpack.c.b16 %v10788, %v10787
    %v10867 = vpack.c.b16 %v10790, %v10789
    %v10868 = vpack.c.b16 %v10792, %v10791
    %v10869 = vpack.c.b16 %v10794, %v10793
    %v10946 = vsel %vm8865, %v10340, 0
    %10948 = vmatpush.bf16.msra.mxu0 %v10802
    %10949 = vmatpush.bf16.msra.mxu0 %v10801
    %10950 = vmatpush.bf16.msra.mxu0 %v10800
    %10951 = vmatpush.bf16.msra.mxu0 %v10799
    %10952 = vmatpush.bf16.msra.mxu0 %v10798
    %10953 = vmatpush.bf16.msra.mxu0 %v10797
    %10954 = vmatpush.bf16.msra.mxu0 %v10796
    %10955 = vmatpush.bf16.msra.mxu0 %v10795
    %10956 = vmatmul.bf16.gmra.mxu0 %v10331
    %v10957 = vpop.f32.mrf.mxu0
    %v10958 = vadd.f32 %v10493, %v10957
    %v10959 = vpop.f32.mrf.mxu0
    %10960 = vdwg.mxu0
    %10961 = vmatpush.bf16.msra.mxu0 %v10810
    %10962 = vmatpush.bf16.msra.mxu0 %v10809
    %10963 = vmatpush.bf16.msra.mxu0 %v10808
    %10964 = vmatpush.bf16.msra.mxu0 %v10807
    %10965 = vmatpush.bf16.msra.mxu0 %v10806
    %10966 = vmatpush.bf16.msra.mxu0 %v10805
    %10967 = vmatpush.bf16.msra.mxu0 %v10804
    %10968 = vmatpush.bf16.msra.mxu0 %v10803
    %10969 = vmatmul.bf16.gmra.mxu0 %v10332
    %v10970 = vpop.f32.mrf.mxu0
    %v10971 = vadd.f32 %v10958, %v10970
    %v10972 = vpop.f32.mrf.mxu0
    %10973 = vdwg.mxu0
    %10974 = vmatpush.bf16.msra.mxu0 %v10818
    %10975 = vmatpush.bf16.msra.mxu0 %v10817
    %10976 = vmatpush.bf16.msra.mxu0 %v10816
    %10977 = vmatpush.bf16.msra.mxu0 %v10815
    %10978 = vmatpush.bf16.msra.mxu0 %v10814
    %10979 = vmatpush.bf16.msra.mxu0 %v10813
    %10980 = vmatpush.bf16.msra.mxu0 %v10812
    %10981 = vmatpush.bf16.msra.mxu0 %v10811
    %10982 = vmatmul.bf16.gmra.mxu0 %v10333
    %v10983 = vpop.f32.mrf.mxu0
    %v10984 = vadd.f32 %v10971, %v10983
    %v10985 = vpop.f32.mrf.mxu0
    %10986 = vdwg.mxu0
    %10987 = vmatpush.bf16.msra.mxu0 %v10826
    %10988 = vmatpush.bf16.msra.mxu0 %v10825
    %10989 = vmatpush.bf16.msra.mxu0 %v10824
    %10990 = vmatpush.bf16.msra.mxu0 %v10823
    %10991 = vmatpush.bf16.msra.mxu0 %v10822
    %10992 = vmatpush.bf16.msra.mxu0 %v10821
    %10993 = vmatpush.bf16.msra.mxu0 %v10820
    %10994 = vmatpush.bf16.msra.mxu0 %v10819
    %10995 = vmatmul.bf16.gmra.mxu0 %v10334
    %v10996 = vpop.f32.mrf.mxu0
    %v10997 = vadd.f32 %v10984, %v10996
    %v10998 = vpop.f32.mrf.mxu0
    %10999 = vdwg.mxu0
    %11000 = vmatpush.bf16.msra.mxu0 %v10834
    %11001 = vmatpush.bf16.msra.mxu0 %v10833
    %11002 = vmatpush.bf16.msra.mxu0 %v10832
    %11003 = vmatpush.bf16.msra.mxu0 %v10831
    %11004 = vmatpush.bf16.msra.mxu0 %v10830
    %11005 = vmatpush.bf16.msra.mxu0 %v10829
    %11006 = vmatpush.bf16.msra.mxu0 %v10828
    %11007 = vmatpush.bf16.msra.mxu0 %v10827
    %11008 = vmatmul.bf16.gmra.mxu0 %v10335
    %v11009 = vpop.f32.mrf.mxu0
    %v11010 = vadd.f32 %v10997, %v11009
    %v11011 = vpop.f32.mrf.mxu0
    %11012 = vdwg.mxu0
    %11013 = vmatpush.bf16.msra.mxu0 %v10842
    %11014 = vmatpush.bf16.msra.mxu0 %v10841
    %11015 = vmatpush.bf16.msra.mxu0 %v10840
    %11016 = vmatpush.bf16.msra.mxu0 %v10839
    %11017 = vmatpush.bf16.msra.mxu0 %v10838
    %11018 = vmatpush.bf16.msra.mxu0 %v10837
    %11019 = vmatpush.bf16.msra.mxu0 %v10836
    %11020 = vmatpush.bf16.msra.mxu0 %v10835
    %11021 = vmatmul.bf16.gmra.mxu0 %v10336
    %v11022 = vpop.f32.mrf.mxu0
    %v11023 = vadd.f32 %v11010, %v11022
    %v11024 = vpop.f32.mrf.mxu0
    %11025 = vdwg.mxu0
    %11026 = vmatpush.bf16.msra.mxu0 %v10850
    %11027 = vmatpush.bf16.msra.mxu0 %v10849
    %11028 = vmatpush.bf16.msra.mxu0 %v10848
    %11029 = vmatpush.bf16.msra.mxu0 %v10847
    %11030 = vmatpush.bf16.msra.mxu0 %v10846
    %11031 = vmatpush.bf16.msra.mxu0 %v10845
    %11032 = vmatpush.bf16.msra.mxu0 %v10844
    %11033 = vmatpush.bf16.msra.mxu0 %v10843
    %11034 = vmatmul.bf16.gmra.mxu0 %v10337
    %v11035 = vpop.f32.mrf.mxu0
    %v11036 = vadd.f32 %v11023, %v11035
    %v11037 = vpop.f32.mrf.mxu0
    %11038 = vdwg.mxu0
    %11039 = vmatpush.bf16.msra.mxu0 %v10858
    %11040 = vmatpush.bf16.msra.mxu0 %v10857
    %11041 = vmatpush.bf16.msra.mxu0 %v10856
    %11042 = vmatpush.bf16.msra.mxu0 %v10855
    %11043 = vmatpush.bf16.msra.mxu0 %v10854
    %11044 = vmatpush.bf16.msra.mxu0 %v10853
    %11045 = vmatpush.bf16.msra.mxu0 %v10852
    %11046 = vmatpush.bf16.msra.mxu0 %v10851
    %11047 = vmatmul.bf16.gmra.mxu0 %v10338
    %v11048 = vpop.f32.mrf.mxu0
    %v11049 = vadd.f32 %v11036, %v11048
    %v11050 = vpop.f32.mrf.mxu0
    %11051 = vdwg.mxu0
    %11052 = vmatpush.bf16.msra.mxu0 %v10866
    %11053 = vmatpush.bf16.msra.mxu0 %v10865
    %11054 = vmatpush.bf16.msra.mxu0 %v10864
    %11055 = vmatpush.bf16.msra.mxu0 %v10863
    %11056 = vmatpush.bf16.msra.mxu0 %v10862
    %11057 = vmatpush.bf16.msra.mxu0 %v10861
    %11058 = vmatpush.bf16.msra.mxu0 %v10860
    %11059 = vmatpush.bf16.msra.mxu0 %v10859
    %11060 = vmatmul.bf16.gmra.mxu0 %v10339
    %v11061 = vpop.f32.mrf.mxu0
    %v11062 = vadd.f32 %v11049, %v11061
    %v11063 = vpop.f32.mrf.mxu0
    %11064 = vdwg.mxu0
    %11065 = vmatpush.bf16.msra.mxu0 0
    %11066 = vmatpush.bf16.msra.mxu0 0
    %11067 = vmatpush.bf16.msra.mxu0 0
    %11068 = vmatpush.bf16.msra.mxu0 0
    %11069 = vmatpush.bf16.msra.mxu0 0
    %11070 = vmatpush.bf16.msra.mxu0 %v10869
    %11071 = vmatpush.bf16.msra.mxu0 %v10868
    %11072 = vmatpush.bf16.msra.mxu0 %v10867
    %11073 = vmatmul.bf16.gmra.mxu0 %v10946
    %v11074 = vpop.f32.mrf.mxu0
    %v11075 = vadd.f32 %v11062, %v11074
    %v11076 = vpop.f32.mrf.mxu0
    %11077 = vdwg.mxu0
    %11078 = vst [vmem:[#allocation15] sm:$0xff] %v11075
    // Predicated region
    $region62: #{tpu_custom_call.1} parent=1 // pred_check
      _
    $region63: #{tpu_custom_call.1} parent=1 // pred_check_branch
      %11080 = sbr.rel (0) target = $region65
    $region64: #{tpu_custom_call.1} parent=1 // pred_region
      %11082 = vsyncadd [#allocation5], 0
      %s11084 = sshll.u32 [#allocation15], 4
      %s11085 = int_to_ptr.vmem [resolvable:$true] %s11084
      %s11086 = sshll.u32 %s8, 4
      %s11087 = int_to_ptr.hbm [resolvable:$true] %s11086
      %11089 = dma.vmem_to_hbm [thread:$0]  %s11085, 128, %s11087, [#allocation5]
    $region65: #{tpu_custom_call.1} parent=1 // pred_fallthru
      _
    // Predicated region
    $region66: #{tpu_custom_call.1} parent=1 // pred_check
      _
    $region67: #{tpu_custom_call.1} parent=1 // pred_check_branch
      %11091 = sbr.rel (0) target = $region69
    $region68: #{tpu_custom_call.1} parent=1 // pred_region
      %11093 = dma.done [#allocation5], 128
    $region69: #{tpu_custom_call.1} parent=1 // pred_fallthru
      _
    %11094 = vsyncpa [#allocation4], 1
    %11095 = vsyncpa [#allocation7], 1
    %11096 = vsyncpa [#allocation10], 1
    %11097 = vsyncpa [#allocation13], 1
    %11098 = vsyncpa [#allocation5], 1

</llo_original>
